<compile_context>
chip_gen: v5e
topology: v5e:2x2
jax: 0.10.0
libtpu: 0.0.40
codegen_flags: <defaults>
</compile_context>

<pallas_src>
import functools
import math

import jax
import jax.numpy as jnp
from jax import lax
from jax.experimental import pallas as pl
from jax.experimental.pallas import tpu as pltpu

_REF_PREC = lax.Precision.HIGHEST    # reference only (kernel uses bf16 MXU operands)
COUT_PAD = 128                       # lane-dense matmul N for the final 1x1 conv
_VMEM_LIMIT = 48 * 1024 * 1024       # scoped-VMEM limit, headroom below v7x's 64 MiB


# ----------------------------------------------------------------------------
# In-kernel helpers (operate on VALUES, not refs -> safe for Mosaic lowering)
# ----------------------------------------------------------------------------
def _zero_pad_hw(x):
    """(B, H, W, C) -> (B, H+2, W+2, C), zero padding via concatenation (stays in VMEM)."""
    B, H, W, C = x.shape
    zc = jnp.zeros((B, H, 1, C), x.dtype)
    x = jnp.concatenate([zc, x, zc], axis=2)
    zr = jnp.zeros((B, 1, W + 2, C), x.dtype)
    return jnp.concatenate([zr, x, zr], axis=1)


def _conv3x3_taps(xp, w_ref):
    """3x3 conv as 9 accumulating (M, C) x (C, Cout) MXU dots on shifted views.

    xp:    (B, H+2, W+2, C) zero-padded activation, already bf16.
    w_ref: (9*C, Cout) bf16 weight ref, rows tap-major (k = 3*dy + dx).
    Returns an f32 (B*H*W, Cout) result (no 9*C lane-concat im2col buffer).
    """
    B, Hp, Wp, C = xp.shape
    H, W = Hp - 2, Wp - 2
    acc = None
    for dy in range(3):
        for dx in range(3):
            k = 3 * dy + dx
            tap = xp[:, dy:dy + H, dx:dx + W, :].reshape(B * H * W, C)
            wk = w_ref[pl.ds(k * C, C), :]
            d = jnp.dot(tap, wk, preferred_element_type=jnp.float32)
            acc = d if acc is None else acc + d
    return acc


def _maxpool2x2(x):
    """(B, H, W, C) -> (B, H//2, W//2, C), 2x2 / stride-2 max pool."""
    B, H, W, C = x.shape
    x = x.reshape(B, H // 2, 2, W // 2, 2, C)
    return jnp.max(jnp.max(x, axis=4), axis=2)


def _interleave2x2(p00, p01, p10, p11):
    """Phases (B, Hs, Ws, C) -> (B, 2Hs, 2Ws, C), out[:, 2i+di, 2j+dj] = p_{di,dj}[:, i, j]."""
    B, Hs, Ws, C = p00.shape
    r0 = jnp.stack([p00, p01], axis=3).reshape(B, Hs, 2 * Ws, C)   # even output rows
    r1 = jnp.stack([p10, p11], axis=3).reshape(B, Hs, 2 * Ws, C)   # odd output rows
    return jnp.stack([r0, r1], axis=2).reshape(B, 2 * Hs, 2 * Ws, C)


# ----------------------------------------------------------------------------
# Fused Pallas kernel: one batch tile per grid step, everything resident on-chip
# ----------------------------------------------------------------------------
def _light_unet_kernel(xp_ref, w1_ref, b1_ref, w2_ref, b2_ref, w3_ref, b3_ref,
                       w4d_ref, w4e_ref, b4_ref, w5_ref, b5_ref, o_ref):
    B, H, W, NC = o_ref.shape
    Hs, Ws = H // 2, W // 2
    C1 = b1_ref.shape[-1]            # 32
    Cup = w3_ref.shape[-1] // 4      # 32

    # ---- encoder_conv1 (3x3, pad=1) + ReLU: one bf16 dot on wrapper-built patches
    patches = xp_ref[...].reshape(B * H * W, xp_ref.shape[-1])         # bf16 (M, 9*Cin)
    enc1 = jnp.dot(patches, w1_ref[...], preferred_element_type=jnp.float32)
    enc1 = jnp.maximum(enc1 + b1_ref[...], 0.0).reshape(B, H, W, C1)   # f32

    # ---- maxpool 2x2 -> encoder_conv2 (3x3, pad=1) + ReLU (per-tap dots) ----
    pooled = _maxpool2x2(enc1)                                         # (B, Hs, Ws, 32)
    enc2 = _conv3x3_taps(_zero_pad_hw(pooled).astype(jnp.bfloat16), w2_ref)
    enc2 = jnp.maximum(enc2 + b2_ref[...], 0.0)                        # (B*Hs*Ws, 64) f32

    # ---- decoder_upconv1: ConvTranspose2d(k=2, s=2) = ONE lane-dense (64,128) dot,
    #      stride-2 phase interleave done in-register
    up = jnp.dot(enc2.astype(jnp.bfloat16), w3_ref[...],
                 preferred_element_type=jnp.float32) + b3_ref[...]     # (B*Hs*Ws, 128)
    phases = [up[:, k * Cup:(k + 1) * Cup].reshape(B, Hs, Ws, Cup) for k in range(4)]
    dec1 = _interleave2x2(*phases)                                     # (B, H, W, 32) f32
    # F.interpolate(size=enc1.shape[-2:], mode='bilinear') is the identity here
    # because H, W are even (upconv output already matches enc1's size).

    # ---- decoder_conv1 (3x3, pad=1) on concat([dec1, enc1]) + ReLU ----------
    # concat never materialized: weight split along input channels, two per-tap
    # accumulations summed into the same f32 result
    dec2 = (_conv3x3_taps(_zero_pad_hw(dec1).astype(jnp.bfloat16), w4d_ref) +
            _conv3x3_taps(_zero_pad_hw(enc1).astype(jnp.bfloat16), w4e_ref))
    dec2 = jnp.maximum(dec2 + b4_ref[...], 0.0)                        # (B*H*W, 32) f32

    # ---- decoder_conv2 (1x1): lane-dense N=128 dot, slim num_classes-lane store
    out = jnp.dot(dec2.astype(jnp.bfloat16), w5_ref[...],
                  preferred_element_type=jnp.float32) + b5_ref[...]
    o_ref[...] = out[:, :NC].reshape(B, H, W, NC).astype(o_ref.dtype)


# ----------------------------------------------------------------------------
# Parameters (PyTorch-default-style uniform init) + matmul-ready bf16 packing
# ----------------------------------------------------------------------------
def init_params(key, in_channels, num_classes):
    ks = jax.random.split(key, 10)

    def conv_init(kw, kb, kh, kwd, cin, cout):
        bound = 1.0 / math.sqrt(cin * kh * kwd)
        w = jax.random.uniform(kw, (kh, kwd, cin, cout), jnp.float32, -bound, bound)
        b = jax.random.uniform(kb, (cout,), jnp.float32, -bound, bound)
        return w, b

    w1, b1 = conv_init(ks[0], ks[1], 3, 3, in_channels, 32)     # encoder_conv1
    w2, b2 = conv_init(ks[2], ks[3], 3, 3, 32, 64)              # encoder_conv2
    bound = 1.0 / math.sqrt(32 * 2 * 2)                         # decoder_upconv1
    wt3 = jax.random.uniform(ks[4], (64, 32, 2, 2), jnp.float32, -bound, bound)
    b3 = jax.random.uniform(ks[5], (32,), jnp.float32, -bound, bound)
    w4, b4 = conv_init(ks[6], ks[7], 3, 3, 64, 32)              # decoder_conv1
    w5, b5 = conv_init(ks[8], ks[9], 1, 1, 32, num_classes)     # decoder_conv2
    w5 = w5.reshape(32, num_classes)
    return dict(w1=w1, b1=b1, w2=w2, b2=b2, wt3=wt3, b3=b3,
                w4=w4, b4=b4, w5=w5, b5=b5)


def pack_params(params, cout_pad=COUT_PAD):
    """Reshape/cast weights into the matmul-ready bf16 forms the fused kernel consumes."""
    bf16 = jnp.bfloat16
    p = {}
    p["w1"] = params["w1"].reshape(-1, params["w1"].shape[-1]).astype(bf16)  # (9*Cin, 32)
    p["b1"] = params["b1"].reshape(1, -1)
    p["w2"] = params["w2"].reshape(-1, params["w2"].shape[-1]).astype(bf16)  # (288, 64)
    p["b2"] = params["b2"].reshape(1, -1)
    # torch ConvTranspose2d weight (cin=64, cout=32, 2, 2) -> (64, 4*32),
    # columns ordered k*32 + o with k = 2*di + dj
    wt = params["wt3"]
    p["w3"] = jnp.transpose(wt, (0, 2, 3, 1)).reshape(wt.shape[0], -1).astype(bf16)
    p["b3"] = jnp.tile(params["b3"].reshape(1, -1), (1, 4))                  # (1, 128)
    # decoder_conv1 weight split along its 64 input channels: [dec1 | enc1]
    w4 = params["w4"]
    p["w4d"] = w4[:, :, :32, :].reshape(-1, w4.shape[-1]).astype(bf16)       # (288, 32)
    p["w4e"] = w4[:, :, 32:, :].reshape(-1, w4.shape[-1]).astype(bf16)       # (288, 32)
    p["b4"] = params["b4"].reshape(1, -1)
    # final 1x1 conv: lane-dense matmul N (store is sliced to num_classes in-kernel)
    w5 = params["w5"]
    nc = w5.shape[-1]
    p["w5"] = jnp.pad(w5, ((0, 0), (0, cout_pad - nc))).astype(bf16)         # (32, 128)
    p["b5"] = jnp.pad(params["b5"].reshape(1, -1), ((0, 0), (0, cout_pad - nc)))
    return p


# ----------------------------------------------------------------------------
# Forward pass (matches LightUNet.forward)
# ----------------------------------------------------------------------------
def _im2col_input(x_nhwc):
    """NHWC input -> (N, H*W, 9*Cin) bf16 patches.  One cheap XLA hoist so the
    kernel's input DMA is lane-dense instead of a Cin=4-wide, ~32x lane-padded block."""
    N, H, W, C = x_nhwc.shape
    xp = jnp.pad(x_nhwc.astype(jnp.bfloat16), ((0, 0), (1, 1), (1, 1), (0, 0)))
    cols = [xp[:, dy:dy + H, dx:dx + W, :] for dy in range(3) for dx in range(3)]
    return jnp.concatenate(cols, axis=-1).reshape(N, H * W, 9 * C)


def _pick_batch_tile(n):
    """Largest batch tile <= 8 that divides N and leaves >= 2 grid steps
    (keeps both v7x TensorCores busy, amortizes per-grid-step overhead)."""
    if n <= 1:
        return 1
    for bt in range(min(8, n // 2), 0, -1):
        if n % bt == 0:
            return bt
    return 1


def light_unet_forward(packed, x_nchw, *, num_classes):
    x = jnp.transpose(x_nchw, (0, 2, 3, 1)).astype(jnp.float32)      # NCHW -> NHWC
    N, H, W, Cin = x.shape
    if H % 2 or W % 2:
        # TODO(synk): odd spatial sizes need the general bilinear F.interpolate path.
        raise NotImplementedError("LightUNet Pallas kernel requires even H and W")
    # TODO(synk): for large images (whole-image residency caps near ~128x128 on
    # v7x's 64 MiB VMEM) add a second "parallel" grid axis over spatial row bands
    # with a 1-row halo instead of the whole-image-per-step layout used here.

    patches = _im2col_input(x)                                       # (N, H*W, 9*Cin) bf16
    bt = _pick_batch_tile(N)

    def full(shape):
        nd = len(shape)
        return pl.BlockSpec(shape, lambda n, _nd=nd: (0,) * _nd)

    out = pl.pallas_call(
        _light_unet_kernel,
        out_shape=jax.ShapeDtypeStruct((N, H, W, num_classes), jnp.float32),
        grid=(N // bt,),
        in_specs=[
            pl.BlockSpec((bt, H * W, 9 * Cin), lambda n: (n, 0, 0)),
            full(packed["w1"].shape), full(packed["b1"].shape),
            full(packed["w2"].shape), full(packed["b2"].shape),
            full(packed["w3"].shape), full(packed["b3"].shape),
            full(packed["w4d"].shape), full(packed["w4e"].shape),
            full(packed["b4"].shape),
            full(packed["w5"].shape), full(packed["b5"].shape),
        ],
        out_specs=pl.BlockSpec((bt, H, W, num_classes), lambda n: (n, 0, 0, 0)),
        compiler_params=pltpu.CompilerParams(
            dimension_semantics=("parallel",),       # v7x: shard batch tiles over both TCs
            vmem_limit_bytes=_VMEM_LIMIT),
    )(patches, packed["w1"], packed["b1"], packed["w2"], packed["b2"],
      packed["w3"], packed["b3"], packed["w4d"], packed["w4e"], packed["b4"],
      packed["w5"], packed["b5"])

    return jnp.transpose(out, (0, 3, 1, 2))          # tiny (num_classes-lane) NHWC -> NCHW


# ----------------------------------------------------------------------------
# Pure-JAX f32 reference (spec-faithful, for the correctness check)
# ----------------------------------------------------------------------------
def reference_forward(params, x_nchw):
    dn = ("NHWC", "HWIO", "NHWC")

    def conv(x, w, b, pad):
        y = lax.conv_general_dilated(x, w, (1, 1), ((pad, pad), (pad, pad)),
                                     dimension_numbers=dn, precision=_REF_PREC)
        return y + b.reshape(1, 1, 1, -1)

    x = jnp.transpose(x_nchw, (0, 2, 3, 1))
    enc1 = jax.nn.relu(conv(x, params["w1"], params["b1"], 1))
    pooled = lax.reduce_window(enc1, -jnp.inf, lax.max,
                               (1, 2, 2, 1), (1, 2, 2, 1), "VALID")
    enc2 = jax.nn.relu(conv(pooled, params["w2"], params["b2"], 1))
    N, Hs, Ws, _ = enc2.shape
    w3p = jnp.transpose(params["wt3"], (2, 3, 0, 1)).reshape(4, 64, 32)  # (k, ci, co)
    y = jnp.einsum("nhwc,kco->nhwko", enc2, w3p, precision=_REF_PREC)
    y = y + params["b3"].reshape(1, 1, 1, 1, -1)
    dec1 = y.reshape(N, Hs, Ws, 2, 2, 32).transpose(0, 1, 3, 2, 4, 5)
    dec1 = dec1.reshape(N, 2 * Hs, 2 * Ws, 32)
    # bilinear resize to enc1's size is the identity for even H, W
    cat = jnp.concatenate([dec1, enc1], axis=-1)
    dec2 = jax.nn.relu(conv(cat, params["w4"], params["b4"], 1))
    out = conv(dec2, params["w5"].reshape(1, 1, 32, -1), params["b5"], 0)
    return jnp.transpose(out, (0, 3, 1, 2))


# ----------------------------------------------------------------------------
if __name__ == "__main__":
    key = jax.random.PRNGKey(0)
    kp, kx = jax.random.split(key)

    in_channels, num_classes = 4, 3
    N, H, W = 2, 16, 16

    params = init_params(kp, in_channels, num_classes)
    packed = pack_params(params)
    x = jax.random.normal(kx, (N, in_channels, H, W), jnp.float32)   # NCHW input

    fwd = jax.jit(functools.partial(light_unet_forward, num_classes=num_classes))
    out = jax.block_until_ready(fwd(packed, x))
    assert out.shape == (N, num_classes, H, W), out.shape

    ref = reference_forward(params, x)
    # bf16 MXU operands (f32 accumulate) vs the f32 HIGHEST-precision reference.
    max_err = float(jnp.max(jnp.abs(out - ref)))
    assert jnp.allclose(out, ref, atol=3e-2, rtol=3e-2), max_err

    print("KERNEL_OK")
</pallas_src>

<mosaic_0001>
module attributes {stable_mosaic.version = 11 : i64} {
  func.func @_light_unet_kernel(%arg0: i32, %arg1: memref<1x256x36xbf16, #tpu.memory_space<vmem>>, %arg2: memref<36x32xbf16, #tpu.memory_space<vmem>>, %arg3: memref<1x32xf32, #tpu.memory_space<vmem>>, %arg4: memref<288x64xbf16, #tpu.memory_space<vmem>>, %arg5: memref<1x64xf32, #tpu.memory_space<vmem>>, %arg6: memref<64x128xbf16, #tpu.memory_space<vmem>>, %arg7: memref<1x128xf32, #tpu.memory_space<vmem>>, %arg8: memref<288x32xbf16, #tpu.memory_space<vmem>>, %arg9: memref<288x32xbf16, #tpu.memory_space<vmem>>, %arg10: memref<1x32xf32, #tpu.memory_space<vmem>>, %arg11: memref<32x128xbf16, #tpu.memory_space<vmem>>, %arg12: memref<1x128xf32, #tpu.memory_space<vmem>>, %arg13: memref<1x16x16x3xf32, #tpu.memory_space<vmem>>) attributes {dimension_semantics = [#tpu.dimension_semantics<parallel>], iteration_bounds = array<i64: 2>, scalar_prefetch = 0 : i64, scratch_operands = 0 : i64, tpu.core_type = #tpu.core_type<tc>, window_params = [{transform_indices = @transform_0, window_bounds = array<i64: 1, 256, 36>}, {pipeline_mode = #tpu.pipeline_mode<synchronous>, transform_indices = @transform_1, window_bounds = array<i64: 36, 32>}, {pipeline_mode = #tpu.pipeline_mode<synchronous>, transform_indices = @transform_2, window_bounds = array<i64: 1, 32>}, {pipeline_mode = #tpu.pipeline_mode<synchronous>, transform_indices = @transform_3, window_bounds = array<i64: 288, 64>}, {pipeline_mode = #tpu.pipeline_mode<synchronous>, transform_indices = @transform_4, window_bounds = array<i64: 1, 64>}, {pipeline_mode = #tpu.pipeline_mode<synchronous>, transform_indices = @transform_5, window_bounds = array<i64: 64, 128>}, {pipeline_mode = #tpu.pipeline_mode<synchronous>, transform_indices = @transform_6, window_bounds = array<i64: 1, 128>}, {pipeline_mode = #tpu.pipeline_mode<synchronous>, transform_indices = @transform_7, window_bounds = array<i64: 288, 32>}, {pipeline_mode = #tpu.pipeline_mode<synchronous>, transform_indices = @transform_8, window_bounds = array<i64: 288, 32>}, {pipeline_mode = #tpu.pipeline_mode<synchronous>, transform_indices = @transform_9, window_bounds = array<i64: 1, 32>}, {pipeline_mode = #tpu.pipeline_mode<synchronous>, transform_indices = @transform_10, window_bounds = array<i64: 32, 128>}, {pipeline_mode = #tpu.pipeline_mode<synchronous>, transform_indices = @transform_11, window_bounds = array<i64: 1, 128>}, {transform_indices = @transform_12, window_bounds = array<i64: 1, 16, 16, 3>}]} {
    %c0 = arith.constant 0 : index
    %c0_0 = arith.constant 0 : index
    %c0_1 = arith.constant 0 : index
    %0 = vector.load %arg1[%c0, %c0_0, %c0_1] : memref<1x256x36xbf16, #tpu.memory_space<vmem>>, vector<1x256x36xbf16>
    %1 = vector.shape_cast %0 : vector<1x256x36xbf16> to vector<256x36xbf16>
    %c0_2 = arith.constant 0 : index
    %c0_3 = arith.constant 0 : index
    %2 = vector.load %arg2[%c0_2, %c0_3] : memref<36x32xbf16, #tpu.memory_space<vmem>>, vector<36x32xbf16>
    %cst = arith.constant dense<0.000000e+00> : vector<256x32xf32>
    %3 = tpu.matmul %1, %2, %cst {dimension_numbers = #tpu.dot_dimension_numbers<[1], [0], [0], [1], [0, 0, 1, 1], [], []>} : vector<256x36xbf16>, vector<36x32xbf16>, vector<256x32xf32> -> vector<256x32xf32>
    %c0_4 = arith.constant 0 : index
    %c0_5 = arith.constant 0 : index
    %4 = vector.load %arg3[%c0_4, %c0_5] : memref<1x32xf32, #tpu.memory_space<vmem>>, vector<1x32xf32>
    %5 = vector.broadcast %4 : vector<1x32xf32> to vector<256x32xf32>
    %6 = arith.addf %3, %5 : vector<256x32xf32>
    %cst_6 = arith.constant 0.000000e+00 : f32
    %7 = vector.broadcast %cst_6 : f32 to vector<256x32xf32>
    %8 = arith.maximumf %6, %7 : vector<256x32xf32>
    %9 = vector.shape_cast %8 : vector<256x32xf32> to vector<1x16x16x32xf32>
    %10 = vector.shape_cast %9 : vector<1x16x16x32xf32> to vector<1x8x2x8x2x32xf32>
    %cst_7 = arith.constant dense<0xFF800000> : vector<1x8x2x8x32xf32>
    %11 = vector.multi_reduction <maximumf>, %10, %cst_7 [4] : vector<1x8x2x8x2x32xf32> to vector<1x8x2x8x32xf32>
    %cst_8 = arith.constant dense<0xFF800000> : vector<1x8x8x32xf32>
    %12 = vector.multi_reduction <maximumf>, %11, %cst_8 [2] : vector<1x8x2x8x32xf32> to vector<1x8x8x32xf32>
    %cst_9 = arith.constant 0.000000e+00 : f32
    %13 = vector.broadcast %cst_9 : f32 to vector<1x8x1x32xf32>
    %14 = tpu.concatenate %13, %12, %13 in 2 : vector<1x8x1x32xf32>, vector<1x8x8x32xf32>, vector<1x8x1x32xf32> -> vector<1x8x10x32xf32>
    %cst_10 = arith.constant 0.000000e+00 : f32
    %15 = vector.broadcast %cst_10 : f32 to vector<1x1x10x32xf32>
    %16 = tpu.concatenate %15, %14, %15 in 1 : vector<1x1x10x32xf32>, vector<1x8x10x32xf32>, vector<1x1x10x32xf32> -> vector<1x10x10x32xf32>
    %17 = arith.truncf %16 : vector<1x10x10x32xf32> to vector<1x10x10x32xbf16>
    %18 = vector.extract_strided_slice %17 {offsets = [0, 0, 0, 0], sizes = [1, 8, 8, 32], strides = [1, 1, 1, 1]} : vector<1x10x10x32xbf16> to vector<1x8x8x32xbf16>
    %19 = vector.shape_cast %18 : vector<1x8x8x32xbf16> to vector<64x32xbf16>
    %c0_11 = arith.constant 0 : index
    %c0_12 = arith.constant 0 : index
    %20 = vector.load %arg4[%c0_11, %c0_12] : memref<288x64xbf16, #tpu.memory_space<vmem>>, vector<32x64xbf16>
    %cst_13 = arith.constant dense<0.000000e+00> : vector<64x64xf32>
    %21 = tpu.matmul %19, %20, %cst_13 {dimension_numbers = #tpu.dot_dimension_numbers<[1], [0], [0], [1], [0, 0, 1, 1], [], []>} : vector<64x32xbf16>, vector<32x64xbf16>, vector<64x64xf32> -> vector<64x64xf32>
    %22 = vector.extract_strided_slice %17 {offsets = [0, 0, 1, 0], sizes = [1, 8, 8, 32], strides = [1, 1, 1, 1]} : vector<1x10x10x32xbf16> to vector<1x8x8x32xbf16>
    %23 = vector.shape_cast %22 : vector<1x8x8x32xbf16> to vector<64x32xbf16>
    %c32 = arith.constant 32 : index
    %c0_14 = arith.constant 0 : index
    %24 = vector.load %arg4[%c32, %c0_14] : memref<288x64xbf16, #tpu.memory_space<vmem>>, vector<32x64xbf16>
    %cst_15 = arith.constant dense<0.000000e+00> : vector<64x64xf32>
    %25 = tpu.matmul %23, %24, %cst_15 {dimension_numbers = #tpu.dot_dimension_numbers<[1], [0], [0], [1], [0, 0, 1, 1], [], []>} : vector<64x32xbf16>, vector<32x64xbf16>, vector<64x64xf32> -> vector<64x64xf32>
    %26 = arith.addf %21, %25 : vector<64x64xf32>
    %27 = vector.extract_strided_slice %17 {offsets = [0, 0, 2, 0], sizes = [1, 8, 8, 32], strides = [1, 1, 1, 1]} : vector<1x10x10x32xbf16> to vector<1x8x8x32xbf16>
    %28 = vector.shape_cast %27 : vector<1x8x8x32xbf16> to vector<64x32xbf16>
    %c64 = arith.constant 64 : index
    %c0_16 = arith.constant 0 : index
    %29 = vector.load %arg4[%c64, %c0_16] : memref<288x64xbf16, #tpu.memory_space<vmem>>, vector<32x64xbf16>
    %cst_17 = arith.constant dense<0.000000e+00> : vector<64x64xf32>
    %30 = tpu.matmul %28, %29, %cst_17 {dimension_numbers = #tpu.dot_dimension_numbers<[1], [0], [0], [1], [0, 0, 1, 1], [], []>} : vector<64x32xbf16>, vector<32x64xbf16>, vector<64x64xf32> -> vector<64x64xf32>
    %31 = arith.addf %26, %30 : vector<64x64xf32>
    %32 = vector.extract_strided_slice %17 {offsets = [0, 1, 0, 0], sizes = [1, 8, 8, 32], strides = [1, 1, 1, 1]} : vector<1x10x10x32xbf16> to vector<1x8x8x32xbf16>
    %33 = vector.shape_cast %32 : vector<1x8x8x32xbf16> to vector<64x32xbf16>
    %c96 = arith.constant 96 : index
    %c0_18 = arith.constant 0 : index
    %34 = vector.load %arg4[%c96, %c0_18] : memref<288x64xbf16, #tpu.memory_space<vmem>>, vector<32x64xbf16>
    %cst_19 = arith.constant dense<0.000000e+00> : vector<64x64xf32>
    %35 = tpu.matmul %33, %34, %cst_19 {dimension_numbers = #tpu.dot_dimension_numbers<[1], [0], [0], [1], [0, 0, 1, 1], [], []>} : vector<64x32xbf16>, vector<32x64xbf16>, vector<64x64xf32> -> vector<64x64xf32>
    %36 = arith.addf %31, %35 : vector<64x64xf32>
    %37 = vector.extract_strided_slice %17 {offsets = [0, 1, 1, 0], sizes = [1, 8, 8, 32], strides = [1, 1, 1, 1]} : vector<1x10x10x32xbf16> to vector<1x8x8x32xbf16>
    %38 = vector.shape_cast %37 : vector<1x8x8x32xbf16> to vector<64x32xbf16>
    %c128 = arith.constant 128 : index
    %c0_20 = arith.constant 0 : index
    %39 = vector.load %arg4[%c128, %c0_20] : memref<288x64xbf16, #tpu.memory_space<vmem>>, vector<32x64xbf16>
    %cst_21 = arith.constant dense<0.000000e+00> : vector<64x64xf32>
    %40 = tpu.matmul %38, %39, %cst_21 {dimension_numbers = #tpu.dot_dimension_numbers<[1], [0], [0], [1], [0, 0, 1, 1], [], []>} : vector<64x32xbf16>, vector<32x64xbf16>, vector<64x64xf32> -> vector<64x64xf32>
    %41 = arith.addf %36, %40 : vector<64x64xf32>
    %42 = vector.extract_strided_slice %17 {offsets = [0, 1, 2, 0], sizes = [1, 8, 8, 32], strides = [1, 1, 1, 1]} : vector<1x10x10x32xbf16> to vector<1x8x8x32xbf16>
    %43 = vector.shape_cast %42 : vector<1x8x8x32xbf16> to vector<64x32xbf16>
    %c160 = arith.constant 160 : index
    %c0_22 = arith.constant 0 : index
    %44 = vector.load %arg4[%c160, %c0_22] : memref<288x64xbf16, #tpu.memory_space<vmem>>, vector<32x64xbf16>
    %cst_23 = arith.constant dense<0.000000e+00> : vector<64x64xf32>
    %45 = tpu.matmul %43, %44, %cst_23 {dimension_numbers = #tpu.dot_dimension_numbers<[1], [0], [0], [1], [0, 0, 1, 1], [], []>} : vector<64x32xbf16>, vector<32x64xbf16>, vector<64x64xf32> -> vector<64x64xf32>
    %46 = arith.addf %41, %45 : vector<64x64xf32>
    %47 = vector.extract_strided_slice %17 {offsets = [0, 2, 0, 0], sizes = [1, 8, 8, 32], strides = [1, 1, 1, 1]} : vector<1x10x10x32xbf16> to vector<1x8x8x32xbf16>
    %48 = vector.shape_cast %47 : vector<1x8x8x32xbf16> to vector<64x32xbf16>
    %c192 = arith.constant 192 : index
    %c0_24 = arith.constant 0 : index
    %49 = vector.load %arg4[%c192, %c0_24] : memref<288x64xbf16, #tpu.memory_space<vmem>>, vector<32x64xbf16>
    %cst_25 = arith.constant dense<0.000000e+00> : vector<64x64xf32>
    %50 = tpu.matmul %48, %49, %cst_25 {dimension_numbers = #tpu.dot_dimension_numbers<[1], [0], [0], [1], [0, 0, 1, 1], [], []>} : vector<64x32xbf16>, vector<32x64xbf16>, vector<64x64xf32> -> vector<64x64xf32>
    %51 = arith.addf %46, %50 : vector<64x64xf32>
    %52 = vector.extract_strided_slice %17 {offsets = [0, 2, 1, 0], sizes = [1, 8, 8, 32], strides = [1, 1, 1, 1]} : vector<1x10x10x32xbf16> to vector<1x8x8x32xbf16>
    %53 = vector.shape_cast %52 : vector<1x8x8x32xbf16> to vector<64x32xbf16>
    %c224 = arith.constant 224 : index
    %c0_26 = arith.constant 0 : index
    %54 = vector.load %arg4[%c224, %c0_26] : memref<288x64xbf16, #tpu.memory_space<vmem>>, vector<32x64xbf16>
    %cst_27 = arith.constant dense<0.000000e+00> : vector<64x64xf32>
    %55 = tpu.matmul %53, %54, %cst_27 {dimension_numbers = #tpu.dot_dimension_numbers<[1], [0], [0], [1], [0, 0, 1, 1], [], []>} : vector<64x32xbf16>, vector<32x64xbf16>, vector<64x64xf32> -> vector<64x64xf32>
    %56 = arith.addf %51, %55 : vector<64x64xf32>
    %57 = vector.extract_strided_slice %17 {offsets = [0, 2, 2, 0], sizes = [1, 8, 8, 32], strides = [1, 1, 1, 1]} : vector<1x10x10x32xbf16> to vector<1x8x8x32xbf16>
    %58 = vector.shape_cast %57 : vector<1x8x8x32xbf16> to vector<64x32xbf16>
    %c256 = arith.constant 256 : index
    %c0_28 = arith.constant 0 : index
    %59 = vector.load %arg4[%c256, %c0_28] : memref<288x64xbf16, #tpu.memory_space<vmem>>, vector<32x64xbf16>
    %cst_29 = arith.constant dense<0.000000e+00> : vector<64x64xf32>
    %60 = tpu.matmul %58, %59, %cst_29 {dimension_numbers = #tpu.dot_dimension_numbers<[1], [0], [0], [1], [0, 0, 1, 1], [], []>} : vector<64x32xbf16>, vector<32x64xbf16>, vector<64x64xf32> -> vector<64x64xf32>
    %61 = arith.addf %56, %60 : vector<64x64xf32>
    %c0_30 = arith.constant 0 : index
    %c0_31 = arith.constant 0 : index
    %62 = vector.load %arg5[%c0_30, %c0_31] : memref<1x64xf32, #tpu.memory_space<vmem>>, vector<1x64xf32>
    %63 = vector.broadcast %62 : vector<1x64xf32> to vector<64x64xf32>
    %64 = arith.addf %61, %63 : vector<64x64xf32>
    %cst_32 = arith.constant 0.000000e+00 : f32
    %65 = vector.broadcast %cst_32 : f32 to vector<64x64xf32>
    %66 = arith.maximumf %64, %65 : vector<64x64xf32>
    %67 = arith.truncf %66 : vector<64x64xf32> to vector<64x64xbf16>
    %c0_33 = arith.constant 0 : index
    %c0_34 = arith.constant 0 : index
    %68 = vector.load %arg6[%c0_33, %c0_34] : memref<64x128xbf16, #tpu.memory_space<vmem>>, vector<64x128xbf16>
    %cst_35 = arith.constant dense<0.000000e+00> : vector<64x128xf32>
    %69 = tpu.matmul %67, %68, %cst_35 {dimension_numbers = #tpu.dot_dimension_numbers<[1], [0], [0], [1], [0, 0, 1, 1], [], []>} : vector<64x64xbf16>, vector<64x128xbf16>, vector<64x128xf32> -> vector<64x128xf32>
    %c0_36 = arith.constant 0 : index
    %c0_37 = arith.constant 0 : index
    %70 = vector.load %arg7[%c0_36, %c0_37] : memref<1x128xf32, #tpu.memory_space<vmem>>, vector<1x128xf32>
    %71 = vector.broadcast %70 : vector<1x128xf32> to vector<64x128xf32>
    %72 = arith.addf %69, %71 : vector<64x128xf32>
    %73 = vector.extract_strided_slice %72 {offsets = [0, 0], sizes = [64, 32], strides = [1, 1]} : vector<64x128xf32> to vector<64x32xf32>
    %74 = vector.shape_cast %73 : vector<64x32xf32> to vector<1x8x8x32xf32>
    %75 = vector.extract_strided_slice %72 {offsets = [0, 32], sizes = [64, 32], strides = [1, 1]} : vector<64x128xf32> to vector<64x32xf32>
    %76 = vector.shape_cast %75 : vector<64x32xf32> to vector<1x8x8x32xf32>
    %77 = vector.extract_strided_slice %72 {offsets = [0, 64], sizes = [64, 32], strides = [1, 1]} : vector<64x128xf32> to vector<64x32xf32>
    %78 = vector.shape_cast %77 : vector<64x32xf32> to vector<1x8x8x32xf32>
    %79 = vector.extract_strided_slice %72 {offsets = [0, 96], sizes = [64, 32], strides = [1, 1]} : vector<64x128xf32> to vector<64x32xf32>
    %80 = vector.shape_cast %79 : vector<64x32xf32> to vector<1x8x8x32xf32>
    %81 = vector.shape_cast %74 : vector<1x8x8x32xf32> to vector<1x8x8x1x32xf32>
    %82 = vector.shape_cast %76 : vector<1x8x8x32xf32> to vector<1x8x8x1x32xf32>
    %83 = tpu.concatenate %81, %82 in 3 : vector<1x8x8x1x32xf32>, vector<1x8x8x1x32xf32> -> vector<1x8x8x2x32xf32>
    %84 = vector.shape_cast %83 : vector<1x8x8x2x32xf32> to vector<1x8x16x32xf32>
    %85 = vector.shape_cast %78 : vector<1x8x8x32xf32> to vector<1x8x8x1x32xf32>
    %86 = vector.shape_cast %80 : vector<1x8x8x32xf32> to vector<1x8x8x1x32xf32>
    %87 = tpu.concatenate %85, %86 in 3 : vector<1x8x8x1x32xf32>, vector<1x8x8x1x32xf32> -> vector<1x8x8x2x32xf32>
    %88 = vector.shape_cast %87 : vector<1x8x8x2x32xf32> to vector<1x8x16x32xf32>
    %89 = vector.shape_cast %84 : vector<1x8x16x32xf32> to vector<1x8x1x16x32xf32>
    %90 = vector.shape_cast %88 : vector<1x8x16x32xf32> to vector<1x8x1x16x32xf32>
    %91 = tpu.concatenate %89, %90 in 2 : vector<1x8x1x16x32xf32>, vector<1x8x1x16x32xf32> -> vector<1x8x2x16x32xf32>
    %92 = vector.shape_cast %91 : vector<1x8x2x16x32xf32> to vector<1x16x16x32xf32>
    %cst_38 = arith.constant 0.000000e+00 : f32
    %93 = vector.broadcast %cst_38 : f32 to vector<1x16x1x32xf32>
    %94 = tpu.concatenate %93, %92, %93 in 2 : vector<1x16x1x32xf32>, vector<1x16x16x32xf32>, vector<1x16x1x32xf32> -> vector<1x16x18x32xf32>
    %cst_39 = arith.constant 0.000000e+00 : f32
    %95 = vector.broadcast %cst_39 : f32 to vector<1x1x18x32xf32>
    %96 = tpu.concatenate %95, %94, %95 in 1 : vector<1x1x18x32xf32>, vector<1x16x18x32xf32>, vector<1x1x18x32xf32> -> vector<1x18x18x32xf32>
    %97 = arith.truncf %96 : vector<1x18x18x32xf32> to vector<1x18x18x32xbf16>
    %98 = vector.extract_strided_slice %97 {offsets = [0, 0, 0, 0], sizes = [1, 16, 16, 32], strides = [1, 1, 1, 1]} : vector<1x18x18x32xbf16> to vector<1x16x16x32xbf16>
    %99 = vector.shape_cast %98 : vector<1x16x16x32xbf16> to vector<256x32xbf16>
    %c0_40 = arith.constant 0 : index
    %c0_41 = arith.constant 0 : index
    %100 = vector.load %arg8[%c0_40, %c0_41] : memref<288x32xbf16, #tpu.memory_space<vmem>>, vector<32x32xbf16>
    %cst_42 = arith.constant dense<0.000000e+00> : vector<256x32xf32>
    %101 = tpu.matmul %99, %100, %cst_42 {dimension_numbers = #tpu.dot_dimension_numbers<[1], [0], [0], [1], [0, 0, 1, 1], [], []>} : vector<256x32xbf16>, vector<32x32xbf16>, vector<256x32xf32> -> vector<256x32xf32>
    %102 = vector.extract_strided_slice %97 {offsets = [0, 0, 1, 0], sizes = [1, 16, 16, 32], strides = [1, 1, 1, 1]} : vector<1x18x18x32xbf16> to vector<1x16x16x32xbf16>
    %103 = vector.shape_cast %102 : vector<1x16x16x32xbf16> to vector<256x32xbf16>
    %c32_43 = arith.constant 32 : index
    %c0_44 = arith.constant 0 : index
    %104 = vector.load %arg8[%c32_43, %c0_44] : memref<288x32xbf16, #tpu.memory_space<vmem>>, vector<32x32xbf16>
    %cst_45 = arith.constant dense<0.000000e+00> : vector<256x32xf32>
    %105 = tpu.matmul %103, %104, %cst_45 {dimension_numbers = #tpu.dot_dimension_numbers<[1], [0], [0], [1], [0, 0, 1, 1], [], []>} : vector<256x32xbf16>, vector<32x32xbf16>, vector<256x32xf32> -> vector<256x32xf32>
    %106 = arith.addf %101, %105 : vector<256x32xf32>
    %107 = vector.extract_strided_slice %97 {offsets = [0, 0, 2, 0], sizes = [1, 16, 16, 32], strides = [1, 1, 1, 1]} : vector<1x18x18x32xbf16> to vector<1x16x16x32xbf16>
    %108 = vector.shape_cast %107 : vector<1x16x16x32xbf16> to vector<256x32xbf16>
    %c64_46 = arith.constant 64 : index
    %c0_47 = arith.constant 0 : index
    %109 = vector.load %arg8[%c64_46, %c0_47] : memref<288x32xbf16, #tpu.memory_space<vmem>>, vector<32x32xbf16>
    %cst_48 = arith.constant dense<0.000000e+00> : vector<256x32xf32>
    %110 = tpu.matmul %108, %109, %cst_48 {dimension_numbers = #tpu.dot_dimension_numbers<[1], [0], [0], [1], [0, 0, 1, 1], [], []>} : vector<256x32xbf16>, vector<32x32xbf16>, vector<256x32xf32> -> vector<256x32xf32>
    %111 = arith.addf %106, %110 : vector<256x32xf32>
    %112 = vector.extract_strided_slice %97 {offsets = [0, 1, 0, 0], sizes = [1, 16, 16, 32], strides = [1, 1, 1, 1]} : vector<1x18x18x32xbf16> to vector<1x16x16x32xbf16>
    %113 = vector.shape_cast %112 : vector<1x16x16x32xbf16> to vector<256x32xbf16>
    %c96_49 = arith.constant 96 : index
    %c0_50 = arith.constant 0 : index
    %114 = vector.load %arg8[%c96_49, %c0_50] : memref<288x32xbf16, #tpu.memory_space<vmem>>, vector<32x32xbf16>
    %cst_51 = arith.constant dense<0.000000e+00> : vector<256x32xf32>
    %115 = tpu.matmul %113, %114, %cst_51 {dimension_numbers = #tpu.dot_dimension_numbers<[1], [0], [0], [1], [0, 0, 1, 1], [], []>} : vector<256x32xbf16>, vector<32x32xbf16>, vector<256x32xf32> -> vector<256x32xf32>
    %116 = arith.addf %111, %115 : vector<256x32xf32>
    %117 = vector.extract_strided_slice %97 {offsets = [0, 1, 1, 0], sizes = [1, 16, 16, 32], strides = [1, 1, 1, 1]} : vector<1x18x18x32xbf16> to vector<1x16x16x32xbf16>
    %118 = vector.shape_cast %117 : vector<1x16x16x32xbf16> to vector<256x32xbf16>
    %c128_52 = arith.constant 128 : index
    %c0_53 = arith.constant 0 : index
    %119 = vector.load %arg8[%c128_52, %c0_53] : memref<288x32xbf16, #tpu.memory_space<vmem>>, vector<32x32xbf16>
    %cst_54 = arith.constant dense<0.000000e+00> : vector<256x32xf32>
    %120 = tpu.matmul %118, %119, %cst_54 {dimension_numbers = #tpu.dot_dimension_numbers<[1], [0], [0], [1], [0, 0, 1, 1], [], []>} : vector<256x32xbf16>, vector<32x32xbf16>, vector<256x32xf32> -> vector<256x32xf32>
    %121 = arith.addf %116, %120 : vector<256x32xf32>
    %122 = vector.extract_strided_slice %97 {offsets = [0, 1, 2, 0], sizes = [1, 16, 16, 32], strides = [1, 1, 1, 1]} : vector<1x18x18x32xbf16> to vector<1x16x16x32xbf16>
    %123 = vector.shape_cast %122 : vector<1x16x16x32xbf16> to vector<256x32xbf16>
    %c160_55 = arith.constant 160 : index
    %c0_56 = arith.constant 0 : index
    %124 = vector.load %arg8[%c160_55, %c0_56] : memref<288x32xbf16, #tpu.memory_space<vmem>>, vector<32x32xbf16>
    %cst_57 = arith.constant dense<0.000000e+00> : vector<256x32xf32>
    %125 = tpu.matmul %123, %124, %cst_57 {dimension_numbers = #tpu.dot_dimension_numbers<[1], [0], [0], [1], [0, 0, 1, 1], [], []>} : vector<256x32xbf16>, vector<32x32xbf16>, vector<256x32xf32> -> vector<256x32xf32>
    %126 = arith.addf %121, %125 : vector<256x32xf32>
    %127 = vector.extract_strided_slice %97 {offsets = [0, 2, 0, 0], sizes = [1, 16, 16, 32], strides = [1, 1, 1, 1]} : vector<1x18x18x32xbf16> to vector<1x16x16x32xbf16>
    %128 = vector.shape_cast %127 : vector<1x16x16x32xbf16> to vector<256x32xbf16>
    %c192_58 = arith.constant 192 : index
    %c0_59 = arith.constant 0 : index
    %129 = vector.load %arg8[%c192_58, %c0_59] : memref<288x32xbf16, #tpu.memory_space<vmem>>, vector<32x32xbf16>
    %cst_60 = arith.constant dense<0.000000e+00> : vector<256x32xf32>
    %130 = tpu.matmul %128, %129, %cst_60 {dimension_numbers = #tpu.dot_dimension_numbers<[1], [0], [0], [1], [0, 0, 1, 1], [], []>} : vector<256x32xbf16>, vector<32x32xbf16>, vector<256x32xf32> -> vector<256x32xf32>
    %131 = arith.addf %126, %130 : vector<256x32xf32>
    %132 = vector.extract_strided_slice %97 {offsets = [0, 2, 1, 0], sizes = [1, 16, 16, 32], strides = [1, 1, 1, 1]} : vector<1x18x18x32xbf16> to vector<1x16x16x32xbf16>
    %133 = vector.shape_cast %132 : vector<1x16x16x32xbf16> to vector<256x32xbf16>
    %c224_61 = arith.constant 224 : index
    %c0_62 = arith.constant 0 : index
    %134 = vector.load %arg8[%c224_61, %c0_62] : memref<288x32xbf16, #tpu.memory_space<vmem>>, vector<32x32xbf16>
    %cst_63 = arith.constant dense<0.000000e+00> : vector<256x32xf32>
    %135 = tpu.matmul %133, %134, %cst_63 {dimension_numbers = #tpu.dot_dimension_numbers<[1], [0], [0], [1], [0, 0, 1, 1], [], []>} : vector<256x32xbf16>, vector<32x32xbf16>, vector<256x32xf32> -> vector<256x32xf32>
    %136 = arith.addf %131, %135 : vector<256x32xf32>
    %137 = vector.extract_strided_slice %97 {offsets = [0, 2, 2, 0], sizes = [1, 16, 16, 32], strides = [1, 1, 1, 1]} : vector<1x18x18x32xbf16> to vector<1x16x16x32xbf16>
    %138 = vector.shape_cast %137 : vector<1x16x16x32xbf16> to vector<256x32xbf16>
    %c256_64 = arith.constant 256 : index
    %c0_65 = arith.constant 0 : index
    %139 = vector.load %arg8[%c256_64, %c0_65] : memref<288x32xbf16, #tpu.memory_space<vmem>>, vector<32x32xbf16>
    %cst_66 = arith.constant dense<0.000000e+00> : vector<256x32xf32>
    %140 = tpu.matmul %138, %139, %cst_66 {dimension_numbers = #tpu.dot_dimension_numbers<[1], [0], [0], [1], [0, 0, 1, 1], [], []>} : vector<256x32xbf16>, vector<32x32xbf16>, vector<256x32xf32> -> vector<256x32xf32>
    %141 = arith.addf %136, %140 : vector<256x32xf32>
    %cst_67 = arith.constant 0.000000e+00 : f32
    %142 = vector.broadcast %cst_67 : f32 to vector<1x16x1x32xf32>
    %143 = tpu.concatenate %142, %9, %142 in 2 : vector<1x16x1x32xf32>, vector<1x16x16x32xf32>, vector<1x16x1x32xf32> -> vector<1x16x18x32xf32>
    %cst_68 = arith.constant 0.000000e+00 : f32
    %144 = vector.broadcast %cst_68 : f32 to vector<1x1x18x32xf32>
    %145 = tpu.concatenate %144, %143, %144 in 1 : vector<1x1x18x32xf32>, vector<1x16x18x32xf32>, vector<1x1x18x32xf32> -> vector<1x18x18x32xf32>
    %146 = arith.truncf %145 : vector<1x18x18x32xf32> to vector<1x18x18x32xbf16>
    %147 = vector.extract_strided_slice %146 {offsets = [0, 0, 0, 0], sizes = [1, 16, 16, 32], strides = [1, 1, 1, 1]} : vector<1x18x18x32xbf16> to vector<1x16x16x32xbf16>
    %148 = vector.shape_cast %147 : vector<1x16x16x32xbf16> to vector<256x32xbf16>
    %c0_69 = arith.constant 0 : index
    %c0_70 = arith.constant 0 : index
    %149 = vector.load %arg9[%c0_69, %c0_70] : memref<288x32xbf16, #tpu.memory_space<vmem>>, vector<32x32xbf16>
    %cst_71 = arith.constant dense<0.000000e+00> : vector<256x32xf32>
    %150 = tpu.matmul %148, %149, %cst_71 {dimension_numbers = #tpu.dot_dimension_numbers<[1], [0], [0], [1], [0, 0, 1, 1], [], []>} : vector<256x32xbf16>, vector<32x32xbf16>, vector<256x32xf32> -> vector<256x32xf32>
    %151 = vector.extract_strided_slice %146 {offsets = [0, 0, 1, 0], sizes = [1, 16, 16, 32], strides = [1, 1, 1, 1]} : vector<1x18x18x32xbf16> to vector<1x16x16x32xbf16>
    %152 = vector.shape_cast %151 : vector<1x16x16x32xbf16> to vector<256x32xbf16>
    %c32_72 = arith.constant 32 : index
    %c0_73 = arith.constant 0 : index
    %153 = vector.load %arg9[%c32_72, %c0_73] : memref<288x32xbf16, #tpu.memory_space<vmem>>, vector<32x32xbf16>
    %cst_74 = arith.constant dense<0.000000e+00> : vector<256x32xf32>
    %154 = tpu.matmul %152, %153, %cst_74 {dimension_numbers = #tpu.dot_dimension_numbers<[1], [0], [0], [1], [0, 0, 1, 1], [], []>} : vector<256x32xbf16>, vector<32x32xbf16>, vector<256x32xf32> -> vector<256x32xf32>
    %155 = arith.addf %150, %154 : vector<256x32xf32>
    %156 = vector.extract_strided_slice %146 {offsets = [0, 0, 2, 0], sizes = [1, 16, 16, 32], strides = [1, 1, 1, 1]} : vector<1x18x18x32xbf16> to vector<1x16x16x32xbf16>
    %157 = vector.shape_cast %156 : vector<1x16x16x32xbf16> to vector<256x32xbf16>
    %c64_75 = arith.constant 64 : index
    %c0_76 = arith.constant 0 : index
    %158 = vector.load %arg9[%c64_75, %c0_76] : memref<288x32xbf16, #tpu.memory_space<vmem>>, vector<32x32xbf16>
    %cst_77 = arith.constant dense<0.000000e+00> : vector<256x32xf32>
    %159 = tpu.matmul %157, %158, %cst_77 {dimension_numbers = #tpu.dot_dimension_numbers<[1], [0], [0], [1], [0, 0, 1, 1], [], []>} : vector<256x32xbf16>, vector<32x32xbf16>, vector<256x32xf32> -> vector<256x32xf32>
    %160 = arith.addf %155, %159 : vector<256x32xf32>
    %161 = vector.extract_strided_slice %146 {offsets = [0, 1, 0, 0], sizes = [1, 16, 16, 32], strides = [1, 1, 1, 1]} : vector<1x18x18x32xbf16> to vector<1x16x16x32xbf16>
    %162 = vector.shape_cast %161 : vector<1x16x16x32xbf16> to vector<256x32xbf16>
    %c96_78 = arith.constant 96 : index
    %c0_79 = arith.constant 0 : index
    %163 = vector.load %arg9[%c96_78, %c0_79] : memref<288x32xbf16, #tpu.memory_space<vmem>>, vector<32x32xbf16>
    %cst_80 = arith.constant dense<0.000000e+00> : vector<256x32xf32>
    %164 = tpu.matmul %162, %163, %cst_80 {dimension_numbers = #tpu.dot_dimension_numbers<[1], [0], [0], [1], [0, 0, 1, 1], [], []>} : vector<256x32xbf16>, vector<32x32xbf16>, vector<256x32xf32> -> vector<256x32xf32>
    %165 = arith.addf %160, %164 : vector<256x32xf32>
    %166 = vector.extract_strided_slice %146 {offsets = [0, 1, 1, 0], sizes = [1, 16, 16, 32], strides = [1, 1, 1, 1]} : vector<1x18x18x32xbf16> to vector<1x16x16x32xbf16>
    %167 = vector.shape_cast %166 : vector<1x16x16x32xbf16> to vector<256x32xbf16>
    %c128_81 = arith.constant 128 : index
    %c0_82 = arith.constant 0 : index
    %168 = vector.load %arg9[%c128_81, %c0_82] : memref<288x32xbf16, #tpu.memory_space<vmem>>, vector<32x32xbf16>
    %cst_83 = arith.constant dense<0.000000e+00> : vector<256x32xf32>
    %169 = tpu.matmul %167, %168, %cst_83 {dimension_numbers = #tpu.dot_dimension_numbers<[1], [0], [0], [1], [0, 0, 1, 1], [], []>} : vector<256x32xbf16>, vector<32x32xbf16>, vector<256x32xf32> -> vector<256x32xf32>
    %170 = arith.addf %165, %169 : vector<256x32xf32>
    %171 = vector.extract_strided_slice %146 {offsets = [0, 1, 2, 0], sizes = [1, 16, 16, 32], strides = [1, 1, 1, 1]} : vector<1x18x18x32xbf16> to vector<1x16x16x32xbf16>
    %172 = vector.shape_cast %171 : vector<1x16x16x32xbf16> to vector<256x32xbf16>
    %c160_84 = arith.constant 160 : index
    %c0_85 = arith.constant 0 : index
    %173 = vector.load %arg9[%c160_84, %c0_85] : memref<288x32xbf16, #tpu.memory_space<vmem>>, vector<32x32xbf16>
    %cst_86 = arith.constant dense<0.000000e+00> : vector<256x32xf32>
    %174 = tpu.matmul %172, %173, %cst_86 {dimension_numbers = #tpu.dot_dimension_numbers<[1], [0], [0], [1], [0, 0, 1, 1], [], []>} : vector<256x32xbf16>, vector<32x32xbf16>, vector<256x32xf32> -> vector<256x32xf32>
    %175 = arith.addf %170, %174 : vector<256x32xf32>
    %176 = vector.extract_strided_slice %146 {offsets = [0, 2, 0, 0], sizes = [1, 16, 16, 32], strides = [1, 1, 1, 1]} : vector<1x18x18x32xbf16> to vector<1x16x16x32xbf16>
    %177 = vector.shape_cast %176 : vector<1x16x16x32xbf16> to vector<256x32xbf16>
    %c192_87 = arith.constant 192 : index
    %c0_88 = arith.constant 0 : index
    %178 = vector.load %arg9[%c192_87, %c0_88] : memref<288x32xbf16, #tpu.memory_space<vmem>>, vector<32x32xbf16>
    %cst_89 = arith.constant dense<0.000000e+00> : vector<256x32xf32>
    %179 = tpu.matmul %177, %178, %cst_89 {dimension_numbers = #tpu.dot_dimension_numbers<[1], [0], [0], [1], [0, 0, 1, 1], [], []>} : vector<256x32xbf16>, vector<32x32xbf16>, vector<256x32xf32> -> vector<256x32xf32>
    %180 = arith.addf %175, %179 : vector<256x32xf32>
    %181 = vector.extract_strided_slice %146 {offsets = [0, 2, 1, 0], sizes = [1, 16, 16, 32], strides = [1, 1, 1, 1]} : vector<1x18x18x32xbf16> to vector<1x16x16x32xbf16>
    %182 = vector.shape_cast %181 : vector<1x16x16x32xbf16> to vector<256x32xbf16>
    %c224_90 = arith.constant 224 : index
    %c0_91 = arith.constant 0 : index
    %183 = vector.load %arg9[%c224_90, %c0_91] : memref<288x32xbf16, #tpu.memory_space<vmem>>, vector<32x32xbf16>
    %cst_92 = arith.constant dense<0.000000e+00> : vector<256x32xf32>
    %184 = tpu.matmul %182, %183, %cst_92 {dimension_numbers = #tpu.dot_dimension_numbers<[1], [0], [0], [1], [0, 0, 1, 1], [], []>} : vector<256x32xbf16>, vector<32x32xbf16>, vector<256x32xf32> -> vector<256x32xf32>
    %185 = arith.addf %180, %184 : vector<256x32xf32>
    %186 = vector.extract_strided_slice %146 {offsets = [0, 2, 2, 0], sizes = [1, 16, 16, 32], strides = [1, 1, 1, 1]} : vector<1x18x18x32xbf16> to vector<1x16x16x32xbf16>
    %187 = vector.shape_cast %186 : vector<1x16x16x32xbf16> to vector<256x32xbf16>
    %c256_93 = arith.constant 256 : index
    %c0_94 = arith.constant 0 : index
    %188 = vector.load %arg9[%c256_93, %c0_94] : memref<288x32xbf16, #tpu.memory_space<vmem>>, vector<32x32xbf16>
    %cst_95 = arith.constant dense<0.000000e+00> : vector<256x32xf32>
    %189 = tpu.matmul %187, %188, %cst_95 {dimension_numbers = #tpu.dot_dimension_numbers<[1], [0], [0], [1], [0, 0, 1, 1], [], []>} : vector<256x32xbf16>, vector<32x32xbf16>, vector<256x32xf32> -> vector<256x32xf32>
    %190 = arith.addf %185, %189 : vector<256x32xf32>
    %191 = arith.addf %141, %190 : vector<256x32xf32>
    %c0_96 = arith.constant 0 : index
    %c0_97 = arith.constant 0 : index
    %192 = vector.load %arg10[%c0_96, %c0_97] : memref<1x32xf32, #tpu.memory_space<vmem>>, vector<1x32xf32>
    %193 = vector.broadcast %192 : vector<1x32xf32> to vector<256x32xf32>
    %194 = arith.addf %191, %193 : vector<256x32xf32>
    %cst_98 = arith.constant 0.000000e+00 : f32
    %195 = vector.broadcast %cst_98 : f32 to vector<256x32xf32>
    %196 = arith.maximumf %194, %195 : vector<256x32xf32>
    %197 = arith.truncf %196 : vector<256x32xf32> to vector<256x32xbf16>
    %c0_99 = arith.constant 0 : index
    %c0_100 = arith.constant 0 : index
    %198 = vector.load %arg11[%c0_99, %c0_100] : memref<32x128xbf16, #tpu.memory_space<vmem>>, vector<32x128xbf16>
    %cst_101 = arith.constant dense<0.000000e+00> : vector<256x128xf32>
    %199 = tpu.matmul %197, %198, %cst_101 {dimension_numbers = #tpu.dot_dimension_numbers<[1], [0], [0], [1], [0, 0, 1, 1], [], []>} : vector<256x32xbf16>, vector<32x128xbf16>, vector<256x128xf32> -> vector<256x128xf32>
    %c0_102 = arith.constant 0 : index
    %c0_103 = arith.constant 0 : index
    %200 = vector.load %arg12[%c0_102, %c0_103] : memref<1x128xf32, #tpu.memory_space<vmem>>, vector<1x128xf32>
    %201 = vector.broadcast %200 : vector<1x128xf32> to vector<256x128xf32>
    %202 = arith.addf %199, %201 : vector<256x128xf32>
    %203 = vector.extract_strided_slice %202 {offsets = [0, 0], sizes = [256, 3], strides = [1, 1]} : vector<256x128xf32> to vector<256x3xf32>
    %204 = vector.shape_cast %203 : vector<256x3xf32> to vector<1x16x16x3xf32>
    %c0_104 = arith.constant 0 : index
    %c0_105 = arith.constant 0 : index
    %c0_106 = arith.constant 0 : index
    %c0_107 = arith.constant 0 : index
    %205 = vector.load %arg13[%c0_104, %c0_105, %c0_106, %c0_107] : memref<1x16x16x3xf32, #tpu.memory_space<vmem>>, vector<1x16x16x3xf32>
    tpu.vector_store %arg13[%c0_104, %c0_105, %c0_106, %c0_107], %204 {strides = array<i32>} : memref<1x16x16x3xf32, #tpu.memory_space<vmem>>, vector<1x16x16x3xf32>,
    return
  }
  func.func @transform_0(%arg0: i32) -> (i32, i32, i32) {
    %c0_i32 = arith.constant 0 : i32
    %c0_i32_0 = arith.constant 0 : i32
    %c0_i32_1 = arith.constant 0 : i32
    return %arg0, %c0_i32, %c0_i32_0 : i32, i32, i32
  }
  func.func @transform_1(%arg0: i32) -> (i32, i32) {
    %c0_i32 = arith.constant 0 : i32
    %c0_i32_0 = arith.constant 0 : i32
    %c0_i32_1 = arith.constant 0 : i32
    return %c0_i32, %c0_i32_0 : i32, i32
  }
  func.func @transform_2(%arg0: i32) -> (i32, i32) {
    %c0_i32 = arith.constant 0 : i32
    %c0_i32_0 = arith.constant 0 : i32
    %c0_i32_1 = arith.constant 0 : i32
    return %c0_i32, %c0_i32_0 : i32, i32
  }
  func.func @transform_3(%arg0: i32) -> (i32, i32) {
    %c0_i32 = arith.constant 0 : i32
    %c0_i32_0 = arith.constant 0 : i32
    %c0_i32_1 = arith.constant 0 : i32
    return %c0_i32, %c0_i32_0 : i32, i32
  }
  func.func @transform_4(%arg0: i32) -> (i32, i32) {
    %c0_i32 = arith.constant 0 : i32
    %c0_i32_0 = arith.constant 0 : i32
    %c0_i32_1 = arith.constant 0 : i32
    return %c0_i32, %c0_i32_0 : i32, i32
  }
  func.func @transform_5(%arg0: i32) -> (i32, i32) {
    %c0_i32 = arith.constant 0 : i32
    %c0_i32_0 = arith.constant 0 : i32
    %c0_i32_1 = arith.constant 0 : i32
    return %c0_i32, %c0_i32_0 : i32, i32
  }
  func.func @transform_6(%arg0: i32) -> (i32, i32) {
    %c0_i32 = arith.constant 0 : i32
    %c0_i32_0 = arith.constant 0 : i32
    %c0_i32_1 = arith.constant 0 : i32
    return %c0_i32, %c0_i32_0 : i32, i32
  }
  func.func @transform_7(%arg0: i32) -> (i32, i32) {
    %c0_i32 = arith.constant 0 : i32
    %c0_i32_0 = arith.constant 0 : i32
    %c0_i32_1 = arith.constant 0 : i32
    return %c0_i32, %c0_i32_0 : i32, i32
  }
  func.func @transform_8(%arg0: i32) -> (i32, i32) {
    %c0_i32 = arith.constant 0 : i32
    %c0_i32_0 = arith.constant 0 : i32
    %c0_i32_1 = arith.constant 0 : i32
    return %c0_i32, %c0_i32_0 : i32, i32
  }
  func.func @transform_9(%arg0: i32) -> (i32, i32) {
    %c0_i32 = arith.constant 0 : i32
    %c0_i32_0 = arith.constant 0 : i32
    %c0_i32_1 = arith.constant 0 : i32
    return %c0_i32, %c0_i32_0 : i32, i32
  }
  func.func @transform_10(%arg0: i32) -> (i32, i32) {
    %c0_i32 = arith.constant 0 : i32
    %c0_i32_0 = arith.constant 0 : i32
    %c0_i32_1 = arith.constant 0 : i32
    return %c0_i32, %c0_i32_0 : i32, i32
  }
  func.func @transform_11(%arg0: i32) -> (i32, i32) {
    %c0_i32 = arith.constant 0 : i32
    %c0_i32_0 = arith.constant 0 : i32
    %c0_i32_1 = arith.constant 0 : i32
    return %c0_i32, %c0_i32_0 : i32, i32
  }
  func.func @transform_12(%arg0: i32) -> (i32, i32, i32, i32) {
    %c0_i32 = arith.constant 0 : i32
    %c0_i32_0 = arith.constant 0 : i32
    %c0_i32_1 = arith.constant 0 : i32
    %c0_i32_2 = arith.constant 0 : i32
    return %arg0, %c0_i32, %c0_i32_0, %c0_i32_1 : i32, i32, i32, i32
  }
}

</mosaic_0001>

<llo_original>
// kernel: light_unet_forward.1
$region0: #{light_unet_forward.1}
  #allocation0 [shape = 'u32[]', space=smem, size = 0x4, offset = 0x4, fixed_abs, tag = 'smem constant byte address 0x4 - core index']
  #allocation1 [shape = 'u32[72,128]{1,0:T(1,128)}', space=vmem, size = 0x9000, scoped, tag = 'internal scratch']
  %s0 = inlined_call_operand.vmem [shape: bf16[2,256,36], index: 0, kind: input, shape index: {}]
  %s1 = inlined_call_operand.vmem [shape: bf16[36,32], index: 1, kind: input, shape index: {}]
  %s2 = inlined_call_operand.vmem [shape: f32[1,32], index: 2, kind: input, shape index: {}]
  %s3 = inlined_call_operand.vmem [shape: bf16[288,64], index: 3, kind: input, shape index: {}]
  %s4 = inlined_call_operand.vmem [shape: f32[1,64], index: 4, kind: input, shape index: {}]
  %s5 = inlined_call_operand.vmem [shape: bf16[64,128], index: 5, kind: input, shape index: {}]
  %s6 = inlined_call_operand.vmem [shape: f32[1,128], index: 6, kind: input, shape index: {}]
  %s7 = inlined_call_operand.vmem [shape: bf16[288,32], index: 7, kind: input, shape index: {}]
  %s8 = inlined_call_operand.vmem [shape: bf16[288,32], index: 8, kind: input, shape index: {}]
  %s9 = inlined_call_operand.vmem [shape: f32[1,32], index: 9, kind: input, shape index: {}]
  %s10 = inlined_call_operand.vmem [shape: bf16[32,128], index: 10, kind: input, shape index: {}]
  %s11 = inlined_call_operand.vmem [shape: f32[1,128], index: 11, kind: input, shape index: {}]
  %s12 = inlined_call_operand.vmem [shape: f32[2,16,16,3], index: 12, kind: output, shape index: {}]
  %s13 = sld [smem:[#allocation0]]
  $region81: #{light_unet_forward.1} parent=0
    _
  %s15 = ssub.s32 1, %s13
  %s16 = scalar_select 0, %s15, %s13
  loop: start=0, step=1, limit=4
  $region2: #{light_unet_forward.1} parent=0 // loop_pre_header
    _
  $region3: #{light_unet_forward.1} parent=0 // loop_header
    %s18 = sphi 0, %s22
    %p19 = scmp.ge.s32.totalorder %s18, 4
    %s28 = sphi 0, %s30
    %s31 = sphi 0, %s28
    %s32 = sphi 0, %s31
    %s48 = sphi 0, %s32
    %s52 = sphi 0, %s52
    %s54 = sphi 0, %s52
    %s55 = sphi 0, %s54
    %s69 = sphi 0, %s55
    %s73 = sphi 0, %s73
    %s75 = sphi 0, %s73
    %s76 = sphi 0, %s75
    %s90 = sphi 0, %s76
    %s94 = sphi 0, %s94
    %s96 = sphi 0, %s94
    %s97 = sphi 0, %s96
    %s111 = sphi 0, %s97
    %s115 = sphi 0, %s115
    %s117 = sphi 0, %s115
    %s118 = sphi 0, %s117
    %s132 = sphi 0, %s118
    %s136 = sphi 0, %s136
    %s138 = sphi 0, %s136
    %s139 = sphi 0, %s138
    %s153 = sphi 0, %s139
    %s157 = sphi 0, %s157
    %s159 = sphi 0, %s157
    %s160 = sphi 0, %s159
    %s174 = sphi 0, %s160
    %s178 = sphi 0, %s178
    %s180 = sphi 0, %s178
    %s181 = sphi 0, %s180
    %s195 = sphi 0, %s181
    %s199 = sphi 0, %s199
    %s201 = sphi 0, %s199
    %s202 = sphi 0, %s201
    %s216 = sphi 0, %s202
    %s220 = sphi 0, %s220
    %s222 = sphi 0, %s220
    %s223 = sphi 0, %s222
    %s237 = sphi 0, %s223
    %s241 = sphi 0, %s241
    %s243 = sphi 0, %s241
    %s244 = sphi 0, %s243
    %s258 = sphi 0, %s244
    %s262 = sphi 0, %s262
    %s264 = sphi 0, %s262
    %s265 = sphi 0, %s264
    %s279 = sphi 0, %s265
    %s285 = sphi 0, %s287
    %s288 = sphi 0, %s285
    %s289 = sphi 0, %s288
    %s305 = sphi 0, %s289
  $region4: #{light_unet_forward.1} parent=0 // loop_header_branch
    %21 = sbr.rel (%p19) target = $region8
  $region5: #{light_unet_forward.1} parent=0 // loop_body
    %s23 = ssub.s32 %s18, 1
    %s24 = ssub.s32 %s18, 2
    %s25 = sadd.s32 %s18, 1
    %s26 = ssub.s32 %s18, %s25
    %p27 = scmp.eq.s32.totalorder %s26, 0
    %s29 = sadd.s32 %s28, 1
    %s30 = scalar_select %p27, %s28, %s29
    %p33 = pneg %p27
    %p34 = scmp.eq.s32.totalorder %s18, 1
    %p35 = por %p33, %p34
    %p36 = scmp.ne.s32.totalorder %s28, %s31
    %p37 = scmp.eq.s32.totalorder %s18, 0
    %p38 = por %p36, %p37
    %p39 = scmp.ne.s32.totalorder %s28, %s31
    %p40 = scmp.eq.s32.totalorder %s23, 1
    %p41 = por %p39, %p40
    %p42 = scmp.ne.s32.totalorder %s31, %s32
    %p43 = scmp.eq.s32.totalorder %s23, 0
    %p44 = por %p42, %p43
    %p45 = scmp.ne.s32.totalorder %s31, %s32
    %p46 = scmp.eq.s32.totalorder %s24, 1
    %p47 = por %p45, %p46
    %p49 = scmp.ne.s32.totalorder %s32, %s48
    %p50 = scmp.eq.s32.totalorder %s24, 0
    %p51 = por %p49, %p50
    %s53 = sadd.s32 %s52, 1
    %p56 = scmp.eq.s32.totalorder %s18, 1
    %p57 = scmp.ne.s32.totalorder %s52, %s54
    %p58 = scmp.eq.s32.totalorder %s18, 0
    %p59 = por %p57, %p58
    %p60 = scmp.ne.s32.totalorder %s52, %s54
    %p61 = scmp.eq.s32.totalorder %s23, 1
    %p62 = por %p60, %p61
    %p63 = scmp.ne.s32.totalorder %s54, %s55
    %p64 = scmp.eq.s32.totalorder %s23, 0
    %p65 = por %p63, %p64
    %p66 = scmp.ne.s32.totalorder %s54, %s55
    %p67 = scmp.eq.s32.totalorder %s24, 1
    %p68 = por %p66, %p67
    %p70 = scmp.ne.s32.totalorder %s55, %s69
    %p71 = scmp.eq.s32.totalorder %s24, 0
    %p72 = por %p70, %p71
    %s74 = sadd.s32 %s73, 1
    %p77 = scmp.eq.s32.totalorder %s18, 1
    %p78 = scmp.ne.s32.totalorder %s73, %s75
    %p79 = scmp.eq.s32.totalorder %s18, 0
    %p80 = por %p78, %p79
    %p81 = scmp.ne.s32.totalorder %s73, %s75
    %p82 = scmp.eq.s32.totalorder %s23, 1
    %p83 = por %p81, %p82
    %p84 = scmp.ne.s32.totalorder %s75, %s76
    %p85 = scmp.eq.s32.totalorder %s23, 0
    %p86 = por %p84, %p85
    %p87 = scmp.ne.s32.totalorder %s75, %s76
    %p88 = scmp.eq.s32.totalorder %s24, 1
    %p89 = por %p87, %p88
    %p91 = scmp.ne.s32.totalorder %s76, %s90
    %p92 = scmp.eq.s32.totalorder %s24, 0
    %p93 = por %p91, %p92
    %s95 = sadd.s32 %s94, 1
    %p98 = scmp.eq.s32.totalorder %s18, 1
    %p99 = scmp.ne.s32.totalorder %s94, %s96
    %p100 = scmp.eq.s32.totalorder %s18, 0
    %p101 = por %p99, %p100
    %p102 = scmp.ne.s32.totalorder %s94, %s96
    %p103 = scmp.eq.s32.totalorder %s23, 1
    %p104 = por %p102, %p103
    %p105 = scmp.ne.s32.totalorder %s96, %s97
    %p106 = scmp.eq.s32.totalorder %s23, 0
    %p107 = por %p105, %p106
    %p108 = scmp.ne.s32.totalorder %s96, %s97
    %p109 = scmp.eq.s32.totalorder %s24, 1
    %p110 = por %p108, %p109
    %p112 = scmp.ne.s32.totalorder %s97, %s111
    %p113 = scmp.eq.s32.totalorder %s24, 0
    %p114 = por %p112, %p113
    %s116 = sadd.s32 %s115, 1
    %p119 = scmp.eq.s32.totalorder %s18, 1
    %p120 = scmp.ne.s32.totalorder %s115, %s117
    %p121 = scmp.eq.s32.totalorder %s18, 0
    %p122 = por %p120, %p121
    %p123 = scmp.ne.s32.totalorder %s115, %s117
    %p124 = scmp.eq.s32.totalorder %s23, 1
    %p125 = por %p123, %p124
    %p126 = scmp.ne.s32.totalorder %s117, %s118
    %p127 = scmp.eq.s32.totalorder %s23, 0
    %p128 = por %p126, %p127
    %p129 = scmp.ne.s32.totalorder %s117, %s118
    %p130 = scmp.eq.s32.totalorder %s24, 1
    %p131 = por %p129, %p130
    %p133 = scmp.ne.s32.totalorder %s118, %s132
    %p134 = scmp.eq.s32.totalorder %s24, 0
    %p135 = por %p133, %p134
    %s137 = sadd.s32 %s136, 1
    %p140 = scmp.eq.s32.totalorder %s18, 1
    %p141 = scmp.ne.s32.totalorder %s136, %s138
    %p142 = scmp.eq.s32.totalorder %s18, 0
    %p143 = por %p141, %p142
    %p144 = scmp.ne.s32.totalorder %s136, %s138
    %p145 = scmp.eq.s32.totalorder %s23, 1
    %p146 = por %p144, %p145
    %p147 = scmp.ne.s32.totalorder %s138, %s139
    %p148 = scmp.eq.s32.totalorder %s23, 0
    %p149 = por %p147, %p148
    %p150 = scmp.ne.s32.totalorder %s138, %s139
    %p151 = scmp.eq.s32.totalorder %s24, 1
    %p152 = por %p150, %p151
    %p154 = scmp.ne.s32.totalorder %s139, %s153
    %p155 = scmp.eq.s32.totalorder %s24, 0
    %p156 = por %p154, %p155
    %s158 = sadd.s32 %s157, 1
    %p161 = scmp.eq.s32.totalorder %s18, 1
    %p162 = scmp.ne.s32.totalorder %s157, %s159
    %p163 = scmp.eq.s32.totalorder %s18, 0
    %p164 = por %p162, %p163
    %p165 = scmp.ne.s32.totalorder %s157, %s159
    %p166 = scmp.eq.s32.totalorder %s23, 1
    %p167 = por %p165, %p166
    %p168 = scmp.ne.s32.totalorder %s159, %s160
    %p169 = scmp.eq.s32.totalorder %s23, 0
    %p170 = por %p168, %p169
    %p171 = scmp.ne.s32.totalorder %s159, %s160
    %p172 = scmp.eq.s32.totalorder %s24, 1
    %p173 = por %p171, %p172
    %p175 = scmp.ne.s32.totalorder %s160, %s174
    %p176 = scmp.eq.s32.totalorder %s24, 0
    %p177 = por %p175, %p176
    %s179 = sadd.s32 %s178, 1
    %p182 = scmp.eq.s32.totalorder %s18, 1
    %p183 = scmp.ne.s32.totalorder %s178, %s180
    %p184 = scmp.eq.s32.totalorder %s18, 0
    %p185 = por %p183, %p184
    %p186 = scmp.ne.s32.totalorder %s178, %s180
    %p187 = scmp.eq.s32.totalorder %s23, 1
    %p188 = por %p186, %p187
    %p189 = scmp.ne.s32.totalorder %s180, %s181
    %p190 = scmp.eq.s32.totalorder %s23, 0
    %p191 = por %p189, %p190
    %p192 = scmp.ne.s32.totalorder %s180, %s181
    %p193 = scmp.eq.s32.totalorder %s24, 1
    %p194 = por %p192, %p193
    %p196 = scmp.ne.s32.totalorder %s181, %s195
    %p197 = scmp.eq.s32.totalorder %s24, 0
    %p198 = por %p196, %p197
    %s200 = sadd.s32 %s199, 1
    %p203 = scmp.eq.s32.totalorder %s18, 1
    %p204 = scmp.ne.s32.totalorder %s199, %s201
    %p205 = scmp.eq.s32.totalorder %s18, 0
    %p206 = por %p204, %p205
    %p207 = scmp.ne.s32.totalorder %s199, %s201
    %p208 = scmp.eq.s32.totalorder %s23, 1
    %p209 = por %p207, %p208
    %p210 = scmp.ne.s32.totalorder %s201, %s202
    %p211 = scmp.eq.s32.totalorder %s23, 0
    %p212 = por %p210, %p211
    %p213 = scmp.ne.s32.totalorder %s201, %s202
    %p214 = scmp.eq.s32.totalorder %s24, 1
    %p215 = por %p213, %p214
    %p217 = scmp.ne.s32.totalorder %s202, %s216
    %p218 = scmp.eq.s32.totalorder %s24, 0
    %p219 = por %p217, %p218
    %s221 = sadd.s32 %s220, 1
    %p224 = scmp.eq.s32.totalorder %s18, 1
    %p225 = scmp.ne.s32.totalorder %s220, %s222
    %p226 = scmp.eq.s32.totalorder %s18, 0
    %p227 = por %p225, %p226
    %p228 = scmp.ne.s32.totalorder %s220, %s222
    %p229 = scmp.eq.s32.totalorder %s23, 1
    %p230 = por %p228, %p229
    %p231 = scmp.ne.s32.totalorder %s222, %s223
    %p232 = scmp.eq.s32.totalorder %s23, 0
    %p233 = por %p231, %p232
    %p234 = scmp.ne.s32.totalorder %s222, %s223
    %p235 = scmp.eq.s32.totalorder %s24, 1
    %p236 = por %p234, %p235
    %p238 = scmp.ne.s32.totalorder %s223, %s237
    %p239 = scmp.eq.s32.totalorder %s24, 0
    %p240 = por %p238, %p239
    %s242 = sadd.s32 %s241, 1
    %p245 = scmp.eq.s32.totalorder %s18, 1
    %p246 = scmp.ne.s32.totalorder %s241, %s243
    %p247 = scmp.eq.s32.totalorder %s18, 0
    %p248 = por %p246, %p247
    %p249 = scmp.ne.s32.totalorder %s241, %s243
    %p250 = scmp.eq.s32.totalorder %s23, 1
    %p251 = por %p249, %p250
    %p252 = scmp.ne.s32.totalorder %s243, %s244
    %p253 = scmp.eq.s32.totalorder %s23, 0
    %p254 = por %p252, %p253
    %p255 = scmp.ne.s32.totalorder %s243, %s244
    %p256 = scmp.eq.s32.totalorder %s24, 1
    %p257 = por %p255, %p256
    %p259 = scmp.ne.s32.totalorder %s244, %s258
    %p260 = scmp.eq.s32.totalorder %s24, 0
    %p261 = por %p259, %p260
    %s263 = sadd.s32 %s262, 1
    %p266 = scmp.eq.s32.totalorder %s18, 1
    %p267 = scmp.ne.s32.totalorder %s262, %s264
    %p268 = scmp.eq.s32.totalorder %s18, 0
    %p269 = por %p267, %p268
    %p270 = scmp.ne.s32.totalorder %s262, %s264
    %p271 = scmp.eq.s32.totalorder %s23, 1
    %p272 = por %p270, %p271
    %p273 = scmp.ne.s32.totalorder %s264, %s265
    %p274 = scmp.eq.s32.totalorder %s23, 0
    %p275 = por %p273, %p274
    %p276 = scmp.ne.s32.totalorder %s264, %s265
    %p277 = scmp.eq.s32.totalorder %s24, 1
    %p278 = por %p276, %p277
    %p280 = scmp.ne.s32.totalorder %s265, %s279
    %p281 = scmp.eq.s32.totalorder %s24, 0
    %p282 = por %p280, %p281
    %s283 = ssub.s32 %s18, %s25
    %p284 = scmp.eq.s32.totalorder %s283, 0
    %s286 = sadd.s32 %s285, 1
    %s287 = scalar_select %p284, %s285, %s286
    %p290 = pneg %p284
    %p291 = scmp.eq.s32.totalorder %s18, 1
    %p292 = por %p290, %p291
    %p293 = scmp.ne.s32.totalorder %s285, %s288
    %p294 = scmp.eq.s32.totalorder %s18, 0
    %p295 = por %p293, %p294
    %p296 = scmp.ne.s32.totalorder %s285, %s288
    %p297 = scmp.eq.s32.totalorder %s23, 1
    %p298 = por %p296, %p297
    %p299 = scmp.ne.s32.totalorder %s288, %s289
    %p300 = scmp.eq.s32.totalorder %s23, 0
    %p301 = por %p299, %p300
    %p302 = scmp.ne.s32.totalorder %s288, %s289
    %p303 = scmp.eq.s32.totalorder %s24, 1
    %p304 = por %p302, %p303
    %p306 = scmp.ne.s32.totalorder %s289, %s305
    %p307 = scmp.eq.s32.totalorder %s24, 0
    %p308 = por %p306, %p307
    %p309 = scmp.le.s32.totalorder 1, %s18
    %p310 = scmp.lt.s32.totalorder %s18, 3
    %p311 = pnand %p309, %p310
    %p312 = pneg %p311
    // Predicated region
    $region9: #{light_unet_forward.1} parent=5 // pred_check
      _
    $region10: #{light_unet_forward.1} parent=5 // pred_check_branch
      %314 = sbr.rel (%p311) target = $region12
    $region11: #{light_unet_forward.1} parent=5 // pred_region
      %s315 = ssub.s32 %s18, 1
      // Predicated region
      $region13: #{light_unet_forward.1} parent=11 // pred_check
        %p316 = pneg %p65
      $region14: #{light_unet_forward.1} parent=11 // pred_check_branch
        %318 = sbr.rel (%p316) target = $region16
      $region15: #{light_unet_forward.1} parent=11 // pred_region
        _
      $region16: #{light_unet_forward.1} parent=11 // pred_fallthru
        _
      // Predicated region
      $region17: #{light_unet_forward.1} parent=11 // pred_check
        %p319 = pneg %p86
      $region18: #{light_unet_forward.1} parent=11 // pred_check_branch
        %321 = sbr.rel (%p319) target = $region20
      $region19: #{light_unet_forward.1} parent=11 // pred_region
        _
      $region20: #{light_unet_forward.1} parent=11 // pred_fallthru
        _
      // Predicated region
      $region21: #{light_unet_forward.1} parent=11 // pred_check
        %p322 = pneg %p107
      $region22: #{light_unet_forward.1} parent=11 // pred_check_branch
        %324 = sbr.rel (%p322) target = $region24
      $region23: #{light_unet_forward.1} parent=11 // pred_region
        _
      $region24: #{light_unet_forward.1} parent=11 // pred_fallthru
        _
      // Predicated region
      $region25: #{light_unet_forward.1} parent=11 // pred_check
        %p325 = pneg %p128
      $region26: #{light_unet_forward.1} parent=11 // pred_check_branch
        %327 = sbr.rel (%p325) target = $region28
      $region27: #{light_unet_forward.1} parent=11 // pred_region
        _
      $region28: #{light_unet_forward.1} parent=11 // pred_fallthru
        _
      // Predicated region
      $region29: #{light_unet_forward.1} parent=11 // pred_check
        %p328 = pneg %p149
      $region30: #{light_unet_forward.1} parent=11 // pred_check_branch
        %330 = sbr.rel (%p328) target = $region32
      $region31: #{light_unet_forward.1} parent=11 // pred_region
        _
      $region32: #{light_unet_forward.1} parent=11 // pred_fallthru
        _
      // Predicated region
      $region33: #{light_unet_forward.1} parent=11 // pred_check
        %p331 = pneg %p170
      $region34: #{light_unet_forward.1} parent=11 // pred_check_branch
        %333 = sbr.rel (%p331) target = $region36
      $region35: #{light_unet_forward.1} parent=11 // pred_region
        _
      $region36: #{light_unet_forward.1} parent=11 // pred_fallthru
        _
      // Predicated region
      $region37: #{light_unet_forward.1} parent=11 // pred_check
        %p334 = pneg %p191
      $region38: #{light_unet_forward.1} parent=11 // pred_check_branch
        %336 = sbr.rel (%p334) target = $region40
      $region39: #{light_unet_forward.1} parent=11 // pred_region
        _
      $region40: #{light_unet_forward.1} parent=11 // pred_fallthru
        _
      // Predicated region
      $region41: #{light_unet_forward.1} parent=11 // pred_check
        %p337 = pneg %p212
      $region42: #{light_unet_forward.1} parent=11 // pred_check_branch
        %339 = sbr.rel (%p337) target = $region44
      $region43: #{light_unet_forward.1} parent=11 // pred_region
        _
      $region44: #{light_unet_forward.1} parent=11 // pred_fallthru
        _
      // Predicated region
      $region45: #{light_unet_forward.1} parent=11 // pred_check
        %p340 = pneg %p233
      $region46: #{light_unet_forward.1} parent=11 // pred_check_branch
        %342 = sbr.rel (%p340) target = $region48
      $region47: #{light_unet_forward.1} parent=11 // pred_region
        _
      $region48: #{light_unet_forward.1} parent=11 // pred_fallthru
        _
      // Predicated region
      $region49: #{light_unet_forward.1} parent=11 // pred_check
        %p343 = pneg %p254
      $region50: #{light_unet_forward.1} parent=11 // pred_check_branch
        %345 = sbr.rel (%p343) target = $region52
      $region51: #{light_unet_forward.1} parent=11 // pred_region
        _
      $region52: #{light_unet_forward.1} parent=11 // pred_fallthru
        _
      // Predicated region
      $region53: #{light_unet_forward.1} parent=11 // pred_check
        %p346 = pneg %p275
      $region54: #{light_unet_forward.1} parent=11 // pred_check_branch
        %348 = sbr.rel (%p346) target = $region56
      $region55: #{light_unet_forward.1} parent=11 // pred_region
        _
      $region56: #{light_unet_forward.1} parent=11 // pred_fallthru
        _
    $region12: #{light_unet_forward.1} parent=5 // pred_fallthru
      _
    %p349 = scmp.lt.s32.totalorder %s18, 2
    // Predicated region
    $region57: #{light_unet_forward.1} parent=5 // pred_check
      %p350 = pneg %p349
    $region58: #{light_unet_forward.1} parent=5 // pred_check_branch
      %352 = sbr.rel (%p350) target = $region60
    $region59: #{light_unet_forward.1} parent=5 // pred_region
      // Predicated region
      $region61: #{light_unet_forward.1} parent=59 // pred_check
        %p353 = pneg %p38
      $region62: #{light_unet_forward.1} parent=59 // pred_check_branch
        %355 = sbr.rel (%p353) target = $region64
      $region63: #{light_unet_forward.1} parent=59 // pred_region
        %p356 = scmp.lt.s32.totalorder %s18, 1
        %s357 = scalar_select %p356, %s18, 1
        %s358 = smul.addr %s357, 32
        %s359 = smul.addr %s358, 4
        %s360 = scalar_lea.vmem %s0, %s359
      $region64: #{light_unet_forward.1} parent=59 // pred_fallthru
        _
    $region60: #{light_unet_forward.1} parent=5 // pred_fallthru
      _
    %p361 = scmp.le.s32.totalorder 1, %s18
    %p362 = scmp.lt.s32.totalorder %s18, 3
    %p363 = pnand %p361, %p362
    %p364 = pneg %p363
    // Predicated region
    $region65: #{light_unet_forward.1} parent=5 // pred_check
      _
    $region66: #{light_unet_forward.1} parent=5 // pred_check_branch
      %366 = sbr.rel (%p363) target = $region68
    $region67: #{light_unet_forward.1} parent=5 // pred_region
      %s367 = ssub.s32 %s18, 1
      %p368 = scmp.lt.s32.totalorder %s23, 1
      %s369 = scalar_select %p368, %s23, 1
      %s370 = smul.addr %s369, 32
      %s371 = smul.addr %s370, 4
      %s372 = scalar_lea.vmem %s0, %s371
      %p373 = pneg %p44
      %p374 = pneg %p41
      %p375 = pneg %p65
      %p376 = pneg %p62
      %p377 = pneg %p86
      %p378 = pneg %p83
      %p379 = pneg %p107
      %p380 = pneg %p104
      %p381 = pneg %p128
      %p382 = pneg %p125
      %p383 = pneg %p149
      %p384 = pneg %p146
      %p385 = pneg %p170
      %p386 = pneg %p167
      %p387 = pneg %p191
      %p388 = pneg %p188
      %p389 = pneg %p212
      %p390 = pneg %p209
      %p391 = pneg %p233
      %p392 = pneg %p230
      %p393 = pneg %p254
      %p394 = pneg %p251
      %p395 = pneg %p275
      %p396 = pneg %p272
      %p397 = pneg %p301
      %p398 = pneg %p298
      %p399 = scmp.lt.s32.totalorder %s23, 1
      %s400 = scalar_select %p399, %s23, 1
      %s401 = smul.addr %s400, 32
      %s402 = smul.addr %s401, 8
      %s403 = scalar_lea.vmem %s12, %s402
      %p404 = scmp.lt.s32.totalorder %s23, 1
      %s405 = scalar_select %p404, %s23, 1
      %s406 = smul.addr %s405, 32
      %s407 = smul.addr %s406, 4
      %s408 = scalar_lea.vmem %s0, %s407
      %p409 = scmp.lt.s32.totalorder %s23, 1
      %s410 = scalar_select %p409, %s23, 1
      %s411 = smul.addr %s410, 32
      %s412 = smul.addr %s411, 8
      %s413 = scalar_lea.vmem %s12, %s412
      %v415 = vld [vmem:[%s408] sm:$0xf]
      %v416 = vld [vmem:[%s408 + $0x4] sm:$0xf]
      %v417 = vld [vmem:[%s408 + $0x8] sm:$0xf]
      %v418 = vld [vmem:[%s408 + $0xc] sm:$0xf]
      %v419 = vld [vmem:[%s408 + $0x10] sm:$0xf]
      %v420 = vld [vmem:[%s408 + $0x14] sm:$0xf]
      %v421 = vld [vmem:[%s408 + $0x18] sm:$0xf]
      %v422 = vld [vmem:[%s408 + $0x1c] sm:$0xf]
      %v423 = vld [vmem:[%s408 + $0x20] sm:$0xf]
      %v424 = vld [vmem:[%s408 + $0x24] sm:$0xf]
      %v425 = vld [vmem:[%s408 + $0x28] sm:$0xf]
      %v426 = vld [vmem:[%s408 + $0x2c] sm:$0xf]
      %v427 = vld [vmem:[%s408 + $0x30] sm:$0xf]
      %v428 = vld [vmem:[%s408 + $0x34] sm:$0xf]
      %v429 = vld [vmem:[%s408 + $0x38] sm:$0xf]
      %v430 = vld [vmem:[%s408 + $0x3c] sm:$0xf]
      %v431 = vld [vmem:[%s408 + $0x40] sm:$0xf]
      %v432 = vld [vmem:[%s408 + $0x44] sm:$0xf]
      %v433 = vld [vmem:[%s408 + $0x48] sm:$0xf]
      %v434 = vld [vmem:[%s408 + $0x4c] sm:$0xf]
      %v435 = vld [vmem:[%s408 + $0x50] sm:$0xf]
      %v436 = vld [vmem:[%s408 + $0x54] sm:$0xf]
      %v437 = vld [vmem:[%s408 + $0x58] sm:$0xf]
      %v438 = vld [vmem:[%s408 + $0x5c] sm:$0xf]
      %v439 = vld [vmem:[%s408 + $0x60] sm:$0xf]
      %v440 = vld [vmem:[%s408 + $0x64] sm:$0xf]
      %v441 = vld [vmem:[%s408 + $0x68] sm:$0xf]
      %v442 = vld [vmem:[%s408 + $0x6c] sm:$0xf]
      %v443 = vld [vmem:[%s408 + $0x70] sm:$0xf]
      %v444 = vld [vmem:[%s408 + $0x74] sm:$0xf]
      %v445 = vld [vmem:[%s408 + $0x78] sm:$0xf]
      %v446 = vld [vmem:[%s408 + $0x7c] sm:$0xf]
      %v447 = vld [vmem:[%s1] sm:$0xf]
      %v448 = vld [vmem:[%s1 + $0x4] sm:$0xf]
      %v449 = vld [vmem:[%s1 + $0x8] sm:$0xf]
      %v450 = vld [vmem:[%s1 + $0xc] sm:$0xf]
      %v451 = vld [vmem:[%s1 + $0x10] sm:$0x3]
      %v452 = vld [vmem:[%s2] sm:$0x1]
      %v454 = vperm.slane %v452, 0
      %v488 = vunpack.c.l.b16 %v415
      %v489 = vunpack.c.l.b16 %v416
      %v490 = vunpack.c.l.b16 %v417
      %v491 = vunpack.c.l.b16 %v418
      %v492 = vunpack.c.l.b16 %v419
      %v493 = vunpack.c.l.b16 %v420
      %v494 = vunpack.c.l.b16 %v421
      %v495 = vunpack.c.l.b16 %v422
      %v496 = vunpack.c.l.b16 %v423
      %v497 = vunpack.c.l.b16 %v424
      %v498 = vunpack.c.l.b16 %v425
      %v499 = vunpack.c.l.b16 %v426
      %v500 = vunpack.c.l.b16 %v427
      %v501 = vunpack.c.l.b16 %v428
      %v502 = vunpack.c.l.b16 %v429
      %v503 = vunpack.c.l.b16 %v430
      %v504 = vunpack.c.l.b16 %v431
      %v505 = vunpack.c.l.b16 %v432
      %v506 = vunpack.c.l.b16 %v433
      %v507 = vunpack.c.l.b16 %v434
      %v508 = vunpack.c.l.b16 %v435
      %v509 = vunpack.c.l.b16 %v436
      %v510 = vunpack.c.l.b16 %v437
      %v511 = vunpack.c.l.b16 %v438
      %v512 = vunpack.c.l.b16 %v439
      %v513 = vunpack.c.l.b16 %v440
      %v514 = vunpack.c.l.b16 %v441
      %v515 = vunpack.c.l.b16 %v442
      %v516 = vunpack.c.l.b16 %v443
      %v517 = vunpack.c.l.b16 %v444
      %v518 = vunpack.c.l.b16 %v445
      %v519 = vunpack.c.l.b16 %v446
      %v520 = vpack.c.b16 %v489, %v488
      %v521 = vpack.c.b16 %v491, %v490
      %v522 = vpack.c.b16 %v493, %v492
      %v523 = vpack.c.b16 %v495, %v494
      %v524 = vpack.c.b16 %v497, %v496
      %v525 = vpack.c.b16 %v499, %v498
      %v526 = vpack.c.b16 %v501, %v500
      %v527 = vpack.c.b16 %v503, %v502
      %v528 = vpack.c.b16 %v505, %v504
      %v529 = vpack.c.b16 %v507, %v506
      %v530 = vpack.c.b16 %v509, %v508
      %v531 = vpack.c.b16 %v511, %v510
      %v532 = vpack.c.b16 %v513, %v512
      %v533 = vpack.c.b16 %v515, %v514
      %v534 = vpack.c.b16 %v517, %v516
      %v535 = vpack.c.b16 %v519, %v518
      %v541 = vunpack.c.l.b16 %v447
      %v542 = vunpack.c.l.b16 %v448
      %v543 = vunpack.c.l.b16 %v449
      %v544 = vunpack.c.l.b16 %v450
      %v545 = vunpack.c.l.b16 %v451
      %v546 = vpack.c.b16 %v542, %v541
      %v547 = vpack.c.b16 %v544, %v543
      %v548 = vpack.c.b16 %v545, %v545
      %vm551 = vcmask 293888
      %v553 = vsel %vm551, %v520, 0
      %v556 = vsel %vm551, %v521, 0
      %v559 = vsel %vm551, %v522, 0
      %v562 = vsel %vm551, %v523, 0
      %v565 = vsel %vm551, %v524, 0
      %v568 = vsel %vm551, %v525, 0
      %v571 = vsel %vm551, %v526, 0
      %v574 = vsel %vm551, %v527, 0
      %v577 = vsel %vm551, %v528, 0
      %v580 = vsel %vm551, %v529, 0
      %v583 = vsel %vm551, %v530, 0
      %v586 = vsel %vm551, %v531, 0
      %v589 = vsel %vm551, %v532, 0
      %v592 = vsel %vm551, %v533, 0
      %v595 = vsel %vm551, %v534, 0
      %v598 = vsel %vm551, %v535, 0
      %vm600 = vcmask 1041408
      %v602 = vsel %vm600, %v548, 0
      %604 = vmatpush.bf16.msra.mxu0 0
      %605 = vmatpush.bf16.msra.mxu0 0
      %606 = vmatpush.bf16.msra.mxu0 0
      %607 = vmatpush.bf16.msra.mxu0 0
      %608 = vmatpush.bf16.msra.mxu0 0
      %609 = vmatpush.bf16.msra.mxu0 %v602
      %610 = vmatpush.bf16.msra.mxu0 %v547
      %611 = vmatpush.bf16.msra.mxu0 %v546
      %612 = vmatmul.bf16.gmra.mxu0 %v553
      %v613 = vpop.f32.mrf.mxu0
      %v614 = vadd.f32 %v454, %v613
      %v615 = vpop.f32.mrf.mxu0
      %v616 = vadd.f32 %v454, %v615
      %617 = vmatmul.bf16.gmra.mxu0 %v556
      %v618 = vpop.f32.mrf.mxu0
      %v619 = vadd.f32 %v454, %v618
      %v620 = vpop.f32.mrf.mxu0
      %v621 = vadd.f32 %v454, %v620
      %622 = vmatmul.bf16.gmra.mxu0 %v559
      %v623 = vpop.f32.mrf.mxu0
      %v624 = vadd.f32 %v454, %v623
      %v625 = vpop.f32.mrf.mxu0
      %v626 = vadd.f32 %v454, %v625
      %627 = vmatmul.bf16.gmra.mxu0 %v562
      %v628 = vpop.f32.mrf.mxu0
      %v629 = vadd.f32 %v454, %v628
      %v630 = vpop.f32.mrf.mxu0
      %v631 = vadd.f32 %v454, %v630
      %632 = vmatmul.bf16.gmra.mxu0 %v565
      %v633 = vpop.f32.mrf.mxu0
      %v634 = vadd.f32 %v454, %v633
      %v635 = vpop.f32.mrf.mxu0
      %v636 = vadd.f32 %v454, %v635
      %637 = vmatmul.bf16.gmra.mxu0 %v568
      %v638 = vpop.f32.mrf.mxu0
      %v639 = vadd.f32 %v454, %v638
      %v640 = vpop.f32.mrf.mxu0
      %v641 = vadd.f32 %v454, %v640
      %642 = vmatmul.bf16.gmra.mxu0 %v571
      %v643 = vpop.f32.mrf.mxu0
      %v644 = vadd.f32 %v454, %v643
      %v645 = vpop.f32.mrf.mxu0
      %v646 = vadd.f32 %v454, %v645
      %647 = vmatmul.bf16.gmra.mxu0 %v574
      %v648 = vpop.f32.mrf.mxu0
      %v649 = vadd.f32 %v454, %v648
      %v650 = vpop.f32.mrf.mxu0
      %v651 = vadd.f32 %v454, %v650
      %652 = vmatmul.bf16.gmra.mxu0 %v577
      %v653 = vpop.f32.mrf.mxu0
      %v654 = vadd.f32 %v454, %v653
      %v655 = vpop.f32.mrf.mxu0
      %v656 = vadd.f32 %v454, %v655
      %657 = vmatmul.bf16.gmra.mxu0 %v580
      %v658 = vpop.f32.mrf.mxu0
      %v659 = vadd.f32 %v454, %v658
      %v660 = vpop.f32.mrf.mxu0
      %v661 = vadd.f32 %v454, %v660
      %662 = vmatmul.bf16.gmra.mxu0 %v583
      %v663 = vpop.f32.mrf.mxu0
      %v664 = vadd.f32 %v454, %v663
      %v665 = vpop.f32.mrf.mxu0
      %v666 = vadd.f32 %v454, %v665
      %667 = vmatmul.bf16.gmra.mxu0 %v586
      %v668 = vpop.f32.mrf.mxu0
      %v669 = vadd.f32 %v454, %v668
      %v670 = vpop.f32.mrf.mxu0
      %v671 = vadd.f32 %v454, %v670
      %672 = vmatmul.bf16.gmra.mxu0 %v589
      %v673 = vpop.f32.mrf.mxu0
      %v674 = vadd.f32 %v454, %v673
      %v675 = vpop.f32.mrf.mxu0
      %v676 = vadd.f32 %v454, %v675
      %677 = vmatmul.bf16.gmra.mxu0 %v592
      %v678 = vpop.f32.mrf.mxu0
      %v679 = vadd.f32 %v454, %v678
      %v680 = vpop.f32.mrf.mxu0
      %v681 = vadd.f32 %v454, %v680
      %682 = vmatmul.bf16.gmra.mxu0 %v595
      %v683 = vpop.f32.mrf.mxu0
      %v684 = vadd.f32 %v454, %v683
      %v685 = vpop.f32.mrf.mxu0
      %v686 = vadd.f32 %v454, %v685
      %687 = vmatmul.bf16.gmra.mxu0 %v598
      %v688 = vpop.f32.mrf.mxu0
      %v689 = vadd.f32 %v454, %v688
      %v690 = vpop.f32.mrf.mxu0
      %v691 = vadd.f32 %v454, %v690
      %692 = vdwg.mxu0
      %v693 = vmax.f32 %v614, 0.0
      %v694 = vmax.f32 %v616, 0.0
      %v695 = vmax.f32 %v619, 0.0
      %v696 = vmax.f32 %v621, 0.0
      %v697 = vmax.f32 %v624, 0.0
      %v698 = vmax.f32 %v626, 0.0
      %v699 = vmax.f32 %v629, 0.0
      %v700 = vmax.f32 %v631, 0.0
      %v701 = vmax.f32 %v634, 0.0
      %v702 = vmax.f32 %v636, 0.0
      %v703 = vmax.f32 %v639, 0.0
      %v704 = vmax.f32 %v641, 0.0
      %v705 = vmax.f32 %v644, 0.0
      %v706 = vmax.f32 %v646, 0.0
      %v707 = vmax.f32 %v649, 0.0
      %v708 = vmax.f32 %v651, 0.0
      %v709 = vmax.f32 %v654, 0.0
      %v710 = vmax.f32 %v656, 0.0
      %v711 = vmax.f32 %v659, 0.0
      %v712 = vmax.f32 %v661, 0.0
      %v713 = vmax.f32 %v664, 0.0
      %v714 = vmax.f32 %v666, 0.0
      %v715 = vmax.f32 %v669, 0.0
      %v716 = vmax.f32 %v671, 0.0
      %v717 = vmax.f32 %v674, 0.0
      %v718 = vmax.f32 %v676, 0.0
      %v719 = vmax.f32 %v679, 0.0
      %v720 = vmax.f32 %v681, 0.0
      %v721 = vmax.f32 %v684, 0.0
      %v722 = vmax.f32 %v686, 0.0
      %v723 = vmax.f32 %v689, 0.0
      %v724 = vmax.f32 %v691, 0.0
      %v757 = vrot.slane %v693, 2
      %v758 = vrot.slane %v693, 4
      %v759 = vrot.slane %v693, 6
      %v760 = vrot.slane %v694, 2
      %v761 = vrot.slane %v694, 4
      %v762 = vrot.slane %v694, 6
      %v763 = vrot.slane %v695, 2
      %v764 = vrot.slane %v695, 4
      %v765 = vrot.slane %v695, 6
      %v766 = vrot.slane %v696, 2
      %v767 = vrot.slane %v696, 4
      %v768 = vrot.slane %v696, 6
      %v769 = vrot.slane %v697, 2
      %v770 = vrot.slane %v697, 4
      %v771 = vrot.slane %v697, 6
      %v772 = vrot.slane %v698, 2
      %v773 = vrot.slane %v698, 4
      %v774 = vrot.slane %v698, 6
      %v775 = vrot.slane %v699, 2
      %v776 = vrot.slane %v699, 4
      %v777 = vrot.slane %v699, 6
      %v778 = vrot.slane %v700, 2
      %v779 = vrot.slane %v700, 4
      %v780 = vrot.slane %v700, 6
      %v781 = vrot.slane %v701, 2
      %v782 = vrot.slane %v701, 4
      %v783 = vrot.slane %v701, 6
      %v784 = vrot.slane %v702, 2
      %v785 = vrot.slane %v702, 4
      %v786 = vrot.slane %v702, 6
      %v787 = vrot.slane %v703, 2
      %v788 = vrot.slane %v703, 4
      %v789 = vrot.slane %v703, 6
      %v790 = vrot.slane %v704, 2
      %v791 = vrot.slane %v704, 4
      %v792 = vrot.slane %v704, 6
      %v793 = vrot.slane %v705, 2
      %v794 = vrot.slane %v705, 4
      %v795 = vrot.slane %v705, 6
      %v796 = vrot.slane %v706, 2
      %v797 = vrot.slane %v706, 4
      %v798 = vrot.slane %v706, 6
      %v799 = vrot.slane %v707, 2
      %v800 = vrot.slane %v707, 4
      %v801 = vrot.slane %v707, 6
      %v802 = vrot.slane %v708, 2
      %v803 = vrot.slane %v708, 4
      %v804 = vrot.slane %v708, 6
      %v805 = vrot.slane %v709, 2
      %v806 = vrot.slane %v709, 4
      %v807 = vrot.slane %v709, 6
      %v808 = vrot.slane %v710, 2
      %v809 = vrot.slane %v710, 4
      %v810 = vrot.slane %v710, 6
      %v811 = vrot.slane %v711, 2
      %v812 = vrot.slane %v711, 4
      %v813 = vrot.slane %v711, 6
      %v814 = vrot.slane %v712, 2
      %v815 = vrot.slane %v712, 4
      %v816 = vrot.slane %v712, 6
      %v817 = vrot.slane %v713, 2
      %v818 = vrot.slane %v713, 4
      %v819 = vrot.slane %v713, 6
      %v820 = vrot.slane %v714, 2
      %v821 = vrot.slane %v714, 4
      %v822 = vrot.slane %v714, 6
      %v823 = vrot.slane %v715, 2
      %v824 = vrot.slane %v715, 4
      %v825 = vrot.slane %v715, 6
      %v826 = vrot.slane %v716, 2
      %v827 = vrot.slane %v716, 4
      %v828 = vrot.slane %v716, 6
      %v829 = vrot.slane %v717, 2
      %v830 = vrot.slane %v717, 4
      %v831 = vrot.slane %v717, 6
      %v832 = vrot.slane %v718, 2
      %v833 = vrot.slane %v718, 4
      %v834 = vrot.slane %v718, 6
      %v835 = vrot.slane %v719, 2
      %v836 = vrot.slane %v719, 4
      %v837 = vrot.slane %v719, 6
      %v838 = vrot.slane %v720, 2
      %v839 = vrot.slane %v720, 4
      %v840 = vrot.slane %v720, 6
      %v841 = vrot.slane %v721, 2
      %v842 = vrot.slane %v721, 4
      %v843 = vrot.slane %v721, 6
      %v844 = vrot.slane %v722, 2
      %v845 = vrot.slane %v722, 4
      %v846 = vrot.slane %v722, 6
      %v847 = vrot.slane %v723, 2
      %v848 = vrot.slane %v723, 4
      %v849 = vrot.slane %v723, 6
      %v850 = vrot.slane %v724, 2
      %v851 = vrot.slane %v724, 4
      %v852 = vrot.slane %v724, 6
      %vm949 = vcmask 254976
      %v950 = vsel %vm949, %v693, -inf
      %v951 = vrot.slane %v950, 4
      %v952 = vmax.f32 %v950, %v951
      %v953 = vrot.slane %v952, 2
      %v954 = vmax.f32 %v952, %v953
      %v955 = vrot.slane %v954, 1
      %v956 = vmax.f32 %v954, %v955
      %v957 = vsel %vm949, %v757, -inf
      %v958 = vrot.slane %v957, 4
      %v959 = vmax.f32 %v957, %v958
      %v960 = vrot.slane %v959, 2
      %v961 = vmax.f32 %v959, %v960
      %v962 = vrot.slane %v961, 1
      %v963 = vmax.f32 %v961, %v962
      %v964 = vsel %vm949, %v758, -inf
      %v965 = vrot.slane %v964, 4
      %v966 = vmax.f32 %v964, %v965
      %v967 = vrot.slane %v966, 2
      %v968 = vmax.f32 %v966, %v967
      %v969 = vrot.slane %v968, 1
      %v970 = vmax.f32 %v968, %v969
      %v971 = vsel %vm949, %v759, -inf
      %v972 = vrot.slane %v971, 4
      %v973 = vmax.f32 %v971, %v972
      %v974 = vrot.slane %v973, 2
      %v975 = vmax.f32 %v973, %v974
      %v976 = vrot.slane %v975, 1
      %v977 = vmax.f32 %v975, %v976
      %v978 = vsel %vm949, %v694, -inf
      %v979 = vrot.slane %v978, 4
      %v980 = vmax.f32 %v978, %v979
      %v981 = vrot.slane %v980, 2
      %v982 = vmax.f32 %v980, %v981
      %v983 = vrot.slane %v982, 1
      %v984 = vmax.f32 %v982, %v983
      %v985 = vsel %vm949, %v760, -inf
      %v986 = vrot.slane %v985, 4
      %v987 = vmax.f32 %v985, %v986
      %v988 = vrot.slane %v987, 2
      %v989 = vmax.f32 %v987, %v988
      %v990 = vrot.slane %v989, 1
      %v991 = vmax.f32 %v989, %v990
      %v992 = vsel %vm949, %v761, -inf
      %v993 = vrot.slane %v992, 4
      %v994 = vmax.f32 %v992, %v993
      %v995 = vrot.slane %v994, 2
      %v996 = vmax.f32 %v994, %v995
      %v997 = vrot.slane %v996, 1
      %v998 = vmax.f32 %v996, %v997
      %v999 = vsel %vm949, %v762, -inf
      %v1000 = vrot.slane %v999, 4
      %v1001 = vmax.f32 %v999, %v1000
      %v1002 = vrot.slane %v1001, 2
      %v1003 = vmax.f32 %v1001, %v1002
      %v1004 = vrot.slane %v1003, 1
      %v1005 = vmax.f32 %v1003, %v1004
      %v1006 = vsel %vm949, %v695, -inf
      %v1007 = vrot.slane %v1006, 4
      %v1008 = vmax.f32 %v1006, %v1007
      %v1009 = vrot.slane %v1008, 2
      %v1010 = vmax.f32 %v1008, %v1009
      %v1011 = vrot.slane %v1010, 1
      %v1012 = vmax.f32 %v1010, %v1011
      %v1013 = vsel %vm949, %v763, -inf
      %v1014 = vrot.slane %v1013, 4
      %v1015 = vmax.f32 %v1013, %v1014
      %v1016 = vrot.slane %v1015, 2
      %v1017 = vmax.f32 %v1015, %v1016
      %v1018 = vrot.slane %v1017, 1
      %v1019 = vmax.f32 %v1017, %v1018
      %v1020 = vsel %vm949, %v764, -inf
      %v1021 = vrot.slane %v1020, 4
      %v1022 = vmax.f32 %v1020, %v1021
      %v1023 = vrot.slane %v1022, 2
      %v1024 = vmax.f32 %v1022, %v1023
      %v1025 = vrot.slane %v1024, 1
      %v1026 = vmax.f32 %v1024, %v1025
      %v1027 = vsel %vm949, %v765, -inf
      %v1028 = vrot.slane %v1027, 4
      %v1029 = vmax.f32 %v1027, %v1028
      %v1030 = vrot.slane %v1029, 2
      %v1031 = vmax.f32 %v1029, %v1030
      %v1032 = vrot.slane %v1031, 1
      %v1033 = vmax.f32 %v1031, %v1032
      %v1034 = vsel %vm949, %v696, -inf
      %v1035 = vrot.slane %v1034, 4
      %v1036 = vmax.f32 %v1034, %v1035
      %v1037 = vrot.slane %v1036, 2
      %v1038 = vmax.f32 %v1036, %v1037
      %v1039 = vrot.slane %v1038, 1
      %v1040 = vmax.f32 %v1038, %v1039
      %v1041 = vsel %vm949, %v766, -inf
      %v1042 = vrot.slane %v1041, 4
      %v1043 = vmax.f32 %v1041, %v1042
      %v1044 = vrot.slane %v1043, 2
      %v1045 = vmax.f32 %v1043, %v1044
      %v1046 = vrot.slane %v1045, 1
      %v1047 = vmax.f32 %v1045, %v1046
      %v1048 = vsel %vm949, %v767, -inf
      %v1049 = vrot.slane %v1048, 4
      %v1050 = vmax.f32 %v1048, %v1049
      %v1051 = vrot.slane %v1050, 2
      %v1052 = vmax.f32 %v1050, %v1051
      %v1053 = vrot.slane %v1052, 1
      %v1054 = vmax.f32 %v1052, %v1053
      %v1055 = vsel %vm949, %v768, -inf
      %v1056 = vrot.slane %v1055, 4
      %v1057 = vmax.f32 %v1055, %v1056
      %v1058 = vrot.slane %v1057, 2
      %v1059 = vmax.f32 %v1057, %v1058
      %v1060 = vrot.slane %v1059, 1
      %v1061 = vmax.f32 %v1059, %v1060
      %v1062 = vsel %vm949, %v697, -inf
      %v1063 = vrot.slane %v1062, 4
      %v1064 = vmax.f32 %v1062, %v1063
      %v1065 = vrot.slane %v1064, 2
      %v1066 = vmax.f32 %v1064, %v1065
      %v1067 = vrot.slane %v1066, 1
      %v1068 = vmax.f32 %v1066, %v1067
      %v1069 = vsel %vm949, %v769, -inf
      %v1070 = vrot.slane %v1069, 4
      %v1071 = vmax.f32 %v1069, %v1070
      %v1072 = vrot.slane %v1071, 2
      %v1073 = vmax.f32 %v1071, %v1072
      %v1074 = vrot.slane %v1073, 1
      %v1075 = vmax.f32 %v1073, %v1074
      %v1076 = vsel %vm949, %v770, -inf
      %v1077 = vrot.slane %v1076, 4
      %v1078 = vmax.f32 %v1076, %v1077
      %v1079 = vrot.slane %v1078, 2
      %v1080 = vmax.f32 %v1078, %v1079
      %v1081 = vrot.slane %v1080, 1
      %v1082 = vmax.f32 %v1080, %v1081
      %v1083 = vsel %vm949, %v771, -inf
      %v1084 = vrot.slane %v1083, 4
      %v1085 = vmax.f32 %v1083, %v1084
      %v1086 = vrot.slane %v1085, 2
      %v1087 = vmax.f32 %v1085, %v1086
      %v1088 = vrot.slane %v1087, 1
      %v1089 = vmax.f32 %v1087, %v1088
      %v1090 = vsel %vm949, %v698, -inf
      %v1091 = vrot.slane %v1090, 4
      %v1092 = vmax.f32 %v1090, %v1091
      %v1093 = vrot.slane %v1092, 2
      %v1094 = vmax.f32 %v1092, %v1093
      %v1095 = vrot.slane %v1094, 1
      %v1096 = vmax.f32 %v1094, %v1095
      %v1097 = vsel %vm949, %v772, -inf
      %v1098 = vrot.slane %v1097, 4
      %v1099 = vmax.f32 %v1097, %v1098
      %v1100 = vrot.slane %v1099, 2
      %v1101 = vmax.f32 %v1099, %v1100
      %v1102 = vrot.slane %v1101, 1
      %v1103 = vmax.f32 %v1101, %v1102
      %v1104 = vsel %vm949, %v773, -inf
      %v1105 = vrot.slane %v1104, 4
      %v1106 = vmax.f32 %v1104, %v1105
      %v1107 = vrot.slane %v1106, 2
      %v1108 = vmax.f32 %v1106, %v1107
      %v1109 = vrot.slane %v1108, 1
      %v1110 = vmax.f32 %v1108, %v1109
      %v1111 = vsel %vm949, %v774, -inf
      %v1112 = vrot.slane %v1111, 4
      %v1113 = vmax.f32 %v1111, %v1112
      %v1114 = vrot.slane %v1113, 2
      %v1115 = vmax.f32 %v1113, %v1114
      %v1116 = vrot.slane %v1115, 1
      %v1117 = vmax.f32 %v1115, %v1116
      %v1118 = vsel %vm949, %v699, -inf
      %v1119 = vrot.slane %v1118, 4
      %v1120 = vmax.f32 %v1118, %v1119
      %v1121 = vrot.slane %v1120, 2
      %v1122 = vmax.f32 %v1120, %v1121
      %v1123 = vrot.slane %v1122, 1
      %v1124 = vmax.f32 %v1122, %v1123
      %v1125 = vsel %vm949, %v775, -inf
      %v1126 = vrot.slane %v1125, 4
      %v1127 = vmax.f32 %v1125, %v1126
      %v1128 = vrot.slane %v1127, 2
      %v1129 = vmax.f32 %v1127, %v1128
      %v1130 = vrot.slane %v1129, 1
      %v1131 = vmax.f32 %v1129, %v1130
      %v1132 = vsel %vm949, %v776, -inf
      %v1133 = vrot.slane %v1132, 4
      %v1134 = vmax.f32 %v1132, %v1133
      %v1135 = vrot.slane %v1134, 2
      %v1136 = vmax.f32 %v1134, %v1135
      %v1137 = vrot.slane %v1136, 1
      %v1138 = vmax.f32 %v1136, %v1137
      %v1139 = vsel %vm949, %v777, -inf
      %v1140 = vrot.slane %v1139, 4
      %v1141 = vmax.f32 %v1139, %v1140
      %v1142 = vrot.slane %v1141, 2
      %v1143 = vmax.f32 %v1141, %v1142
      %v1144 = vrot.slane %v1143, 1
      %v1145 = vmax.f32 %v1143, %v1144
      %v1146 = vsel %vm949, %v700, -inf
      %v1147 = vrot.slane %v1146, 4
      %v1148 = vmax.f32 %v1146, %v1147
      %v1149 = vrot.slane %v1148, 2
      %v1150 = vmax.f32 %v1148, %v1149
      %v1151 = vrot.slane %v1150, 1
      %v1152 = vmax.f32 %v1150, %v1151
      %v1153 = vsel %vm949, %v778, -inf
      %v1154 = vrot.slane %v1153, 4
      %v1155 = vmax.f32 %v1153, %v1154
      %v1156 = vrot.slane %v1155, 2
      %v1157 = vmax.f32 %v1155, %v1156
      %v1158 = vrot.slane %v1157, 1
      %v1159 = vmax.f32 %v1157, %v1158
      %v1160 = vsel %vm949, %v779, -inf
      %v1161 = vrot.slane %v1160, 4
      %v1162 = vmax.f32 %v1160, %v1161
      %v1163 = vrot.slane %v1162, 2
      %v1164 = vmax.f32 %v1162, %v1163
      %v1165 = vrot.slane %v1164, 1
      %v1166 = vmax.f32 %v1164, %v1165
      %v1167 = vsel %vm949, %v780, -inf
      %v1168 = vrot.slane %v1167, 4
      %v1169 = vmax.f32 %v1167, %v1168
      %v1170 = vrot.slane %v1169, 2
      %v1171 = vmax.f32 %v1169, %v1170
      %v1172 = vrot.slane %v1171, 1
      %v1173 = vmax.f32 %v1171, %v1172
      %v1174 = vsel %vm949, %v701, -inf
      %v1175 = vrot.slane %v1174, 4
      %v1176 = vmax.f32 %v1174, %v1175
      %v1177 = vrot.slane %v1176, 2
      %v1178 = vmax.f32 %v1176, %v1177
      %v1179 = vrot.slane %v1178, 1
      %v1180 = vmax.f32 %v1178, %v1179
      %v1181 = vsel %vm949, %v781, -inf
      %v1182 = vrot.slane %v1181, 4
      %v1183 = vmax.f32 %v1181, %v1182
      %v1184 = vrot.slane %v1183, 2
      %v1185 = vmax.f32 %v1183, %v1184
      %v1186 = vrot.slane %v1185, 1
      %v1187 = vmax.f32 %v1185, %v1186
      %v1188 = vsel %vm949, %v782, -inf
      %v1189 = vrot.slane %v1188, 4
      %v1190 = vmax.f32 %v1188, %v1189
      %v1191 = vrot.slane %v1190, 2
      %v1192 = vmax.f32 %v1190, %v1191
      %v1193 = vrot.slane %v1192, 1
      %v1194 = vmax.f32 %v1192, %v1193
      %v1195 = vsel %vm949, %v783, -inf
      %v1196 = vrot.slane %v1195, 4
      %v1197 = vmax.f32 %v1195, %v1196
      %v1198 = vrot.slane %v1197, 2
      %v1199 = vmax.f32 %v1197, %v1198
      %v1200 = vrot.slane %v1199, 1
      %v1201 = vmax.f32 %v1199, %v1200
      %v1202 = vsel %vm949, %v702, -inf
      %v1203 = vrot.slane %v1202, 4
      %v1204 = vmax.f32 %v1202, %v1203
      %v1205 = vrot.slane %v1204, 2
      %v1206 = vmax.f32 %v1204, %v1205
      %v1207 = vrot.slane %v1206, 1
      %v1208 = vmax.f32 %v1206, %v1207
      %v1209 = vsel %vm949, %v784, -inf
      %v1210 = vrot.slane %v1209, 4
      %v1211 = vmax.f32 %v1209, %v1210
      %v1212 = vrot.slane %v1211, 2
      %v1213 = vmax.f32 %v1211, %v1212
      %v1214 = vrot.slane %v1213, 1
      %v1215 = vmax.f32 %v1213, %v1214
      %v1216 = vsel %vm949, %v785, -inf
      %v1217 = vrot.slane %v1216, 4
      %v1218 = vmax.f32 %v1216, %v1217
      %v1219 = vrot.slane %v1218, 2
      %v1220 = vmax.f32 %v1218, %v1219
      %v1221 = vrot.slane %v1220, 1
      %v1222 = vmax.f32 %v1220, %v1221
      %v1223 = vsel %vm949, %v786, -inf
      %v1224 = vrot.slane %v1223, 4
      %v1225 = vmax.f32 %v1223, %v1224
      %v1226 = vrot.slane %v1225, 2
      %v1227 = vmax.f32 %v1225, %v1226
      %v1228 = vrot.slane %v1227, 1
      %v1229 = vmax.f32 %v1227, %v1228
      %v1230 = vsel %vm949, %v703, -inf
      %v1231 = vrot.slane %v1230, 4
      %v1232 = vmax.f32 %v1230, %v1231
      %v1233 = vrot.slane %v1232, 2
      %v1234 = vmax.f32 %v1232, %v1233
      %v1235 = vrot.slane %v1234, 1
      %v1236 = vmax.f32 %v1234, %v1235
      %v1237 = vsel %vm949, %v787, -inf
      %v1238 = vrot.slane %v1237, 4
      %v1239 = vmax.f32 %v1237, %v1238
      %v1240 = vrot.slane %v1239, 2
      %v1241 = vmax.f32 %v1239, %v1240
      %v1242 = vrot.slane %v1241, 1
      %v1243 = vmax.f32 %v1241, %v1242
      %v1244 = vsel %vm949, %v788, -inf
      %v1245 = vrot.slane %v1244, 4
      %v1246 = vmax.f32 %v1244, %v1245
      %v1247 = vrot.slane %v1246, 2
      %v1248 = vmax.f32 %v1246, %v1247
      %v1249 = vrot.slane %v1248, 1
      %v1250 = vmax.f32 %v1248, %v1249
      %v1251 = vsel %vm949, %v789, -inf
      %v1252 = vrot.slane %v1251, 4
      %v1253 = vmax.f32 %v1251, %v1252
      %v1254 = vrot.slane %v1253, 2
      %v1255 = vmax.f32 %v1253, %v1254
      %v1256 = vrot.slane %v1255, 1
      %v1257 = vmax.f32 %v1255, %v1256
      %v1258 = vsel %vm949, %v704, -inf
      %v1259 = vrot.slane %v1258, 4
      %v1260 = vmax.f32 %v1258, %v1259
      %v1261 = vrot.slane %v1260, 2
      %v1262 = vmax.f32 %v1260, %v1261
      %v1263 = vrot.slane %v1262, 1
      %v1264 = vmax.f32 %v1262, %v1263
      %v1265 = vsel %vm949, %v790, -inf
      %v1266 = vrot.slane %v1265, 4
      %v1267 = vmax.f32 %v1265, %v1266
      %v1268 = vrot.slane %v1267, 2
      %v1269 = vmax.f32 %v1267, %v1268
      %v1270 = vrot.slane %v1269, 1
      %v1271 = vmax.f32 %v1269, %v1270
      %v1272 = vsel %vm949, %v791, -inf
      %v1273 = vrot.slane %v1272, 4
      %v1274 = vmax.f32 %v1272, %v1273
      %v1275 = vrot.slane %v1274, 2
      %v1276 = vmax.f32 %v1274, %v1275
      %v1277 = vrot.slane %v1276, 1
      %v1278 = vmax.f32 %v1276, %v1277
      %v1279 = vsel %vm949, %v792, -inf
      %v1280 = vrot.slane %v1279, 4
      %v1281 = vmax.f32 %v1279, %v1280
      %v1282 = vrot.slane %v1281, 2
      %v1283 = vmax.f32 %v1281, %v1282
      %v1284 = vrot.slane %v1283, 1
      %v1285 = vmax.f32 %v1283, %v1284
      %v1286 = vsel %vm949, %v705, -inf
      %v1287 = vrot.slane %v1286, 4
      %v1288 = vmax.f32 %v1286, %v1287
      %v1289 = vrot.slane %v1288, 2
      %v1290 = vmax.f32 %v1288, %v1289
      %v1291 = vrot.slane %v1290, 1
      %v1292 = vmax.f32 %v1290, %v1291
      %v1293 = vsel %vm949, %v793, -inf
      %v1294 = vrot.slane %v1293, 4
      %v1295 = vmax.f32 %v1293, %v1294
      %v1296 = vrot.slane %v1295, 2
      %v1297 = vmax.f32 %v1295, %v1296
      %v1298 = vrot.slane %v1297, 1
      %v1299 = vmax.f32 %v1297, %v1298
      %v1300 = vsel %vm949, %v794, -inf
      %v1301 = vrot.slane %v1300, 4
      %v1302 = vmax.f32 %v1300, %v1301
      %v1303 = vrot.slane %v1302, 2
      %v1304 = vmax.f32 %v1302, %v1303
      %v1305 = vrot.slane %v1304, 1
      %v1306 = vmax.f32 %v1304, %v1305
      %v1307 = vsel %vm949, %v795, -inf
      %v1308 = vrot.slane %v1307, 4
      %v1309 = vmax.f32 %v1307, %v1308
      %v1310 = vrot.slane %v1309, 2
      %v1311 = vmax.f32 %v1309, %v1310
      %v1312 = vrot.slane %v1311, 1
      %v1313 = vmax.f32 %v1311, %v1312
      %v1314 = vsel %vm949, %v706, -inf
      %v1315 = vrot.slane %v1314, 4
      %v1316 = vmax.f32 %v1314, %v1315
      %v1317 = vrot.slane %v1316, 2
      %v1318 = vmax.f32 %v1316, %v1317
      %v1319 = vrot.slane %v1318, 1
      %v1320 = vmax.f32 %v1318, %v1319
      %v1321 = vsel %vm949, %v796, -inf
      %v1322 = vrot.slane %v1321, 4
      %v1323 = vmax.f32 %v1321, %v1322
      %v1324 = vrot.slane %v1323, 2
      %v1325 = vmax.f32 %v1323, %v1324
      %v1326 = vrot.slane %v1325, 1
      %v1327 = vmax.f32 %v1325, %v1326
      %v1328 = vsel %vm949, %v797, -inf
      %v1329 = vrot.slane %v1328, 4
      %v1330 = vmax.f32 %v1328, %v1329
      %v1331 = vrot.slane %v1330, 2
      %v1332 = vmax.f32 %v1330, %v1331
      %v1333 = vrot.slane %v1332, 1
      %v1334 = vmax.f32 %v1332, %v1333
      %v1335 = vsel %vm949, %v798, -inf
      %v1336 = vrot.slane %v1335, 4
      %v1337 = vmax.f32 %v1335, %v1336
      %v1338 = vrot.slane %v1337, 2
      %v1339 = vmax.f32 %v1337, %v1338
      %v1340 = vrot.slane %v1339, 1
      %v1341 = vmax.f32 %v1339, %v1340
      %v1342 = vsel %vm949, %v707, -inf
      %v1343 = vrot.slane %v1342, 4
      %v1344 = vmax.f32 %v1342, %v1343
      %v1345 = vrot.slane %v1344, 2
      %v1346 = vmax.f32 %v1344, %v1345
      %v1347 = vrot.slane %v1346, 1
      %v1348 = vmax.f32 %v1346, %v1347
      %v1349 = vsel %vm949, %v799, -inf
      %v1350 = vrot.slane %v1349, 4
      %v1351 = vmax.f32 %v1349, %v1350
      %v1352 = vrot.slane %v1351, 2
      %v1353 = vmax.f32 %v1351, %v1352
      %v1354 = vrot.slane %v1353, 1
      %v1355 = vmax.f32 %v1353, %v1354
      %v1356 = vsel %vm949, %v800, -inf
      %v1357 = vrot.slane %v1356, 4
      %v1358 = vmax.f32 %v1356, %v1357
      %v1359 = vrot.slane %v1358, 2
      %v1360 = vmax.f32 %v1358, %v1359
      %v1361 = vrot.slane %v1360, 1
      %v1362 = vmax.f32 %v1360, %v1361
      %v1363 = vsel %vm949, %v801, -inf
      %v1364 = vrot.slane %v1363, 4
      %v1365 = vmax.f32 %v1363, %v1364
      %v1366 = vrot.slane %v1365, 2
      %v1367 = vmax.f32 %v1365, %v1366
      %v1368 = vrot.slane %v1367, 1
      %v1369 = vmax.f32 %v1367, %v1368
      %v1370 = vsel %vm949, %v708, -inf
      %v1371 = vrot.slane %v1370, 4
      %v1372 = vmax.f32 %v1370, %v1371
      %v1373 = vrot.slane %v1372, 2
      %v1374 = vmax.f32 %v1372, %v1373
      %v1375 = vrot.slane %v1374, 1
      %v1376 = vmax.f32 %v1374, %v1375
      %v1377 = vsel %vm949, %v802, -inf
      %v1378 = vrot.slane %v1377, 4
      %v1379 = vmax.f32 %v1377, %v1378
      %v1380 = vrot.slane %v1379, 2
      %v1381 = vmax.f32 %v1379, %v1380
      %v1382 = vrot.slane %v1381, 1
      %v1383 = vmax.f32 %v1381, %v1382
      %v1384 = vsel %vm949, %v803, -inf
      %v1385 = vrot.slane %v1384, 4
      %v1386 = vmax.f32 %v1384, %v1385
      %v1387 = vrot.slane %v1386, 2
      %v1388 = vmax.f32 %v1386, %v1387
      %v1389 = vrot.slane %v1388, 1
      %v1390 = vmax.f32 %v1388, %v1389
      %v1391 = vsel %vm949, %v804, -inf
      %v1392 = vrot.slane %v1391, 4
      %v1393 = vmax.f32 %v1391, %v1392
      %v1394 = vrot.slane %v1393, 2
      %v1395 = vmax.f32 %v1393, %v1394
      %v1396 = vrot.slane %v1395, 1
      %v1397 = vmax.f32 %v1395, %v1396
      %v1398 = vsel %vm949, %v709, -inf
      %v1399 = vrot.slane %v1398, 4
      %v1400 = vmax.f32 %v1398, %v1399
      %v1401 = vrot.slane %v1400, 2
      %v1402 = vmax.f32 %v1400, %v1401
      %v1403 = vrot.slane %v1402, 1
      %v1404 = vmax.f32 %v1402, %v1403
      %v1405 = vsel %vm949, %v805, -inf
      %v1406 = vrot.slane %v1405, 4
      %v1407 = vmax.f32 %v1405, %v1406
      %v1408 = vrot.slane %v1407, 2
      %v1409 = vmax.f32 %v1407, %v1408
      %v1410 = vrot.slane %v1409, 1
      %v1411 = vmax.f32 %v1409, %v1410
      %v1412 = vsel %vm949, %v806, -inf
      %v1413 = vrot.slane %v1412, 4
      %v1414 = vmax.f32 %v1412, %v1413
      %v1415 = vrot.slane %v1414, 2
      %v1416 = vmax.f32 %v1414, %v1415
      %v1417 = vrot.slane %v1416, 1
      %v1418 = vmax.f32 %v1416, %v1417
      %v1419 = vsel %vm949, %v807, -inf
      %v1420 = vrot.slane %v1419, 4
      %v1421 = vmax.f32 %v1419, %v1420
      %v1422 = vrot.slane %v1421, 2
      %v1423 = vmax.f32 %v1421, %v1422
      %v1424 = vrot.slane %v1423, 1
      %v1425 = vmax.f32 %v1423, %v1424
      %v1426 = vsel %vm949, %v710, -inf
      %v1427 = vrot.slane %v1426, 4
      %v1428 = vmax.f32 %v1426, %v1427
      %v1429 = vrot.slane %v1428, 2
      %v1430 = vmax.f32 %v1428, %v1429
      %v1431 = vrot.slane %v1430, 1
      %v1432 = vmax.f32 %v1430, %v1431
      %v1433 = vsel %vm949, %v808, -inf
      %v1434 = vrot.slane %v1433, 4
      %v1435 = vmax.f32 %v1433, %v1434
      %v1436 = vrot.slane %v1435, 2
      %v1437 = vmax.f32 %v1435, %v1436
      %v1438 = vrot.slane %v1437, 1
      %v1439 = vmax.f32 %v1437, %v1438
      %v1440 = vsel %vm949, %v809, -inf
      %v1441 = vrot.slane %v1440, 4
      %v1442 = vmax.f32 %v1440, %v1441
      %v1443 = vrot.slane %v1442, 2
      %v1444 = vmax.f32 %v1442, %v1443
      %v1445 = vrot.slane %v1444, 1
      %v1446 = vmax.f32 %v1444, %v1445
      %v1447 = vsel %vm949, %v810, -inf
      %v1448 = vrot.slane %v1447, 4
      %v1449 = vmax.f32 %v1447, %v1448
      %v1450 = vrot.slane %v1449, 2
      %v1451 = vmax.f32 %v1449, %v1450
      %v1452 = vrot.slane %v1451, 1
      %v1453 = vmax.f32 %v1451, %v1452
      %v1454 = vsel %vm949, %v711, -inf
      %v1455 = vrot.slane %v1454, 4
      %v1456 = vmax.f32 %v1454, %v1455
      %v1457 = vrot.slane %v1456, 2
      %v1458 = vmax.f32 %v1456, %v1457
      %v1459 = vrot.slane %v1458, 1
      %v1460 = vmax.f32 %v1458, %v1459
      %v1461 = vsel %vm949, %v811, -inf
      %v1462 = vrot.slane %v1461, 4
      %v1463 = vmax.f32 %v1461, %v1462
      %v1464 = vrot.slane %v1463, 2
      %v1465 = vmax.f32 %v1463, %v1464
      %v1466 = vrot.slane %v1465, 1
      %v1467 = vmax.f32 %v1465, %v1466
      %v1468 = vsel %vm949, %v812, -inf
      %v1469 = vrot.slane %v1468, 4
      %v1470 = vmax.f32 %v1468, %v1469
      %v1471 = vrot.slane %v1470, 2
      %v1472 = vmax.f32 %v1470, %v1471
      %v1473 = vrot.slane %v1472, 1
      %v1474 = vmax.f32 %v1472, %v1473
      %v1475 = vsel %vm949, %v813, -inf
      %v1476 = vrot.slane %v1475, 4
      %v1477 = vmax.f32 %v1475, %v1476
      %v1478 = vrot.slane %v1477, 2
      %v1479 = vmax.f32 %v1477, %v1478
      %v1480 = vrot.slane %v1479, 1
      %v1481 = vmax.f32 %v1479, %v1480
      %v1482 = vsel %vm949, %v712, -inf
      %v1483 = vrot.slane %v1482, 4
      %v1484 = vmax.f32 %v1482, %v1483
      %v1485 = vrot.slane %v1484, 2
      %v1486 = vmax.f32 %v1484, %v1485
      %v1487 = vrot.slane %v1486, 1
      %v1488 = vmax.f32 %v1486, %v1487
      %v1489 = vsel %vm949, %v814, -inf
      %v1490 = vrot.slane %v1489, 4
      %v1491 = vmax.f32 %v1489, %v1490
      %v1492 = vrot.slane %v1491, 2
      %v1493 = vmax.f32 %v1491, %v1492
      %v1494 = vrot.slane %v1493, 1
      %v1495 = vmax.f32 %v1493, %v1494
      %v1496 = vsel %vm949, %v815, -inf
      %v1497 = vrot.slane %v1496, 4
      %v1498 = vmax.f32 %v1496, %v1497
      %v1499 = vrot.slane %v1498, 2
      %v1500 = vmax.f32 %v1498, %v1499
      %v1501 = vrot.slane %v1500, 1
      %v1502 = vmax.f32 %v1500, %v1501
      %v1503 = vsel %vm949, %v816, -inf
      %v1504 = vrot.slane %v1503, 4
      %v1505 = vmax.f32 %v1503, %v1504
      %v1506 = vrot.slane %v1505, 2
      %v1507 = vmax.f32 %v1505, %v1506
      %v1508 = vrot.slane %v1507, 1
      %v1509 = vmax.f32 %v1507, %v1508
      %v1510 = vsel %vm949, %v713, -inf
      %v1511 = vrot.slane %v1510, 4
      %v1512 = vmax.f32 %v1510, %v1511
      %v1513 = vrot.slane %v1512, 2
      %v1514 = vmax.f32 %v1512, %v1513
      %v1515 = vrot.slane %v1514, 1
      %v1516 = vmax.f32 %v1514, %v1515
      %v1517 = vsel %vm949, %v817, -inf
      %v1518 = vrot.slane %v1517, 4
      %v1519 = vmax.f32 %v1517, %v1518
      %v1520 = vrot.slane %v1519, 2
      %v1521 = vmax.f32 %v1519, %v1520
      %v1522 = vrot.slane %v1521, 1
      %v1523 = vmax.f32 %v1521, %v1522
      %v1524 = vsel %vm949, %v818, -inf
      %v1525 = vrot.slane %v1524, 4
      %v1526 = vmax.f32 %v1524, %v1525
      %v1527 = vrot.slane %v1526, 2
      %v1528 = vmax.f32 %v1526, %v1527
      %v1529 = vrot.slane %v1528, 1
      %v1530 = vmax.f32 %v1528, %v1529
      %v1531 = vsel %vm949, %v819, -inf
      %v1532 = vrot.slane %v1531, 4
      %v1533 = vmax.f32 %v1531, %v1532
      %v1534 = vrot.slane %v1533, 2
      %v1535 = vmax.f32 %v1533, %v1534
      %v1536 = vrot.slane %v1535, 1
      %v1537 = vmax.f32 %v1535, %v1536
      %v1538 = vsel %vm949, %v714, -inf
      %v1539 = vrot.slane %v1538, 4
      %v1540 = vmax.f32 %v1538, %v1539
      %v1541 = vrot.slane %v1540, 2
      %v1542 = vmax.f32 %v1540, %v1541
      %v1543 = vrot.slane %v1542, 1
      %v1544 = vmax.f32 %v1542, %v1543
      %v1545 = vsel %vm949, %v820, -inf
      %v1546 = vrot.slane %v1545, 4
      %v1547 = vmax.f32 %v1545, %v1546
      %v1548 = vrot.slane %v1547, 2
      %v1549 = vmax.f32 %v1547, %v1548
      %v1550 = vrot.slane %v1549, 1
      %v1551 = vmax.f32 %v1549, %v1550
      %v1552 = vsel %vm949, %v821, -inf
      %v1553 = vrot.slane %v1552, 4
      %v1554 = vmax.f32 %v1552, %v1553
      %v1555 = vrot.slane %v1554, 2
      %v1556 = vmax.f32 %v1554, %v1555
      %v1557 = vrot.slane %v1556, 1
      %v1558 = vmax.f32 %v1556, %v1557
      %v1559 = vsel %vm949, %v822, -inf
      %v1560 = vrot.slane %v1559, 4
      %v1561 = vmax.f32 %v1559, %v1560
      %v1562 = vrot.slane %v1561, 2
      %v1563 = vmax.f32 %v1561, %v1562
      %v1564 = vrot.slane %v1563, 1
      %v1565 = vmax.f32 %v1563, %v1564
      %v1566 = vsel %vm949, %v715, -inf
      %v1567 = vrot.slane %v1566, 4
      %v1568 = vmax.f32 %v1566, %v1567
      %v1569 = vrot.slane %v1568, 2
      %v1570 = vmax.f32 %v1568, %v1569
      %v1571 = vrot.slane %v1570, 1
      %v1572 = vmax.f32 %v1570, %v1571
      %v1573 = vsel %vm949, %v823, -inf
      %v1574 = vrot.slane %v1573, 4
      %v1575 = vmax.f32 %v1573, %v1574
      %v1576 = vrot.slane %v1575, 2
      %v1577 = vmax.f32 %v1575, %v1576
      %v1578 = vrot.slane %v1577, 1
      %v1579 = vmax.f32 %v1577, %v1578
      %v1580 = vsel %vm949, %v824, -inf
      %v1581 = vrot.slane %v1580, 4
      %v1582 = vmax.f32 %v1580, %v1581
      %v1583 = vrot.slane %v1582, 2
      %v1584 = vmax.f32 %v1582, %v1583
      %v1585 = vrot.slane %v1584, 1
      %v1586 = vmax.f32 %v1584, %v1585
      %v1587 = vsel %vm949, %v825, -inf
      %v1588 = vrot.slane %v1587, 4
      %v1589 = vmax.f32 %v1587, %v1588
      %v1590 = vrot.slane %v1589, 2
      %v1591 = vmax.f32 %v1589, %v1590
      %v1592 = vrot.slane %v1591, 1
      %v1593 = vmax.f32 %v1591, %v1592
      %v1594 = vsel %vm949, %v716, -inf
      %v1595 = vrot.slane %v1594, 4
      %v1596 = vmax.f32 %v1594, %v1595
      %v1597 = vrot.slane %v1596, 2
      %v1598 = vmax.f32 %v1596, %v1597
      %v1599 = vrot.slane %v1598, 1
      %v1600 = vmax.f32 %v1598, %v1599
      %v1601 = vsel %vm949, %v826, -inf
      %v1602 = vrot.slane %v1601, 4
      %v1603 = vmax.f32 %v1601, %v1602
      %v1604 = vrot.slane %v1603, 2
      %v1605 = vmax.f32 %v1603, %v1604
      %v1606 = vrot.slane %v1605, 1
      %v1607 = vmax.f32 %v1605, %v1606
      %v1608 = vsel %vm949, %v827, -inf
      %v1609 = vrot.slane %v1608, 4
      %v1610 = vmax.f32 %v1608, %v1609
      %v1611 = vrot.slane %v1610, 2
      %v1612 = vmax.f32 %v1610, %v1611
      %v1613 = vrot.slane %v1612, 1
      %v1614 = vmax.f32 %v1612, %v1613
      %v1615 = vsel %vm949, %v828, -inf
      %v1616 = vrot.slane %v1615, 4
      %v1617 = vmax.f32 %v1615, %v1616
      %v1618 = vrot.slane %v1617, 2
      %v1619 = vmax.f32 %v1617, %v1618
      %v1620 = vrot.slane %v1619, 1
      %v1621 = vmax.f32 %v1619, %v1620
      %v1622 = vsel %vm949, %v717, -inf
      %v1623 = vrot.slane %v1622, 4
      %v1624 = vmax.f32 %v1622, %v1623
      %v1625 = vrot.slane %v1624, 2
      %v1626 = vmax.f32 %v1624, %v1625
      %v1627 = vrot.slane %v1626, 1
      %v1628 = vmax.f32 %v1626, %v1627
      %v1629 = vsel %vm949, %v829, -inf
      %v1630 = vrot.slane %v1629, 4
      %v1631 = vmax.f32 %v1629, %v1630
      %v1632 = vrot.slane %v1631, 2
      %v1633 = vmax.f32 %v1631, %v1632
      %v1634 = vrot.slane %v1633, 1
      %v1635 = vmax.f32 %v1633, %v1634
      %v1636 = vsel %vm949, %v830, -inf
      %v1637 = vrot.slane %v1636, 4
      %v1638 = vmax.f32 %v1636, %v1637
      %v1639 = vrot.slane %v1638, 2
      %v1640 = vmax.f32 %v1638, %v1639
      %v1641 = vrot.slane %v1640, 1
      %v1642 = vmax.f32 %v1640, %v1641
      %v1643 = vsel %vm949, %v831, -inf
      %v1644 = vrot.slane %v1643, 4
      %v1645 = vmax.f32 %v1643, %v1644
      %v1646 = vrot.slane %v1645, 2
      %v1647 = vmax.f32 %v1645, %v1646
      %v1648 = vrot.slane %v1647, 1
      %v1649 = vmax.f32 %v1647, %v1648
      %v1650 = vsel %vm949, %v718, -inf
      %v1651 = vrot.slane %v1650, 4
      %v1652 = vmax.f32 %v1650, %v1651
      %v1653 = vrot.slane %v1652, 2
      %v1654 = vmax.f32 %v1652, %v1653
      %v1655 = vrot.slane %v1654, 1
      %v1656 = vmax.f32 %v1654, %v1655
      %v1657 = vsel %vm949, %v832, -inf
      %v1658 = vrot.slane %v1657, 4
      %v1659 = vmax.f32 %v1657, %v1658
      %v1660 = vrot.slane %v1659, 2
      %v1661 = vmax.f32 %v1659, %v1660
      %v1662 = vrot.slane %v1661, 1
      %v1663 = vmax.f32 %v1661, %v1662
      %v1664 = vsel %vm949, %v833, -inf
      %v1665 = vrot.slane %v1664, 4
      %v1666 = vmax.f32 %v1664, %v1665
      %v1667 = vrot.slane %v1666, 2
      %v1668 = vmax.f32 %v1666, %v1667
      %v1669 = vrot.slane %v1668, 1
      %v1670 = vmax.f32 %v1668, %v1669
      %v1671 = vsel %vm949, %v834, -inf
      %v1672 = vrot.slane %v1671, 4
      %v1673 = vmax.f32 %v1671, %v1672
      %v1674 = vrot.slane %v1673, 2
      %v1675 = vmax.f32 %v1673, %v1674
      %v1676 = vrot.slane %v1675, 1
      %v1677 = vmax.f32 %v1675, %v1676
      %v1678 = vsel %vm949, %v719, -inf
      %v1679 = vrot.slane %v1678, 4
      %v1680 = vmax.f32 %v1678, %v1679
      %v1681 = vrot.slane %v1680, 2
      %v1682 = vmax.f32 %v1680, %v1681
      %v1683 = vrot.slane %v1682, 1
      %v1684 = vmax.f32 %v1682, %v1683
      %v1685 = vsel %vm949, %v835, -inf
      %v1686 = vrot.slane %v1685, 4
      %v1687 = vmax.f32 %v1685, %v1686
      %v1688 = vrot.slane %v1687, 2
      %v1689 = vmax.f32 %v1687, %v1688
      %v1690 = vrot.slane %v1689, 1
      %v1691 = vmax.f32 %v1689, %v1690
      %v1692 = vsel %vm949, %v836, -inf
      %v1693 = vrot.slane %v1692, 4
      %v1694 = vmax.f32 %v1692, %v1693
      %v1695 = vrot.slane %v1694, 2
      %v1696 = vmax.f32 %v1694, %v1695
      %v1697 = vrot.slane %v1696, 1
      %v1698 = vmax.f32 %v1696, %v1697
      %v1699 = vsel %vm949, %v837, -inf
      %v1700 = vrot.slane %v1699, 4
      %v1701 = vmax.f32 %v1699, %v1700
      %v1702 = vrot.slane %v1701, 2
      %v1703 = vmax.f32 %v1701, %v1702
      %v1704 = vrot.slane %v1703, 1
      %v1705 = vmax.f32 %v1703, %v1704
      %v1706 = vsel %vm949, %v720, -inf
      %v1707 = vrot.slane %v1706, 4
      %v1708 = vmax.f32 %v1706, %v1707
      %v1709 = vrot.slane %v1708, 2
      %v1710 = vmax.f32 %v1708, %v1709
      %v1711 = vrot.slane %v1710, 1
      %v1712 = vmax.f32 %v1710, %v1711
      %v1713 = vsel %vm949, %v838, -inf
      %v1714 = vrot.slane %v1713, 4
      %v1715 = vmax.f32 %v1713, %v1714
      %v1716 = vrot.slane %v1715, 2
      %v1717 = vmax.f32 %v1715, %v1716
      %v1718 = vrot.slane %v1717, 1
      %v1719 = vmax.f32 %v1717, %v1718
      %v1720 = vsel %vm949, %v839, -inf
      %v1721 = vrot.slane %v1720, 4
      %v1722 = vmax.f32 %v1720, %v1721
      %v1723 = vrot.slane %v1722, 2
      %v1724 = vmax.f32 %v1722, %v1723
      %v1725 = vrot.slane %v1724, 1
      %v1726 = vmax.f32 %v1724, %v1725
      %v1727 = vsel %vm949, %v840, -inf
      %v1728 = vrot.slane %v1727, 4
      %v1729 = vmax.f32 %v1727, %v1728
      %v1730 = vrot.slane %v1729, 2
      %v1731 = vmax.f32 %v1729, %v1730
      %v1732 = vrot.slane %v1731, 1
      %v1733 = vmax.f32 %v1731, %v1732
      %v1734 = vsel %vm949, %v721, -inf
      %v1735 = vrot.slane %v1734, 4
      %v1736 = vmax.f32 %v1734, %v1735
      %v1737 = vrot.slane %v1736, 2
      %v1738 = vmax.f32 %v1736, %v1737
      %v1739 = vrot.slane %v1738, 1
      %v1740 = vmax.f32 %v1738, %v1739
      %v1741 = vsel %vm949, %v841, -inf
      %v1742 = vrot.slane %v1741, 4
      %v1743 = vmax.f32 %v1741, %v1742
      %v1744 = vrot.slane %v1743, 2
      %v1745 = vmax.f32 %v1743, %v1744
      %v1746 = vrot.slane %v1745, 1
      %v1747 = vmax.f32 %v1745, %v1746
      %v1748 = vsel %vm949, %v842, -inf
      %v1749 = vrot.slane %v1748, 4
      %v1750 = vmax.f32 %v1748, %v1749
      %v1751 = vrot.slane %v1750, 2
      %v1752 = vmax.f32 %v1750, %v1751
      %v1753 = vrot.slane %v1752, 1
      %v1754 = vmax.f32 %v1752, %v1753
      %v1755 = vsel %vm949, %v843, -inf
      %v1756 = vrot.slane %v1755, 4
      %v1757 = vmax.f32 %v1755, %v1756
      %v1758 = vrot.slane %v1757, 2
      %v1759 = vmax.f32 %v1757, %v1758
      %v1760 = vrot.slane %v1759, 1
      %v1761 = vmax.f32 %v1759, %v1760
      %v1762 = vsel %vm949, %v722, -inf
      %v1763 = vrot.slane %v1762, 4
      %v1764 = vmax.f32 %v1762, %v1763
      %v1765 = vrot.slane %v1764, 2
      %v1766 = vmax.f32 %v1764, %v1765
      %v1767 = vrot.slane %v1766, 1
      %v1768 = vmax.f32 %v1766, %v1767
      %v1769 = vsel %vm949, %v844, -inf
      %v1770 = vrot.slane %v1769, 4
      %v1771 = vmax.f32 %v1769, %v1770
      %v1772 = vrot.slane %v1771, 2
      %v1773 = vmax.f32 %v1771, %v1772
      %v1774 = vrot.slane %v1773, 1
      %v1775 = vmax.f32 %v1773, %v1774
      %v1776 = vsel %vm949, %v845, -inf
      %v1777 = vrot.slane %v1776, 4
      %v1778 = vmax.f32 %v1776, %v1777
      %v1779 = vrot.slane %v1778, 2
      %v1780 = vmax.f32 %v1778, %v1779
      %v1781 = vrot.slane %v1780, 1
      %v1782 = vmax.f32 %v1780, %v1781
      %v1783 = vsel %vm949, %v846, -inf
      %v1784 = vrot.slane %v1783, 4
      %v1785 = vmax.f32 %v1783, %v1784
      %v1786 = vrot.slane %v1785, 2
      %v1787 = vmax.f32 %v1785, %v1786
      %v1788 = vrot.slane %v1787, 1
      %v1789 = vmax.f32 %v1787, %v1788
      %v1790 = vsel %vm949, %v723, -inf
      %v1791 = vrot.slane %v1790, 4
      %v1792 = vmax.f32 %v1790, %v1791
      %v1793 = vrot.slane %v1792, 2
      %v1794 = vmax.f32 %v1792, %v1793
      %v1795 = vrot.slane %v1794, 1
      %v1796 = vmax.f32 %v1794, %v1795
      %v1797 = vsel %vm949, %v847, -inf
      %v1798 = vrot.slane %v1797, 4
      %v1799 = vmax.f32 %v1797, %v1798
      %v1800 = vrot.slane %v1799, 2
      %v1801 = vmax.f32 %v1799, %v1800
      %v1802 = vrot.slane %v1801, 1
      %v1803 = vmax.f32 %v1801, %v1802
      %v1804 = vsel %vm949, %v848, -inf
      %v1805 = vrot.slane %v1804, 4
      %v1806 = vmax.f32 %v1804, %v1805
      %v1807 = vrot.slane %v1806, 2
      %v1808 = vmax.f32 %v1806, %v1807
      %v1809 = vrot.slane %v1808, 1
      %v1810 = vmax.f32 %v1808, %v1809
      %v1811 = vsel %vm949, %v849, -inf
      %v1812 = vrot.slane %v1811, 4
      %v1813 = vmax.f32 %v1811, %v1812
      %v1814 = vrot.slane %v1813, 2
      %v1815 = vmax.f32 %v1813, %v1814
      %v1816 = vrot.slane %v1815, 1
      %v1817 = vmax.f32 %v1815, %v1816
      %v1818 = vsel %vm949, %v724, -inf
      %v1819 = vrot.slane %v1818, 4
      %v1820 = vmax.f32 %v1818, %v1819
      %v1821 = vrot.slane %v1820, 2
      %v1822 = vmax.f32 %v1820, %v1821
      %v1823 = vrot.slane %v1822, 1
      %v1824 = vmax.f32 %v1822, %v1823
      %v1825 = vsel %vm949, %v850, -inf
      %v1826 = vrot.slane %v1825, 4
      %v1827 = vmax.f32 %v1825, %v1826
      %v1828 = vrot.slane %v1827, 2
      %v1829 = vmax.f32 %v1827, %v1828
      %v1830 = vrot.slane %v1829, 1
      %v1831 = vmax.f32 %v1829, %v1830
      %v1832 = vsel %vm949, %v851, -inf
      %v1833 = vrot.slane %v1832, 4
      %v1834 = vmax.f32 %v1832, %v1833
      %v1835 = vrot.slane %v1834, 2
      %v1836 = vmax.f32 %v1834, %v1835
      %v1837 = vrot.slane %v1836, 1
      %v1838 = vmax.f32 %v1836, %v1837
      %v1839 = vsel %vm949, %v852, -inf
      %v1840 = vrot.slane %v1839, 4
      %v1841 = vmax.f32 %v1839, %v1840
      %v1842 = vrot.slane %v1841, 2
      %v1843 = vmax.f32 %v1841, %v1842
      %v1844 = vrot.slane %v1843, 1
      %v1845 = vmax.f32 %v1843, %v1844
      %vm1846 = vcmask 261120
      %v1847 = vsel %vm1846, %v956, -inf
      %v1848 = vsel %vm1846, %v1012, -inf
      %v1849 = vmax.f32 %v1847, %v1848
      %v1850 = vsel %vm1846, %v963, -inf
      %v1851 = vsel %vm1846, %v1019, -inf
      %v1852 = vmax.f32 %v1850, %v1851
      %v1853 = vsel %vm1846, %v970, -inf
      %v1854 = vsel %vm1846, %v1026, -inf
      %v1855 = vmax.f32 %v1853, %v1854
      %v1856 = vsel %vm1846, %v977, -inf
      %v1857 = vsel %vm1846, %v1033, -inf
      %v1858 = vmax.f32 %v1856, %v1857
      %v1859 = vsel %vm1846, %v984, -inf
      %v1860 = vsel %vm1846, %v1040, -inf
      %v1861 = vmax.f32 %v1859, %v1860
      %v1862 = vsel %vm1846, %v991, -inf
      %v1863 = vsel %vm1846, %v1047, -inf
      %v1864 = vmax.f32 %v1862, %v1863
      %v1865 = vsel %vm1846, %v998, -inf
      %v1866 = vsel %vm1846, %v1054, -inf
      %v1867 = vmax.f32 %v1865, %v1866
      %v1868 = vsel %vm1846, %v1005, -inf
      %v1869 = vsel %vm1846, %v1061, -inf
      %v1870 = vmax.f32 %v1868, %v1869
      %v1871 = vsel %vm1846, %v1068, -inf
      %v1872 = vsel %vm1846, %v1124, -inf
      %v1873 = vmax.f32 %v1871, %v1872
      %v1874 = vsel %vm1846, %v1075, -inf
      %v1875 = vsel %vm1846, %v1131, -inf
      %v1876 = vmax.f32 %v1874, %v1875
      %v1877 = vsel %vm1846, %v1082, -inf
      %v1878 = vsel %vm1846, %v1138, -inf
      %v1879 = vmax.f32 %v1877, %v1878
      %v1880 = vsel %vm1846, %v1089, -inf
      %v1881 = vsel %vm1846, %v1145, -inf
      %v1882 = vmax.f32 %v1880, %v1881
      %v1883 = vsel %vm1846, %v1096, -inf
      %v1884 = vsel %vm1846, %v1152, -inf
      %v1885 = vmax.f32 %v1883, %v1884
      %v1886 = vsel %vm1846, %v1103, -inf
      %v1887 = vsel %vm1846, %v1159, -inf
      %v1888 = vmax.f32 %v1886, %v1887
      %v1889 = vsel %vm1846, %v1110, -inf
      %v1890 = vsel %vm1846, %v1166, -inf
      %v1891 = vmax.f32 %v1889, %v1890
      %v1892 = vsel %vm1846, %v1117, -inf
      %v1893 = vsel %vm1846, %v1173, -inf
      %v1894 = vmax.f32 %v1892, %v1893
      %v1895 = vsel %vm1846, %v1180, -inf
      %v1896 = vsel %vm1846, %v1236, -inf
      %v1897 = vmax.f32 %v1895, %v1896
      %v1898 = vsel %vm1846, %v1187, -inf
      %v1899 = vsel %vm1846, %v1243, -inf
      %v1900 = vmax.f32 %v1898, %v1899
      %v1901 = vsel %vm1846, %v1194, -inf
      %v1902 = vsel %vm1846, %v1250, -inf
      %v1903 = vmax.f32 %v1901, %v1902
      %v1904 = vsel %vm1846, %v1201, -inf
      %v1905 = vsel %vm1846, %v1257, -inf
      %v1906 = vmax.f32 %v1904, %v1905
      %v1907 = vsel %vm1846, %v1208, -inf
      %v1908 = vsel %vm1846, %v1264, -inf
      %v1909 = vmax.f32 %v1907, %v1908
      %v1910 = vsel %vm1846, %v1215, -inf
      %v1911 = vsel %vm1846, %v1271, -inf
      %v1912 = vmax.f32 %v1910, %v1911
      %v1913 = vsel %vm1846, %v1222, -inf
      %v1914 = vsel %vm1846, %v1278, -inf
      %v1915 = vmax.f32 %v1913, %v1914
      %v1916 = vsel %vm1846, %v1229, -inf
      %v1917 = vsel %vm1846, %v1285, -inf
      %v1918 = vmax.f32 %v1916, %v1917
      %v1919 = vsel %vm1846, %v1292, -inf
      %v1920 = vsel %vm1846, %v1348, -inf
      %v1921 = vmax.f32 %v1919, %v1920
      %v1922 = vsel %vm1846, %v1299, -inf
      %v1923 = vsel %vm1846, %v1355, -inf
      %v1924 = vmax.f32 %v1922, %v1923
      %v1925 = vsel %vm1846, %v1306, -inf
      %v1926 = vsel %vm1846, %v1362, -inf
      %v1927 = vmax.f32 %v1925, %v1926
      %v1928 = vsel %vm1846, %v1313, -inf
      %v1929 = vsel %vm1846, %v1369, -inf
      %v1930 = vmax.f32 %v1928, %v1929
      %v1931 = vsel %vm1846, %v1320, -inf
      %v1932 = vsel %vm1846, %v1376, -inf
      %v1933 = vmax.f32 %v1931, %v1932
      %v1934 = vsel %vm1846, %v1327, -inf
      %v1935 = vsel %vm1846, %v1383, -inf
      %v1936 = vmax.f32 %v1934, %v1935
      %v1937 = vsel %vm1846, %v1334, -inf
      %v1938 = vsel %vm1846, %v1390, -inf
      %v1939 = vmax.f32 %v1937, %v1938
      %v1940 = vsel %vm1846, %v1341, -inf
      %v1941 = vsel %vm1846, %v1397, -inf
      %v1942 = vmax.f32 %v1940, %v1941
      %v1943 = vsel %vm1846, %v1404, -inf
      %v1944 = vsel %vm1846, %v1460, -inf
      %v1945 = vmax.f32 %v1943, %v1944
      %v1946 = vsel %vm1846, %v1411, -inf
      %v1947 = vsel %vm1846, %v1467, -inf
      %v1948 = vmax.f32 %v1946, %v1947
      %v1949 = vsel %vm1846, %v1418, -inf
      %v1950 = vsel %vm1846, %v1474, -inf
      %v1951 = vmax.f32 %v1949, %v1950
      %v1952 = vsel %vm1846, %v1425, -inf
      %v1953 = vsel %vm1846, %v1481, -inf
      %v1954 = vmax.f32 %v1952, %v1953
      %v1955 = vsel %vm1846, %v1432, -inf
      %v1956 = vsel %vm1846, %v1488, -inf
      %v1957 = vmax.f32 %v1955, %v1956
      %v1958 = vsel %vm1846, %v1439, -inf
      %v1959 = vsel %vm1846, %v1495, -inf
      %v1960 = vmax.f32 %v1958, %v1959
      %v1961 = vsel %vm1846, %v1446, -inf
      %v1962 = vsel %vm1846, %v1502, -inf
      %v1963 = vmax.f32 %v1961, %v1962
      %v1964 = vsel %vm1846, %v1453, -inf
      %v1965 = vsel %vm1846, %v1509, -inf
      %v1966 = vmax.f32 %v1964, %v1965
      %v1967 = vsel %vm1846, %v1516, -inf
      %v1968 = vsel %vm1846, %v1572, -inf
      %v1969 = vmax.f32 %v1967, %v1968
      %v1970 = vsel %vm1846, %v1523, -inf
      %v1971 = vsel %vm1846, %v1579, -inf
      %v1972 = vmax.f32 %v1970, %v1971
      %v1973 = vsel %vm1846, %v1530, -inf
      %v1974 = vsel %vm1846, %v1586, -inf
      %v1975 = vmax.f32 %v1973, %v1974
      %v1976 = vsel %vm1846, %v1537, -inf
      %v1977 = vsel %vm1846, %v1593, -inf
      %v1978 = vmax.f32 %v1976, %v1977
      %v1979 = vsel %vm1846, %v1544, -inf
      %v1980 = vsel %vm1846, %v1600, -inf
      %v1981 = vmax.f32 %v1979, %v1980
      %v1982 = vsel %vm1846, %v1551, -inf
      %v1983 = vsel %vm1846, %v1607, -inf
      %v1984 = vmax.f32 %v1982, %v1983
      %v1985 = vsel %vm1846, %v1558, -inf
      %v1986 = vsel %vm1846, %v1614, -inf
      %v1987 = vmax.f32 %v1985, %v1986
      %v1988 = vsel %vm1846, %v1565, -inf
      %v1989 = vsel %vm1846, %v1621, -inf
      %v1990 = vmax.f32 %v1988, %v1989
      %v1991 = vsel %vm1846, %v1628, -inf
      %v1992 = vsel %vm1846, %v1684, -inf
      %v1993 = vmax.f32 %v1991, %v1992
      %v1994 = vsel %vm1846, %v1635, -inf
      %v1995 = vsel %vm1846, %v1691, -inf
      %v1996 = vmax.f32 %v1994, %v1995
      %v1997 = vsel %vm1846, %v1642, -inf
      %v1998 = vsel %vm1846, %v1698, -inf
      %v1999 = vmax.f32 %v1997, %v1998
      %v2000 = vsel %vm1846, %v1649, -inf
      %v2001 = vsel %vm1846, %v1705, -inf
      %v2002 = vmax.f32 %v2000, %v2001
      %v2003 = vsel %vm1846, %v1656, -inf
      %v2004 = vsel %vm1846, %v1712, -inf
      %v2005 = vmax.f32 %v2003, %v2004
      %v2006 = vsel %vm1846, %v1663, -inf
      %v2007 = vsel %vm1846, %v1719, -inf
      %v2008 = vmax.f32 %v2006, %v2007
      %v2009 = vsel %vm1846, %v1670, -inf
      %v2010 = vsel %vm1846, %v1726, -inf
      %v2011 = vmax.f32 %v2009, %v2010
      %v2012 = vsel %vm1846, %v1677, -inf
      %v2013 = vsel %vm1846, %v1733, -inf
      %v2014 = vmax.f32 %v2012, %v2013
      %v2015 = vsel %vm1846, %v1740, -inf
      %v2016 = vsel %vm1846, %v1796, -inf
      %v2017 = vmax.f32 %v2015, %v2016
      %v2018 = vsel %vm1846, %v1747, -inf
      %v2019 = vsel %vm1846, %v1803, -inf
      %v2020 = vmax.f32 %v2018, %v2019
      %v2021 = vsel %vm1846, %v1754, -inf
      %v2022 = vsel %vm1846, %v1810, -inf
      %v2023 = vmax.f32 %v2021, %v2022
      %v2024 = vsel %vm1846, %v1761, -inf
      %v2025 = vsel %vm1846, %v1817, -inf
      %v2026 = vmax.f32 %v2024, %v2025
      %v2027 = vsel %vm1846, %v1768, -inf
      %v2028 = vsel %vm1846, %v1824, -inf
      %v2029 = vmax.f32 %v2027, %v2028
      %v2030 = vsel %vm1846, %v1775, -inf
      %v2031 = vsel %vm1846, %v1831, -inf
      %v2032 = vmax.f32 %v2030, %v2031
      %v2033 = vsel %vm1846, %v1782, -inf
      %v2034 = vsel %vm1846, %v1838, -inf
      %v2035 = vmax.f32 %v2033, %v2034
      %v2036 = vsel %vm1846, %v1789, -inf
      %v2037 = vsel %vm1846, %v1845, -inf
      %v2038 = vmax.f32 %v2036, %v2037
      %vm2103 = vcmask 1042434
      %v2104 = vsel %vm2103, %v1852, %v1849
      %vm2105 = vcmask 1043459
      %v2106 = vsel %vm2105, %v1855, %v2104
      %vm2107 = vcmask 1044484
      %v2108 = vsel %vm2107, %v1858, %v2106
      %vm2109 = vcmask 1045509
      %v2110 = vsel %vm2109, %v1861, %v2108
      %vm2111 = vcmask 1046534
      %v2112 = vsel %vm2111, %v1864, %v2110
      %vm2113 = vcmask 1047559
      %v2114 = vsel %vm2113, %v1867, %v2112
      %v2115 = vsel %vm2103, %v1876, %v1873
      %v2116 = vsel %vm2105, %v1879, %v2115
      %v2117 = vsel %vm2107, %v1882, %v2116
      %v2118 = vsel %vm2109, %v1885, %v2117
      %v2119 = vsel %vm2111, %v1888, %v2118
      %v2120 = vsel %vm2113, %v1891, %v2119
      %v2121 = vsel %vm2103, %v1900, %v1897
      %v2122 = vsel %vm2105, %v1903, %v2121
      %v2123 = vsel %vm2107, %v1906, %v2122
      %v2124 = vsel %vm2109, %v1909, %v2123
      %v2125 = vsel %vm2111, %v1912, %v2124
      %v2126 = vsel %vm2113, %v1915, %v2125
      %v2127 = vsel %vm2103, %v1924, %v1921
      %v2128 = vsel %vm2105, %v1927, %v2127
      %v2129 = vsel %vm2107, %v1930, %v2128
      %v2130 = vsel %vm2109, %v1933, %v2129
      %v2131 = vsel %vm2111, %v1936, %v2130
      %v2132 = vsel %vm2113, %v1939, %v2131
      %v2133 = vsel %vm2103, %v1948, %v1945
      %v2134 = vsel %vm2105, %v1951, %v2133
      %v2135 = vsel %vm2107, %v1954, %v2134
      %v2136 = vsel %vm2109, %v1957, %v2135
      %v2137 = vsel %vm2111, %v1960, %v2136
      %v2138 = vsel %vm2113, %v1963, %v2137
      %v2139 = vsel %vm2103, %v1972, %v1969
      %v2140 = vsel %vm2105, %v1975, %v2139
      %v2141 = vsel %vm2107, %v1978, %v2140
      %v2142 = vsel %vm2109, %v1981, %v2141
      %v2143 = vsel %vm2111, %v1984, %v2142
      %v2144 = vsel %vm2113, %v1987, %v2143
      %v2145 = vsel %vm2103, %v1996, %v1993
      %v2146 = vsel %vm2105, %v1999, %v2145
      %v2147 = vsel %vm2107, %v2002, %v2146
      %v2148 = vsel %vm2109, %v2005, %v2147
      %v2149 = vsel %vm2111, %v2008, %v2148
      %v2150 = vsel %vm2113, %v2011, %v2149
      %v2151 = vsel %vm2103, %v2020, %v2017
      %v2152 = vsel %vm2105, %v2023, %v2151
      %v2153 = vsel %vm2107, %v2026, %v2152
      %v2154 = vsel %vm2109, %v2029, %v2153
      %v2155 = vsel %vm2111, %v2032, %v2154
      %v2156 = vsel %vm2113, %v2035, %v2155
      %vm2173 = vcmask 1040384
      %v2174 = vsel %vm2173, 0.0, %v2114
      %v2175 = vsel %vm2173, 0.0, %v2120
      %v2176 = vsel %vm2173, 0.0, %v2126
      %v2177 = vsel %vm2173, 0.0, %v2132
      %v2178 = vsel %vm2173, 0.0, %v2138
      %v2179 = vsel %vm2173, 0.0, %v2144
      %v2180 = vsel %vm2173, 0.0, %v2150
      %v2181 = vsel %vm2173, 0.0, %v2156
      %v2182 = vsel %vm2173, %v1870, 0.0
      %v2183 = vsel %vm2173, %v1894, 0.0
      %v2184 = vsel %vm2173, %v1918, 0.0
      %v2185 = vsel %vm2173, %v1942, 0.0
      %v2186 = vsel %vm2173, %v1966, 0.0
      %v2187 = vsel %vm2173, %v1990, 0.0
      %v2188 = vsel %vm2173, %v2014, 0.0
      %v2189 = vsel %vm2173, %v2038, 0.0
      %v2190 = vpack.c.bf16 0.0, 0.0
      %v2191 = vpack.c.bf16 %v2174, %v2174
      %v2192 = vpack.c.bf16 %v2182, %v2182
      %v2193 = vpack.c.bf16 %v2175, %v2175
      %v2194 = vpack.c.bf16 %v2183, %v2183
      %v2195 = vpack.c.bf16 %v2176, %v2176
      %v2196 = vpack.c.bf16 %v2184, %v2184
      %v2197 = vpack.c.bf16 %v2177, %v2177
      %v2198 = vpack.c.bf16 %v2185, %v2185
      %v2199 = vpack.c.bf16 %v2178, %v2178
      %v2200 = vpack.c.bf16 %v2186, %v2186
      %v2201 = vpack.c.bf16 %v2179, %v2179
      %v2202 = vpack.c.bf16 %v2187, %v2187
      %v2203 = vpack.c.bf16 %v2180, %v2180
      %v2204 = vpack.c.bf16 %v2188, %v2188
      %v2205 = vpack.c.bf16 %v2181, %v2181
      %v2206 = vpack.c.bf16 %v2189, %v2189
      %v2207 = vld [vmem:[%s3] sm:$0xf]
      %v2208 = vld [vmem:[%s3 + $0x4] sm:$0xf]
      %v2209 = vld [vmem:[%s3 + $0x8] sm:$0xf]
      %v2210 = vld [vmem:[%s3 + $0xc] sm:$0xf]
      %vm2211 = vsmask.f32 3328
      %vm2212 = vsmask.f32 7440
      %vm2213 = vmor %vm2211, %vm2212
      %v2215 = vshrl.u32 %v2190, 16
      %v2217 = vrot.slane %v2215, 4
      %v2218 = vshll.u32 %v2190, 16
      %v2220 = vrot.slane %v2218, 5
      %v2221 = vor.u32 %v2217, %v2220
      %v2222 = vrot.slane %v2221, 4
      %v2223 = vsel %vm2213, %v2222, %v2220
      %v2225 = vshrl.u32 %v2191, 16
      %v2227 = vrot.slane %v2225, 4
      %v2228 = vshll.u32 %v2191, 16
      %v2230 = vrot.slane %v2228, 5
      %v2231 = vor.u32 %v2227, %v2230
      %v2232 = vrot.slane %v2231, 4
      %v2234 = vshll.u32 %v2192, 16
      %v2236 = vrot.slane %v2234, 5
      %v2237 = vsel %vm2213, %v2232, %v2236
      %v2239 = vshrl.u32 %v2193, 16
      %v2241 = vrot.slane %v2239, 4
      %v2242 = vshll.u32 %v2193, 16
      %v2244 = vrot.slane %v2242, 5
      %v2245 = vor.u32 %v2241, %v2244
      %v2246 = vrot.slane %v2245, 4
      %v2248 = vshll.u32 %v2194, 16
      %v2250 = vrot.slane %v2248, 5
      %v2251 = vsel %vm2213, %v2246, %v2250
      %v2253 = vshrl.u32 %v2195, 16
      %v2255 = vrot.slane %v2253, 4
      %v2256 = vshll.u32 %v2195, 16
      %v2258 = vrot.slane %v2256, 5
      %v2259 = vor.u32 %v2255, %v2258
      %v2260 = vrot.slane %v2259, 4
      %v2262 = vshll.u32 %v2196, 16
      %v2264 = vrot.slane %v2262, 5
      %v2265 = vsel %vm2213, %v2260, %v2264
      %v2267 = vshrl.u32 %v2197, 16
      %v2269 = vrot.slane %v2267, 4
      %v2270 = vshll.u32 %v2197, 16
      %v2272 = vrot.slane %v2270, 5
      %v2273 = vor.u32 %v2269, %v2272
      %v2274 = vrot.slane %v2273, 4
      %v2276 = vshll.u32 %v2198, 16
      %v2278 = vrot.slane %v2276, 5
      %v2279 = vsel %vm2213, %v2274, %v2278
      %v2281 = vshrl.u32 %v2199, 16
      %v2283 = vrot.slane %v2281, 4
      %v2284 = vshll.u32 %v2199, 16
      %v2286 = vrot.slane %v2284, 5
      %v2287 = vor.u32 %v2283, %v2286
      %v2288 = vrot.slane %v2287, 4
      %v2290 = vshll.u32 %v2200, 16
      %v2292 = vrot.slane %v2290, 5
      %v2293 = vsel %vm2213, %v2288, %v2292
      %v2295 = vshrl.u32 %v2201, 16
      %v2297 = vrot.slane %v2295, 4
      %v2298 = vshll.u32 %v2201, 16
      %v2300 = vrot.slane %v2298, 5
      %v2301 = vor.u32 %v2297, %v2300
      %v2302 = vrot.slane %v2301, 4
      %v2304 = vshll.u32 %v2202, 16
      %v2306 = vrot.slane %v2304, 5
      %v2307 = vsel %vm2213, %v2302, %v2306
      %v2309 = vshrl.u32 %v2203, 16
      %v2311 = vrot.slane %v2309, 4
      %v2312 = vshll.u32 %v2203, 16
      %v2314 = vrot.slane %v2312, 5
      %v2315 = vor.u32 %v2311, %v2314
      %v2316 = vrot.slane %v2315, 4
      %v2318 = vshll.u32 %v2204, 16
      %v2320 = vrot.slane %v2318, 5
      %v2321 = vsel %vm2213, %v2316, %v2320
      %v2322 = vld [vmem:[%s3 + $0x10] sm:$0xf]
      %v2323 = vld [vmem:[%s3 + $0x14] sm:$0xf]
      %v2324 = vld [vmem:[%s3 + $0x18] sm:$0xf]
      %v2325 = vld [vmem:[%s3 + $0x1c] sm:$0xf]
      %v2326 = vunpack.c.l.b16 %v2223
      %v2327 = vunpack.c.l.b16 %v2237
      %v2328 = vunpack.c.l.b16 %v2251
      %v2329 = vunpack.c.l.b16 %v2265
      %v2330 = vunpack.c.l.b16 %v2279
      %v2331 = vunpack.c.l.b16 %v2293
      %v2332 = vunpack.c.l.b16 %v2307
      %v2333 = vunpack.c.l.b16 %v2321
      %v2334 = vpack.c.b16 %v2327, %v2326
      %v2335 = vpack.c.b16 %v2329, %v2328
      %v2336 = vpack.c.b16 %v2331, %v2330
      %v2337 = vpack.c.b16 %v2333, %v2332
      %v2342 = vunpack.c.l.b16 %v2322
      %v2343 = vunpack.c.l.b16 %v2323
      %v2344 = vunpack.c.l.b16 %v2324
      %v2345 = vunpack.c.l.b16 %v2325
      %v2346 = vpack.c.b16 %v2343, %v2342
      %v2347 = vpack.c.b16 %v2345, %v2344
      %v2351 = vsel %vm1846, %v2334, 0
      %v2354 = vsel %vm1846, %v2335, 0
      %v2357 = vsel %vm1846, %v2336, 0
      %v2360 = vsel %vm1846, %v2337, 0
      %2362 = vmatpush.bf16.msra.mxu0 0
      %2363 = vmatpush.bf16.msra.mxu0 0
      %2364 = vmatpush.bf16.msra.mxu0 0
      %2365 = vmatpush.bf16.msra.mxu0 0
      %2366 = vmatpush.bf16.msra.mxu0 0
      %2367 = vmatpush.bf16.msra.mxu0 0
      %2368 = vmatpush.bf16.msra.mxu0 %v2347
      %2369 = vmatpush.bf16.msra.mxu0 %v2346
      %2370 = vmatmul.bf16.gmra.mxu0 %v2351
      %v2371 = vpop.f32.mrf.mxu0
      %v2372 = vadd.f32 0.0, %v2371
      %v2373 = vpop.f32.mrf.mxu0
      %v2374 = vadd.f32 0.0, %v2373
      %2375 = vmatmul.bf16.gmra.mxu0 %v2354
      %v2376 = vpop.f32.mrf.mxu0
      %v2377 = vadd.f32 0.0, %v2376
      %v2378 = vpop.f32.mrf.mxu0
      %v2379 = vadd.f32 0.0, %v2378
      %2380 = vmatmul.bf16.gmra.mxu0 %v2357
      %v2381 = vpop.f32.mrf.mxu0
      %v2382 = vadd.f32 0.0, %v2381
      %v2383 = vpop.f32.mrf.mxu0
      %v2384 = vadd.f32 0.0, %v2383
      %2385 = vmatmul.bf16.gmra.mxu0 %v2360
      %v2386 = vpop.f32.mrf.mxu0
      %v2387 = vadd.f32 0.0, %v2386
      %v2388 = vpop.f32.mrf.mxu0
      %v2389 = vadd.f32 0.0, %v2388
      %2390 = vdwg.mxu0
      %v2399 = vunpack.c.l.b16 %v2190
      %v2400 = vunpack.c.l.b16 %v2191
      %v2401 = vunpack.c.l.b16 %v2193
      %v2402 = vunpack.c.l.b16 %v2195
      %v2403 = vunpack.c.l.b16 %v2197
      %v2404 = vunpack.c.l.b16 %v2199
      %v2405 = vunpack.c.l.b16 %v2201
      %v2406 = vunpack.c.l.b16 %v2203
      %v2407 = vpack.c.b16 %v2400, %v2399
      %v2408 = vpack.c.b16 %v2402, %v2401
      %v2409 = vpack.c.b16 %v2404, %v2403
      %v2410 = vpack.c.b16 %v2406, %v2405
      %v2415 = vunpack.c.l.b16 %v2207
      %v2416 = vunpack.c.l.b16 %v2208
      %v2417 = vunpack.c.l.b16 %v2209
      %v2418 = vunpack.c.l.b16 %v2210
      %v2419 = vpack.c.b16 %v2416, %v2415
      %v2420 = vpack.c.b16 %v2418, %v2417
      %v2424 = vsel %vm1846, %v2407, 0
      %v2427 = vsel %vm1846, %v2408, 0
      %v2430 = vsel %vm1846, %v2409, 0
      %v2433 = vsel %vm1846, %v2410, 0
      %2435 = vmatpush.bf16.msra.mxu0 0
      %2436 = vmatpush.bf16.msra.mxu0 0
      %2437 = vmatpush.bf16.msra.mxu0 0
      %2438 = vmatpush.bf16.msra.mxu0 0
      %2439 = vmatpush.bf16.msra.mxu0 0
      %2440 = vmatpush.bf16.msra.mxu0 0
      %2441 = vmatpush.bf16.msra.mxu0 %v2420
      %2442 = vmatpush.bf16.msra.mxu0 %v2419
      %2443 = vmatmul.bf16.gmra.mxu0 %v2424
      %v2444 = vpop.f32.mrf.mxu0
      %v2445 = vadd.f32 %v2372, %v2444
      %v2446 = vpop.f32.mrf.mxu0
      %v2447 = vadd.f32 %v2374, %v2446
      %2448 = vmatmul.bf16.gmra.mxu0 %v2427
      %v2449 = vpop.f32.mrf.mxu0
      %v2450 = vadd.f32 %v2377, %v2449
      %v2451 = vpop.f32.mrf.mxu0
      %v2452 = vadd.f32 %v2379, %v2451
      %2453 = vmatmul.bf16.gmra.mxu0 %v2430
      %v2454 = vpop.f32.mrf.mxu0
      %v2455 = vadd.f32 %v2382, %v2454
      %v2456 = vpop.f32.mrf.mxu0
      %v2457 = vadd.f32 %v2384, %v2456
      %2458 = vmatmul.bf16.gmra.mxu0 %v2433
      %v2459 = vpop.f32.mrf.mxu0
      %v2460 = vadd.f32 %v2387, %v2459
      %v2461 = vpop.f32.mrf.mxu0
      %v2462 = vadd.f32 %v2389, %v2461
      %2463 = vdwg.mxu0
      %vm2471 = vcmask 1042432
      %vm2472 = vcmask 1046532
      %vm2473 = vmor %vm2471, %vm2472
      %v2474 = vrot.slane %v2190, 5
      %v2475 = vrot.slane %v2474, 4
      %v2476 = vsel %vm2473, %v2475, %v2474
      %v2477 = vrot.slane %v2191, 5
      %v2478 = vrot.slane %v2477, 4
      %v2479 = vrot.slane %v2192, 5
      %v2480 = vsel %vm2473, %v2478, %v2479
      %v2481 = vrot.slane %v2193, 5
      %v2482 = vrot.slane %v2481, 4
      %v2483 = vrot.slane %v2194, 5
      %v2484 = vsel %vm2473, %v2482, %v2483
      %v2485 = vrot.slane %v2195, 5
      %v2486 = vrot.slane %v2485, 4
      %v2487 = vrot.slane %v2196, 5
      %v2488 = vsel %vm2473, %v2486, %v2487
      %v2489 = vrot.slane %v2197, 5
      %v2490 = vrot.slane %v2489, 4
      %v2491 = vrot.slane %v2198, 5
      %v2492 = vsel %vm2473, %v2490, %v2491
      %v2493 = vrot.slane %v2199, 5
      %v2494 = vrot.slane %v2493, 4
      %v2495 = vrot.slane %v2200, 5
      %v2496 = vsel %vm2473, %v2494, %v2495
      %v2497 = vrot.slane %v2201, 5
      %v2498 = vrot.slane %v2497, 4
      %v2499 = vrot.slane %v2202, 5
      %v2500 = vsel %vm2473, %v2498, %v2499
      %v2501 = vrot.slane %v2203, 5
      %v2502 = vrot.slane %v2501, 4
      %v2503 = vrot.slane %v2204, 5
      %v2504 = vsel %vm2473, %v2502, %v2503
      %v2505 = vld [vmem:[%s3 + $0x20] sm:$0xf]
      %v2506 = vld [vmem:[%s3 + $0x24] sm:$0xf]
      %v2507 = vld [vmem:[%s3 + $0x28] sm:$0xf]
      %v2508 = vld [vmem:[%s3 + $0x2c] sm:$0xf]
      %v2509 = vunpack.c.l.b16 %v2476
      %v2510 = vunpack.c.l.b16 %v2480
      %v2511 = vunpack.c.l.b16 %v2484
      %v2512 = vunpack.c.l.b16 %v2488
      %v2513 = vunpack.c.l.b16 %v2492
      %v2514 = vunpack.c.l.b16 %v2496
      %v2515 = vunpack.c.l.b16 %v2500
      %v2516 = vunpack.c.l.b16 %v2504
      %v2517 = vpack.c.b16 %v2510, %v2509
      %v2518 = vpack.c.b16 %v2512, %v2511
      %v2519 = vpack.c.b16 %v2514, %v2513
      %v2520 = vpack.c.b16 %v2516, %v2515
      %v2525 = vunpack.c.l.b16 %v2505
      %v2526 = vunpack.c.l.b16 %v2506
      %v2527 = vunpack.c.l.b16 %v2507
      %v2528 = vunpack.c.l.b16 %v2508
      %v2529 = vpack.c.b16 %v2526, %v2525
      %v2530 = vpack.c.b16 %v2528, %v2527
      %v2534 = vsel %vm1846, %v2517, 0
      %v2537 = vsel %vm1846, %v2518, 0
      %v2540 = vsel %vm1846, %v2519, 0
      %v2543 = vsel %vm1846, %v2520, 0
      %2545 = vmatpush.bf16.msra.mxu0 0
      %2546 = vmatpush.bf16.msra.mxu0 0
      %2547 = vmatpush.bf16.msra.mxu0 0
      %2548 = vmatpush.bf16.msra.mxu0 0
      %2549 = vmatpush.bf16.msra.mxu0 0
      %2550 = vmatpush.bf16.msra.mxu0 0
      %2551 = vmatpush.bf16.msra.mxu0 %v2530
      %2552 = vmatpush.bf16.msra.mxu0 %v2529
      %2553 = vmatmul.bf16.gmra.mxu0 %v2534
      %v2554 = vpop.f32.mrf.mxu0
      %v2555 = vadd.f32 0.0, %v2554
      %v2556 = vpop.f32.mrf.mxu0
      %v2557 = vadd.f32 0.0, %v2556
      %2558 = vmatmul.bf16.gmra.mxu0 %v2537
      %v2559 = vpop.f32.mrf.mxu0
      %v2560 = vadd.f32 0.0, %v2559
      %v2561 = vpop.f32.mrf.mxu0
      %v2562 = vadd.f32 0.0, %v2561
      %2563 = vmatmul.bf16.gmra.mxu0 %v2540
      %v2564 = vpop.f32.mrf.mxu0
      %v2565 = vadd.f32 0.0, %v2564
      %v2566 = vpop.f32.mrf.mxu0
      %v2567 = vadd.f32 0.0, %v2566
      %2568 = vmatmul.bf16.gmra.mxu0 %v2543
      %v2569 = vpop.f32.mrf.mxu0
      %v2570 = vadd.f32 0.0, %v2569
      %v2571 = vpop.f32.mrf.mxu0
      %v2572 = vadd.f32 0.0, %v2571
      %2573 = vdwg.mxu0
      %v2574 = vadd.f32 %v2445, %v2555
      %v2575 = vadd.f32 %v2447, %v2557
      %v2576 = vadd.f32 %v2450, %v2560
      %v2577 = vadd.f32 %v2452, %v2562
      %v2578 = vadd.f32 %v2455, %v2565
      %v2579 = vadd.f32 %v2457, %v2567
      %v2580 = vadd.f32 %v2460, %v2570
      %v2581 = vadd.f32 %v2462, %v2572
      %v2582 = vld [vmem:[%s3 + $0x30] sm:$0xf]
      %v2583 = vld [vmem:[%s3 + $0x34] sm:$0xf]
      %v2584 = vld [vmem:[%s3 + $0x38] sm:$0xf]
      %v2585 = vld [vmem:[%s3 + $0x3c] sm:$0xf]
      %v2587 = vunpack.c.l.b16 %v2205
      %v2588 = vpack.c.b16 %v2401, %v2400
      %v2589 = vpack.c.b16 %v2403, %v2402
      %v2590 = vpack.c.b16 %v2405, %v2404
      %v2591 = vpack.c.b16 %v2587, %v2406
      %v2596 = vunpack.c.l.b16 %v2582
      %v2597 = vunpack.c.l.b16 %v2583
      %v2598 = vunpack.c.l.b16 %v2584
      %v2599 = vunpack.c.l.b16 %v2585
      %v2600 = vpack.c.b16 %v2597, %v2596
      %v2601 = vpack.c.b16 %v2599, %v2598
      %v2605 = vsel %vm1846, %v2588, 0
      %v2608 = vsel %vm1846, %v2589, 0
      %v2611 = vsel %vm1846, %v2590, 0
      %v2614 = vsel %vm1846, %v2591, 0
      %2616 = vmatpush.bf16.msra.mxu0 0
      %2617 = vmatpush.bf16.msra.mxu0 0
      %2618 = vmatpush.bf16.msra.mxu0 0
      %2619 = vmatpush.bf16.msra.mxu0 0
      %2620 = vmatpush.bf16.msra.mxu0 0
      %2621 = vmatpush.bf16.msra.mxu0 0
      %2622 = vmatpush.bf16.msra.mxu0 %v2601
      %2623 = vmatpush.bf16.msra.mxu0 %v2600
      %2624 = vmatmul.bf16.gmra.mxu0 %v2605
      %v2625 = vpop.f32.mrf.mxu0
      %v2626 = vadd.f32 0.0, %v2625
      %v2627 = vpop.f32.mrf.mxu0
      %v2628 = vadd.f32 0.0, %v2627
      %2629 = vmatmul.bf16.gmra.mxu0 %v2608
      %v2630 = vpop.f32.mrf.mxu0
      %v2631 = vadd.f32 0.0, %v2630
      %v2632 = vpop.f32.mrf.mxu0
      %v2633 = vadd.f32 0.0, %v2632
      %2634 = vmatmul.bf16.gmra.mxu0 %v2611
      %v2635 = vpop.f32.mrf.mxu0
      %v2636 = vadd.f32 0.0, %v2635
      %v2637 = vpop.f32.mrf.mxu0
      %v2638 = vadd.f32 0.0, %v2637
      %2639 = vmatmul.bf16.gmra.mxu0 %v2614
      %v2640 = vpop.f32.mrf.mxu0
      %v2641 = vadd.f32 0.0, %v2640
      %v2642 = vpop.f32.mrf.mxu0
      %v2643 = vadd.f32 0.0, %v2642
      %2644 = vdwg.mxu0
      %v2645 = vadd.f32 %v2574, %v2626
      %v2646 = vadd.f32 %v2575, %v2628
      %v2647 = vadd.f32 %v2576, %v2631
      %v2648 = vadd.f32 %v2577, %v2633
      %v2649 = vadd.f32 %v2578, %v2636
      %v2650 = vadd.f32 %v2579, %v2638
      %v2651 = vadd.f32 %v2580, %v2641
      %v2652 = vadd.f32 %v2581, %v2643
      %v2654 = vshrl.u32 %v2205, 16
      %v2656 = vrot.slane %v2654, 4
      %v2657 = vshll.u32 %v2205, 16
      %v2659 = vrot.slane %v2657, 5
      %v2660 = vor.u32 %v2656, %v2659
      %v2661 = vrot.slane %v2660, 4
      %v2663 = vshll.u32 %v2206, 16
      %v2665 = vrot.slane %v2663, 5
      %v2666 = vsel %vm2213, %v2661, %v2665
      %v2667 = vld [vmem:[%s3 + $0x40] sm:$0xf]
      %v2668 = vld [vmem:[%s3 + $0x44] sm:$0xf]
      %v2669 = vld [vmem:[%s3 + $0x48] sm:$0xf]
      %v2670 = vld [vmem:[%s3 + $0x4c] sm:$0xf]
      %v2671 = vunpack.c.l.b16 %v2666
      %v2672 = vpack.c.b16 %v2328, %v2327
      %v2673 = vpack.c.b16 %v2330, %v2329
      %v2674 = vpack.c.b16 %v2332, %v2331
      %v2675 = vpack.c.b16 %v2671, %v2333
      %v2680 = vunpack.c.l.b16 %v2667
      %v2681 = vunpack.c.l.b16 %v2668
      %v2682 = vunpack.c.l.b16 %v2669
      %v2683 = vunpack.c.l.b16 %v2670
      %v2684 = vpack.c.b16 %v2681, %v2680
      %v2685 = vpack.c.b16 %v2683, %v2682
      %v2689 = vsel %vm1846, %v2672, 0
      %v2692 = vsel %vm1846, %v2673, 0
      %v2695 = vsel %vm1846, %v2674, 0
      %v2698 = vsel %vm1846, %v2675, 0
      %2700 = vmatpush.bf16.msra.mxu0 0
      %2701 = vmatpush.bf16.msra.mxu0 0
      %2702 = vmatpush.bf16.msra.mxu0 0
      %2703 = vmatpush.bf16.msra.mxu0 0
      %2704 = vmatpush.bf16.msra.mxu0 0
      %2705 = vmatpush.bf16.msra.mxu0 0
      %2706 = vmatpush.bf16.msra.mxu0 %v2685
      %2707 = vmatpush.bf16.msra.mxu0 %v2684
      %2708 = vmatmul.bf16.gmra.mxu0 %v2689
      %v2709 = vpop.f32.mrf.mxu0
      %v2710 = vadd.f32 0.0, %v2709
      %v2711 = vpop.f32.mrf.mxu0
      %v2712 = vadd.f32 0.0, %v2711
      %2713 = vmatmul.bf16.gmra.mxu0 %v2692
      %v2714 = vpop.f32.mrf.mxu0
      %v2715 = vadd.f32 0.0, %v2714
      %v2716 = vpop.f32.mrf.mxu0
      %v2717 = vadd.f32 0.0, %v2716
      %2718 = vmatmul.bf16.gmra.mxu0 %v2695
      %v2719 = vpop.f32.mrf.mxu0
      %v2720 = vadd.f32 0.0, %v2719
      %v2721 = vpop.f32.mrf.mxu0
      %v2722 = vadd.f32 0.0, %v2721
      %2723 = vmatmul.bf16.gmra.mxu0 %v2698
      %v2724 = vpop.f32.mrf.mxu0
      %v2725 = vadd.f32 0.0, %v2724
      %v2726 = vpop.f32.mrf.mxu0
      %v2727 = vadd.f32 0.0, %v2726
      %2728 = vdwg.mxu0
      %v2729 = vadd.f32 %v2645, %v2710
      %v2730 = vadd.f32 %v2646, %v2712
      %v2731 = vadd.f32 %v2647, %v2715
      %v2732 = vadd.f32 %v2648, %v2717
      %v2733 = vadd.f32 %v2649, %v2720
      %v2734 = vadd.f32 %v2650, %v2722
      %v2735 = vadd.f32 %v2651, %v2725
      %v2736 = vadd.f32 %v2652, %v2727
      %v2738 = vrot.slane %v2205, 5
      %v2739 = vrot.slane %v2738, 4
      %v2740 = vrot.slane %v2206, 5
      %v2741 = vsel %vm2473, %v2739, %v2740
      %v2742 = vld [vmem:[%s3 + $0x50] sm:$0xf]
      %v2743 = vld [vmem:[%s3 + $0x54] sm:$0xf]
      %v2744 = vld [vmem:[%s3 + $0x58] sm:$0xf]
      %v2745 = vld [vmem:[%s3 + $0x5c] sm:$0xf]
      %v2746 = vunpack.c.l.b16 %v2741
      %v2747 = vpack.c.b16 %v2511, %v2510
      %v2748 = vpack.c.b16 %v2513, %v2512
      %v2749 = vpack.c.b16 %v2515, %v2514
      %v2750 = vpack.c.b16 %v2746, %v2516
      %v2755 = vunpack.c.l.b16 %v2742
      %v2756 = vunpack.c.l.b16 %v2743
      %v2757 = vunpack.c.l.b16 %v2744
      %v2758 = vunpack.c.l.b16 %v2745
      %v2759 = vpack.c.b16 %v2756, %v2755
      %v2760 = vpack.c.b16 %v2758, %v2757
      %v2764 = vsel %vm1846, %v2747, 0
      %v2767 = vsel %vm1846, %v2748, 0
      %v2770 = vsel %vm1846, %v2749, 0
      %v2773 = vsel %vm1846, %v2750, 0
      %2775 = vmatpush.bf16.msra.mxu0 0
      %2776 = vmatpush.bf16.msra.mxu0 0
      %2777 = vmatpush.bf16.msra.mxu0 0
      %2778 = vmatpush.bf16.msra.mxu0 0
      %2779 = vmatpush.bf16.msra.mxu0 0
      %2780 = vmatpush.bf16.msra.mxu0 0
      %2781 = vmatpush.bf16.msra.mxu0 %v2760
      %2782 = vmatpush.bf16.msra.mxu0 %v2759
      %2783 = vmatmul.bf16.gmra.mxu0 %v2764
      %v2784 = vpop.f32.mrf.mxu0
      %v2785 = vadd.f32 0.0, %v2784
      %v2786 = vpop.f32.mrf.mxu0
      %v2787 = vadd.f32 0.0, %v2786
      %2788 = vmatmul.bf16.gmra.mxu0 %v2767
      %v2789 = vpop.f32.mrf.mxu0
      %v2790 = vadd.f32 0.0, %v2789
      %v2791 = vpop.f32.mrf.mxu0
      %v2792 = vadd.f32 0.0, %v2791
      %2793 = vmatmul.bf16.gmra.mxu0 %v2770
      %v2794 = vpop.f32.mrf.mxu0
      %v2795 = vadd.f32 0.0, %v2794
      %v2796 = vpop.f32.mrf.mxu0
      %v2797 = vadd.f32 0.0, %v2796
      %2798 = vmatmul.bf16.gmra.mxu0 %v2773
      %v2799 = vpop.f32.mrf.mxu0
      %v2800 = vadd.f32 0.0, %v2799
      %v2801 = vpop.f32.mrf.mxu0
      %v2802 = vadd.f32 0.0, %v2801
      %2803 = vdwg.mxu0
      %v2804 = vadd.f32 %v2729, %v2785
      %v2805 = vadd.f32 %v2730, %v2787
      %v2806 = vadd.f32 %v2731, %v2790
      %v2807 = vadd.f32 %v2732, %v2792
      %v2808 = vadd.f32 %v2733, %v2795
      %v2809 = vadd.f32 %v2734, %v2797
      %v2810 = vadd.f32 %v2735, %v2800
      %v2811 = vadd.f32 %v2736, %v2802
      %v2812 = vld [vmem:[%s3 + $0x60] sm:$0xf]
      %v2813 = vld [vmem:[%s3 + $0x64] sm:$0xf]
      %v2814 = vld [vmem:[%s3 + $0x68] sm:$0xf]
      %v2815 = vld [vmem:[%s3 + $0x6c] sm:$0xf]
      %v2816 = vpack.c.b16 %v2399, %v2587
      %v2821 = vunpack.c.l.b16 %v2812
      %v2822 = vunpack.c.l.b16 %v2813
      %v2823 = vunpack.c.l.b16 %v2814
      %v2824 = vunpack.c.l.b16 %v2815
      %v2825 = vpack.c.b16 %v2822, %v2821
      %v2826 = vpack.c.b16 %v2824, %v2823
      %v2830 = vsel %vm1846, %v2816, 0
      %2832 = vmatpush.bf16.msra.mxu0 0
      %2833 = vmatpush.bf16.msra.mxu0 0
      %2834 = vmatpush.bf16.msra.mxu0 0
      %2835 = vmatpush.bf16.msra.mxu0 0
      %2836 = vmatpush.bf16.msra.mxu0 0
      %2837 = vmatpush.bf16.msra.mxu0 0
      %2838 = vmatpush.bf16.msra.mxu0 %v2826
      %2839 = vmatpush.bf16.msra.mxu0 %v2825
      %2840 = vmatmul.bf16.gmra.mxu0 %v2427
      %v2841 = vpop.f32.mrf.mxu0
      %v2842 = vadd.f32 0.0, %v2841
      %v2843 = vpop.f32.mrf.mxu0
      %v2844 = vadd.f32 0.0, %v2843
      %2845 = vmatmul.bf16.gmra.mxu0 %v2430
      %v2846 = vpop.f32.mrf.mxu0
      %v2847 = vadd.f32 0.0, %v2846
      %v2848 = vpop.f32.mrf.mxu0
      %v2849 = vadd.f32 0.0, %v2848
      %2850 = vmatmul.bf16.gmra.mxu0 %v2433
      %v2851 = vpop.f32.mrf.mxu0
      %v2852 = vadd.f32 0.0, %v2851
      %v2853 = vpop.f32.mrf.mxu0
      %v2854 = vadd.f32 0.0, %v2853
      %2855 = vmatmul.bf16.gmra.mxu0 %v2830
      %v2856 = vpop.f32.mrf.mxu0
      %v2857 = vadd.f32 0.0, %v2856
      %v2858 = vpop.f32.mrf.mxu0
      %v2859 = vadd.f32 0.0, %v2858
      %2860 = vdwg.mxu0
      %v2861 = vadd.f32 %v2804, %v2842
      %v2862 = vadd.f32 %v2805, %v2844
      %v2863 = vadd.f32 %v2806, %v2847
      %v2864 = vadd.f32 %v2807, %v2849
      %v2865 = vadd.f32 %v2808, %v2852
      %v2866 = vadd.f32 %v2809, %v2854
      %v2867 = vadd.f32 %v2810, %v2857
      %v2868 = vadd.f32 %v2811, %v2859
      %v2869 = vld [vmem:[%s3 + $0x70] sm:$0xf]
      %v2870 = vld [vmem:[%s3 + $0x74] sm:$0xf]
      %v2871 = vld [vmem:[%s3 + $0x78] sm:$0xf]
      %v2872 = vld [vmem:[%s3 + $0x7c] sm:$0xf]
      %v2873 = vpack.c.b16 %v2326, %v2671
      %v2878 = vunpack.c.l.b16 %v2869
      %v2879 = vunpack.c.l.b16 %v2870
      %v2880 = vunpack.c.l.b16 %v2871
      %v2881 = vunpack.c.l.b16 %v2872
      %v2882 = vpack.c.b16 %v2879, %v2878
      %v2883 = vpack.c.b16 %v2881, %v2880
      %v2887 = vsel %vm1846, %v2873, 0
      %2889 = vmatpush.bf16.msra.mxu0 0
      %2890 = vmatpush.bf16.msra.mxu0 0
      %2891 = vmatpush.bf16.msra.mxu0 0
      %2892 = vmatpush.bf16.msra.mxu0 0
      %2893 = vmatpush.bf16.msra.mxu0 0
      %2894 = vmatpush.bf16.msra.mxu0 0
      %2895 = vmatpush.bf16.msra.mxu0 %v2883
      %2896 = vmatpush.bf16.msra.mxu0 %v2882
      %2897 = vmatmul.bf16.gmra.mxu0 %v2354
      %v2898 = vpop.f32.mrf.mxu0
      %v2899 = vadd.f32 0.0, %v2898
      %v2900 = vpop.f32.mrf.mxu0
      %v2901 = vadd.f32 0.0, %v2900
      %2902 = vmatmul.bf16.gmra.mxu0 %v2357
      %v2903 = vpop.f32.mrf.mxu0
      %v2904 = vadd.f32 0.0, %v2903
      %v2905 = vpop.f32.mrf.mxu0
      %v2906 = vadd.f32 0.0, %v2905
      %2907 = vmatmul.bf16.gmra.mxu0 %v2360
      %v2908 = vpop.f32.mrf.mxu0
      %v2909 = vadd.f32 0.0, %v2908
      %v2910 = vpop.f32.mrf.mxu0
      %v2911 = vadd.f32 0.0, %v2910
      %2912 = vmatmul.bf16.gmra.mxu0 %v2887
      %v2913 = vpop.f32.mrf.mxu0
      %v2914 = vadd.f32 0.0, %v2913
      %v2915 = vpop.f32.mrf.mxu0
      %v2916 = vadd.f32 0.0, %v2915
      %2917 = vdwg.mxu0
      %v2918 = vadd.f32 %v2861, %v2899
      %v2919 = vadd.f32 %v2862, %v2901
      %v2920 = vadd.f32 %v2863, %v2904
      %v2921 = vadd.f32 %v2864, %v2906
      %v2922 = vadd.f32 %v2865, %v2909
      %v2923 = vadd.f32 %v2866, %v2911
      %v2924 = vadd.f32 %v2867, %v2914
      %v2925 = vadd.f32 %v2868, %v2916
      %v2926 = vld [vmem:[%s3 + $0x80] sm:$0xf]
      %v2927 = vld [vmem:[%s3 + $0x84] sm:$0xf]
      %v2928 = vld [vmem:[%s3 + $0x88] sm:$0xf]
      %v2929 = vld [vmem:[%s3 + $0x8c] sm:$0xf]
      %v2930 = vpack.c.b16 %v2509, %v2746
      %v2935 = vunpack.c.l.b16 %v2926
      %v2936 = vunpack.c.l.b16 %v2927
      %v2937 = vunpack.c.l.b16 %v2928
      %v2938 = vunpack.c.l.b16 %v2929
      %v2939 = vpack.c.b16 %v2936, %v2935
      %v2940 = vpack.c.b16 %v2938, %v2937
      %v2944 = vsel %vm1846, %v2930, 0
      %2946 = vmatpush.bf16.msra.mxu0 0
      %2947 = vmatpush.bf16.msra.mxu0 0
      %2948 = vmatpush.bf16.msra.mxu0 0
      %2949 = vmatpush.bf16.msra.mxu0 0
      %2950 = vmatpush.bf16.msra.mxu0 0
      %2951 = vmatpush.bf16.msra.mxu0 0
      %2952 = vmatpush.bf16.msra.mxu0 %v2940
      %2953 = vmatpush.bf16.msra.mxu0 %v2939
      %2954 = vmatmul.bf16.gmra.mxu0 %v2537
      %v2955 = vpop.f32.mrf.mxu0
      %v2956 = vadd.f32 0.0, %v2955
      %v2957 = vpop.f32.mrf.mxu0
      %v2958 = vadd.f32 0.0, %v2957
      %2959 = vmatmul.bf16.gmra.mxu0 %v2540
      %v2960 = vpop.f32.mrf.mxu0
      %v2961 = vadd.f32 0.0, %v2960
      %v2962 = vpop.f32.mrf.mxu0
      %v2963 = vadd.f32 0.0, %v2962
      %2964 = vmatmul.bf16.gmra.mxu0 %v2543
      %v2965 = vpop.f32.mrf.mxu0
      %v2966 = vadd.f32 0.0, %v2965
      %v2967 = vpop.f32.mrf.mxu0
      %v2968 = vadd.f32 0.0, %v2967
      %2969 = vmatmul.bf16.gmra.mxu0 %v2944
      %v2970 = vpop.f32.mrf.mxu0
      %v2971 = vadd.f32 0.0, %v2970
      %v2972 = vpop.f32.mrf.mxu0
      %v2973 = vadd.f32 0.0, %v2972
      %2974 = vdwg.mxu0
      %v2975 = vadd.f32 %v2918, %v2956
      %v2976 = vadd.f32 %v2919, %v2958
      %v2977 = vadd.f32 %v2920, %v2961
      %v2978 = vadd.f32 %v2921, %v2963
      %v2979 = vadd.f32 %v2922, %v2966
      %v2980 = vadd.f32 %v2923, %v2968
      %v2981 = vadd.f32 %v2924, %v2971
      %v2982 = vadd.f32 %v2925, %v2973
      %v2983 = vld [vmem:[%s4] sm:$0x1]
      %v2985 = vperm.slane %v2983, 0
      %v2987 = vadd.f32 %v2975, %v2985
      %v2988 = vadd.f32 %v2976, %v2985
      %v2989 = vadd.f32 %v2977, %v2985
      %v2990 = vadd.f32 %v2978, %v2985
      %v2991 = vadd.f32 %v2979, %v2985
      %v2992 = vadd.f32 %v2980, %v2985
      %v2993 = vadd.f32 %v2981, %v2985
      %v2994 = vadd.f32 %v2982, %v2985
      %v2995 = vmax.f32 %v2987, 0.0
      %v2996 = vmax.f32 %v2988, 0.0
      %v2997 = vmax.f32 %v2989, 0.0
      %v2998 = vmax.f32 %v2990, 0.0
      %v2999 = vmax.f32 %v2991, 0.0
      %v3000 = vmax.f32 %v2992, 0.0
      %v3001 = vmax.f32 %v2993, 0.0
      %v3002 = vmax.f32 %v2994, 0.0
      %v3003 = vpack.c.bf16 %v2996, %v2995
      %v3004 = vpack.c.bf16 %v2998, %v2997
      %v3005 = vpack.c.bf16 %v3000, %v2999
      %v3006 = vpack.c.bf16 %v3002, %v3001
      %v3007 = vld [vmem:[%s5] sm:$0xf]
      %v3008 = vld [vmem:[%s5 + $0x4] sm:$0xf]
      %v3009 = vld [vmem:[%s5 + $0x8] sm:$0xf]
      %v3010 = vld [vmem:[%s5 + $0xc] sm:$0xf]
      %v3011 = vld [vmem:[%s5 + $0x10] sm:$0xf]
      %v3012 = vld [vmem:[%s5 + $0x14] sm:$0xf]
      %v3013 = vld [vmem:[%s5 + $0x18] sm:$0xf]
      %v3014 = vld [vmem:[%s5 + $0x1c] sm:$0xf]
      %v3015 = vld [vmem:[%s6] sm:$0x1]
      %v3017 = vperm.slane %v3015, 0
      %v3027 = vunpack.c.l.b16 %v3007
      %v3028 = vunpack.c.l.b16 %v3008
      %v3029 = vunpack.c.l.b16 %v3009
      %v3030 = vunpack.c.l.b16 %v3010
      %v3031 = vunpack.c.l.b16 %v3011
      %v3032 = vunpack.c.l.b16 %v3012
      %v3033 = vunpack.c.l.b16 %v3013
      %v3034 = vunpack.c.l.b16 %v3014
      %v3035 = vpack.c.b16 %v3028, %v3027
      %v3036 = vpack.c.b16 %v3030, %v3029
      %v3037 = vpack.c.b16 %v3032, %v3031
      %v3038 = vpack.c.b16 %v3034, %v3033
      %vm3043 = vcmask 523264
      %v3045 = vsel %vm3043, %v3003, 0
      %v3048 = vsel %vm3043, %v3004, 0
      %v3051 = vsel %vm3043, %v3005, 0
      %v3054 = vsel %vm3043, %v3006, 0
      %3056 = vmatpush.bf16.msra.mxu0 0
      %3057 = vmatpush.bf16.msra.mxu0 0
      %3058 = vmatpush.bf16.msra.mxu0 0
      %3059 = vmatpush.bf16.msra.mxu0 0
      %3060 = vmatpush.bf16.msra.mxu0 %v3038
      %3061 = vmatpush.bf16.msra.mxu0 %v3037
      %3062 = vmatpush.bf16.msra.mxu0 %v3036
      %3063 = vmatpush.bf16.msra.mxu0 %v3035
      %3064 = vmatmul.bf16.gmra.mxu0 %v3045
      %v3065 = vpop.f32.mrf.mxu0
      %v3066 = vadd.f32 %v3017, %v3065
      %v3067 = vpop.f32.mrf.mxu0
      %v3068 = vadd.f32 %v3017, %v3067
      %3069 = vmatmul.bf16.gmra.mxu0 %v3048
      %v3070 = vpop.f32.mrf.mxu0
      %v3071 = vadd.f32 %v3017, %v3070
      %v3072 = vpop.f32.mrf.mxu0
      %v3073 = vadd.f32 %v3017, %v3072
      %3074 = vmatmul.bf16.gmra.mxu0 %v3051
      %v3075 = vpop.f32.mrf.mxu0
      %v3076 = vadd.f32 %v3017, %v3075
      %v3077 = vpop.f32.mrf.mxu0
      %v3078 = vadd.f32 %v3017, %v3077
      %3079 = vmatmul.bf16.gmra.mxu0 %v3054
      %v3080 = vpop.f32.mrf.mxu0
      %v3081 = vadd.f32 %v3017, %v3080
      %v3082 = vpop.f32.mrf.mxu0
      %v3083 = vadd.f32 %v3017, %v3082
      %3084 = vdwg.mxu0
      %v3093 = vrot.slane %v3066, 1
      %v3094 = vrot.slane %v3066, 2
      %v3095 = vrot.slane %v3066, 3
      %v3096 = vrot.slane %v3066, 4
      %v3097 = vrot.slane %v3066, 5
      %v3098 = vrot.slane %v3066, 6
      %v3099 = vrot.slane %v3066, 7
      %v3100 = vrot.slane %v3068, 1
      %v3101 = vrot.slane %v3068, 2
      %v3102 = vrot.slane %v3068, 3
      %v3103 = vrot.slane %v3068, 4
      %v3104 = vrot.slane %v3068, 5
      %v3105 = vrot.slane %v3068, 6
      %v3106 = vrot.slane %v3068, 7
      %v3107 = vrot.slane %v3071, 1
      %v3108 = vrot.slane %v3071, 2
      %v3109 = vrot.slane %v3071, 3
      %v3110 = vrot.slane %v3071, 4
      %v3111 = vrot.slane %v3071, 5
      %v3112 = vrot.slane %v3071, 6
      %v3113 = vrot.slane %v3071, 7
      %v3114 = vrot.slane %v3073, 1
      %v3115 = vrot.slane %v3073, 2
      %v3116 = vrot.slane %v3073, 3
      %v3117 = vrot.slane %v3073, 4
      %v3118 = vrot.slane %v3073, 5
      %v3119 = vrot.slane %v3073, 6
      %v3120 = vrot.slane %v3073, 7
      %v3121 = vrot.slane %v3076, 1
      %v3122 = vrot.slane %v3076, 2
      %v3123 = vrot.slane %v3076, 3
      %v3124 = vrot.slane %v3076, 4
      %v3125 = vrot.slane %v3076, 5
      %v3126 = vrot.slane %v3076, 6
      %v3127 = vrot.slane %v3076, 7
      %v3128 = vrot.slane %v3078, 1
      %v3129 = vrot.slane %v3078, 2
      %v3130 = vrot.slane %v3078, 3
      %v3131 = vrot.slane %v3078, 4
      %v3132 = vrot.slane %v3078, 5
      %v3133 = vrot.slane %v3078, 6
      %v3134 = vrot.slane %v3078, 7
      %v3135 = vrot.slane %v3081, 1
      %v3136 = vrot.slane %v3081, 2
      %v3137 = vrot.slane %v3081, 3
      %v3138 = vrot.slane %v3081, 4
      %v3139 = vrot.slane %v3081, 5
      %v3140 = vrot.slane %v3081, 6
      %v3141 = vrot.slane %v3081, 7
      %v3142 = vrot.slane %v3083, 1
      %v3143 = vrot.slane %v3083, 2
      %v3144 = vrot.slane %v3083, 3
      %v3145 = vrot.slane %v3083, 4
      %v3146 = vrot.slane %v3083, 5
      %v3147 = vrot.slane %v3083, 6
      %v3148 = vrot.slane %v3083, 7
      %v3205 = vperm.slane %v3066, 0
      %v3206 = vperm.slane %v3093, 0
      %v3207 = vperm.slane %v3094, 0
      %v3208 = vperm.slane %v3095, 0
      %v3209 = vperm.slane %v3096, 0
      %v3210 = vperm.slane %v3097, 0
      %v3211 = vperm.slane %v3098, 0
      %v3212 = vperm.slane %v3099, 0
      %v3213 = vperm.slane %v3068, 0
      %v3214 = vperm.slane %v3100, 0
      %v3215 = vperm.slane %v3101, 0
      %v3216 = vperm.slane %v3102, 0
      %v3217 = vperm.slane %v3103, 0
      %v3218 = vperm.slane %v3104, 0
      %v3219 = vperm.slane %v3105, 0
      %v3220 = vperm.slane %v3106, 0
      %v3221 = vperm.slane %v3071, 0
      %v3222 = vperm.slane %v3107, 0
      %v3223 = vperm.slane %v3108, 0
      %v3224 = vperm.slane %v3109, 0
      %v3225 = vperm.slane %v3110, 0
      %v3226 = vperm.slane %v3111, 0
      %v3227 = vperm.slane %v3112, 0
      %v3228 = vperm.slane %v3113, 0
      %v3229 = vperm.slane %v3073, 0
      %v3230 = vperm.slane %v3114, 0
      %v3231 = vperm.slane %v3115, 0
      %v3232 = vperm.slane %v3116, 0
      %v3233 = vperm.slane %v3117, 0
      %v3234 = vperm.slane %v3118, 0
      %v3235 = vperm.slane %v3119, 0
      %v3236 = vperm.slane %v3120, 0
      %v3237 = vperm.slane %v3076, 0
      %v3238 = vperm.slane %v3121, 0
      %v3239 = vperm.slane %v3122, 0
      %v3240 = vperm.slane %v3123, 0
      %v3241 = vperm.slane %v3124, 0
      %v3242 = vperm.slane %v3125, 0
      %v3243 = vperm.slane %v3126, 0
      %v3244 = vperm.slane %v3127, 0
      %v3245 = vperm.slane %v3078, 0
      %v3246 = vperm.slane %v3128, 0
      %v3247 = vperm.slane %v3129, 0
      %v3248 = vperm.slane %v3130, 0
      %v3249 = vperm.slane %v3131, 0
      %v3250 = vperm.slane %v3132, 0
      %v3251 = vperm.slane %v3133, 0
      %v3252 = vperm.slane %v3134, 0
      %v3253 = vperm.slane %v3081, 0
      %v3254 = vperm.slane %v3135, 0
      %v3255 = vperm.slane %v3136, 0
      %v3256 = vperm.slane %v3137, 0
      %v3257 = vperm.slane %v3138, 0
      %v3258 = vperm.slane %v3139, 0
      %v3259 = vperm.slane %v3140, 0
      %v3260 = vperm.slane %v3141, 0
      %v3261 = vperm.slane %v3083, 0
      %v3262 = vperm.slane %v3142, 0
      %v3263 = vperm.slane %v3143, 0
      %v3264 = vperm.slane %v3144, 0
      %v3265 = vperm.slane %v3145, 0
      %v3266 = vperm.slane %v3146, 0
      %v3267 = vperm.slane %v3147, 0
      %v3268 = vperm.slane %v3148, 0
      %3269 = vrot.lane.b32.xlu0 %v3205, 96
      %v3270 = vpop.permute.xlu0 %3269
      %3271 = vrot.lane.b32.xlu0 %v3206, 96
      %v3272 = vpop.permute.xlu0 %3271
      %3273 = vrot.lane.b32.xlu0 %v3207, 96
      %v3274 = vpop.permute.xlu0 %3273
      %3275 = vrot.lane.b32.xlu0 %v3208, 96
      %v3276 = vpop.permute.xlu0 %3275
      %3277 = vrot.lane.b32.xlu0 %v3209, 96
      %v3278 = vpop.permute.xlu0 %3277
      %3279 = vrot.lane.b32.xlu0 %v3210, 96
      %v3280 = vpop.permute.xlu0 %3279
      %3281 = vrot.lane.b32.xlu0 %v3211, 96
      %v3282 = vpop.permute.xlu0 %3281
      %3283 = vrot.lane.b32.xlu0 %v3212, 96
      %v3284 = vpop.permute.xlu0 %3283
      %3285 = vrot.lane.b32.xlu0 %v3213, 96
      %v3286 = vpop.permute.xlu0 %3285
      %3287 = vrot.lane.b32.xlu0 %v3214, 96
      %v3288 = vpop.permute.xlu0 %3287
      %3289 = vrot.lane.b32.xlu0 %v3215, 96
      %v3290 = vpop.permute.xlu0 %3289
      %3291 = vrot.lane.b32.xlu0 %v3216, 96
      %v3292 = vpop.permute.xlu0 %3291
      %3293 = vrot.lane.b32.xlu0 %v3217, 96
      %v3294 = vpop.permute.xlu0 %3293
      %3295 = vrot.lane.b32.xlu0 %v3218, 96
      %v3296 = vpop.permute.xlu0 %3295
      %3297 = vrot.lane.b32.xlu0 %v3219, 96
      %v3298 = vpop.permute.xlu0 %3297
      %3299 = vrot.lane.b32.xlu0 %v3220, 96
      %v3300 = vpop.permute.xlu0 %3299
      %3301 = vrot.lane.b32.xlu0 %v3221, 96
      %v3302 = vpop.permute.xlu0 %3301
      %3303 = vrot.lane.b32.xlu0 %v3222, 96
      %v3304 = vpop.permute.xlu0 %3303
      %3305 = vrot.lane.b32.xlu0 %v3223, 96
      %v3306 = vpop.permute.xlu0 %3305
      %3307 = vrot.lane.b32.xlu0 %v3224, 96
      %v3308 = vpop.permute.xlu0 %3307
      %3309 = vrot.lane.b32.xlu0 %v3225, 96
      %v3310 = vpop.permute.xlu0 %3309
      %3311 = vrot.lane.b32.xlu0 %v3226, 96
      %v3312 = vpop.permute.xlu0 %3311
      %3313 = vrot.lane.b32.xlu0 %v3227, 96
      %v3314 = vpop.permute.xlu0 %3313
      %3315 = vrot.lane.b32.xlu0 %v3228, 96
      %v3316 = vpop.permute.xlu0 %3315
      %3317 = vrot.lane.b32.xlu0 %v3229, 96
      %v3318 = vpop.permute.xlu0 %3317
      %3319 = vrot.lane.b32.xlu0 %v3230, 96
      %v3320 = vpop.permute.xlu0 %3319
      %3321 = vrot.lane.b32.xlu0 %v3231, 96
      %v3322 = vpop.permute.xlu0 %3321
      %3323 = vrot.lane.b32.xlu0 %v3232, 96
      %v3324 = vpop.permute.xlu0 %3323
      %3325 = vrot.lane.b32.xlu0 %v3233, 96
      %v3326 = vpop.permute.xlu0 %3325
      %3327 = vrot.lane.b32.xlu0 %v3234, 96
      %v3328 = vpop.permute.xlu0 %3327
      %3329 = vrot.lane.b32.xlu0 %v3235, 96
      %v3330 = vpop.permute.xlu0 %3329
      %3331 = vrot.lane.b32.xlu0 %v3236, 96
      %v3332 = vpop.permute.xlu0 %3331
      %3333 = vrot.lane.b32.xlu0 %v3237, 96
      %v3334 = vpop.permute.xlu0 %3333
      %3335 = vrot.lane.b32.xlu0 %v3238, 96
      %v3336 = vpop.permute.xlu0 %3335
      %3337 = vrot.lane.b32.xlu0 %v3239, 96
      %v3338 = vpop.permute.xlu0 %3337
      %3339 = vrot.lane.b32.xlu0 %v3240, 96
      %v3340 = vpop.permute.xlu0 %3339
      %3341 = vrot.lane.b32.xlu0 %v3241, 96
      %v3342 = vpop.permute.xlu0 %3341
      %3343 = vrot.lane.b32.xlu0 %v3242, 96
      %v3344 = vpop.permute.xlu0 %3343
      %3345 = vrot.lane.b32.xlu0 %v3243, 96
      %v3346 = vpop.permute.xlu0 %3345
      %3347 = vrot.lane.b32.xlu0 %v3244, 96
      %v3348 = vpop.permute.xlu0 %3347
      %3349 = vrot.lane.b32.xlu0 %v3245, 96
      %v3350 = vpop.permute.xlu0 %3349
      %3351 = vrot.lane.b32.xlu0 %v3246, 96
      %v3352 = vpop.permute.xlu0 %3351
      %3353 = vrot.lane.b32.xlu0 %v3247, 96
      %v3354 = vpop.permute.xlu0 %3353
      %3355 = vrot.lane.b32.xlu0 %v3248, 96
      %v3356 = vpop.permute.xlu0 %3355
      %3357 = vrot.lane.b32.xlu0 %v3249, 96
      %v3358 = vpop.permute.xlu0 %3357
      %3359 = vrot.lane.b32.xlu0 %v3250, 96
      %v3360 = vpop.permute.xlu0 %3359
      %3361 = vrot.lane.b32.xlu0 %v3251, 96
      %v3362 = vpop.permute.xlu0 %3361
      %3363 = vrot.lane.b32.xlu0 %v3252, 96
      %v3364 = vpop.permute.xlu0 %3363
      %3365 = vrot.lane.b32.xlu0 %v3253, 96
      %v3366 = vpop.permute.xlu0 %3365
      %3367 = vrot.lane.b32.xlu0 %v3254, 96
      %v3368 = vpop.permute.xlu0 %3367
      %3369 = vrot.lane.b32.xlu0 %v3255, 96
      %v3370 = vpop.permute.xlu0 %3369
      %3371 = vrot.lane.b32.xlu0 %v3256, 96
      %v3372 = vpop.permute.xlu0 %3371
      %3373 = vrot.lane.b32.xlu0 %v3257, 96
      %v3374 = vpop.permute.xlu0 %3373
      %3375 = vrot.lane.b32.xlu0 %v3258, 96
      %v3376 = vpop.permute.xlu0 %3375
      %3377 = vrot.lane.b32.xlu0 %v3259, 96
      %v3378 = vpop.permute.xlu0 %3377
      %3379 = vrot.lane.b32.xlu0 %v3260, 96
      %v3380 = vpop.permute.xlu0 %3379
      %3381 = vrot.lane.b32.xlu0 %v3261, 96
      %v3382 = vpop.permute.xlu0 %3381
      %3383 = vrot.lane.b32.xlu0 %v3262, 96
      %v3384 = vpop.permute.xlu0 %3383
      %3385 = vrot.lane.b32.xlu0 %v3263, 96
      %v3386 = vpop.permute.xlu0 %3385
      %3387 = vrot.lane.b32.xlu0 %v3264, 96
      %v3388 = vpop.permute.xlu0 %3387
      %3389 = vrot.lane.b32.xlu0 %v3265, 96
      %v3390 = vpop.permute.xlu0 %3389
      %3391 = vrot.lane.b32.xlu0 %v3266, 96
      %v3392 = vpop.permute.xlu0 %3391
      %3393 = vrot.lane.b32.xlu0 %v3267, 96
      %v3394 = vpop.permute.xlu0 %3393
      %3395 = vrot.lane.b32.xlu0 %v3268, 96
      %v3396 = vpop.permute.xlu0 %3395
      %v3461 = vsel %vm2173, %v3066, %v3270
      %v3462 = vsel %vm2173, %v3093, %v3272
      %v3463 = vsel %vm2173, %v3094, %v3274
      %v3464 = vsel %vm2173, %v3095, %v3276
      %v3465 = vsel %vm2173, %v3096, %v3278
      %v3466 = vsel %vm2173, %v3097, %v3280
      %v3467 = vsel %vm2173, %v3098, %v3282
      %v3468 = vsel %vm2173, %v3099, %v3284
      %v3469 = vsel %vm2173, %v3068, %v3286
      %v3470 = vsel %vm2173, %v3100, %v3288
      %v3471 = vsel %vm2173, %v3101, %v3290
      %v3472 = vsel %vm2173, %v3102, %v3292
      %v3473 = vsel %vm2173, %v3103, %v3294
      %v3474 = vsel %vm2173, %v3104, %v3296
      %v3475 = vsel %vm2173, %v3105, %v3298
      %v3476 = vsel %vm2173, %v3106, %v3300
      %v3477 = vsel %vm2173, %v3071, %v3302
      %v3478 = vsel %vm2173, %v3107, %v3304
      %v3479 = vsel %vm2173, %v3108, %v3306
      %v3480 = vsel %vm2173, %v3109, %v3308
      %v3481 = vsel %vm2173, %v3110, %v3310
      %v3482 = vsel %vm2173, %v3111, %v3312
      %v3483 = vsel %vm2173, %v3112, %v3314
      %v3484 = vsel %vm2173, %v3113, %v3316
      %v3485 = vsel %vm2173, %v3073, %v3318
      %v3486 = vsel %vm2173, %v3114, %v3320
      %v3487 = vsel %vm2173, %v3115, %v3322
      %v3488 = vsel %vm2173, %v3116, %v3324
      %v3489 = vsel %vm2173, %v3117, %v3326
      %v3490 = vsel %vm2173, %v3118, %v3328
      %v3491 = vsel %vm2173, %v3119, %v3330
      %v3492 = vsel %vm2173, %v3120, %v3332
      %v3493 = vsel %vm2173, %v3076, %v3334
      %v3494 = vsel %vm2173, %v3121, %v3336
      %v3495 = vsel %vm2173, %v3122, %v3338
      %v3496 = vsel %vm2173, %v3123, %v3340
      %v3497 = vsel %vm2173, %v3124, %v3342
      %v3498 = vsel %vm2173, %v3125, %v3344
      %v3499 = vsel %vm2173, %v3126, %v3346
      %v3500 = vsel %vm2173, %v3127, %v3348
      %v3501 = vsel %vm2173, %v3078, %v3350
      %v3502 = vsel %vm2173, %v3128, %v3352
      %v3503 = vsel %vm2173, %v3129, %v3354
      %v3504 = vsel %vm2173, %v3130, %v3356
      %v3505 = vsel %vm2173, %v3131, %v3358
      %v3506 = vsel %vm2173, %v3132, %v3360
      %v3507 = vsel %vm2173, %v3133, %v3362
      %v3508 = vsel %vm2173, %v3134, %v3364
      %v3509 = vsel %vm2173, %v3081, %v3366
      %v3510 = vsel %vm2173, %v3135, %v3368
      %v3511 = vsel %vm2173, %v3136, %v3370
      %v3512 = vsel %vm2173, %v3137, %v3372
      %v3513 = vsel %vm2173, %v3138, %v3374
      %v3514 = vsel %vm2173, %v3139, %v3376
      %v3515 = vsel %vm2173, %v3140, %v3378
      %v3516 = vsel %vm2173, %v3141, %v3380
      %v3517 = vsel %vm2173, %v3083, %v3382
      %v3518 = vsel %vm2173, %v3142, %v3384
      %v3519 = vsel %vm2173, %v3143, %v3386
      %v3520 = vsel %vm2173, %v3144, %v3388
      %v3521 = vsel %vm2173, %v3145, %v3390
      %v3522 = vsel %vm2173, %v3146, %v3392
      %v3523 = vsel %vm2173, %v3147, %v3394
      %v3524 = vsel %vm2173, %v3148, %v3396
      %3589 = vrot.lane.b32.xlu0 %v3461, 64
      %v3590 = vpop.permute.xlu0 %3589
      %3591 = vrot.lane.b32.xlu0 %v3462, 64
      %v3592 = vpop.permute.xlu0 %3591
      %3593 = vrot.lane.b32.xlu0 %v3463, 64
      %v3594 = vpop.permute.xlu0 %3593
      %3595 = vrot.lane.b32.xlu0 %v3464, 64
      %v3596 = vpop.permute.xlu0 %3595
      %3597 = vrot.lane.b32.xlu0 %v3465, 64
      %v3598 = vpop.permute.xlu0 %3597
      %3599 = vrot.lane.b32.xlu0 %v3466, 64
      %v3600 = vpop.permute.xlu0 %3599
      %3601 = vrot.lane.b32.xlu0 %v3467, 64
      %v3602 = vpop.permute.xlu0 %3601
      %3603 = vrot.lane.b32.xlu0 %v3468, 64
      %v3604 = vpop.permute.xlu0 %3603
      %3605 = vrot.lane.b32.xlu0 %v3469, 64
      %v3606 = vpop.permute.xlu0 %3605
      %3607 = vrot.lane.b32.xlu0 %v3470, 64
      %v3608 = vpop.permute.xlu0 %3607
      %3609 = vrot.lane.b32.xlu0 %v3471, 64
      %v3610 = vpop.permute.xlu0 %3609
      %3611 = vrot.lane.b32.xlu0 %v3472, 64
      %v3612 = vpop.permute.xlu0 %3611
      %3613 = vrot.lane.b32.xlu0 %v3473, 64
      %v3614 = vpop.permute.xlu0 %3613
      %3615 = vrot.lane.b32.xlu0 %v3474, 64
      %v3616 = vpop.permute.xlu0 %3615
      %3617 = vrot.lane.b32.xlu0 %v3475, 64
      %v3618 = vpop.permute.xlu0 %3617
      %3619 = vrot.lane.b32.xlu0 %v3476, 64
      %v3620 = vpop.permute.xlu0 %3619
      %3621 = vrot.lane.b32.xlu0 %v3477, 64
      %v3622 = vpop.permute.xlu0 %3621
      %3623 = vrot.lane.b32.xlu0 %v3478, 64
      %v3624 = vpop.permute.xlu0 %3623
      %3625 = vrot.lane.b32.xlu0 %v3479, 64
      %v3626 = vpop.permute.xlu0 %3625
      %3627 = vrot.lane.b32.xlu0 %v3480, 64
      %v3628 = vpop.permute.xlu0 %3627
      %3629 = vrot.lane.b32.xlu0 %v3481, 64
      %v3630 = vpop.permute.xlu0 %3629
      %3631 = vrot.lane.b32.xlu0 %v3482, 64
      %v3632 = vpop.permute.xlu0 %3631
      %3633 = vrot.lane.b32.xlu0 %v3483, 64
      %v3634 = vpop.permute.xlu0 %3633
      %3635 = vrot.lane.b32.xlu0 %v3484, 64
      %v3636 = vpop.permute.xlu0 %3635
      %3637 = vrot.lane.b32.xlu0 %v3485, 64
      %v3638 = vpop.permute.xlu0 %3637
      %3639 = vrot.lane.b32.xlu0 %v3486, 64
      %v3640 = vpop.permute.xlu0 %3639
      %3641 = vrot.lane.b32.xlu0 %v3487, 64
      %v3642 = vpop.permute.xlu0 %3641
      %3643 = vrot.lane.b32.xlu0 %v3488, 64
      %v3644 = vpop.permute.xlu0 %3643
      %3645 = vrot.lane.b32.xlu0 %v3489, 64
      %v3646 = vpop.permute.xlu0 %3645
      %3647 = vrot.lane.b32.xlu0 %v3490, 64
      %v3648 = vpop.permute.xlu0 %3647
      %3649 = vrot.lane.b32.xlu0 %v3491, 64
      %v3650 = vpop.permute.xlu0 %3649
      %3651 = vrot.lane.b32.xlu0 %v3492, 64
      %v3652 = vpop.permute.xlu0 %3651
      %3653 = vrot.lane.b32.xlu0 %v3493, 64
      %v3654 = vpop.permute.xlu0 %3653
      %3655 = vrot.lane.b32.xlu0 %v3494, 64
      %v3656 = vpop.permute.xlu0 %3655
      %3657 = vrot.lane.b32.xlu0 %v3495, 64
      %v3658 = vpop.permute.xlu0 %3657
      %3659 = vrot.lane.b32.xlu0 %v3496, 64
      %v3660 = vpop.permute.xlu0 %3659
      %3661 = vrot.lane.b32.xlu0 %v3497, 64
      %v3662 = vpop.permute.xlu0 %3661
      %3663 = vrot.lane.b32.xlu0 %v3498, 64
      %v3664 = vpop.permute.xlu0 %3663
      %3665 = vrot.lane.b32.xlu0 %v3499, 64
      %v3666 = vpop.permute.xlu0 %3665
      %3667 = vrot.lane.b32.xlu0 %v3500, 64
      %v3668 = vpop.permute.xlu0 %3667
      %3669 = vrot.lane.b32.xlu0 %v3501, 64
      %v3670 = vpop.permute.xlu0 %3669
      %3671 = vrot.lane.b32.xlu0 %v3502, 64
      %v3672 = vpop.permute.xlu0 %3671
      %3673 = vrot.lane.b32.xlu0 %v3503, 64
      %v3674 = vpop.permute.xlu0 %3673
      %3675 = vrot.lane.b32.xlu0 %v3504, 64
      %v3676 = vpop.permute.xlu0 %3675
      %3677 = vrot.lane.b32.xlu0 %v3505, 64
      %v3678 = vpop.permute.xlu0 %3677
      %3679 = vrot.lane.b32.xlu0 %v3506, 64
      %v3680 = vpop.permute.xlu0 %3679
      %3681 = vrot.lane.b32.xlu0 %v3507, 64
      %v3682 = vpop.permute.xlu0 %3681
      %3683 = vrot.lane.b32.xlu0 %v3508, 64
      %v3684 = vpop.permute.xlu0 %3683
      %3685 = vrot.lane.b32.xlu0 %v3509, 64
      %v3686 = vpop.permute.xlu0 %3685
      %3687 = vrot.lane.b32.xlu0 %v3510, 64
      %v3688 = vpop.permute.xlu0 %3687
      %3689 = vrot.lane.b32.xlu0 %v3511, 64
      %v3690 = vpop.permute.xlu0 %3689
      %3691 = vrot.lane.b32.xlu0 %v3512, 64
      %v3692 = vpop.permute.xlu0 %3691
      %3693 = vrot.lane.b32.xlu0 %v3513, 64
      %v3694 = vpop.permute.xlu0 %3693
      %3695 = vrot.lane.b32.xlu0 %v3514, 64
      %v3696 = vpop.permute.xlu0 %3695
      %3697 = vrot.lane.b32.xlu0 %v3515, 64
      %v3698 = vpop.permute.xlu0 %3697
      %3699 = vrot.lane.b32.xlu0 %v3516, 64
      %v3700 = vpop.permute.xlu0 %3699
      %3701 = vrot.lane.b32.xlu0 %v3517, 64
      %v3702 = vpop.permute.xlu0 %3701
      %3703 = vrot.lane.b32.xlu0 %v3518, 64
      %v3704 = vpop.permute.xlu0 %3703
      %3705 = vrot.lane.b32.xlu0 %v3519, 64
      %v3706 = vpop.permute.xlu0 %3705
      %3707 = vrot.lane.b32.xlu0 %v3520, 64
      %v3708 = vpop.permute.xlu0 %3707
      %3709 = vrot.lane.b32.xlu0 %v3521, 64
      %v3710 = vpop.permute.xlu0 %3709
      %3711 = vrot.lane.b32.xlu0 %v3522, 64
      %v3712 = vpop.permute.xlu0 %3711
      %3713 = vrot.lane.b32.xlu0 %v3523, 64
      %v3714 = vpop.permute.xlu0 %3713
      %3715 = vrot.lane.b32.xlu0 %v3524, 64
      %v3716 = vpop.permute.xlu0 %3715
      %3717 = vst [vmem:[#allocation1] ss:$4 sm:$0xff] %v3461
      %s3718 = scalar_lea.vmem [#allocation1], 1
      %3719 = vst [vmem:[%s3718] ss:$4 sm:$0xff] %v3462
      %s3720 = scalar_lea.vmem [#allocation1], 2
      %3721 = vst [vmem:[%s3720] ss:$4 sm:$0xff] %v3463
      %s3722 = scalar_lea.vmem [#allocation1], 3
      %3723 = vst [vmem:[%s3722] ss:$4 sm:$0xff] %v3464
      %s3724 = scalar_lea.vmem [#allocation1], 32
      %3725 = vst [vmem:[%s3724] ss:$4 sm:$0xff] %v3465
      %s3726 = scalar_lea.vmem [#allocation1], 33
      %3727 = vst [vmem:[%s3726] ss:$4 sm:$0xff] %v3466
      %s3728 = scalar_lea.vmem [#allocation1], 34
      %3729 = vst [vmem:[%s3728] ss:$4 sm:$0xff] %v3467
      %s3730 = scalar_lea.vmem [#allocation1], 35
      %3731 = vst [vmem:[%s3730] ss:$4 sm:$0xff] %v3468
      %v3732 = vld.sshfl [vmem:[#allocation1] sm:$0xff pattern:$0x73625140]
      %v3733 = vld.sshfl [vmem:[#allocation1 + $0x20] sm:$0xff pattern:$0x73625140]
      %3734 = vst [vmem:[#allocation1] ss:$4 sm:$0xff] %v3590
      %3735 = vst [vmem:[%s3718] ss:$4 sm:$0xff] %v3592
      %3736 = vst [vmem:[%s3720] ss:$4 sm:$0xff] %v3594
      %3737 = vst [vmem:[%s3722] ss:$4 sm:$0xff] %v3596
      %3738 = vst [vmem:[%s3724] ss:$4 sm:$0xff] %v3598
      %3739 = vst [vmem:[%s3726] ss:$4 sm:$0xff] %v3600
      %3740 = vst [vmem:[%s3728] ss:$4 sm:$0xff] %v3602
      %3741 = vst [vmem:[%s3730] ss:$4 sm:$0xff] %v3604
      %v3742 = vld.sshfl [vmem:[#allocation1] sm:$0xff pattern:$0x73625140]
      %v3743 = vld.sshfl [vmem:[#allocation1 + $0x20] sm:$0xff pattern:$0x73625140]
      %3744 = vst [vmem:[#allocation1] ss:$4 sm:$0xff] %v3469
      %3745 = vst [vmem:[%s3718] ss:$4 sm:$0xff] %v3470
      %3746 = vst [vmem:[%s3720] ss:$4 sm:$0xff] %v3471
      %3747 = vst [vmem:[%s3722] ss:$4 sm:$0xff] %v3472
      %3748 = vst [vmem:[%s3724] ss:$4 sm:$0xff] %v3473
      %3749 = vst [vmem:[%s3726] ss:$4 sm:$0xff] %v3474
      %3750 = vst [vmem:[%s3728] ss:$4 sm:$0xff] %v3475
      %3751 = vst [vmem:[%s3730] ss:$4 sm:$0xff] %v3476
      %v3752 = vld.sshfl [vmem:[#allocation1] sm:$0xff pattern:$0x73625140]
      %v3753 = vld.sshfl [vmem:[#allocation1 + $0x20] sm:$0xff pattern:$0x73625140]
      %3754 = vst [vmem:[#allocation1] ss:$4 sm:$0xff] %v3606
      %3755 = vst [vmem:[%s3718] ss:$4 sm:$0xff] %v3608
      %3756 = vst [vmem:[%s3720] ss:$4 sm:$0xff] %v3610
      %3757 = vst [vmem:[%s3722] ss:$4 sm:$0xff] %v3612
      %3758 = vst [vmem:[%s3724] ss:$4 sm:$0xff] %v3614
      %3759 = vst [vmem:[%s3726] ss:$4 sm:$0xff] %v3616
      %3760 = vst [vmem:[%s3728] ss:$4 sm:$0xff] %v3618
      %3761 = vst [vmem:[%s3730] ss:$4 sm:$0xff] %v3620
      %v3762 = vld.sshfl [vmem:[#allocation1] sm:$0xff pattern:$0x73625140]
      %v3763 = vld.sshfl [vmem:[#allocation1 + $0x20] sm:$0xff pattern:$0x73625140]
      %3764 = vst [vmem:[#allocation1] ss:$4 sm:$0xff] %v3477
      %3765 = vst [vmem:[%s3718] ss:$4 sm:$0xff] %v3478
      %3766 = vst [vmem:[%s3720] ss:$4 sm:$0xff] %v3479
      %3767 = vst [vmem:[%s3722] ss:$4 sm:$0xff] %v3480
      %3768 = vst [vmem:[%s3724] ss:$4 sm:$0xff] %v3481
      %3769 = vst [vmem:[%s3726] ss:$4 sm:$0xff] %v3482
      %3770 = vst [vmem:[%s3728] ss:$4 sm:$0xff] %v3483
      %3771 = vst [vmem:[%s3730] ss:$4 sm:$0xff] %v3484
      %v3772 = vld.sshfl [vmem:[#allocation1] sm:$0xff pattern:$0x73625140]
      %v3773 = vld.sshfl [vmem:[#allocation1 + $0x20] sm:$0xff pattern:$0x73625140]
      %3774 = vst [vmem:[#allocation1] ss:$4 sm:$0xff] %v3622
      %3775 = vst [vmem:[%s3718] ss:$4 sm:$0xff] %v3624
      %3776 = vst [vmem:[%s3720] ss:$4 sm:$0xff] %v3626
      %3777 = vst [vmem:[%s3722] ss:$4 sm:$0xff] %v3628
      %3778 = vst [vmem:[%s3724] ss:$4 sm:$0xff] %v3630
      %3779 = vst [vmem:[%s3726] ss:$4 sm:$0xff] %v3632
      %3780 = vst [vmem:[%s3728] ss:$4 sm:$0xff] %v3634
      %3781 = vst [vmem:[%s3730] ss:$4 sm:$0xff] %v3636
      %v3782 = vld.sshfl [vmem:[#allocation1] sm:$0xff pattern:$0x73625140]
      %v3783 = vld.sshfl [vmem:[#allocation1 + $0x20] sm:$0xff pattern:$0x73625140]
      %3784 = vst [vmem:[#allocation1] ss:$4 sm:$0xff] %v3485
      %3785 = vst [vmem:[%s3718] ss:$4 sm:$0xff] %v3486
      %3786 = vst [vmem:[%s3720] ss:$4 sm:$0xff] %v3487
      %3787 = vst [vmem:[%s3722] ss:$4 sm:$0xff] %v3488
      %3788 = vst [vmem:[%s3724] ss:$4 sm:$0xff] %v3489
      %3789 = vst [vmem:[%s3726] ss:$4 sm:$0xff] %v3490
      %3790 = vst [vmem:[%s3728] ss:$4 sm:$0xff] %v3491
      %3791 = vst [vmem:[%s3730] ss:$4 sm:$0xff] %v3492
      %v3792 = vld.sshfl [vmem:[#allocation1] sm:$0xff pattern:$0x73625140]
      %v3793 = vld.sshfl [vmem:[#allocation1 + $0x20] sm:$0xff pattern:$0x73625140]
      %3794 = vst [vmem:[#allocation1] ss:$4 sm:$0xff] %v3638
      %3795 = vst [vmem:[%s3718] ss:$4 sm:$0xff] %v3640
      %3796 = vst [vmem:[%s3720] ss:$4 sm:$0xff] %v3642
      %3797 = vst [vmem:[%s3722] ss:$4 sm:$0xff] %v3644
      %3798 = vst [vmem:[%s3724] ss:$4 sm:$0xff] %v3646
      %3799 = vst [vmem:[%s3726] ss:$4 sm:$0xff] %v3648
      %3800 = vst [vmem:[%s3728] ss:$4 sm:$0xff] %v3650
      %3801 = vst [vmem:[%s3730] ss:$4 sm:$0xff] %v3652
      %v3802 = vld.sshfl [vmem:[#allocation1] sm:$0xff pattern:$0x73625140]
      %v3803 = vld.sshfl [vmem:[#allocation1 + $0x20] sm:$0xff pattern:$0x73625140]
      %3804 = vst [vmem:[#allocation1] ss:$4 sm:$0xff] %v3493
      %3805 = vst [vmem:[%s3718] ss:$4 sm:$0xff] %v3494
      %3806 = vst [vmem:[%s3720] ss:$4 sm:$0xff] %v3495
      %3807 = vst [vmem:[%s3722] ss:$4 sm:$0xff] %v3496
      %3808 = vst [vmem:[%s3724] ss:$4 sm:$0xff] %v3497
      %3809 = vst [vmem:[%s3726] ss:$4 sm:$0xff] %v3498
      %3810 = vst [vmem:[%s3728] ss:$4 sm:$0xff] %v3499
      %3811 = vst [vmem:[%s3730] ss:$4 sm:$0xff] %v3500
      %v3812 = vld.sshfl [vmem:[#allocation1] sm:$0xff pattern:$0x73625140]
      %v3813 = vld.sshfl [vmem:[#allocation1 + $0x20] sm:$0xff pattern:$0x73625140]
      %3814 = vst [vmem:[#allocation1] ss:$4 sm:$0xff] %v3654
      %3815 = vst [vmem:[%s3718] ss:$4 sm:$0xff] %v3656
      %3816 = vst [vmem:[%s3720] ss:$4 sm:$0xff] %v3658
      %3817 = vst [vmem:[%s3722] ss:$4 sm:$0xff] %v3660
      %3818 = vst [vmem:[%s3724] ss:$4 sm:$0xff] %v3662
      %3819 = vst [vmem:[%s3726] ss:$4 sm:$0xff] %v3664
      %3820 = vst [vmem:[%s3728] ss:$4 sm:$0xff] %v3666
      %3821 = vst [vmem:[%s3730] ss:$4 sm:$0xff] %v3668
      %v3822 = vld.sshfl [vmem:[#allocation1] sm:$0xff pattern:$0x73625140]
      %v3823 = vld.sshfl [vmem:[#allocation1 + $0x20] sm:$0xff pattern:$0x73625140]
      %3824 = vst [vmem:[#allocation1] ss:$4 sm:$0xff] %v3501
      %3825 = vst [vmem:[%s3718] ss:$4 sm:$0xff] %v3502
      %3826 = vst [vmem:[%s3720] ss:$4 sm:$0xff] %v3503
      %3827 = vst [vmem:[%s3722] ss:$4 sm:$0xff] %v3504
      %3828 = vst [vmem:[%s3724] ss:$4 sm:$0xff] %v3505
      %3829 = vst [vmem:[%s3726] ss:$4 sm:$0xff] %v3506
      %3830 = vst [vmem:[%s3728] ss:$4 sm:$0xff] %v3507
      %3831 = vst [vmem:[%s3730] ss:$4 sm:$0xff] %v3508
      %v3832 = vld.sshfl [vmem:[#allocation1] sm:$0xff pattern:$0x73625140]
      %v3833 = vld.sshfl [vmem:[#allocation1 + $0x20] sm:$0xff pattern:$0x73625140]
      %3834 = vst [vmem:[#allocation1] ss:$4 sm:$0xff] %v3670
      %3835 = vst [vmem:[%s3718] ss:$4 sm:$0xff] %v3672
      %3836 = vst [vmem:[%s3720] ss:$4 sm:$0xff] %v3674
      %3837 = vst [vmem:[%s3722] ss:$4 sm:$0xff] %v3676
      %3838 = vst [vmem:[%s3724] ss:$4 sm:$0xff] %v3678
      %3839 = vst [vmem:[%s3726] ss:$4 sm:$0xff] %v3680
      %3840 = vst [vmem:[%s3728] ss:$4 sm:$0xff] %v3682
      %3841 = vst [vmem:[%s3730] ss:$4 sm:$0xff] %v3684
      %v3842 = vld.sshfl [vmem:[#allocation1] sm:$0xff pattern:$0x73625140]
      %v3843 = vld.sshfl [vmem:[#allocation1 + $0x20] sm:$0xff pattern:$0x73625140]
      %3844 = vst [vmem:[#allocation1] ss:$4 sm:$0xff] %v3509
      %3845 = vst [vmem:[%s3718] ss:$4 sm:$0xff] %v3510
      %3846 = vst [vmem:[%s3720] ss:$4 sm:$0xff] %v3511
      %3847 = vst [vmem:[%s3722] ss:$4 sm:$0xff] %v3512
      %3848 = vst [vmem:[%s3724] ss:$4 sm:$0xff] %v3513
      %3849 = vst [vmem:[%s3726] ss:$4 sm:$0xff] %v3514
      %3850 = vst [vmem:[%s3728] ss:$4 sm:$0xff] %v3515
      %3851 = vst [vmem:[%s3730] ss:$4 sm:$0xff] %v3516
      %v3852 = vld.sshfl [vmem:[#allocation1] sm:$0xff pattern:$0x73625140]
      %v3853 = vld.sshfl [vmem:[#allocation1 + $0x20] sm:$0xff pattern:$0x73625140]
      %3854 = vst [vmem:[#allocation1] ss:$4 sm:$0xff] %v3686
      %3855 = vst [vmem:[%s3718] ss:$4 sm:$0xff] %v3688
      %3856 = vst [vmem:[%s3720] ss:$4 sm:$0xff] %v3690
      %3857 = vst [vmem:[%s3722] ss:$4 sm:$0xff] %v3692
      %3858 = vst [vmem:[%s3724] ss:$4 sm:$0xff] %v3694
      %3859 = vst [vmem:[%s3726] ss:$4 sm:$0xff] %v3696
      %3860 = vst [vmem:[%s3728] ss:$4 sm:$0xff] %v3698
      %3861 = vst [vmem:[%s3730] ss:$4 sm:$0xff] %v3700
      %v3862 = vld.sshfl [vmem:[#allocation1] sm:$0xff pattern:$0x73625140]
      %v3863 = vld.sshfl [vmem:[#allocation1 + $0x20] sm:$0xff pattern:$0x73625140]
      %3864 = vst [vmem:[#allocation1] ss:$4 sm:$0xff] %v3517
      %3865 = vst [vmem:[%s3718] ss:$4 sm:$0xff] %v3518
      %3866 = vst [vmem:[%s3720] ss:$4 sm:$0xff] %v3519
      %3867 = vst [vmem:[%s3722] ss:$4 sm:$0xff] %v3520
      %3868 = vst [vmem:[%s3724] ss:$4 sm:$0xff] %v3521
      %3869 = vst [vmem:[%s3726] ss:$4 sm:$0xff] %v3522
      %3870 = vst [vmem:[%s3728] ss:$4 sm:$0xff] %v3523
      %3871 = vst [vmem:[%s3730] ss:$4 sm:$0xff] %v3524
      %v3872 = vld.sshfl [vmem:[#allocation1] sm:$0xff pattern:$0x73625140]
      %v3873 = vld.sshfl [vmem:[#allocation1 + $0x20] sm:$0xff pattern:$0x73625140]
      %3874 = vst [vmem:[#allocation1] ss:$4 sm:$0xff] %v3702
      %3875 = vst [vmem:[%s3718] ss:$4 sm:$0xff] %v3704
      %3876 = vst [vmem:[%s3720] ss:$4 sm:$0xff] %v3706
      %3877 = vst [vmem:[%s3722] ss:$4 sm:$0xff] %v3708
      %3878 = vst [vmem:[%s3724] ss:$4 sm:$0xff] %v3710
      %3879 = vst [vmem:[%s3726] ss:$4 sm:$0xff] %v3712
      %3880 = vst [vmem:[%s3728] ss:$4 sm:$0xff] %v3714
      %3881 = vst [vmem:[%s3730] ss:$4 sm:$0xff] %v3716
      %v3882 = vld.sshfl [vmem:[#allocation1] sm:$0xff pattern:$0x73625140]
      %v3883 = vld.sshfl [vmem:[#allocation1 + $0x20] sm:$0xff pattern:$0x73625140]
      %v3884 = vrot.slane %v3732, 7
      %v3885 = vrot.slane %v3733, 7
      %v3886 = vsel %vm2173, %v3884, %v3885
      %v3887 = vrot.slane %v3742, 7
      %v3888 = vrot.slane %v3743, 7
      %v3889 = vsel %vm2173, %v3887, %v3888
      %v3890 = vrot.slane %v3752, 7
      %v3891 = vrot.slane %v3753, 7
      %v3892 = vsel %vm2173, %v3890, %v3891
      %v3893 = vrot.slane %v3762, 7
      %v3894 = vrot.slane %v3763, 7
      %v3895 = vsel %vm2173, %v3893, %v3894
      %v3896 = vrot.slane %v3772, 7
      %v3897 = vrot.slane %v3773, 7
      %v3898 = vsel %vm2173, %v3896, %v3897
      %v3899 = vrot.slane %v3782, 7
      %v3900 = vrot.slane %v3783, 7
      %v3901 = vsel %vm2173, %v3899, %v3900
      %v3902 = vrot.slane %v3792, 7
      %v3903 = vrot.slane %v3793, 7
      %v3904 = vsel %vm2173, %v3902, %v3903
      %v3905 = vrot.slane %v3802, 7
      %v3906 = vrot.slane %v3803, 7
      %v3907 = vsel %vm2173, %v3905, %v3906
      %v3908 = vrot.slane %v3812, 7
      %v3909 = vrot.slane %v3813, 7
      %v3910 = vsel %vm2173, %v3908, %v3909
      %v3911 = vrot.slane %v3822, 7
      %v3912 = vrot.slane %v3823, 7
      %v3913 = vsel %vm2173, %v3911, %v3912
      %v3914 = vrot.slane %v3832, 7
      %v3915 = vrot.slane %v3833, 7
      %v3916 = vsel %vm2173, %v3914, %v3915
      %v3917 = vrot.slane %v3842, 7
      %v3918 = vrot.slane %v3843, 7
      %v3919 = vsel %vm2173, %v3917, %v3918
      %v3920 = vrot.slane %v3852, 7
      %v3921 = vrot.slane %v3853, 7
      %v3922 = vsel %vm2173, %v3920, %v3921
      %v3923 = vrot.slane %v3862, 7
      %v3924 = vrot.slane %v3863, 7
      %v3925 = vsel %vm2173, %v3923, %v3924
      %v3926 = vrot.slane %v3872, 7
      %v3927 = vrot.slane %v3873, 7
      %v3928 = vsel %vm2173, %v3926, %v3927
      %v3929 = vrot.slane %v3882, 7
      %v3930 = vrot.slane %v3883, 7
      %v3931 = vsel %vm2173, %v3929, %v3930
      %v3980 = vsel %vm2173, 0.0, %v3884
      %v3981 = vsel %vm2173, 0.0, %v3887
      %v3982 = vsel %vm2173, 0.0, %v3890
      %v3983 = vsel %vm2173, 0.0, %v3893
      %v3984 = vsel %vm2173, 0.0, %v3896
      %v3985 = vsel %vm2173, 0.0, %v3899
      %v3986 = vsel %vm2173, 0.0, %v3902
      %v3987 = vsel %vm2173, 0.0, %v3905
      %v3988 = vsel %vm2173, 0.0, %v3908
      %v3989 = vsel %vm2173, 0.0, %v3911
      %v3990 = vsel %vm2173, 0.0, %v3914
      %v3991 = vsel %vm2173, 0.0, %v3917
      %v3992 = vsel %vm2173, 0.0, %v3920
      %v3993 = vsel %vm2173, 0.0, %v3923
      %v3994 = vsel %vm2173, 0.0, %v3926
      %v3995 = vsel %vm2173, 0.0, %v3929
      %v3996 = vsel %vm2173, %v3885, 0.0
      %v3997 = vsel %vm2173, %v3888, 0.0
      %v3998 = vsel %vm2173, %v3891, 0.0
      %v3999 = vsel %vm2173, %v3894, 0.0
      %v4000 = vsel %vm2173, %v3897, 0.0
      %v4001 = vsel %vm2173, %v3900, 0.0
      %v4002 = vsel %vm2173, %v3903, 0.0
      %v4003 = vsel %vm2173, %v3906, 0.0
      %v4004 = vsel %vm2173, %v3909, 0.0
      %v4005 = vsel %vm2173, %v3912, 0.0
      %v4006 = vsel %vm2173, %v3915, 0.0
      %v4007 = vsel %vm2173, %v3918, 0.0
      %v4008 = vsel %vm2173, %v3921, 0.0
      %v4009 = vsel %vm2173, %v3924, 0.0
      %v4010 = vsel %vm2173, %v3927, 0.0
      %v4011 = vsel %vm2173, %v3930, 0.0
      %v4012 = vpack.c.bf16 %v3980, %v3980
      %v4013 = vpack.c.bf16 %v3886, %v3886
      %v4014 = vpack.c.bf16 %v3996, %v3996
      %v4015 = vpack.c.bf16 %v3981, %v3981
      %v4016 = vpack.c.bf16 %v3889, %v3889
      %v4017 = vpack.c.bf16 %v3997, %v3997
      %v4018 = vpack.c.bf16 %v3982, %v3982
      %v4019 = vpack.c.bf16 %v3892, %v3892
      %v4020 = vpack.c.bf16 %v3998, %v3998
      %v4021 = vpack.c.bf16 %v3983, %v3983
      %v4022 = vpack.c.bf16 %v3895, %v3895
      %v4023 = vpack.c.bf16 %v3999, %v3999
      %v4024 = vpack.c.bf16 %v3984, %v3984
      %v4025 = vpack.c.bf16 %v3898, %v3898
      %v4026 = vpack.c.bf16 %v4000, %v4000
      %v4027 = vpack.c.bf16 %v3985, %v3985
      %v4028 = vpack.c.bf16 %v3901, %v3901
      %v4029 = vpack.c.bf16 %v4001, %v4001
      %v4030 = vpack.c.bf16 %v3986, %v3986
      %v4031 = vpack.c.bf16 %v3904, %v3904
      %v4032 = vpack.c.bf16 %v4002, %v4002
      %v4033 = vpack.c.bf16 %v3987, %v3987
      %v4034 = vpack.c.bf16 %v3907, %v3907
      %v4035 = vpack.c.bf16 %v4003, %v4003
      %v4036 = vpack.c.bf16 %v3988, %v3988
      %v4037 = vpack.c.bf16 %v3910, %v3910
      %v4038 = vpack.c.bf16 %v4004, %v4004
      %v4039 = vpack.c.bf16 %v3989, %v3989
      %v4040 = vpack.c.bf16 %v3913, %v3913
      %v4041 = vpack.c.bf16 %v4005, %v4005
      %v4042 = vpack.c.bf16 %v3990, %v3990
      %v4043 = vpack.c.bf16 %v3916, %v3916
      %v4044 = vpack.c.bf16 %v4006, %v4006
      %v4045 = vpack.c.bf16 %v3991, %v3991
      %v4046 = vpack.c.bf16 %v3919, %v3919
      %v4047 = vpack.c.bf16 %v4007, %v4007
      %v4048 = vpack.c.bf16 %v3992, %v3992
      %v4049 = vpack.c.bf16 %v3922, %v3922
      %v4050 = vpack.c.bf16 %v4008, %v4008
      %v4051 = vpack.c.bf16 %v3993, %v3993
      %v4052 = vpack.c.bf16 %v3925, %v3925
      %v4053 = vpack.c.bf16 %v4009, %v4009
      %v4054 = vpack.c.bf16 %v3994, %v3994
      %v4055 = vpack.c.bf16 %v3928, %v3928
      %v4056 = vpack.c.bf16 %v4010, %v4010
      %v4057 = vpack.c.bf16 %v3995, %v3995
      %v4058 = vpack.c.bf16 %v3931, %v3931
      %v4059 = vpack.c.bf16 %v4011, %v4011
      %v4060 = vld [vmem:[%s7] sm:$0xf]
      %v4061 = vld [vmem:[%s7 + $0x4] sm:$0xf]
      %v4062 = vld [vmem:[%s7 + $0x8] sm:$0xf]
      %v4063 = vld [vmem:[%s7 + $0xc] sm:$0xf]
      %v4065 = vshrl.u32 %v4012, 16
      %v4067 = vrot.slane %v4065, 4
      %v4068 = vshll.u32 %v4012, 16
      %v4070 = vrot.slane %v4068, 5
      %v4071 = vor.u32 %v4067, %v4070
      %v4072 = vrot.slane %v4071, 4
      %v4074 = vshll.u32 %v4013, 16
      %v4076 = vrot.slane %v4074, 5
      %v4077 = vsel %vm2213, %v4072, %v4076
      %v4078 = vshrl.u32 %v4013, 16
      %v4080 = vrot.slane %v4078, 4
      %v4081 = vor.u32 %v4080, %v4076
      %v4082 = vrot.slane %v4081, 4
      %v4084 = vshll.u32 %v4014, 16
      %v4086 = vrot.slane %v4084, 5
      %v4087 = vsel %vm2213, %v4082, %v4086
      %v4089 = vshrl.u32 %v4015, 16
      %v4091 = vrot.slane %v4089, 4
      %v4092 = vshll.u32 %v4015, 16
      %v4094 = vrot.slane %v4092, 5
      %v4095 = vor.u32 %v4091, %v4094
      %v4096 = vrot.slane %v4095, 4
      %v4098 = vshll.u32 %v4016, 16
      %v4100 = vrot.slane %v4098, 5
      %v4101 = vsel %vm2213, %v4096, %v4100
      %v4102 = vshrl.u32 %v4016, 16
      %v4104 = vrot.slane %v4102, 4
      %v4105 = vor.u32 %v4104, %v4100
      %v4106 = vrot.slane %v4105, 4
      %v4108 = vshll.u32 %v4017, 16
      %v4110 = vrot.slane %v4108, 5
      %v4111 = vsel %vm2213, %v4106, %v4110
      %v4113 = vshrl.u32 %v4018, 16
      %v4115 = vrot.slane %v4113, 4
      %v4116 = vshll.u32 %v4018, 16
      %v4118 = vrot.slane %v4116, 5
      %v4119 = vor.u32 %v4115, %v4118
      %v4120 = vrot.slane %v4119, 4
      %v4122 = vshll.u32 %v4019, 16
      %v4124 = vrot.slane %v4122, 5
      %v4125 = vsel %vm2213, %v4120, %v4124
      %v4126 = vshrl.u32 %v4019, 16
      %v4128 = vrot.slane %v4126, 4
      %v4129 = vor.u32 %v4128, %v4124
      %v4130 = vrot.slane %v4129, 4
      %v4132 = vshll.u32 %v4020, 16
      %v4134 = vrot.slane %v4132, 5
      %v4135 = vsel %vm2213, %v4130, %v4134
      %v4137 = vshrl.u32 %v4021, 16
      %v4139 = vrot.slane %v4137, 4
      %v4140 = vshll.u32 %v4021, 16
      %v4142 = vrot.slane %v4140, 5
      %v4143 = vor.u32 %v4139, %v4142
      %v4144 = vrot.slane %v4143, 4
      %v4146 = vshll.u32 %v4022, 16
      %v4148 = vrot.slane %v4146, 5
      %v4149 = vsel %vm2213, %v4144, %v4148
      %v4150 = vshrl.u32 %v4022, 16
      %v4152 = vrot.slane %v4150, 4
      %v4153 = vor.u32 %v4152, %v4148
      %v4154 = vrot.slane %v4153, 4
      %v4156 = vshll.u32 %v4023, 16
      %v4158 = vrot.slane %v4156, 5
      %v4159 = vsel %vm2213, %v4154, %v4158
      %v4161 = vshrl.u32 %v4024, 16
      %v4163 = vrot.slane %v4161, 4
      %v4164 = vshll.u32 %v4024, 16
      %v4166 = vrot.slane %v4164, 5
      %v4167 = vor.u32 %v4163, %v4166
      %v4168 = vrot.slane %v4167, 4
      %v4170 = vshll.u32 %v4025, 16
      %v4172 = vrot.slane %v4170, 5
      %v4173 = vsel %vm2213, %v4168, %v4172
      %v4174 = vshrl.u32 %v4025, 16
      %v4176 = vrot.slane %v4174, 4
      %v4177 = vor.u32 %v4176, %v4172
      %v4178 = vrot.slane %v4177, 4
      %v4180 = vshll.u32 %v4026, 16
      %v4182 = vrot.slane %v4180, 5
      %v4183 = vsel %vm2213, %v4178, %v4182
      %v4185 = vshrl.u32 %v4027, 16
      %v4187 = vrot.slane %v4185, 4
      %v4188 = vshll.u32 %v4027, 16
      %v4190 = vrot.slane %v4188, 5
      %v4191 = vor.u32 %v4187, %v4190
      %v4192 = vrot.slane %v4191, 4
      %v4194 = vshll.u32 %v4028, 16
      %v4196 = vrot.slane %v4194, 5
      %v4197 = vsel %vm2213, %v4192, %v4196
      %v4198 = vshrl.u32 %v4028, 16
      %v4200 = vrot.slane %v4198, 4
      %v4201 = vor.u32 %v4200, %v4196
      %v4202 = vrot.slane %v4201, 4
      %v4204 = vshll.u32 %v4029, 16
      %v4206 = vrot.slane %v4204, 5
      %v4207 = vsel %vm2213, %v4202, %v4206
      %v4209 = vshrl.u32 %v4030, 16
      %v4211 = vrot.slane %v4209, 4
      %v4212 = vshll.u32 %v4030, 16
      %v4214 = vrot.slane %v4212, 5
      %v4215 = vor.u32 %v4211, %v4214
      %v4216 = vrot.slane %v4215, 4
      %v4218 = vshll.u32 %v4031, 16
      %v4220 = vrot.slane %v4218, 5
      %v4221 = vsel %vm2213, %v4216, %v4220
      %v4222 = vshrl.u32 %v4031, 16
      %v4224 = vrot.slane %v4222, 4
      %v4225 = vor.u32 %v4224, %v4220
      %v4226 = vrot.slane %v4225, 4
      %v4228 = vshll.u32 %v4032, 16
      %v4230 = vrot.slane %v4228, 5
      %v4231 = vsel %vm2213, %v4226, %v4230
      %v4233 = vshrl.u32 %v4033, 16
      %v4235 = vrot.slane %v4233, 4
      %v4236 = vshll.u32 %v4033, 16
      %v4238 = vrot.slane %v4236, 5
      %v4239 = vor.u32 %v4235, %v4238
      %v4240 = vrot.slane %v4239, 4
      %v4242 = vshll.u32 %v4034, 16
      %v4244 = vrot.slane %v4242, 5
      %v4245 = vsel %vm2213, %v4240, %v4244
      %v4246 = vshrl.u32 %v4034, 16
      %v4248 = vrot.slane %v4246, 4
      %v4249 = vor.u32 %v4248, %v4244
      %v4250 = vrot.slane %v4249, 4
      %v4252 = vshll.u32 %v4035, 16
      %v4254 = vrot.slane %v4252, 5
      %v4255 = vsel %vm2213, %v4250, %v4254
      %v4257 = vshrl.u32 %v4036, 16
      %v4259 = vrot.slane %v4257, 4
      %v4260 = vshll.u32 %v4036, 16
      %v4262 = vrot.slane %v4260, 5
      %v4263 = vor.u32 %v4259, %v4262
      %v4264 = vrot.slane %v4263, 4
      %v4266 = vshll.u32 %v4037, 16
      %v4268 = vrot.slane %v4266, 5
      %v4269 = vsel %vm2213, %v4264, %v4268
      %v4270 = vshrl.u32 %v4037, 16
      %v4272 = vrot.slane %v4270, 4
      %v4273 = vor.u32 %v4272, %v4268
      %v4274 = vrot.slane %v4273, 4
      %v4276 = vshll.u32 %v4038, 16
      %v4278 = vrot.slane %v4276, 5
      %v4279 = vsel %vm2213, %v4274, %v4278
      %v4281 = vshrl.u32 %v4039, 16
      %v4283 = vrot.slane %v4281, 4
      %v4284 = vshll.u32 %v4039, 16
      %v4286 = vrot.slane %v4284, 5
      %v4287 = vor.u32 %v4283, %v4286
      %v4288 = vrot.slane %v4287, 4
      %v4290 = vshll.u32 %v4040, 16
      %v4292 = vrot.slane %v4290, 5
      %v4293 = vsel %vm2213, %v4288, %v4292
      %v4294 = vshrl.u32 %v4040, 16
      %v4296 = vrot.slane %v4294, 4
      %v4297 = vor.u32 %v4296, %v4292
      %v4298 = vrot.slane %v4297, 4
      %v4300 = vshll.u32 %v4041, 16
      %v4302 = vrot.slane %v4300, 5
      %v4303 = vsel %vm2213, %v4298, %v4302
      %v4305 = vshrl.u32 %v4042, 16
      %v4307 = vrot.slane %v4305, 4
      %v4308 = vshll.u32 %v4042, 16
      %v4310 = vrot.slane %v4308, 5
      %v4311 = vor.u32 %v4307, %v4310
      %v4312 = vrot.slane %v4311, 4
      %v4314 = vshll.u32 %v4043, 16
      %v4316 = vrot.slane %v4314, 5
      %v4317 = vsel %vm2213, %v4312, %v4316
      %v4318 = vshrl.u32 %v4043, 16
      %v4320 = vrot.slane %v4318, 4
      %v4321 = vor.u32 %v4320, %v4316
      %v4322 = vrot.slane %v4321, 4
      %v4324 = vshll.u32 %v4044, 16
      %v4326 = vrot.slane %v4324, 5
      %v4327 = vsel %vm2213, %v4322, %v4326
      %v4329 = vshrl.u32 %v4045, 16
      %v4331 = vrot.slane %v4329, 4
      %v4332 = vshll.u32 %v4045, 16
      %v4334 = vrot.slane %v4332, 5
      %v4335 = vor.u32 %v4331, %v4334
      %v4336 = vrot.slane %v4335, 4
      %v4338 = vshll.u32 %v4046, 16
      %v4340 = vrot.slane %v4338, 5
      %v4341 = vsel %vm2213, %v4336, %v4340
      %v4342 = vshrl.u32 %v4046, 16
      %v4344 = vrot.slane %v4342, 4
      %v4345 = vor.u32 %v4344, %v4340
      %v4346 = vrot.slane %v4345, 4
      %v4348 = vshll.u32 %v4047, 16
      %v4350 = vrot.slane %v4348, 5
      %v4351 = vsel %vm2213, %v4346, %v4350
      %v4353 = vshrl.u32 %v4048, 16
      %v4355 = vrot.slane %v4353, 4
      %v4356 = vshll.u32 %v4048, 16
      %v4358 = vrot.slane %v4356, 5
      %v4359 = vor.u32 %v4355, %v4358
      %v4360 = vrot.slane %v4359, 4
      %v4362 = vshll.u32 %v4049, 16
      %v4364 = vrot.slane %v4362, 5
      %v4365 = vsel %vm2213, %v4360, %v4364
      %v4366 = vshrl.u32 %v4049, 16
      %v4368 = vrot.slane %v4366, 4
      %v4369 = vor.u32 %v4368, %v4364
      %v4370 = vrot.slane %v4369, 4
      %v4372 = vshll.u32 %v4050, 16
      %v4374 = vrot.slane %v4372, 5
      %v4375 = vsel %vm2213, %v4370, %v4374
      %v4377 = vshrl.u32 %v4051, 16
      %v4379 = vrot.slane %v4377, 4
      %v4380 = vshll.u32 %v4051, 16
      %v4382 = vrot.slane %v4380, 5
      %v4383 = vor.u32 %v4379, %v4382
      %v4384 = vrot.slane %v4383, 4
      %v4386 = vshll.u32 %v4052, 16
      %v4388 = vrot.slane %v4386, 5
      %v4389 = vsel %vm2213, %v4384, %v4388
      %v4390 = vshrl.u32 %v4052, 16
      %v4392 = vrot.slane %v4390, 4
      %v4393 = vor.u32 %v4392, %v4388
      %v4394 = vrot.slane %v4393, 4
      %v4396 = vshll.u32 %v4053, 16
      %v4398 = vrot.slane %v4396, 5
      %v4399 = vsel %vm2213, %v4394, %v4398
      %v4401 = vshrl.u32 %v4054, 16
      %v4403 = vrot.slane %v4401, 4
      %v4404 = vshll.u32 %v4054, 16
      %v4406 = vrot.slane %v4404, 5
      %v4407 = vor.u32 %v4403, %v4406
      %v4408 = vrot.slane %v4407, 4
      %v4410 = vshll.u32 %v4055, 16
      %v4412 = vrot.slane %v4410, 5
      %v4413 = vsel %vm2213, %v4408, %v4412
      %v4414 = vshrl.u32 %v4055, 16
      %v4416 = vrot.slane %v4414, 4
      %v4417 = vor.u32 %v4416, %v4412
      %v4418 = vrot.slane %v4417, 4
      %v4420 = vshll.u32 %v4056, 16
      %v4422 = vrot.slane %v4420, 5
      %v4423 = vsel %vm2213, %v4418, %v4422
      %v4424 = vld [vmem:[%s7 + $0x10] sm:$0xf]
      %v4425 = vld [vmem:[%s7 + $0x14] sm:$0xf]
      %v4426 = vld [vmem:[%s7 + $0x18] sm:$0xf]
      %v4427 = vld [vmem:[%s7 + $0x1c] sm:$0xf]
      %v4428 = vunpack.c.l.b16 %v4077
      %v4429 = vunpack.c.l.b16 %v4087
      %v4430 = vunpack.c.l.b16 %v4101
      %v4431 = vunpack.c.l.b16 %v4111
      %v4432 = vunpack.c.l.b16 %v4125
      %v4433 = vunpack.c.l.b16 %v4135
      %v4434 = vunpack.c.l.b16 %v4149
      %v4435 = vunpack.c.l.b16 %v4159
      %v4436 = vunpack.c.l.b16 %v4173
      %v4437 = vunpack.c.l.b16 %v4183
      %v4438 = vunpack.c.l.b16 %v4197
      %v4439 = vunpack.c.l.b16 %v4207
      %v4440 = vunpack.c.l.b16 %v4221
      %v4441 = vunpack.c.l.b16 %v4231
      %v4442 = vunpack.c.l.b16 %v4245
      %v4443 = vunpack.c.l.b16 %v4255
      %v4444 = vunpack.c.l.b16 %v4269
      %v4445 = vunpack.c.l.b16 %v4279
      %v4446 = vunpack.c.l.b16 %v4293
      %v4447 = vunpack.c.l.b16 %v4303
      %v4448 = vunpack.c.l.b16 %v4317
      %v4449 = vunpack.c.l.b16 %v4327
      %v4450 = vunpack.c.l.b16 %v4341
      %v4451 = vunpack.c.l.b16 %v4351
      %v4452 = vunpack.c.l.b16 %v4365
      %v4453 = vunpack.c.l.b16 %v4375
      %v4454 = vunpack.c.l.b16 %v4389
      %v4455 = vunpack.c.l.b16 %v4399
      %v4456 = vunpack.c.l.b16 %v4413
      %v4457 = vunpack.c.l.b16 %v4423
      %v4458 = vpack.c.b16 %v2326, %v2326
      %v4459 = vpack.c.b16 %v4429, %v4428
      %v4460 = vpack.c.b16 %v4431, %v4430
      %v4461 = vpack.c.b16 %v4433, %v4432
      %v4462 = vpack.c.b16 %v4435, %v4434
      %v4463 = vpack.c.b16 %v4437, %v4436
      %v4464 = vpack.c.b16 %v4439, %v4438
      %v4465 = vpack.c.b16 %v4441, %v4440
      %v4466 = vpack.c.b16 %v4443, %v4442
      %v4467 = vpack.c.b16 %v4445, %v4444
      %v4468 = vpack.c.b16 %v4447, %v4446
      %v4469 = vpack.c.b16 %v4449, %v4448
      %v4470 = vpack.c.b16 %v4451, %v4450
      %v4471 = vpack.c.b16 %v4453, %v4452
      %v4472 = vpack.c.b16 %v4455, %v4454
      %v4473 = vpack.c.b16 %v4457, %v4456
      %v4478 = vunpack.c.l.b16 %v4424
      %v4479 = vunpack.c.l.b16 %v4425
      %v4480 = vunpack.c.l.b16 %v4426
      %v4481 = vunpack.c.l.b16 %v4427
      %v4482 = vpack.c.b16 %v4479, %v4478
      %v4483 = vpack.c.b16 %v4481, %v4480
      %v4487 = vsel %vm1846, %v4458, 0
      %v4490 = vsel %vm1846, %v4459, 0
      %v4493 = vsel %vm1846, %v4460, 0
      %v4496 = vsel %vm1846, %v4461, 0
      %v4499 = vsel %vm1846, %v4462, 0
      %v4502 = vsel %vm1846, %v4463, 0
      %v4505 = vsel %vm1846, %v4464, 0
      %v4508 = vsel %vm1846, %v4465, 0
      %v4511 = vsel %vm1846, %v4466, 0
      %v4514 = vsel %vm1846, %v4467, 0
      %v4517 = vsel %vm1846, %v4468, 0
      %v4520 = vsel %vm1846, %v4469, 0
      %v4523 = vsel %vm1846, %v4470, 0
      %v4526 = vsel %vm1846, %v4471, 0
      %v4529 = vsel %vm1846, %v4472, 0
      %v4532 = vsel %vm1846, %v4473, 0
      %4534 = vmatpush.bf16.msra.mxu0 0
      %4535 = vmatpush.bf16.msra.mxu0 0
      %4536 = vmatpush.bf16.msra.mxu0 0
      %4537 = vmatpush.bf16.msra.mxu0 0
      %4538 = vmatpush.bf16.msra.mxu0 0
      %4539 = vmatpush.bf16.msra.mxu0 0
      %4540 = vmatpush.bf16.msra.mxu0 %v4483
      %4541 = vmatpush.bf16.msra.mxu0 %v4482
      %4542 = vmatmul.bf16.gmra.mxu0 %v4487
      %v4543 = vpop.f32.mrf.mxu0
      %v4544 = vadd.f32 0.0, %v4543
      %v4545 = vpop.f32.mrf.mxu0
      %v4546 = vadd.f32 0.0, %v4545
      %4547 = vmatmul.bf16.gmra.mxu0 %v4490
      %v4548 = vpop.f32.mrf.mxu0
      %v4549 = vadd.f32 0.0, %v4548
      %v4550 = vpop.f32.mrf.mxu0
      %v4551 = vadd.f32 0.0, %v4550
      %4552 = vmatmul.bf16.gmra.mxu0 %v4493
      %v4553 = vpop.f32.mrf.mxu0
      %v4554 = vadd.f32 0.0, %v4553
      %v4555 = vpop.f32.mrf.mxu0
      %v4556 = vadd.f32 0.0, %v4555
      %4557 = vmatmul.bf16.gmra.mxu0 %v4496
      %v4558 = vpop.f32.mrf.mxu0
      %v4559 = vadd.f32 0.0, %v4558
      %v4560 = vpop.f32.mrf.mxu0
      %v4561 = vadd.f32 0.0, %v4560
      %4562 = vmatmul.bf16.gmra.mxu0 %v4499
      %v4563 = vpop.f32.mrf.mxu0
      %v4564 = vadd.f32 0.0, %v4563
      %v4565 = vpop.f32.mrf.mxu0
      %v4566 = vadd.f32 0.0, %v4565
      %4567 = vmatmul.bf16.gmra.mxu0 %v4502
      %v4568 = vpop.f32.mrf.mxu0
      %v4569 = vadd.f32 0.0, %v4568
      %v4570 = vpop.f32.mrf.mxu0
      %v4571 = vadd.f32 0.0, %v4570
      %4572 = vmatmul.bf16.gmra.mxu0 %v4505
      %v4573 = vpop.f32.mrf.mxu0
      %v4574 = vadd.f32 0.0, %v4573
      %v4575 = vpop.f32.mrf.mxu0
      %v4576 = vadd.f32 0.0, %v4575
      %4577 = vmatmul.bf16.gmra.mxu0 %v4508
      %v4578 = vpop.f32.mrf.mxu0
      %v4579 = vadd.f32 0.0, %v4578
      %v4580 = vpop.f32.mrf.mxu0
      %v4581 = vadd.f32 0.0, %v4580
      %4582 = vmatmul.bf16.gmra.mxu0 %v4511
      %v4583 = vpop.f32.mrf.mxu0
      %v4584 = vadd.f32 0.0, %v4583
      %v4585 = vpop.f32.mrf.mxu0
      %v4586 = vadd.f32 0.0, %v4585
      %4587 = vmatmul.bf16.gmra.mxu0 %v4514
      %v4588 = vpop.f32.mrf.mxu0
      %v4589 = vadd.f32 0.0, %v4588
      %v4590 = vpop.f32.mrf.mxu0
      %v4591 = vadd.f32 0.0, %v4590
      %4592 = vmatmul.bf16.gmra.mxu0 %v4517
      %v4593 = vpop.f32.mrf.mxu0
      %v4594 = vadd.f32 0.0, %v4593
      %v4595 = vpop.f32.mrf.mxu0
      %v4596 = vadd.f32 0.0, %v4595
      %4597 = vmatmul.bf16.gmra.mxu0 %v4520
      %v4598 = vpop.f32.mrf.mxu0
      %v4599 = vadd.f32 0.0, %v4598
      %v4600 = vpop.f32.mrf.mxu0
      %v4601 = vadd.f32 0.0, %v4600
      %4602 = vmatmul.bf16.gmra.mxu0 %v4523
      %v4603 = vpop.f32.mrf.mxu0
      %v4604 = vadd.f32 0.0, %v4603
      %v4605 = vpop.f32.mrf.mxu0
      %v4606 = vadd.f32 0.0, %v4605
      %4607 = vmatmul.bf16.gmra.mxu0 %v4526
      %v4608 = vpop.f32.mrf.mxu0
      %v4609 = vadd.f32 0.0, %v4608
      %v4610 = vpop.f32.mrf.mxu0
      %v4611 = vadd.f32 0.0, %v4610
      %4612 = vmatmul.bf16.gmra.mxu0 %v4529
      %v4613 = vpop.f32.mrf.mxu0
      %v4614 = vadd.f32 0.0, %v4613
      %v4615 = vpop.f32.mrf.mxu0
      %v4616 = vadd.f32 0.0, %v4615
      %4617 = vmatmul.bf16.gmra.mxu0 %v4532
      %v4618 = vpop.f32.mrf.mxu0
      %v4619 = vadd.f32 0.0, %v4618
      %v4620 = vpop.f32.mrf.mxu0
      %v4621 = vadd.f32 0.0, %v4620
      %4622 = vdwg.mxu0
      %v4653 = vunpack.c.l.b16 %v4012
      %v4654 = vunpack.c.l.b16 %v4013
      %v4655 = vunpack.c.l.b16 %v4015
      %v4656 = vunpack.c.l.b16 %v4016
      %v4657 = vunpack.c.l.b16 %v4018
      %v4658 = vunpack.c.l.b16 %v4019
      %v4659 = vunpack.c.l.b16 %v4021
      %v4660 = vunpack.c.l.b16 %v4022
      %v4661 = vunpack.c.l.b16 %v4024
      %v4662 = vunpack.c.l.b16 %v4025
      %v4663 = vunpack.c.l.b16 %v4027
      %v4664 = vunpack.c.l.b16 %v4028
      %v4665 = vunpack.c.l.b16 %v4030
      %v4666 = vunpack.c.l.b16 %v4031
      %v4667 = vunpack.c.l.b16 %v4033
      %v4668 = vunpack.c.l.b16 %v4034
      %v4669 = vunpack.c.l.b16 %v4036
      %v4670 = vunpack.c.l.b16 %v4037
      %v4671 = vunpack.c.l.b16 %v4039
      %v4672 = vunpack.c.l.b16 %v4040
      %v4673 = vunpack.c.l.b16 %v4042
      %v4674 = vunpack.c.l.b16 %v4043
      %v4675 = vunpack.c.l.b16 %v4045
      %v4676 = vunpack.c.l.b16 %v4046
      %v4677 = vunpack.c.l.b16 %v4048
      %v4678 = vunpack.c.l.b16 %v4049
      %v4679 = vunpack.c.l.b16 %v4051
      %v4680 = vunpack.c.l.b16 %v4052
      %v4681 = vunpack.c.l.b16 %v4054
      %v4682 = vunpack.c.l.b16 %v4055
      %v4683 = vpack.c.b16 %v2399, %v2399
      %v4684 = vpack.c.b16 %v4654, %v4653
      %v4685 = vpack.c.b16 %v4656, %v4655
      %v4686 = vpack.c.b16 %v4658, %v4657
      %v4687 = vpack.c.b16 %v4660, %v4659
      %v4688 = vpack.c.b16 %v4662, %v4661
      %v4689 = vpack.c.b16 %v4664, %v4663
      %v4690 = vpack.c.b16 %v4666, %v4665
      %v4691 = vpack.c.b16 %v4668, %v4667
      %v4692 = vpack.c.b16 %v4670, %v4669
      %v4693 = vpack.c.b16 %v4672, %v4671
      %v4694 = vpack.c.b16 %v4674, %v4673
      %v4695 = vpack.c.b16 %v4676, %v4675
      %v4696 = vpack.c.b16 %v4678, %v4677
      %v4697 = vpack.c.b16 %v4680, %v4679
      %v4698 = vpack.c.b16 %v4682, %v4681
      %v4703 = vunpack.c.l.b16 %v4060
      %v4704 = vunpack.c.l.b16 %v4061
      %v4705 = vunpack.c.l.b16 %v4062
      %v4706 = vunpack.c.l.b16 %v4063
      %v4707 = vpack.c.b16 %v4704, %v4703
      %v4708 = vpack.c.b16 %v4706, %v4705
      %v4712 = vsel %vm1846, %v4683, 0
      %v4715 = vsel %vm1846, %v4684, 0
      %v4718 = vsel %vm1846, %v4685, 0
      %v4721 = vsel %vm1846, %v4686, 0
      %v4724 = vsel %vm1846, %v4687, 0
      %v4727 = vsel %vm1846, %v4688, 0
      %v4730 = vsel %vm1846, %v4689, 0
      %v4733 = vsel %vm1846, %v4690, 0
      %v4736 = vsel %vm1846, %v4691, 0
      %v4739 = vsel %vm1846, %v4692, 0
      %v4742 = vsel %vm1846, %v4693, 0
      %v4745 = vsel %vm1846, %v4694, 0
      %v4748 = vsel %vm1846, %v4695, 0
      %v4751 = vsel %vm1846, %v4696, 0
      %v4754 = vsel %vm1846, %v4697, 0
      %v4757 = vsel %vm1846, %v4698, 0
      %4759 = vmatpush.bf16.msra.mxu0 0
      %4760 = vmatpush.bf16.msra.mxu0 0
      %4761 = vmatpush.bf16.msra.mxu0 0
      %4762 = vmatpush.bf16.msra.mxu0 0
      %4763 = vmatpush.bf16.msra.mxu0 0
      %4764 = vmatpush.bf16.msra.mxu0 0
      %4765 = vmatpush.bf16.msra.mxu0 %v4708
      %4766 = vmatpush.bf16.msra.mxu0 %v4707
      %4767 = vmatmul.bf16.gmra.mxu0 %v4712
      %v4768 = vpop.f32.mrf.mxu0
      %v4769 = vadd.f32 %v4544, %v4768
      %v4770 = vpop.f32.mrf.mxu0
      %v4771 = vadd.f32 %v4546, %v4770
      %4772 = vmatmul.bf16.gmra.mxu0 %v4715
      %v4773 = vpop.f32.mrf.mxu0
      %v4774 = vadd.f32 %v4549, %v4773
      %v4775 = vpop.f32.mrf.mxu0
      %v4776 = vadd.f32 %v4551, %v4775
      %4777 = vmatmul.bf16.gmra.mxu0 %v4718
      %v4778 = vpop.f32.mrf.mxu0
      %v4779 = vadd.f32 %v4554, %v4778
      %v4780 = vpop.f32.mrf.mxu0
      %v4781 = vadd.f32 %v4556, %v4780
      %4782 = vmatmul.bf16.gmra.mxu0 %v4721
      %v4783 = vpop.f32.mrf.mxu0
      %v4784 = vadd.f32 %v4559, %v4783
      %v4785 = vpop.f32.mrf.mxu0
      %v4786 = vadd.f32 %v4561, %v4785
      %4787 = vmatmul.bf16.gmra.mxu0 %v4724
      %v4788 = vpop.f32.mrf.mxu0
      %v4789 = vadd.f32 %v4564, %v4788
      %v4790 = vpop.f32.mrf.mxu0
      %v4791 = vadd.f32 %v4566, %v4790
      %4792 = vmatmul.bf16.gmra.mxu0 %v4727
      %v4793 = vpop.f32.mrf.mxu0
      %v4794 = vadd.f32 %v4569, %v4793
      %v4795 = vpop.f32.mrf.mxu0
      %v4796 = vadd.f32 %v4571, %v4795
      %4797 = vmatmul.bf16.gmra.mxu0 %v4730
      %v4798 = vpop.f32.mrf.mxu0
      %v4799 = vadd.f32 %v4574, %v4798
      %v4800 = vpop.f32.mrf.mxu0
      %v4801 = vadd.f32 %v4576, %v4800
      %4802 = vmatmul.bf16.gmra.mxu0 %v4733
      %v4803 = vpop.f32.mrf.mxu0
      %v4804 = vadd.f32 %v4579, %v4803
      %v4805 = vpop.f32.mrf.mxu0
      %v4806 = vadd.f32 %v4581, %v4805
      %4807 = vmatmul.bf16.gmra.mxu0 %v4736
      %v4808 = vpop.f32.mrf.mxu0
      %v4809 = vadd.f32 %v4584, %v4808
      %v4810 = vpop.f32.mrf.mxu0
      %v4811 = vadd.f32 %v4586, %v4810
      %4812 = vmatmul.bf16.gmra.mxu0 %v4739
      %v4813 = vpop.f32.mrf.mxu0
      %v4814 = vadd.f32 %v4589, %v4813
      %v4815 = vpop.f32.mrf.mxu0
      %v4816 = vadd.f32 %v4591, %v4815
      %4817 = vmatmul.bf16.gmra.mxu0 %v4742
      %v4818 = vpop.f32.mrf.mxu0
      %v4819 = vadd.f32 %v4594, %v4818
      %v4820 = vpop.f32.mrf.mxu0
      %v4821 = vadd.f32 %v4596, %v4820
      %4822 = vmatmul.bf16.gmra.mxu0 %v4745
      %v4823 = vpop.f32.mrf.mxu0
      %v4824 = vadd.f32 %v4599, %v4823
      %v4825 = vpop.f32.mrf.mxu0
      %v4826 = vadd.f32 %v4601, %v4825
      %4827 = vmatmul.bf16.gmra.mxu0 %v4748
      %v4828 = vpop.f32.mrf.mxu0
      %v4829 = vadd.f32 %v4604, %v4828
      %v4830 = vpop.f32.mrf.mxu0
      %v4831 = vadd.f32 %v4606, %v4830
      %4832 = vmatmul.bf16.gmra.mxu0 %v4751
      %v4833 = vpop.f32.mrf.mxu0
      %v4834 = vadd.f32 %v4609, %v4833
      %v4835 = vpop.f32.mrf.mxu0
      %v4836 = vadd.f32 %v4611, %v4835
      %4837 = vmatmul.bf16.gmra.mxu0 %v4754
      %v4838 = vpop.f32.mrf.mxu0
      %v4839 = vadd.f32 %v4614, %v4838
      %v4840 = vpop.f32.mrf.mxu0
      %v4841 = vadd.f32 %v4616, %v4840
      %4842 = vmatmul.bf16.gmra.mxu0 %v4757
      %v4843 = vpop.f32.mrf.mxu0
      %v4844 = vadd.f32 %v4619, %v4843
      %v4845 = vpop.f32.mrf.mxu0
      %v4846 = vadd.f32 %v4621, %v4845
      %4847 = vdwg.mxu0
      %v4863 = vrot.slane %v4012, 5
      %v4864 = vrot.slane %v4863, 4
      %v4865 = vrot.slane %v4013, 5
      %v4866 = vsel %vm2473, %v4864, %v4865
      %v4867 = vrot.slane %v4865, 4
      %v4868 = vrot.slane %v4014, 5
      %v4869 = vsel %vm2473, %v4867, %v4868
      %v4870 = vrot.slane %v4015, 5
      %v4871 = vrot.slane %v4870, 4
      %v4872 = vrot.slane %v4016, 5
      %v4873 = vsel %vm2473, %v4871, %v4872
      %v4874 = vrot.slane %v4872, 4
      %v4875 = vrot.slane %v4017, 5
      %v4876 = vsel %vm2473, %v4874, %v4875
      %v4877 = vrot.slane %v4018, 5
      %v4878 = vrot.slane %v4877, 4
      %v4879 = vrot.slane %v4019, 5
      %v4880 = vsel %vm2473, %v4878, %v4879
      %v4881 = vrot.slane %v4879, 4
      %v4882 = vrot.slane %v4020, 5
      %v4883 = vsel %vm2473, %v4881, %v4882
      %v4884 = vrot.slane %v4021, 5
      %v4885 = vrot.slane %v4884, 4
      %v4886 = vrot.slane %v4022, 5
      %v4887 = vsel %vm2473, %v4885, %v4886
      %v4888 = vrot.slane %v4886, 4
      %v4889 = vrot.slane %v4023, 5
      %v4890 = vsel %vm2473, %v4888, %v4889
      %v4891 = vrot.slane %v4024, 5
      %v4892 = vrot.slane %v4891, 4
      %v4893 = vrot.slane %v4025, 5
      %v4894 = vsel %vm2473, %v4892, %v4893
      %v4895 = vrot.slane %v4893, 4
      %v4896 = vrot.slane %v4026, 5
      %v4897 = vsel %vm2473, %v4895, %v4896
      %v4898 = vrot.slane %v4027, 5
      %v4899 = vrot.slane %v4898, 4
      %v4900 = vrot.slane %v4028, 5
      %v4901 = vsel %vm2473, %v4899, %v4900
      %v4902 = vrot.slane %v4900, 4
      %v4903 = vrot.slane %v4029, 5
      %v4904 = vsel %vm2473, %v4902, %v4903
      %v4905 = vrot.slane %v4030, 5
      %v4906 = vrot.slane %v4905, 4
      %v4907 = vrot.slane %v4031, 5
      %v4908 = vsel %vm2473, %v4906, %v4907
      %v4909 = vrot.slane %v4907, 4
      %v4910 = vrot.slane %v4032, 5
      %v4911 = vsel %vm2473, %v4909, %v4910
      %v4912 = vrot.slane %v4033, 5
      %v4913 = vrot.slane %v4912, 4
      %v4914 = vrot.slane %v4034, 5
      %v4915 = vsel %vm2473, %v4913, %v4914
      %v4916 = vrot.slane %v4914, 4
      %v4917 = vrot.slane %v4035, 5
      %v4918 = vsel %vm2473, %v4916, %v4917
      %v4919 = vrot.slane %v4036, 5
      %v4920 = vrot.slane %v4919, 4
      %v4921 = vrot.slane %v4037, 5
      %v4922 = vsel %vm2473, %v4920, %v4921
      %v4923 = vrot.slane %v4921, 4
      %v4924 = vrot.slane %v4038, 5
      %v4925 = vsel %vm2473, %v4923, %v4924
      %v4926 = vrot.slane %v4039, 5
      %v4927 = vrot.slane %v4926, 4
      %v4928 = vrot.slane %v4040, 5
      %v4929 = vsel %vm2473, %v4927, %v4928
      %v4930 = vrot.slane %v4928, 4
      %v4931 = vrot.slane %v4041, 5
      %v4932 = vsel %vm2473, %v4930, %v4931
      %v4933 = vrot.slane %v4042, 5
      %v4934 = vrot.slane %v4933, 4
      %v4935 = vrot.slane %v4043, 5
      %v4936 = vsel %vm2473, %v4934, %v4935
      %v4937 = vrot.slane %v4935, 4
      %v4938 = vrot.slane %v4044, 5
      %v4939 = vsel %vm2473, %v4937, %v4938
      %v4940 = vrot.slane %v4045, 5
      %v4941 = vrot.slane %v4940, 4
      %v4942 = vrot.slane %v4046, 5
      %v4943 = vsel %vm2473, %v4941, %v4942
      %v4944 = vrot.slane %v4942, 4
      %v4945 = vrot.slane %v4047, 5
      %v4946 = vsel %vm2473, %v4944, %v4945
      %v4947 = vrot.slane %v4048, 5
      %v4948 = vrot.slane %v4947, 4
      %v4949 = vrot.slane %v4049, 5
      %v4950 = vsel %vm2473, %v4948, %v4949
      %v4951 = vrot.slane %v4949, 4
      %v4952 = vrot.slane %v4050, 5
      %v4953 = vsel %vm2473, %v4951, %v4952
      %v4954 = vrot.slane %v4051, 5
      %v4955 = vrot.slane %v4954, 4
      %v4956 = vrot.slane %v4052, 5
      %v4957 = vsel %vm2473, %v4955, %v4956
      %v4958 = vrot.slane %v4956, 4
      %v4959 = vrot.slane %v4053, 5
      %v4960 = vsel %vm2473, %v4958, %v4959
      %v4961 = vrot.slane %v4054, 5
      %v4962 = vrot.slane %v4961, 4
      %v4963 = vrot.slane %v4055, 5
      %v4964 = vsel %vm2473, %v4962, %v4963
      %v4965 = vrot.slane %v4963, 4
      %v4966 = vrot.slane %v4056, 5
      %v4967 = vsel %vm2473, %v4965, %v4966
      %v4968 = vld [vmem:[%s7 + $0x20] sm:$0xf]
      %v4969 = vld [vmem:[%s7 + $0x24] sm:$0xf]
      %v4970 = vld [vmem:[%s7 + $0x28] sm:$0xf]
      %v4971 = vld [vmem:[%s7 + $0x2c] sm:$0xf]
      %v4972 = vunpack.c.l.b16 %v4866
      %v4973 = vunpack.c.l.b16 %v4869
      %v4974 = vunpack.c.l.b16 %v4873
      %v4975 = vunpack.c.l.b16 %v4876
      %v4976 = vunpack.c.l.b16 %v4880
      %v4977 = vunpack.c.l.b16 %v4883
      %v4978 = vunpack.c.l.b16 %v4887
      %v4979 = vunpack.c.l.b16 %v4890
      %v4980 = vunpack.c.l.b16 %v4894
      %v4981 = vunpack.c.l.b16 %v4897
      %v4982 = vunpack.c.l.b16 %v4901
      %v4983 = vunpack.c.l.b16 %v4904
      %v4984 = vunpack.c.l.b16 %v4908
      %v4985 = vunpack.c.l.b16 %v4911
      %v4986 = vunpack.c.l.b16 %v4915
      %v4987 = vunpack.c.l.b16 %v4918
      %v4988 = vunpack.c.l.b16 %v4922
      %v4989 = vunpack.c.l.b16 %v4925
      %v4990 = vunpack.c.l.b16 %v4929
      %v4991 = vunpack.c.l.b16 %v4932
      %v4992 = vunpack.c.l.b16 %v4936
      %v4993 = vunpack.c.l.b16 %v4939
      %v4994 = vunpack.c.l.b16 %v4943
      %v4995 = vunpack.c.l.b16 %v4946
      %v4996 = vunpack.c.l.b16 %v4950
      %v4997 = vunpack.c.l.b16 %v4953
      %v4998 = vunpack.c.l.b16 %v4957
      %v4999 = vunpack.c.l.b16 %v4960
      %v5000 = vunpack.c.l.b16 %v4964
      %v5001 = vunpack.c.l.b16 %v4967
      %v5002 = vpack.c.b16 %v2509, %v2509
      %v5003 = vpack.c.b16 %v4973, %v4972
      %v5004 = vpack.c.b16 %v4975, %v4974
      %v5005 = vpack.c.b16 %v4977, %v4976
      %v5006 = vpack.c.b16 %v4979, %v4978
      %v5007 = vpack.c.b16 %v4981, %v4980
      %v5008 = vpack.c.b16 %v4983, %v4982
      %v5009 = vpack.c.b16 %v4985, %v4984
      %v5010 = vpack.c.b16 %v4987, %v4986
      %v5011 = vpack.c.b16 %v4989, %v4988
      %v5012 = vpack.c.b16 %v4991, %v4990
      %v5013 = vpack.c.b16 %v4993, %v4992
      %v5014 = vpack.c.b16 %v4995, %v4994
      %v5015 = vpack.c.b16 %v4997, %v4996
      %v5016 = vpack.c.b16 %v4999, %v4998
      %v5017 = vpack.c.b16 %v5001, %v5000
      %v5022 = vunpack.c.l.b16 %v4968
      %v5023 = vunpack.c.l.b16 %v4969
      %v5024 = vunpack.c.l.b16 %v4970
      %v5025 = vunpack.c.l.b16 %v4971
      %v5026 = vpack.c.b16 %v5023, %v5022
      %v5027 = vpack.c.b16 %v5025, %v5024
      %v5031 = vsel %vm1846, %v5002, 0
      %v5034 = vsel %vm1846, %v5003, 0
      %v5037 = vsel %vm1846, %v5004, 0
      %v5040 = vsel %vm1846, %v5005, 0
      %v5043 = vsel %vm1846, %v5006, 0
      %v5046 = vsel %vm1846, %v5007, 0
      %v5049 = vsel %vm1846, %v5008, 0
      %v5052 = vsel %vm1846, %v5009, 0
      %v5055 = vsel %vm1846, %v5010, 0
      %v5058 = vsel %vm1846, %v5011, 0
      %v5061 = vsel %vm1846, %v5012, 0
      %v5064 = vsel %vm1846, %v5013, 0
      %v5067 = vsel %vm1846, %v5014, 0
      %v5070 = vsel %vm1846, %v5015, 0
      %v5073 = vsel %vm1846, %v5016, 0
      %v5076 = vsel %vm1846, %v5017, 0
      %5078 = vmatpush.bf16.msra.mxu0 0
      %5079 = vmatpush.bf16.msra.mxu0 0
      %5080 = vmatpush.bf16.msra.mxu0 0
      %5081 = vmatpush.bf16.msra.mxu0 0
      %5082 = vmatpush.bf16.msra.mxu0 0
      %5083 = vmatpush.bf16.msra.mxu0 0
      %5084 = vmatpush.bf16.msra.mxu0 %v5027
      %5085 = vmatpush.bf16.msra.mxu0 %v5026
      %5086 = vmatmul.bf16.gmra.mxu0 %v5031
      %v5087 = vpop.f32.mrf.mxu0
      %v5088 = vadd.f32 0.0, %v5087
      %v5089 = vpop.f32.mrf.mxu0
      %v5090 = vadd.f32 0.0, %v5089
      %5091 = vmatmul.bf16.gmra.mxu0 %v5034
      %v5092 = vpop.f32.mrf.mxu0
      %v5093 = vadd.f32 0.0, %v5092
      %v5094 = vpop.f32.mrf.mxu0
      %v5095 = vadd.f32 0.0, %v5094
      %5096 = vmatmul.bf16.gmra.mxu0 %v5037
      %v5097 = vpop.f32.mrf.mxu0
      %v5098 = vadd.f32 0.0, %v5097
      %v5099 = vpop.f32.mrf.mxu0
      %v5100 = vadd.f32 0.0, %v5099
      %5101 = vmatmul.bf16.gmra.mxu0 %v5040
      %v5102 = vpop.f32.mrf.mxu0
      %v5103 = vadd.f32 0.0, %v5102
      %v5104 = vpop.f32.mrf.mxu0
      %v5105 = vadd.f32 0.0, %v5104
      %5106 = vmatmul.bf16.gmra.mxu0 %v5043
      %v5107 = vpop.f32.mrf.mxu0
      %v5108 = vadd.f32 0.0, %v5107
      %v5109 = vpop.f32.mrf.mxu0
      %v5110 = vadd.f32 0.0, %v5109
      %5111 = vmatmul.bf16.gmra.mxu0 %v5046
      %v5112 = vpop.f32.mrf.mxu0
      %v5113 = vadd.f32 0.0, %v5112
      %v5114 = vpop.f32.mrf.mxu0
      %v5115 = vadd.f32 0.0, %v5114
      %5116 = vmatmul.bf16.gmra.mxu0 %v5049
      %v5117 = vpop.f32.mrf.mxu0
      %v5118 = vadd.f32 0.0, %v5117
      %v5119 = vpop.f32.mrf.mxu0
      %v5120 = vadd.f32 0.0, %v5119
      %5121 = vmatmul.bf16.gmra.mxu0 %v5052
      %v5122 = vpop.f32.mrf.mxu0
      %v5123 = vadd.f32 0.0, %v5122
      %v5124 = vpop.f32.mrf.mxu0
      %v5125 = vadd.f32 0.0, %v5124
      %5126 = vmatmul.bf16.gmra.mxu0 %v5055
      %v5127 = vpop.f32.mrf.mxu0
      %v5128 = vadd.f32 0.0, %v5127
      %v5129 = vpop.f32.mrf.mxu0
      %v5130 = vadd.f32 0.0, %v5129
      %5131 = vmatmul.bf16.gmra.mxu0 %v5058
      %v5132 = vpop.f32.mrf.mxu0
      %v5133 = vadd.f32 0.0, %v5132
      %v5134 = vpop.f32.mrf.mxu0
      %v5135 = vadd.f32 0.0, %v5134
      %5136 = vmatmul.bf16.gmra.mxu0 %v5061
      %v5137 = vpop.f32.mrf.mxu0
      %v5138 = vadd.f32 0.0, %v5137
      %v5139 = vpop.f32.mrf.mxu0
      %v5140 = vadd.f32 0.0, %v5139
      %5141 = vmatmul.bf16.gmra.mxu0 %v5064
      %v5142 = vpop.f32.mrf.mxu0
      %v5143 = vadd.f32 0.0, %v5142
      %v5144 = vpop.f32.mrf.mxu0
      %v5145 = vadd.f32 0.0, %v5144
      %5146 = vmatmul.bf16.gmra.mxu0 %v5067
      %v5147 = vpop.f32.mrf.mxu0
      %v5148 = vadd.f32 0.0, %v5147
      %v5149 = vpop.f32.mrf.mxu0
      %v5150 = vadd.f32 0.0, %v5149
      %5151 = vmatmul.bf16.gmra.mxu0 %v5070
      %v5152 = vpop.f32.mrf.mxu0
      %v5153 = vadd.f32 0.0, %v5152
      %v5154 = vpop.f32.mrf.mxu0
      %v5155 = vadd.f32 0.0, %v5154
      %5156 = vmatmul.bf16.gmra.mxu0 %v5073
      %v5157 = vpop.f32.mrf.mxu0
      %v5158 = vadd.f32 0.0, %v5157
      %v5159 = vpop.f32.mrf.mxu0
      %v5160 = vadd.f32 0.0, %v5159
      %5161 = vmatmul.bf16.gmra.mxu0 %v5076
      %v5162 = vpop.f32.mrf.mxu0
      %v5163 = vadd.f32 0.0, %v5162
      %v5164 = vpop.f32.mrf.mxu0
      %v5165 = vadd.f32 0.0, %v5164
      %5166 = vdwg.mxu0
      %v5167 = vadd.f32 %v4769, %v5088
      %v5168 = vadd.f32 %v4771, %v5090
      %v5169 = vadd.f32 %v4774, %v5093
      %v5170 = vadd.f32 %v4776, %v5095
      %v5171 = vadd.f32 %v4779, %v5098
      %v5172 = vadd.f32 %v4781, %v5100
      %v5173 = vadd.f32 %v4784, %v5103
      %v5174 = vadd.f32 %v4786, %v5105
      %v5175 = vadd.f32 %v4789, %v5108
      %v5176 = vadd.f32 %v4791, %v5110
      %v5177 = vadd.f32 %v4794, %v5113
      %v5178 = vadd.f32 %v4796, %v5115
      %v5179 = vadd.f32 %v4799, %v5118
      %v5180 = vadd.f32 %v4801, %v5120
      %v5181 = vadd.f32 %v4804, %v5123
      %v5182 = vadd.f32 %v4806, %v5125
      %v5183 = vadd.f32 %v4809, %v5128
      %v5184 = vadd.f32 %v4811, %v5130
      %v5185 = vadd.f32 %v4814, %v5133
      %v5186 = vadd.f32 %v4816, %v5135
      %v5187 = vadd.f32 %v4819, %v5138
      %v5188 = vadd.f32 %v4821, %v5140
      %v5189 = vadd.f32 %v4824, %v5143
      %v5190 = vadd.f32 %v4826, %v5145
      %v5191 = vadd.f32 %v4829, %v5148
      %v5192 = vadd.f32 %v4831, %v5150
      %v5193 = vadd.f32 %v4834, %v5153
      %v5194 = vadd.f32 %v4836, %v5155
      %v5195 = vadd.f32 %v4839, %v5158
      %v5196 = vadd.f32 %v4841, %v5160
      %v5197 = vadd.f32 %v4844, %v5163
      %v5198 = vadd.f32 %v4846, %v5165
      %v5199 = vld [vmem:[%s7 + $0x30] sm:$0xf]
      %v5200 = vld [vmem:[%s7 + $0x34] sm:$0xf]
      %v5201 = vld [vmem:[%s7 + $0x38] sm:$0xf]
      %v5202 = vld [vmem:[%s7 + $0x3c] sm:$0xf]
      %v5205 = vunpack.c.l.b16 %v4057
      %v5206 = vunpack.c.l.b16 %v4058
      %v5207 = vpack.c.b16 %v5206, %v5205
      %v5212 = vunpack.c.l.b16 %v5199
      %v5213 = vunpack.c.l.b16 %v5200
      %v5214 = vunpack.c.l.b16 %v5201
      %v5215 = vunpack.c.l.b16 %v5202
      %v5216 = vpack.c.b16 %v5213, %v5212
      %v5217 = vpack.c.b16 %v5215, %v5214
      %v5221 = vsel %vm1846, %v5207, 0
      %5223 = vmatpush.bf16.msra.mxu0 0
      %5224 = vmatpush.bf16.msra.mxu0 0
      %5225 = vmatpush.bf16.msra.mxu0 0
      %5226 = vmatpush.bf16.msra.mxu0 0
      %5227 = vmatpush.bf16.msra.mxu0 0
      %5228 = vmatpush.bf16.msra.mxu0 0
      %5229 = vmatpush.bf16.msra.mxu0 %v5217
      %5230 = vmatpush.bf16.msra.mxu0 %v5216
      %5231 = vmatmul.bf16.gmra.mxu0 %v4715
      %v5232 = vpop.f32.mrf.mxu0
      %v5233 = vadd.f32 0.0, %v5232
      %v5234 = vpop.f32.mrf.mxu0
      %v5235 = vadd.f32 0.0, %v5234
      %5236 = vmatmul.bf16.gmra.mxu0 %v4718
      %v5237 = vpop.f32.mrf.mxu0
      %v5238 = vadd.f32 0.0, %v5237
      %v5239 = vpop.f32.mrf.mxu0
      %v5240 = vadd.f32 0.0, %v5239
      %5241 = vmatmul.bf16.gmra.mxu0 %v4721
      %v5242 = vpop.f32.mrf.mxu0
      %v5243 = vadd.f32 0.0, %v5242
      %v5244 = vpop.f32.mrf.mxu0
      %v5245 = vadd.f32 0.0, %v5244
      %5246 = vmatmul.bf16.gmra.mxu0 %v4724
      %v5247 = vpop.f32.mrf.mxu0
      %v5248 = vadd.f32 0.0, %v5247
      %v5249 = vpop.f32.mrf.mxu0
      %v5250 = vadd.f32 0.0, %v5249
      %5251 = vmatmul.bf16.gmra.mxu0 %v4727
      %v5252 = vpop.f32.mrf.mxu0
      %v5253 = vadd.f32 0.0, %v5252
      %v5254 = vpop.f32.mrf.mxu0
      %v5255 = vadd.f32 0.0, %v5254
      %5256 = vmatmul.bf16.gmra.mxu0 %v4730
      %v5257 = vpop.f32.mrf.mxu0
      %v5258 = vadd.f32 0.0, %v5257
      %v5259 = vpop.f32.mrf.mxu0
      %v5260 = vadd.f32 0.0, %v5259
      %5261 = vmatmul.bf16.gmra.mxu0 %v4733
      %v5262 = vpop.f32.mrf.mxu0
      %v5263 = vadd.f32 0.0, %v5262
      %v5264 = vpop.f32.mrf.mxu0
      %v5265 = vadd.f32 0.0, %v5264
      %5266 = vmatmul.bf16.gmra.mxu0 %v4736
      %v5267 = vpop.f32.mrf.mxu0
      %v5268 = vadd.f32 0.0, %v5267
      %v5269 = vpop.f32.mrf.mxu0
      %v5270 = vadd.f32 0.0, %v5269
      %5271 = vmatmul.bf16.gmra.mxu0 %v4739
      %v5272 = vpop.f32.mrf.mxu0
      %v5273 = vadd.f32 0.0, %v5272
      %v5274 = vpop.f32.mrf.mxu0
      %v5275 = vadd.f32 0.0, %v5274
      %5276 = vmatmul.bf16.gmra.mxu0 %v4742
      %v5277 = vpop.f32.mrf.mxu0
      %v5278 = vadd.f32 0.0, %v5277
      %v5279 = vpop.f32.mrf.mxu0
      %v5280 = vadd.f32 0.0, %v5279
      %5281 = vmatmul.bf16.gmra.mxu0 %v4745
      %v5282 = vpop.f32.mrf.mxu0
      %v5283 = vadd.f32 0.0, %v5282
      %v5284 = vpop.f32.mrf.mxu0
      %v5285 = vadd.f32 0.0, %v5284
      %5286 = vmatmul.bf16.gmra.mxu0 %v4748
      %v5287 = vpop.f32.mrf.mxu0
      %v5288 = vadd.f32 0.0, %v5287
      %v5289 = vpop.f32.mrf.mxu0
      %v5290 = vadd.f32 0.0, %v5289
      %5291 = vmatmul.bf16.gmra.mxu0 %v4751
      %v5292 = vpop.f32.mrf.mxu0
      %v5293 = vadd.f32 0.0, %v5292
      %v5294 = vpop.f32.mrf.mxu0
      %v5295 = vadd.f32 0.0, %v5294
      %5296 = vmatmul.bf16.gmra.mxu0 %v4754
      %v5297 = vpop.f32.mrf.mxu0
      %v5298 = vadd.f32 0.0, %v5297
      %v5299 = vpop.f32.mrf.mxu0
      %v5300 = vadd.f32 0.0, %v5299
      %5301 = vmatmul.bf16.gmra.mxu0 %v4757
      %v5302 = vpop.f32.mrf.mxu0
      %v5303 = vadd.f32 0.0, %v5302
      %v5304 = vpop.f32.mrf.mxu0
      %v5305 = vadd.f32 0.0, %v5304
      %5306 = vmatmul.bf16.gmra.mxu0 %v5221
      %v5307 = vpop.f32.mrf.mxu0
      %v5308 = vadd.f32 0.0, %v5307
      %v5309 = vpop.f32.mrf.mxu0
      %v5310 = vadd.f32 0.0, %v5309
      %5311 = vdwg.mxu0
      %v5312 = vadd.f32 %v5167, %v5233
      %v5313 = vadd.f32 %v5168, %v5235
      %v5314 = vadd.f32 %v5169, %v5238
      %v5315 = vadd.f32 %v5170, %v5240
      %v5316 = vadd.f32 %v5171, %v5243
      %v5317 = vadd.f32 %v5172, %v5245
      %v5318 = vadd.f32 %v5173, %v5248
      %v5319 = vadd.f32 %v5174, %v5250
      %v5320 = vadd.f32 %v5175, %v5253
      %v5321 = vadd.f32 %v5176, %v5255
      %v5322 = vadd.f32 %v5177, %v5258
      %v5323 = vadd.f32 %v5178, %v5260
      %v5324 = vadd.f32 %v5179, %v5263
      %v5325 = vadd.f32 %v5180, %v5265
      %v5326 = vadd.f32 %v5181, %v5268
      %v5327 = vadd.f32 %v5182, %v5270
      %v5328 = vadd.f32 %v5183, %v5273
      %v5329 = vadd.f32 %v5184, %v5275
      %v5330 = vadd.f32 %v5185, %v5278
      %v5331 = vadd.f32 %v5186, %v5280
      %v5332 = vadd.f32 %v5187, %v5283
      %v5333 = vadd.f32 %v5188, %v5285
      %v5334 = vadd.f32 %v5189, %v5288
      %v5335 = vadd.f32 %v5190, %v5290
      %v5336 = vadd.f32 %v5191, %v5293
      %v5337 = vadd.f32 %v5192, %v5295
      %v5338 = vadd.f32 %v5193, %v5298
      %v5339 = vadd.f32 %v5194, %v5300
      %v5340 = vadd.f32 %v5195, %v5303
      %v5341 = vadd.f32 %v5196, %v5305
      %v5342 = vadd.f32 %v5197, %v5308
      %v5343 = vadd.f32 %v5198, %v5310
      %v5345 = vshrl.u32 %v4057, 16
      %v5347 = vrot.slane %v5345, 4
      %v5348 = vshll.u32 %v4057, 16
      %v5350 = vrot.slane %v5348, 5
      %v5351 = vor.u32 %v5347, %v5350
      %v5352 = vrot.slane %v5351, 4
      %v5354 = vshll.u32 %v4058, 16
      %v5356 = vrot.slane %v5354, 5
      %v5357 = vsel %vm2213, %v5352, %v5356
      %v5358 = vshrl.u32 %v4058, 16
      %v5360 = vrot.slane %v5358, 4
      %v5361 = vor.u32 %v5360, %v5356
      %v5362 = vrot.slane %v5361, 4
      %v5364 = vshll.u32 %v4059, 16
      %v5366 = vrot.slane %v5364, 5
      %v5367 = vsel %vm2213, %v5362, %v5366
      %v5368 = vld [vmem:[%s7 + $0x40] sm:$0xf]
      %v5369 = vld [vmem:[%s7 + $0x44] sm:$0xf]
      %v5370 = vld [vmem:[%s7 + $0x48] sm:$0xf]
      %v5371 = vld [vmem:[%s7 + $0x4c] sm:$0xf]
      %v5372 = vunpack.c.l.b16 %v5357
      %v5373 = vunpack.c.l.b16 %v5367
      %v5374 = vpack.c.b16 %v5373, %v5372
      %v5379 = vunpack.c.l.b16 %v5368
      %v5380 = vunpack.c.l.b16 %v5369
      %v5381 = vunpack.c.l.b16 %v5370
      %v5382 = vunpack.c.l.b16 %v5371
      %v5383 = vpack.c.b16 %v5380, %v5379
      %v5384 = vpack.c.b16 %v5382, %v5381
      %v5388 = vsel %vm1846, %v5374, 0
      %5390 = vmatpush.bf16.msra.mxu0 0
      %5391 = vmatpush.bf16.msra.mxu0 0
      %5392 = vmatpush.bf16.msra.mxu0 0
      %5393 = vmatpush.bf16.msra.mxu0 0
      %5394 = vmatpush.bf16.msra.mxu0 0
      %5395 = vmatpush.bf16.msra.mxu0 0
      %5396 = vmatpush.bf16.msra.mxu0 %v5384
      %5397 = vmatpush.bf16.msra.mxu0 %v5383
      %5398 = vmatmul.bf16.gmra.mxu0 %v4490
      %v5399 = vpop.f32.mrf.mxu0
      %v5400 = vadd.f32 0.0, %v5399
      %v5401 = vpop.f32.mrf.mxu0
      %v5402 = vadd.f32 0.0, %v5401
      %5403 = vmatmul.bf16.gmra.mxu0 %v4493
      %v5404 = vpop.f32.mrf.mxu0
      %v5405 = vadd.f32 0.0, %v5404
      %v5406 = vpop.f32.mrf.mxu0
      %v5407 = vadd.f32 0.0, %v5406
      %5408 = vmatmul.bf16.gmra.mxu0 %v4496
      %v5409 = vpop.f32.mrf.mxu0
      %v5410 = vadd.f32 0.0, %v5409
      %v5411 = vpop.f32.mrf.mxu0
      %v5412 = vadd.f32 0.0, %v5411
      %5413 = vmatmul.bf16.gmra.mxu0 %v4499
      %v5414 = vpop.f32.mrf.mxu0
      %v5415 = vadd.f32 0.0, %v5414
      %v5416 = vpop.f32.mrf.mxu0
      %v5417 = vadd.f32 0.0, %v5416
      %5418 = vmatmul.bf16.gmra.mxu0 %v4502
      %v5419 = vpop.f32.mrf.mxu0
      %v5420 = vadd.f32 0.0, %v5419
      %v5421 = vpop.f32.mrf.mxu0
      %v5422 = vadd.f32 0.0, %v5421
      %5423 = vmatmul.bf16.gmra.mxu0 %v4505
      %v5424 = vpop.f32.mrf.mxu0
      %v5425 = vadd.f32 0.0, %v5424
      %v5426 = vpop.f32.mrf.mxu0
      %v5427 = vadd.f32 0.0, %v5426
      %5428 = vmatmul.bf16.gmra.mxu0 %v4508
      %v5429 = vpop.f32.mrf.mxu0
      %v5430 = vadd.f32 0.0, %v5429
      %v5431 = vpop.f32.mrf.mxu0
      %v5432 = vadd.f32 0.0, %v5431
      %5433 = vmatmul.bf16.gmra.mxu0 %v4511
      %v5434 = vpop.f32.mrf.mxu0
      %v5435 = vadd.f32 0.0, %v5434
      %v5436 = vpop.f32.mrf.mxu0
      %v5437 = vadd.f32 0.0, %v5436
      %5438 = vmatmul.bf16.gmra.mxu0 %v4514
      %v5439 = vpop.f32.mrf.mxu0
      %v5440 = vadd.f32 0.0, %v5439
      %v5441 = vpop.f32.mrf.mxu0
      %v5442 = vadd.f32 0.0, %v5441
      %5443 = vmatmul.bf16.gmra.mxu0 %v4517
      %v5444 = vpop.f32.mrf.mxu0
      %v5445 = vadd.f32 0.0, %v5444
      %v5446 = vpop.f32.mrf.mxu0
      %v5447 = vadd.f32 0.0, %v5446
      %5448 = vmatmul.bf16.gmra.mxu0 %v4520
      %v5449 = vpop.f32.mrf.mxu0
      %v5450 = vadd.f32 0.0, %v5449
      %v5451 = vpop.f32.mrf.mxu0
      %v5452 = vadd.f32 0.0, %v5451
      %5453 = vmatmul.bf16.gmra.mxu0 %v4523
      %v5454 = vpop.f32.mrf.mxu0
      %v5455 = vadd.f32 0.0, %v5454
      %v5456 = vpop.f32.mrf.mxu0
      %v5457 = vadd.f32 0.0, %v5456
      %5458 = vmatmul.bf16.gmra.mxu0 %v4526
      %v5459 = vpop.f32.mrf.mxu0
      %v5460 = vadd.f32 0.0, %v5459
      %v5461 = vpop.f32.mrf.mxu0
      %v5462 = vadd.f32 0.0, %v5461
      %5463 = vmatmul.bf16.gmra.mxu0 %v4529
      %v5464 = vpop.f32.mrf.mxu0
      %v5465 = vadd.f32 0.0, %v5464
      %v5466 = vpop.f32.mrf.mxu0
      %v5467 = vadd.f32 0.0, %v5466
      %5468 = vmatmul.bf16.gmra.mxu0 %v4532
      %v5469 = vpop.f32.mrf.mxu0
      %v5470 = vadd.f32 0.0, %v5469
      %v5471 = vpop.f32.mrf.mxu0
      %v5472 = vadd.f32 0.0, %v5471
      %5473 = vmatmul.bf16.gmra.mxu0 %v5388
      %v5474 = vpop.f32.mrf.mxu0
      %v5475 = vadd.f32 0.0, %v5474
      %v5476 = vpop.f32.mrf.mxu0
      %v5477 = vadd.f32 0.0, %v5476
      %5478 = vdwg.mxu0
      %v5479 = vadd.f32 %v5312, %v5400
      %v5480 = vadd.f32 %v5313, %v5402
      %v5481 = vadd.f32 %v5314, %v5405
      %v5482 = vadd.f32 %v5315, %v5407
      %v5483 = vadd.f32 %v5316, %v5410
      %v5484 = vadd.f32 %v5317, %v5412
      %v5485 = vadd.f32 %v5318, %v5415
      %v5486 = vadd.f32 %v5319, %v5417
      %v5487 = vadd.f32 %v5320, %v5420
      %v5488 = vadd.f32 %v5321, %v5422
      %v5489 = vadd.f32 %v5322, %v5425
      %v5490 = vadd.f32 %v5323, %v5427
      %v5491 = vadd.f32 %v5324, %v5430
      %v5492 = vadd.f32 %v5325, %v5432
      %v5493 = vadd.f32 %v5326, %v5435
      %v5494 = vadd.f32 %v5327, %v5437
      %v5495 = vadd.f32 %v5328, %v5440
      %v5496 = vadd.f32 %v5329, %v5442
      %v5497 = vadd.f32 %v5330, %v5445
      %v5498 = vadd.f32 %v5331, %v5447
      %v5499 = vadd.f32 %v5332, %v5450
      %v5500 = vadd.f32 %v5333, %v5452
      %v5501 = vadd.f32 %v5334, %v5455
      %v5502 = vadd.f32 %v5335, %v5457
      %v5503 = vadd.f32 %v5336, %v5460
      %v5504 = vadd.f32 %v5337, %v5462
      %v5505 = vadd.f32 %v5338, %v5465
      %v5506 = vadd.f32 %v5339, %v5467
      %v5507 = vadd.f32 %v5340, %v5470
      %v5508 = vadd.f32 %v5341, %v5472
      %v5509 = vadd.f32 %v5342, %v5475
      %v5510 = vadd.f32 %v5343, %v5477
      %v5512 = vrot.slane %v4057, 5
      %v5513 = vrot.slane %v5512, 4
      %v5514 = vrot.slane %v4058, 5
      %v5515 = vsel %vm2473, %v5513, %v5514
      %v5516 = vrot.slane %v5514, 4
      %v5517 = vrot.slane %v4059, 5
      %v5518 = vsel %vm2473, %v5516, %v5517
      %v5519 = vld [vmem:[%s7 + $0x50] sm:$0xf]
      %v5520 = vld [vmem:[%s7 + $0x54] sm:$0xf]
      %v5521 = vld [vmem:[%s7 + $0x58] sm:$0xf]
      %v5522 = vld [vmem:[%s7 + $0x5c] sm:$0xf]
      %v5523 = vunpack.c.l.b16 %v5515
      %v5524 = vunpack.c.l.b16 %v5518
      %v5525 = vpack.c.b16 %v5524, %v5523
      %v5530 = vunpack.c.l.b16 %v5519
      %v5531 = vunpack.c.l.b16 %v5520
      %v5532 = vunpack.c.l.b16 %v5521
      %v5533 = vunpack.c.l.b16 %v5522
      %v5534 = vpack.c.b16 %v5531, %v5530
      %v5535 = vpack.c.b16 %v5533, %v5532
      %v5539 = vsel %vm1846, %v5525, 0
      %5541 = vmatpush.bf16.msra.mxu0 0
      %5542 = vmatpush.bf16.msra.mxu0 0
      %5543 = vmatpush.bf16.msra.mxu0 0
      %5544 = vmatpush.bf16.msra.mxu0 0
      %5545 = vmatpush.bf16.msra.mxu0 0
      %5546 = vmatpush.bf16.msra.mxu0 0
      %5547 = vmatpush.bf16.msra.mxu0 %v5535
      %5548 = vmatpush.bf16.msra.mxu0 %v5534
      %5549 = vmatmul.bf16.gmra.mxu0 %v5034
      %v5550 = vpop.f32.mrf.mxu0
      %v5551 = vadd.f32 0.0, %v5550
      %v5552 = vpop.f32.mrf.mxu0
      %v5553 = vadd.f32 0.0, %v5552
      %5554 = vmatmul.bf16.gmra.mxu0 %v5037
      %v5555 = vpop.f32.mrf.mxu0
      %v5556 = vadd.f32 0.0, %v5555
      %v5557 = vpop.f32.mrf.mxu0
      %v5558 = vadd.f32 0.0, %v5557
      %5559 = vmatmul.bf16.gmra.mxu0 %v5040
      %v5560 = vpop.f32.mrf.mxu0
      %v5561 = vadd.f32 0.0, %v5560
      %v5562 = vpop.f32.mrf.mxu0
      %v5563 = vadd.f32 0.0, %v5562
      %5564 = vmatmul.bf16.gmra.mxu0 %v5043
      %v5565 = vpop.f32.mrf.mxu0
      %v5566 = vadd.f32 0.0, %v5565
      %v5567 = vpop.f32.mrf.mxu0
      %v5568 = vadd.f32 0.0, %v5567
      %5569 = vmatmul.bf16.gmra.mxu0 %v5046
      %v5570 = vpop.f32.mrf.mxu0
      %v5571 = vadd.f32 0.0, %v5570
      %v5572 = vpop.f32.mrf.mxu0
      %v5573 = vadd.f32 0.0, %v5572
      %5574 = vmatmul.bf16.gmra.mxu0 %v5049
      %v5575 = vpop.f32.mrf.mxu0
      %v5576 = vadd.f32 0.0, %v5575
      %v5577 = vpop.f32.mrf.mxu0
      %v5578 = vadd.f32 0.0, %v5577
      %5579 = vmatmul.bf16.gmra.mxu0 %v5052
      %v5580 = vpop.f32.mrf.mxu0
      %v5581 = vadd.f32 0.0, %v5580
      %v5582 = vpop.f32.mrf.mxu0
      %v5583 = vadd.f32 0.0, %v5582
      %5584 = vmatmul.bf16.gmra.mxu0 %v5055
      %v5585 = vpop.f32.mrf.mxu0
      %v5586 = vadd.f32 0.0, %v5585
      %v5587 = vpop.f32.mrf.mxu0
      %v5588 = vadd.f32 0.0, %v5587
      %5589 = vmatmul.bf16.gmra.mxu0 %v5058
      %v5590 = vpop.f32.mrf.mxu0
      %v5591 = vadd.f32 0.0, %v5590
      %v5592 = vpop.f32.mrf.mxu0
      %v5593 = vadd.f32 0.0, %v5592
      %5594 = vmatmul.bf16.gmra.mxu0 %v5061
      %v5595 = vpop.f32.mrf.mxu0
      %v5596 = vadd.f32 0.0, %v5595
      %v5597 = vpop.f32.mrf.mxu0
      %v5598 = vadd.f32 0.0, %v5597
      %5599 = vmatmul.bf16.gmra.mxu0 %v5064
      %v5600 = vpop.f32.mrf.mxu0
      %v5601 = vadd.f32 0.0, %v5600
      %v5602 = vpop.f32.mrf.mxu0
      %v5603 = vadd.f32 0.0, %v5602
      %5604 = vmatmul.bf16.gmra.mxu0 %v5067
      %v5605 = vpop.f32.mrf.mxu0
      %v5606 = vadd.f32 0.0, %v5605
      %v5607 = vpop.f32.mrf.mxu0
      %v5608 = vadd.f32 0.0, %v5607
      %5609 = vmatmul.bf16.gmra.mxu0 %v5070
      %v5610 = vpop.f32.mrf.mxu0
      %v5611 = vadd.f32 0.0, %v5610
      %v5612 = vpop.f32.mrf.mxu0
      %v5613 = vadd.f32 0.0, %v5612
      %5614 = vmatmul.bf16.gmra.mxu0 %v5073
      %v5615 = vpop.f32.mrf.mxu0
      %v5616 = vadd.f32 0.0, %v5615
      %v5617 = vpop.f32.mrf.mxu0
      %v5618 = vadd.f32 0.0, %v5617
      %5619 = vmatmul.bf16.gmra.mxu0 %v5076
      %v5620 = vpop.f32.mrf.mxu0
      %v5621 = vadd.f32 0.0, %v5620
      %v5622 = vpop.f32.mrf.mxu0
      %v5623 = vadd.f32 0.0, %v5622
      %5624 = vmatmul.bf16.gmra.mxu0 %v5539
      %v5625 = vpop.f32.mrf.mxu0
      %v5626 = vadd.f32 0.0, %v5625
      %v5627 = vpop.f32.mrf.mxu0
      %v5628 = vadd.f32 0.0, %v5627
      %5629 = vdwg.mxu0
      %v5630 = vadd.f32 %v5479, %v5551
      %v5631 = vadd.f32 %v5480, %v5553
      %v5632 = vadd.f32 %v5481, %v5556
      %v5633 = vadd.f32 %v5482, %v5558
      %v5634 = vadd.f32 %v5483, %v5561
      %v5635 = vadd.f32 %v5484, %v5563
      %v5636 = vadd.f32 %v5485, %v5566
      %v5637 = vadd.f32 %v5486, %v5568
      %v5638 = vadd.f32 %v5487, %v5571
      %v5639 = vadd.f32 %v5488, %v5573
      %v5640 = vadd.f32 %v5489, %v5576
      %v5641 = vadd.f32 %v5490, %v5578
      %v5642 = vadd.f32 %v5491, %v5581
      %v5643 = vadd.f32 %v5492, %v5583
      %v5644 = vadd.f32 %v5493, %v5586
      %v5645 = vadd.f32 %v5494, %v5588
      %v5646 = vadd.f32 %v5495, %v5591
      %v5647 = vadd.f32 %v5496, %v5593
      %v5648 = vadd.f32 %v5497, %v5596
      %v5649 = vadd.f32 %v5498, %v5598
      %v5650 = vadd.f32 %v5499, %v5601
      %v5651 = vadd.f32 %v5500, %v5603
      %v5652 = vadd.f32 %v5501, %v5606
      %v5653 = vadd.f32 %v5502, %v5608
      %v5654 = vadd.f32 %v5503, %v5611
      %v5655 = vadd.f32 %v5504, %v5613
      %v5656 = vadd.f32 %v5505, %v5616
      %v5657 = vadd.f32 %v5506, %v5618
      %v5658 = vadd.f32 %v5507, %v5621
      %v5659 = vadd.f32 %v5508, %v5623
      %v5660 = vadd.f32 %v5509, %v5626
      %v5661 = vadd.f32 %v5510, %v5628
      %v5662 = vld [vmem:[%s7 + $0x60] sm:$0xf]
      %v5663 = vld [vmem:[%s7 + $0x64] sm:$0xf]
      %v5664 = vld [vmem:[%s7 + $0x68] sm:$0xf]
      %v5665 = vld [vmem:[%s7 + $0x6c] sm:$0xf]
      %v5670 = vunpack.c.l.b16 %v5662
      %v5671 = vunpack.c.l.b16 %v5663
      %v5672 = vunpack.c.l.b16 %v5664
      %v5673 = vunpack.c.l.b16 %v5665
      %v5674 = vpack.c.b16 %v5671, %v5670
      %v5675 = vpack.c.b16 %v5673, %v5672
      %5678 = vmatpush.bf16.msra.mxu0 0
      %5679 = vmatpush.bf16.msra.mxu0 0
      %5680 = vmatpush.bf16.msra.mxu0 0
      %5681 = vmatpush.bf16.msra.mxu0 0
      %5682 = vmatpush.bf16.msra.mxu0 0
      %5683 = vmatpush.bf16.msra.mxu0 0
      %5684 = vmatpush.bf16.msra.mxu0 %v5675
      %5685 = vmatpush.bf16.msra.mxu0 %v5674
      %5686 = vmatmul.bf16.gmra.mxu0 %v4718
      %v5687 = vpop.f32.mrf.mxu0
      %v5688 = vadd.f32 0.0, %v5687
      %v5689 = vpop.f32.mrf.mxu0
      %v5690 = vadd.f32 0.0, %v5689
      %5691 = vmatmul.bf16.gmra.mxu0 %v4721
      %v5692 = vpop.f32.mrf.mxu0
      %v5693 = vadd.f32 0.0, %v5692
      %v5694 = vpop.f32.mrf.mxu0
      %v5695 = vadd.f32 0.0, %v5694
      %5696 = vmatmul.bf16.gmra.mxu0 %v4724
      %v5697 = vpop.f32.mrf.mxu0
      %v5698 = vadd.f32 0.0, %v5697
      %v5699 = vpop.f32.mrf.mxu0
      %v5700 = vadd.f32 0.0, %v5699
      %5701 = vmatmul.bf16.gmra.mxu0 %v4727
      %v5702 = vpop.f32.mrf.mxu0
      %v5703 = vadd.f32 0.0, %v5702
      %v5704 = vpop.f32.mrf.mxu0
      %v5705 = vadd.f32 0.0, %v5704
      %5706 = vmatmul.bf16.gmra.mxu0 %v4730
      %v5707 = vpop.f32.mrf.mxu0
      %v5708 = vadd.f32 0.0, %v5707
      %v5709 = vpop.f32.mrf.mxu0
      %v5710 = vadd.f32 0.0, %v5709
      %5711 = vmatmul.bf16.gmra.mxu0 %v4733
      %v5712 = vpop.f32.mrf.mxu0
      %v5713 = vadd.f32 0.0, %v5712
      %v5714 = vpop.f32.mrf.mxu0
      %v5715 = vadd.f32 0.0, %v5714
      %5716 = vmatmul.bf16.gmra.mxu0 %v4736
      %v5717 = vpop.f32.mrf.mxu0
      %v5718 = vadd.f32 0.0, %v5717
      %v5719 = vpop.f32.mrf.mxu0
      %v5720 = vadd.f32 0.0, %v5719
      %5721 = vmatmul.bf16.gmra.mxu0 %v4739
      %v5722 = vpop.f32.mrf.mxu0
      %v5723 = vadd.f32 0.0, %v5722
      %v5724 = vpop.f32.mrf.mxu0
      %v5725 = vadd.f32 0.0, %v5724
      %5726 = vmatmul.bf16.gmra.mxu0 %v4742
      %v5727 = vpop.f32.mrf.mxu0
      %v5728 = vadd.f32 0.0, %v5727
      %v5729 = vpop.f32.mrf.mxu0
      %v5730 = vadd.f32 0.0, %v5729
      %5731 = vmatmul.bf16.gmra.mxu0 %v4745
      %v5732 = vpop.f32.mrf.mxu0
      %v5733 = vadd.f32 0.0, %v5732
      %v5734 = vpop.f32.mrf.mxu0
      %v5735 = vadd.f32 0.0, %v5734
      %5736 = vmatmul.bf16.gmra.mxu0 %v4748
      %v5737 = vpop.f32.mrf.mxu0
      %v5738 = vadd.f32 0.0, %v5737
      %v5739 = vpop.f32.mrf.mxu0
      %v5740 = vadd.f32 0.0, %v5739
      %5741 = vmatmul.bf16.gmra.mxu0 %v4751
      %v5742 = vpop.f32.mrf.mxu0
      %v5743 = vadd.f32 0.0, %v5742
      %v5744 = vpop.f32.mrf.mxu0
      %v5745 = vadd.f32 0.0, %v5744
      %5746 = vmatmul.bf16.gmra.mxu0 %v4754
      %v5747 = vpop.f32.mrf.mxu0
      %v5748 = vadd.f32 0.0, %v5747
      %v5749 = vpop.f32.mrf.mxu0
      %v5750 = vadd.f32 0.0, %v5749
      %5751 = vmatmul.bf16.gmra.mxu0 %v4757
      %v5752 = vpop.f32.mrf.mxu0
      %v5753 = vadd.f32 0.0, %v5752
      %v5754 = vpop.f32.mrf.mxu0
      %v5755 = vadd.f32 0.0, %v5754
      %5756 = vmatmul.bf16.gmra.mxu0 %v5221
      %v5757 = vpop.f32.mrf.mxu0
      %v5758 = vadd.f32 0.0, %v5757
      %v5759 = vpop.f32.mrf.mxu0
      %v5760 = vadd.f32 0.0, %v5759
      %5761 = vmatmul.bf16.gmra.mxu0 %v4712
      %v5762 = vpop.f32.mrf.mxu0
      %v5763 = vadd.f32 0.0, %v5762
      %v5764 = vpop.f32.mrf.mxu0
      %v5765 = vadd.f32 0.0, %v5764
      %5766 = vdwg.mxu0
      %v5767 = vadd.f32 %v5630, %v5688
      %v5768 = vadd.f32 %v5631, %v5690
      %v5769 = vadd.f32 %v5632, %v5693
      %v5770 = vadd.f32 %v5633, %v5695
      %v5771 = vadd.f32 %v5634, %v5698
      %v5772 = vadd.f32 %v5635, %v5700
      %v5773 = vadd.f32 %v5636, %v5703
      %v5774 = vadd.f32 %v5637, %v5705
      %v5775 = vadd.f32 %v5638, %v5708
      %v5776 = vadd.f32 %v5639, %v5710
      %v5777 = vadd.f32 %v5640, %v5713
      %v5778 = vadd.f32 %v5641, %v5715
      %v5779 = vadd.f32 %v5642, %v5718
      %v5780 = vadd.f32 %v5643, %v5720
      %v5781 = vadd.f32 %v5644, %v5723
      %v5782 = vadd.f32 %v5645, %v5725
      %v5783 = vadd.f32 %v5646, %v5728
      %v5784 = vadd.f32 %v5647, %v5730
      %v5785 = vadd.f32 %v5648, %v5733
      %v5786 = vadd.f32 %v5649, %v5735
      %v5787 = vadd.f32 %v5650, %v5738
      %v5788 = vadd.f32 %v5651, %v5740
      %v5789 = vadd.f32 %v5652, %v5743
      %v5790 = vadd.f32 %v5653, %v5745
      %v5791 = vadd.f32 %v5654, %v5748
      %v5792 = vadd.f32 %v5655, %v5750
      %v5793 = vadd.f32 %v5656, %v5753
      %v5794 = vadd.f32 %v5657, %v5755
      %v5795 = vadd.f32 %v5658, %v5758
      %v5796 = vadd.f32 %v5659, %v5760
      %v5797 = vadd.f32 %v5660, %v5763
      %v5798 = vadd.f32 %v5661, %v5765
      %v5799 = vld [vmem:[%s7 + $0x70] sm:$0xf]
      %v5800 = vld [vmem:[%s7 + $0x74] sm:$0xf]
      %v5801 = vld [vmem:[%s7 + $0x78] sm:$0xf]
      %v5802 = vld [vmem:[%s7 + $0x7c] sm:$0xf]
      %v5807 = vunpack.c.l.b16 %v5799
      %v5808 = vunpack.c.l.b16 %v5800
      %v5809 = vunpack.c.l.b16 %v5801
      %v5810 = vunpack.c.l.b16 %v5802
      %v5811 = vpack.c.b16 %v5808, %v5807
      %v5812 = vpack.c.b16 %v5810, %v5809
      %5815 = vmatpush.bf16.msra.mxu0 0
      %5816 = vmatpush.bf16.msra.mxu0 0
      %5817 = vmatpush.bf16.msra.mxu0 0
      %5818 = vmatpush.bf16.msra.mxu0 0
      %5819 = vmatpush.bf16.msra.mxu0 0
      %5820 = vmatpush.bf16.msra.mxu0 0
      %5821 = vmatpush.bf16.msra.mxu0 %v5812
      %5822 = vmatpush.bf16.msra.mxu0 %v5811
      %5823 = vmatmul.bf16.gmra.mxu0 %v4493
      %v5824 = vpop.f32.mrf.mxu0
      %v5825 = vadd.f32 0.0, %v5824
      %v5826 = vpop.f32.mrf.mxu0
      %v5827 = vadd.f32 0.0, %v5826
      %5828 = vmatmul.bf16.gmra.mxu0 %v4496
      %v5829 = vpop.f32.mrf.mxu0
      %v5830 = vadd.f32 0.0, %v5829
      %v5831 = vpop.f32.mrf.mxu0
      %v5832 = vadd.f32 0.0, %v5831
      %5833 = vmatmul.bf16.gmra.mxu0 %v4499
      %v5834 = vpop.f32.mrf.mxu0
      %v5835 = vadd.f32 0.0, %v5834
      %v5836 = vpop.f32.mrf.mxu0
      %v5837 = vadd.f32 0.0, %v5836
      %5838 = vmatmul.bf16.gmra.mxu0 %v4502
      %v5839 = vpop.f32.mrf.mxu0
      %v5840 = vadd.f32 0.0, %v5839
      %v5841 = vpop.f32.mrf.mxu0
      %v5842 = vadd.f32 0.0, %v5841
      %5843 = vmatmul.bf16.gmra.mxu0 %v4505
      %v5844 = vpop.f32.mrf.mxu0
      %v5845 = vadd.f32 0.0, %v5844
      %v5846 = vpop.f32.mrf.mxu0
      %v5847 = vadd.f32 0.0, %v5846
      %5848 = vmatmul.bf16.gmra.mxu0 %v4508
      %v5849 = vpop.f32.mrf.mxu0
      %v5850 = vadd.f32 0.0, %v5849
      %v5851 = vpop.f32.mrf.mxu0
      %v5852 = vadd.f32 0.0, %v5851
      %5853 = vmatmul.bf16.gmra.mxu0 %v4511
      %v5854 = vpop.f32.mrf.mxu0
      %v5855 = vadd.f32 0.0, %v5854
      %v5856 = vpop.f32.mrf.mxu0
      %v5857 = vadd.f32 0.0, %v5856
      %5858 = vmatmul.bf16.gmra.mxu0 %v4514
      %v5859 = vpop.f32.mrf.mxu0
      %v5860 = vadd.f32 0.0, %v5859
      %v5861 = vpop.f32.mrf.mxu0
      %v5862 = vadd.f32 0.0, %v5861
      %5863 = vmatmul.bf16.gmra.mxu0 %v4517
      %v5864 = vpop.f32.mrf.mxu0
      %v5865 = vadd.f32 0.0, %v5864
      %v5866 = vpop.f32.mrf.mxu0
      %v5867 = vadd.f32 0.0, %v5866
      %5868 = vmatmul.bf16.gmra.mxu0 %v4520
      %v5869 = vpop.f32.mrf.mxu0
      %v5870 = vadd.f32 0.0, %v5869
      %v5871 = vpop.f32.mrf.mxu0
      %v5872 = vadd.f32 0.0, %v5871
      %5873 = vmatmul.bf16.gmra.mxu0 %v4523
      %v5874 = vpop.f32.mrf.mxu0
      %v5875 = vadd.f32 0.0, %v5874
      %v5876 = vpop.f32.mrf.mxu0
      %v5877 = vadd.f32 0.0, %v5876
      %5878 = vmatmul.bf16.gmra.mxu0 %v4526
      %v5879 = vpop.f32.mrf.mxu0
      %v5880 = vadd.f32 0.0, %v5879
      %v5881 = vpop.f32.mrf.mxu0
      %v5882 = vadd.f32 0.0, %v5881
      %5883 = vmatmul.bf16.gmra.mxu0 %v4529
      %v5884 = vpop.f32.mrf.mxu0
      %v5885 = vadd.f32 0.0, %v5884
      %v5886 = vpop.f32.mrf.mxu0
      %v5887 = vadd.f32 0.0, %v5886
      %5888 = vmatmul.bf16.gmra.mxu0 %v4532
      %v5889 = vpop.f32.mrf.mxu0
      %v5890 = vadd.f32 0.0, %v5889
      %v5891 = vpop.f32.mrf.mxu0
      %v5892 = vadd.f32 0.0, %v5891
      %5893 = vmatmul.bf16.gmra.mxu0 %v5388
      %v5894 = vpop.f32.mrf.mxu0
      %v5895 = vadd.f32 0.0, %v5894
      %v5896 = vpop.f32.mrf.mxu0
      %v5897 = vadd.f32 0.0, %v5896
      %5898 = vmatmul.bf16.gmra.mxu0 %v4487
      %v5899 = vpop.f32.mrf.mxu0
      %v5900 = vadd.f32 0.0, %v5899
      %v5901 = vpop.f32.mrf.mxu0
      %v5902 = vadd.f32 0.0, %v5901
      %5903 = vdwg.mxu0
      %v5904 = vadd.f32 %v5767, %v5825
      %v5905 = vadd.f32 %v5768, %v5827
      %v5906 = vadd.f32 %v5769, %v5830
      %v5907 = vadd.f32 %v5770, %v5832
      %v5908 = vadd.f32 %v5771, %v5835
      %v5909 = vadd.f32 %v5772, %v5837
      %v5910 = vadd.f32 %v5773, %v5840
      %v5911 = vadd.f32 %v5774, %v5842
      %v5912 = vadd.f32 %v5775, %v5845
      %v5913 = vadd.f32 %v5776, %v5847
      %v5914 = vadd.f32 %v5777, %v5850
      %v5915 = vadd.f32 %v5778, %v5852
      %v5916 = vadd.f32 %v5779, %v5855
      %v5917 = vadd.f32 %v5780, %v5857
      %v5918 = vadd.f32 %v5781, %v5860
      %v5919 = vadd.f32 %v5782, %v5862
      %v5920 = vadd.f32 %v5783, %v5865
      %v5921 = vadd.f32 %v5784, %v5867
      %v5922 = vadd.f32 %v5785, %v5870
      %v5923 = vadd.f32 %v5786, %v5872
      %v5924 = vadd.f32 %v5787, %v5875
      %v5925 = vadd.f32 %v5788, %v5877
      %v5926 = vadd.f32 %v5789, %v5880
      %v5927 = vadd.f32 %v5790, %v5882
      %v5928 = vadd.f32 %v5791, %v5885
      %v5929 = vadd.f32 %v5792, %v5887
      %v5930 = vadd.f32 %v5793, %v5890
      %v5931 = vadd.f32 %v5794, %v5892
      %v5932 = vadd.f32 %v5795, %v5895
      %v5933 = vadd.f32 %v5796, %v5897
      %v5934 = vadd.f32 %v5797, %v5900
      %v5935 = vadd.f32 %v5798, %v5902
      %v5936 = vld [vmem:[%s7 + $0x80] sm:$0xf]
      %v5937 = vld [vmem:[%s7 + $0x84] sm:$0xf]
      %v5938 = vld [vmem:[%s7 + $0x88] sm:$0xf]
      %v5939 = vld [vmem:[%s7 + $0x8c] sm:$0xf]
      %v5944 = vunpack.c.l.b16 %v5936
      %v5945 = vunpack.c.l.b16 %v5937
      %v5946 = vunpack.c.l.b16 %v5938
      %v5947 = vunpack.c.l.b16 %v5939
      %v5948 = vpack.c.b16 %v5945, %v5944
      %v5949 = vpack.c.b16 %v5947, %v5946
      %5952 = vmatpush.bf16.msra.mxu0 0
      %5953 = vmatpush.bf16.msra.mxu0 0
      %5954 = vmatpush.bf16.msra.mxu0 0
      %5955 = vmatpush.bf16.msra.mxu0 0
      %5956 = vmatpush.bf16.msra.mxu0 0
      %5957 = vmatpush.bf16.msra.mxu0 0
      %5958 = vmatpush.bf16.msra.mxu0 %v5949
      %5959 = vmatpush.bf16.msra.mxu0 %v5948
      %5960 = vmatmul.bf16.gmra.mxu0 %v5037
      %v5961 = vpop.f32.mrf.mxu0
      %v5962 = vadd.f32 0.0, %v5961
      %v5963 = vpop.f32.mrf.mxu0
      %v5964 = vadd.f32 0.0, %v5963
      %5965 = vmatmul.bf16.gmra.mxu0 %v5040
      %v5966 = vpop.f32.mrf.mxu0
      %v5967 = vadd.f32 0.0, %v5966
      %v5968 = vpop.f32.mrf.mxu0
      %v5969 = vadd.f32 0.0, %v5968
      %5970 = vmatmul.bf16.gmra.mxu0 %v5043
      %v5971 = vpop.f32.mrf.mxu0
      %v5972 = vadd.f32 0.0, %v5971
      %v5973 = vpop.f32.mrf.mxu0
      %v5974 = vadd.f32 0.0, %v5973
      %5975 = vmatmul.bf16.gmra.mxu0 %v5046
      %v5976 = vpop.f32.mrf.mxu0
      %v5977 = vadd.f32 0.0, %v5976
      %v5978 = vpop.f32.mrf.mxu0
      %v5979 = vadd.f32 0.0, %v5978
      %5980 = vmatmul.bf16.gmra.mxu0 %v5049
      %v5981 = vpop.f32.mrf.mxu0
      %v5982 = vadd.f32 0.0, %v5981
      %v5983 = vpop.f32.mrf.mxu0
      %v5984 = vadd.f32 0.0, %v5983
      %5985 = vmatmul.bf16.gmra.mxu0 %v5052
      %v5986 = vpop.f32.mrf.mxu0
      %v5987 = vadd.f32 0.0, %v5986
      %v5988 = vpop.f32.mrf.mxu0
      %v5989 = vadd.f32 0.0, %v5988
      %5990 = vmatmul.bf16.gmra.mxu0 %v5055
      %v5991 = vpop.f32.mrf.mxu0
      %v5992 = vadd.f32 0.0, %v5991
      %v5993 = vpop.f32.mrf.mxu0
      %v5994 = vadd.f32 0.0, %v5993
      %5995 = vmatmul.bf16.gmra.mxu0 %v5058
      %v5996 = vpop.f32.mrf.mxu0
      %v5997 = vadd.f32 0.0, %v5996
      %v5998 = vpop.f32.mrf.mxu0
      %v5999 = vadd.f32 0.0, %v5998
      %6000 = vmatmul.bf16.gmra.mxu0 %v5061
      %v6001 = vpop.f32.mrf.mxu0
      %v6002 = vadd.f32 0.0, %v6001
      %v6003 = vpop.f32.mrf.mxu0
      %v6004 = vadd.f32 0.0, %v6003
      %6005 = vmatmul.bf16.gmra.mxu0 %v5064
      %v6006 = vpop.f32.mrf.mxu0
      %v6007 = vadd.f32 0.0, %v6006
      %v6008 = vpop.f32.mrf.mxu0
      %v6009 = vadd.f32 0.0, %v6008
      %6010 = vmatmul.bf16.gmra.mxu0 %v5067
      %v6011 = vpop.f32.mrf.mxu0
      %v6012 = vadd.f32 0.0, %v6011
      %v6013 = vpop.f32.mrf.mxu0
      %v6014 = vadd.f32 0.0, %v6013
      %6015 = vmatmul.bf16.gmra.mxu0 %v5070
      %v6016 = vpop.f32.mrf.mxu0
      %v6017 = vadd.f32 0.0, %v6016
      %v6018 = vpop.f32.mrf.mxu0
      %v6019 = vadd.f32 0.0, %v6018
      %6020 = vmatmul.bf16.gmra.mxu0 %v5073
      %v6021 = vpop.f32.mrf.mxu0
      %v6022 = vadd.f32 0.0, %v6021
      %v6023 = vpop.f32.mrf.mxu0
      %v6024 = vadd.f32 0.0, %v6023
      %6025 = vmatmul.bf16.gmra.mxu0 %v5076
      %v6026 = vpop.f32.mrf.mxu0
      %v6027 = vadd.f32 0.0, %v6026
      %v6028 = vpop.f32.mrf.mxu0
      %v6029 = vadd.f32 0.0, %v6028
      %6030 = vmatmul.bf16.gmra.mxu0 %v5539
      %v6031 = vpop.f32.mrf.mxu0
      %v6032 = vadd.f32 0.0, %v6031
      %v6033 = vpop.f32.mrf.mxu0
      %v6034 = vadd.f32 0.0, %v6033
      %6035 = vmatmul.bf16.gmra.mxu0 %v5031
      %v6036 = vpop.f32.mrf.mxu0
      %v6037 = vadd.f32 0.0, %v6036
      %v6038 = vpop.f32.mrf.mxu0
      %v6039 = vadd.f32 0.0, %v6038
      %6040 = vdwg.mxu0
      %v6041 = vadd.f32 %v5904, %v5962
      %v6042 = vadd.f32 %v5905, %v5964
      %v6043 = vadd.f32 %v5906, %v5967
      %v6044 = vadd.f32 %v5907, %v5969
      %v6045 = vadd.f32 %v5908, %v5972
      %v6046 = vadd.f32 %v5909, %v5974
      %v6047 = vadd.f32 %v5910, %v5977
      %v6048 = vadd.f32 %v5911, %v5979
      %v6049 = vadd.f32 %v5912, %v5982
      %v6050 = vadd.f32 %v5913, %v5984
      %v6051 = vadd.f32 %v5914, %v5987
      %v6052 = vadd.f32 %v5915, %v5989
      %v6053 = vadd.f32 %v5916, %v5992
      %v6054 = vadd.f32 %v5917, %v5994
      %v6055 = vadd.f32 %v5918, %v5997
      %v6056 = vadd.f32 %v5919, %v5999
      %v6057 = vadd.f32 %v5920, %v6002
      %v6058 = vadd.f32 %v5921, %v6004
      %v6059 = vadd.f32 %v5922, %v6007
      %v6060 = vadd.f32 %v5923, %v6009
      %v6061 = vadd.f32 %v5924, %v6012
      %v6062 = vadd.f32 %v5925, %v6014
      %v6063 = vadd.f32 %v5926, %v6017
      %v6064 = vadd.f32 %v5927, %v6019
      %v6065 = vadd.f32 %v5928, %v6022
      %v6066 = vadd.f32 %v5929, %v6024
      %v6067 = vadd.f32 %v5930, %v6027
      %v6068 = vadd.f32 %v5931, %v6029
      %v6069 = vadd.f32 %v5932, %v6032
      %v6070 = vadd.f32 %v5933, %v6034
      %v6071 = vadd.f32 %v5934, %v6037
      %v6072 = vadd.f32 %v5935, %v6039
      %v6073 = vrot.slane %v693, 7
      %v6074 = vrot.slane %v694, 7
      %v6075 = vsel %vm2173, %v6073, %v6074
      %v6076 = vrot.slane %v695, 7
      %v6077 = vrot.slane %v696, 7
      %v6078 = vsel %vm2173, %v6076, %v6077
      %v6079 = vrot.slane %v697, 7
      %v6080 = vrot.slane %v698, 7
      %v6081 = vsel %vm2173, %v6079, %v6080
      %v6082 = vrot.slane %v699, 7
      %v6083 = vrot.slane %v700, 7
      %v6084 = vsel %vm2173, %v6082, %v6083
      %v6085 = vrot.slane %v701, 7
      %v6086 = vrot.slane %v702, 7
      %v6087 = vsel %vm2173, %v6085, %v6086
      %v6088 = vrot.slane %v703, 7
      %v6089 = vrot.slane %v704, 7
      %v6090 = vsel %vm2173, %v6088, %v6089
      %v6091 = vrot.slane %v705, 7
      %v6092 = vrot.slane %v706, 7
      %v6093 = vsel %vm2173, %v6091, %v6092
      %v6094 = vrot.slane %v707, 7
      %v6095 = vrot.slane %v708, 7
      %v6096 = vsel %vm2173, %v6094, %v6095
      %v6097 = vrot.slane %v709, 7
      %v6098 = vrot.slane %v710, 7
      %v6099 = vsel %vm2173, %v6097, %v6098
      %v6100 = vrot.slane %v711, 7
      %v6101 = vrot.slane %v712, 7
      %v6102 = vsel %vm2173, %v6100, %v6101
      %v6103 = vrot.slane %v713, 7
      %v6104 = vrot.slane %v714, 7
      %v6105 = vsel %vm2173, %v6103, %v6104
      %v6106 = vrot.slane %v715, 7
      %v6107 = vrot.slane %v716, 7
      %v6108 = vsel %vm2173, %v6106, %v6107
      %v6109 = vrot.slane %v717, 7
      %v6110 = vrot.slane %v718, 7
      %v6111 = vsel %vm2173, %v6109, %v6110
      %v6112 = vrot.slane %v719, 7
      %v6113 = vrot.slane %v720, 7
      %v6114 = vsel %vm2173, %v6112, %v6113
      %v6115 = vrot.slane %v721, 7
      %v6116 = vrot.slane %v722, 7
      %v6117 = vsel %vm2173, %v6115, %v6116
      %v6118 = vrot.slane %v723, 7
      %v6119 = vrot.slane %v724, 7
      %v6120 = vsel %vm2173, %v6118, %v6119
      %v6169 = vsel %vm2173, 0.0, %v6073
      %v6170 = vsel %vm2173, 0.0, %v6076
      %v6171 = vsel %vm2173, 0.0, %v6079
      %v6172 = vsel %vm2173, 0.0, %v6082
      %v6173 = vsel %vm2173, 0.0, %v6085
      %v6174 = vsel %vm2173, 0.0, %v6088
      %v6175 = vsel %vm2173, 0.0, %v6091
      %v6176 = vsel %vm2173, 0.0, %v6094
      %v6177 = vsel %vm2173, 0.0, %v6097
      %v6178 = vsel %vm2173, 0.0, %v6100
      %v6179 = vsel %vm2173, 0.0, %v6103
      %v6180 = vsel %vm2173, 0.0, %v6106
      %v6181 = vsel %vm2173, 0.0, %v6109
      %v6182 = vsel %vm2173, 0.0, %v6112
      %v6183 = vsel %vm2173, 0.0, %v6115
      %v6184 = vsel %vm2173, 0.0, %v6118
      %v6185 = vsel %vm2173, %v6074, 0.0
      %v6186 = vsel %vm2173, %v6077, 0.0
      %v6187 = vsel %vm2173, %v6080, 0.0
      %v6188 = vsel %vm2173, %v6083, 0.0
      %v6189 = vsel %vm2173, %v6086, 0.0
      %v6190 = vsel %vm2173, %v6089, 0.0
      %v6191 = vsel %vm2173, %v6092, 0.0
      %v6192 = vsel %vm2173, %v6095, 0.0
      %v6193 = vsel %vm2173, %v6098, 0.0
      %v6194 = vsel %vm2173, %v6101, 0.0
      %v6195 = vsel %vm2173, %v6104, 0.0
      %v6196 = vsel %vm2173, %v6107, 0.0
      %v6197 = vsel %vm2173, %v6110, 0.0
      %v6198 = vsel %vm2173, %v6113, 0.0
      %v6199 = vsel %vm2173, %v6116, 0.0
      %v6200 = vsel %vm2173, %v6119, 0.0
      %v6201 = vpack.c.bf16 %v6169, %v6169
      %v6202 = vpack.c.bf16 %v6075, %v6075
      %v6203 = vpack.c.bf16 %v6185, %v6185
      %v6204 = vpack.c.bf16 %v6170, %v6170
      %v6205 = vpack.c.bf16 %v6078, %v6078
      %v6206 = vpack.c.bf16 %v6186, %v6186
      %v6207 = vpack.c.bf16 %v6171, %v6171
      %v6208 = vpack.c.bf16 %v6081, %v6081
      %v6209 = vpack.c.bf16 %v6187, %v6187
      %v6210 = vpack.c.bf16 %v6172, %v6172
      %v6211 = vpack.c.bf16 %v6084, %v6084
      %v6212 = vpack.c.bf16 %v6188, %v6188
      %v6213 = vpack.c.bf16 %v6173, %v6173
      %v6214 = vpack.c.bf16 %v6087, %v6087
      %v6215 = vpack.c.bf16 %v6189, %v6189
      %v6216 = vpack.c.bf16 %v6174, %v6174
      %v6217 = vpack.c.bf16 %v6090, %v6090
      %v6218 = vpack.c.bf16 %v6190, %v6190
      %v6219 = vpack.c.bf16 %v6175, %v6175
      %v6220 = vpack.c.bf16 %v6093, %v6093
      %v6221 = vpack.c.bf16 %v6191, %v6191
      %v6222 = vpack.c.bf16 %v6176, %v6176
      %v6223 = vpack.c.bf16 %v6096, %v6096
      %v6224 = vpack.c.bf16 %v6192, %v6192
      %v6225 = vpack.c.bf16 %v6177, %v6177
      %v6226 = vpack.c.bf16 %v6099, %v6099
      %v6227 = vpack.c.bf16 %v6193, %v6193
      %v6228 = vpack.c.bf16 %v6178, %v6178
      %v6229 = vpack.c.bf16 %v6102, %v6102
      %v6230 = vpack.c.bf16 %v6194, %v6194
      %v6231 = vpack.c.bf16 %v6179, %v6179
      %v6232 = vpack.c.bf16 %v6105, %v6105
      %v6233 = vpack.c.bf16 %v6195, %v6195
      %v6234 = vpack.c.bf16 %v6180, %v6180
      %v6235 = vpack.c.bf16 %v6108, %v6108
      %v6236 = vpack.c.bf16 %v6196, %v6196
      %v6237 = vpack.c.bf16 %v6181, %v6181
      %v6238 = vpack.c.bf16 %v6111, %v6111
      %v6239 = vpack.c.bf16 %v6197, %v6197
      %v6240 = vpack.c.bf16 %v6182, %v6182
      %v6241 = vpack.c.bf16 %v6114, %v6114
      %v6242 = vpack.c.bf16 %v6198, %v6198
      %v6243 = vpack.c.bf16 %v6183, %v6183
      %v6244 = vpack.c.bf16 %v6117, %v6117
      %v6245 = vpack.c.bf16 %v6199, %v6199
      %v6246 = vpack.c.bf16 %v6184, %v6184
      %v6247 = vpack.c.bf16 %v6120, %v6120
      %v6248 = vpack.c.bf16 %v6200, %v6200
      %v6249 = vld [vmem:[%s8] sm:$0xf]
      %v6250 = vld [vmem:[%s8 + $0x4] sm:$0xf]
      %v6251 = vld [vmem:[%s8 + $0x8] sm:$0xf]
      %v6252 = vld [vmem:[%s8 + $0xc] sm:$0xf]
      %v6254 = vshrl.u32 %v6201, 16
      %v6256 = vrot.slane %v6254, 4
      %v6257 = vshll.u32 %v6201, 16
      %v6259 = vrot.slane %v6257, 5
      %v6260 = vor.u32 %v6256, %v6259
      %v6261 = vrot.slane %v6260, 4
      %v6263 = vshll.u32 %v6202, 16
      %v6265 = vrot.slane %v6263, 5
      %v6266 = vsel %vm2213, %v6261, %v6265
      %v6267 = vshrl.u32 %v6202, 16
      %v6269 = vrot.slane %v6267, 4
      %v6270 = vor.u32 %v6269, %v6265
      %v6271 = vrot.slane %v6270, 4
      %v6273 = vshll.u32 %v6203, 16
      %v6275 = vrot.slane %v6273, 5
      %v6276 = vsel %vm2213, %v6271, %v6275
      %v6278 = vshrl.u32 %v6204, 16
      %v6280 = vrot.slane %v6278, 4
      %v6281 = vshll.u32 %v6204, 16
      %v6283 = vrot.slane %v6281, 5
      %v6284 = vor.u32 %v6280, %v6283
      %v6285 = vrot.slane %v6284, 4
      %v6287 = vshll.u32 %v6205, 16
      %v6289 = vrot.slane %v6287, 5
      %v6290 = vsel %vm2213, %v6285, %v6289
      %v6291 = vshrl.u32 %v6205, 16
      %v6293 = vrot.slane %v6291, 4
      %v6294 = vor.u32 %v6293, %v6289
      %v6295 = vrot.slane %v6294, 4
      %v6297 = vshll.u32 %v6206, 16
      %v6299 = vrot.slane %v6297, 5
      %v6300 = vsel %vm2213, %v6295, %v6299
      %v6302 = vshrl.u32 %v6207, 16
      %v6304 = vrot.slane %v6302, 4
      %v6305 = vshll.u32 %v6207, 16
      %v6307 = vrot.slane %v6305, 5
      %v6308 = vor.u32 %v6304, %v6307
      %v6309 = vrot.slane %v6308, 4
      %v6311 = vshll.u32 %v6208, 16
      %v6313 = vrot.slane %v6311, 5
      %v6314 = vsel %vm2213, %v6309, %v6313
      %v6315 = vshrl.u32 %v6208, 16
      %v6317 = vrot.slane %v6315, 4
      %v6318 = vor.u32 %v6317, %v6313
      %v6319 = vrot.slane %v6318, 4
      %v6321 = vshll.u32 %v6209, 16
      %v6323 = vrot.slane %v6321, 5
      %v6324 = vsel %vm2213, %v6319, %v6323
      %v6326 = vshrl.u32 %v6210, 16
      %v6328 = vrot.slane %v6326, 4
      %v6329 = vshll.u32 %v6210, 16
      %v6331 = vrot.slane %v6329, 5
      %v6332 = vor.u32 %v6328, %v6331
      %v6333 = vrot.slane %v6332, 4
      %v6335 = vshll.u32 %v6211, 16
      %v6337 = vrot.slane %v6335, 5
      %v6338 = vsel %vm2213, %v6333, %v6337
      %v6339 = vshrl.u32 %v6211, 16
      %v6341 = vrot.slane %v6339, 4
      %v6342 = vor.u32 %v6341, %v6337
      %v6343 = vrot.slane %v6342, 4
      %v6345 = vshll.u32 %v6212, 16
      %v6347 = vrot.slane %v6345, 5
      %v6348 = vsel %vm2213, %v6343, %v6347
      %v6350 = vshrl.u32 %v6213, 16
      %v6352 = vrot.slane %v6350, 4
      %v6353 = vshll.u32 %v6213, 16
      %v6355 = vrot.slane %v6353, 5
      %v6356 = vor.u32 %v6352, %v6355
      %v6357 = vrot.slane %v6356, 4
      %v6359 = vshll.u32 %v6214, 16
      %v6361 = vrot.slane %v6359, 5
      %v6362 = vsel %vm2213, %v6357, %v6361
      %v6363 = vshrl.u32 %v6214, 16
      %v6365 = vrot.slane %v6363, 4
      %v6366 = vor.u32 %v6365, %v6361
      %v6367 = vrot.slane %v6366, 4
      %v6369 = vshll.u32 %v6215, 16
      %v6371 = vrot.slane %v6369, 5
      %v6372 = vsel %vm2213, %v6367, %v6371
      %v6374 = vshrl.u32 %v6216, 16
      %v6376 = vrot.slane %v6374, 4
      %v6377 = vshll.u32 %v6216, 16
      %v6379 = vrot.slane %v6377, 5
      %v6380 = vor.u32 %v6376, %v6379
      %v6381 = vrot.slane %v6380, 4
      %v6383 = vshll.u32 %v6217, 16
      %v6385 = vrot.slane %v6383, 5
      %v6386 = vsel %vm2213, %v6381, %v6385
      %v6387 = vshrl.u32 %v6217, 16
      %v6389 = vrot.slane %v6387, 4
      %v6390 = vor.u32 %v6389, %v6385
      %v6391 = vrot.slane %v6390, 4
      %v6393 = vshll.u32 %v6218, 16
      %v6395 = vrot.slane %v6393, 5
      %v6396 = vsel %vm2213, %v6391, %v6395
      %v6398 = vshrl.u32 %v6219, 16
      %v6400 = vrot.slane %v6398, 4
      %v6401 = vshll.u32 %v6219, 16
      %v6403 = vrot.slane %v6401, 5
      %v6404 = vor.u32 %v6400, %v6403
      %v6405 = vrot.slane %v6404, 4
      %v6407 = vshll.u32 %v6220, 16
      %v6409 = vrot.slane %v6407, 5
      %v6410 = vsel %vm2213, %v6405, %v6409
      %v6411 = vshrl.u32 %v6220, 16
      %v6413 = vrot.slane %v6411, 4
      %v6414 = vor.u32 %v6413, %v6409
      %v6415 = vrot.slane %v6414, 4
      %v6417 = vshll.u32 %v6221, 16
      %v6419 = vrot.slane %v6417, 5
      %v6420 = vsel %vm2213, %v6415, %v6419
      %v6422 = vshrl.u32 %v6222, 16
      %v6424 = vrot.slane %v6422, 4
      %v6425 = vshll.u32 %v6222, 16
      %v6427 = vrot.slane %v6425, 5
      %v6428 = vor.u32 %v6424, %v6427
      %v6429 = vrot.slane %v6428, 4
      %v6431 = vshll.u32 %v6223, 16
      %v6433 = vrot.slane %v6431, 5
      %v6434 = vsel %vm2213, %v6429, %v6433
      %v6435 = vshrl.u32 %v6223, 16
      %v6437 = vrot.slane %v6435, 4
      %v6438 = vor.u32 %v6437, %v6433
      %v6439 = vrot.slane %v6438, 4
      %v6441 = vshll.u32 %v6224, 16
      %v6443 = vrot.slane %v6441, 5
      %v6444 = vsel %vm2213, %v6439, %v6443
      %v6446 = vshrl.u32 %v6225, 16
      %v6448 = vrot.slane %v6446, 4
      %v6449 = vshll.u32 %v6225, 16
      %v6451 = vrot.slane %v6449, 5
      %v6452 = vor.u32 %v6448, %v6451
      %v6453 = vrot.slane %v6452, 4
      %v6455 = vshll.u32 %v6226, 16
      %v6457 = vrot.slane %v6455, 5
      %v6458 = vsel %vm2213, %v6453, %v6457
      %v6459 = vshrl.u32 %v6226, 16
      %v6461 = vrot.slane %v6459, 4
      %v6462 = vor.u32 %v6461, %v6457
      %v6463 = vrot.slane %v6462, 4
      %v6465 = vshll.u32 %v6227, 16
      %v6467 = vrot.slane %v6465, 5
      %v6468 = vsel %vm2213, %v6463, %v6467
      %v6470 = vshrl.u32 %v6228, 16
      %v6472 = vrot.slane %v6470, 4
      %v6473 = vshll.u32 %v6228, 16
      %v6475 = vrot.slane %v6473, 5
      %v6476 = vor.u32 %v6472, %v6475
      %v6477 = vrot.slane %v6476, 4
      %v6479 = vshll.u32 %v6229, 16
      %v6481 = vrot.slane %v6479, 5
      %v6482 = vsel %vm2213, %v6477, %v6481
      %v6483 = vshrl.u32 %v6229, 16
      %v6485 = vrot.slane %v6483, 4
      %v6486 = vor.u32 %v6485, %v6481
      %v6487 = vrot.slane %v6486, 4
      %v6489 = vshll.u32 %v6230, 16
      %v6491 = vrot.slane %v6489, 5
      %v6492 = vsel %vm2213, %v6487, %v6491
      %v6494 = vshrl.u32 %v6231, 16
      %v6496 = vrot.slane %v6494, 4
      %v6497 = vshll.u32 %v6231, 16
      %v6499 = vrot.slane %v6497, 5
      %v6500 = vor.u32 %v6496, %v6499
      %v6501 = vrot.slane %v6500, 4
      %v6503 = vshll.u32 %v6232, 16
      %v6505 = vrot.slane %v6503, 5
      %v6506 = vsel %vm2213, %v6501, %v6505
      %v6507 = vshrl.u32 %v6232, 16
      %v6509 = vrot.slane %v6507, 4
      %v6510 = vor.u32 %v6509, %v6505
      %v6511 = vrot.slane %v6510, 4
      %v6513 = vshll.u32 %v6233, 16
      %v6515 = vrot.slane %v6513, 5
      %v6516 = vsel %vm2213, %v6511, %v6515
      %v6518 = vshrl.u32 %v6234, 16
      %v6520 = vrot.slane %v6518, 4
      %v6521 = vshll.u32 %v6234, 16
      %v6523 = vrot.slane %v6521, 5
      %v6524 = vor.u32 %v6520, %v6523
      %v6525 = vrot.slane %v6524, 4
      %v6527 = vshll.u32 %v6235, 16
      %v6529 = vrot.slane %v6527, 5
      %v6530 = vsel %vm2213, %v6525, %v6529
      %v6531 = vshrl.u32 %v6235, 16
      %v6533 = vrot.slane %v6531, 4
      %v6534 = vor.u32 %v6533, %v6529
      %v6535 = vrot.slane %v6534, 4
      %v6537 = vshll.u32 %v6236, 16
      %v6539 = vrot.slane %v6537, 5
      %v6540 = vsel %vm2213, %v6535, %v6539
      %v6542 = vshrl.u32 %v6237, 16
      %v6544 = vrot.slane %v6542, 4
      %v6545 = vshll.u32 %v6237, 16
      %v6547 = vrot.slane %v6545, 5
      %v6548 = vor.u32 %v6544, %v6547
      %v6549 = vrot.slane %v6548, 4
      %v6551 = vshll.u32 %v6238, 16
      %v6553 = vrot.slane %v6551, 5
      %v6554 = vsel %vm2213, %v6549, %v6553
      %v6555 = vshrl.u32 %v6238, 16
      %v6557 = vrot.slane %v6555, 4
      %v6558 = vor.u32 %v6557, %v6553
      %v6559 = vrot.slane %v6558, 4
      %v6561 = vshll.u32 %v6239, 16
      %v6563 = vrot.slane %v6561, 5
      %v6564 = vsel %vm2213, %v6559, %v6563
      %v6566 = vshrl.u32 %v6240, 16
      %v6568 = vrot.slane %v6566, 4
      %v6569 = vshll.u32 %v6240, 16
      %v6571 = vrot.slane %v6569, 5
      %v6572 = vor.u32 %v6568, %v6571
      %v6573 = vrot.slane %v6572, 4
      %v6575 = vshll.u32 %v6241, 16
      %v6577 = vrot.slane %v6575, 5
      %v6578 = vsel %vm2213, %v6573, %v6577
      %v6579 = vshrl.u32 %v6241, 16
      %v6581 = vrot.slane %v6579, 4
      %v6582 = vor.u32 %v6581, %v6577
      %v6583 = vrot.slane %v6582, 4
      %v6585 = vshll.u32 %v6242, 16
      %v6587 = vrot.slane %v6585, 5
      %v6588 = vsel %vm2213, %v6583, %v6587
      %v6590 = vshrl.u32 %v6243, 16
      %v6592 = vrot.slane %v6590, 4
      %v6593 = vshll.u32 %v6243, 16
      %v6595 = vrot.slane %v6593, 5
      %v6596 = vor.u32 %v6592, %v6595
      %v6597 = vrot.slane %v6596, 4
      %v6599 = vshll.u32 %v6244, 16
      %v6601 = vrot.slane %v6599, 5
      %v6602 = vsel %vm2213, %v6597, %v6601
      %v6603 = vshrl.u32 %v6244, 16
      %v6605 = vrot.slane %v6603, 4
      %v6606 = vor.u32 %v6605, %v6601
      %v6607 = vrot.slane %v6606, 4
      %v6609 = vshll.u32 %v6245, 16
      %v6611 = vrot.slane %v6609, 5
      %v6612 = vsel %vm2213, %v6607, %v6611
      %v6613 = vld [vmem:[%s8 + $0x10] sm:$0xf]
      %v6614 = vld [vmem:[%s8 + $0x14] sm:$0xf]
      %v6615 = vld [vmem:[%s8 + $0x18] sm:$0xf]
      %v6616 = vld [vmem:[%s8 + $0x1c] sm:$0xf]
      %v6617 = vunpack.c.l.b16 %v6266
      %v6618 = vunpack.c.l.b16 %v6276
      %v6619 = vunpack.c.l.b16 %v6290
      %v6620 = vunpack.c.l.b16 %v6300
      %v6621 = vunpack.c.l.b16 %v6314
      %v6622 = vunpack.c.l.b16 %v6324
      %v6623 = vunpack.c.l.b16 %v6338
      %v6624 = vunpack.c.l.b16 %v6348
      %v6625 = vunpack.c.l.b16 %v6362
      %v6626 = vunpack.c.l.b16 %v6372
      %v6627 = vunpack.c.l.b16 %v6386
      %v6628 = vunpack.c.l.b16 %v6396
      %v6629 = vunpack.c.l.b16 %v6410
      %v6630 = vunpack.c.l.b16 %v6420
      %v6631 = vunpack.c.l.b16 %v6434
      %v6632 = vunpack.c.l.b16 %v6444
      %v6633 = vunpack.c.l.b16 %v6458
      %v6634 = vunpack.c.l.b16 %v6468
      %v6635 = vunpack.c.l.b16 %v6482
      %v6636 = vunpack.c.l.b16 %v6492
      %v6637 = vunpack.c.l.b16 %v6506
      %v6638 = vunpack.c.l.b16 %v6516
      %v6639 = vunpack.c.l.b16 %v6530
      %v6640 = vunpack.c.l.b16 %v6540
      %v6641 = vunpack.c.l.b16 %v6554
      %v6642 = vunpack.c.l.b16 %v6564
      %v6643 = vunpack.c.l.b16 %v6578
      %v6644 = vunpack.c.l.b16 %v6588
      %v6645 = vunpack.c.l.b16 %v6602
      %v6646 = vunpack.c.l.b16 %v6612
      %v6647 = vpack.c.b16 %v6618, %v6617
      %v6648 = vpack.c.b16 %v6620, %v6619
      %v6649 = vpack.c.b16 %v6622, %v6621
      %v6650 = vpack.c.b16 %v6624, %v6623
      %v6651 = vpack.c.b16 %v6626, %v6625
      %v6652 = vpack.c.b16 %v6628, %v6627
      %v6653 = vpack.c.b16 %v6630, %v6629
      %v6654 = vpack.c.b16 %v6632, %v6631
      %v6655 = vpack.c.b16 %v6634, %v6633
      %v6656 = vpack.c.b16 %v6636, %v6635
      %v6657 = vpack.c.b16 %v6638, %v6637
      %v6658 = vpack.c.b16 %v6640, %v6639
      %v6659 = vpack.c.b16 %v6642, %v6641
      %v6660 = vpack.c.b16 %v6644, %v6643
      %v6661 = vpack.c.b16 %v6646, %v6645
      %v6666 = vunpack.c.l.b16 %v6613
      %v6667 = vunpack.c.l.b16 %v6614
      %v6668 = vunpack.c.l.b16 %v6615
      %v6669 = vunpack.c.l.b16 %v6616
      %v6670 = vpack.c.b16 %v6667, %v6666
      %v6671 = vpack.c.b16 %v6669, %v6668
      %v6675 = vsel %vm1846, %v6647, 0
      %v6678 = vsel %vm1846, %v6648, 0
      %v6681 = vsel %vm1846, %v6649, 0
      %v6684 = vsel %vm1846, %v6650, 0
      %v6687 = vsel %vm1846, %v6651, 0
      %v6690 = vsel %vm1846, %v6652, 0
      %v6693 = vsel %vm1846, %v6653, 0
      %v6696 = vsel %vm1846, %v6654, 0
      %v6699 = vsel %vm1846, %v6655, 0
      %v6702 = vsel %vm1846, %v6656, 0
      %v6705 = vsel %vm1846, %v6657, 0
      %v6708 = vsel %vm1846, %v6658, 0
      %v6711 = vsel %vm1846, %v6659, 0
      %v6714 = vsel %vm1846, %v6660, 0
      %v6717 = vsel %vm1846, %v6661, 0
      %6719 = vmatpush.bf16.msra.mxu0 0
      %6720 = vmatpush.bf16.msra.mxu0 0
      %6721 = vmatpush.bf16.msra.mxu0 0
      %6722 = vmatpush.bf16.msra.mxu0 0
      %6723 = vmatpush.bf16.msra.mxu0 0
      %6724 = vmatpush.bf16.msra.mxu0 0
      %6725 = vmatpush.bf16.msra.mxu0 %v6671
      %6726 = vmatpush.bf16.msra.mxu0 %v6670
      %6727 = vmatmul.bf16.gmra.mxu0 %v4487
      %v6728 = vpop.f32.mrf.mxu0
      %v6729 = vadd.f32 0.0, %v6728
      %v6730 = vpop.f32.mrf.mxu0
      %v6731 = vadd.f32 0.0, %v6730
      %6732 = vmatmul.bf16.gmra.mxu0 %v6675
      %v6733 = vpop.f32.mrf.mxu0
      %v6734 = vadd.f32 0.0, %v6733
      %v6735 = vpop.f32.mrf.mxu0
      %v6736 = vadd.f32 0.0, %v6735
      %6737 = vmatmul.bf16.gmra.mxu0 %v6678
      %v6738 = vpop.f32.mrf.mxu0
      %v6739 = vadd.f32 0.0, %v6738
      %v6740 = vpop.f32.mrf.mxu0
      %v6741 = vadd.f32 0.0, %v6740
      %6742 = vmatmul.bf16.gmra.mxu0 %v6681
      %v6743 = vpop.f32.mrf.mxu0
      %v6744 = vadd.f32 0.0, %v6743
      %v6745 = vpop.f32.mrf.mxu0
      %v6746 = vadd.f32 0.0, %v6745
      %6747 = vmatmul.bf16.gmra.mxu0 %v6684
      %v6748 = vpop.f32.mrf.mxu0
      %v6749 = vadd.f32 0.0, %v6748
      %v6750 = vpop.f32.mrf.mxu0
      %v6751 = vadd.f32 0.0, %v6750
      %6752 = vmatmul.bf16.gmra.mxu0 %v6687
      %v6753 = vpop.f32.mrf.mxu0
      %v6754 = vadd.f32 0.0, %v6753
      %v6755 = vpop.f32.mrf.mxu0
      %v6756 = vadd.f32 0.0, %v6755
      %6757 = vmatmul.bf16.gmra.mxu0 %v6690
      %v6758 = vpop.f32.mrf.mxu0
      %v6759 = vadd.f32 0.0, %v6758
      %v6760 = vpop.f32.mrf.mxu0
      %v6761 = vadd.f32 0.0, %v6760
      %6762 = vmatmul.bf16.gmra.mxu0 %v6693
      %v6763 = vpop.f32.mrf.mxu0
      %v6764 = vadd.f32 0.0, %v6763
      %v6765 = vpop.f32.mrf.mxu0
      %v6766 = vadd.f32 0.0, %v6765
      %6767 = vmatmul.bf16.gmra.mxu0 %v6696
      %v6768 = vpop.f32.mrf.mxu0
      %v6769 = vadd.f32 0.0, %v6768
      %v6770 = vpop.f32.mrf.mxu0
      %v6771 = vadd.f32 0.0, %v6770
      %6772 = vmatmul.bf16.gmra.mxu0 %v6699
      %v6773 = vpop.f32.mrf.mxu0
      %v6774 = vadd.f32 0.0, %v6773
      %v6775 = vpop.f32.mrf.mxu0
      %v6776 = vadd.f32 0.0, %v6775
      %6777 = vmatmul.bf16.gmra.mxu0 %v6702
      %v6778 = vpop.f32.mrf.mxu0
      %v6779 = vadd.f32 0.0, %v6778
      %v6780 = vpop.f32.mrf.mxu0
      %v6781 = vadd.f32 0.0, %v6780
      %6782 = vmatmul.bf16.gmra.mxu0 %v6705
      %v6783 = vpop.f32.mrf.mxu0
      %v6784 = vadd.f32 0.0, %v6783
      %v6785 = vpop.f32.mrf.mxu0
      %v6786 = vadd.f32 0.0, %v6785
      %6787 = vmatmul.bf16.gmra.mxu0 %v6708
      %v6788 = vpop.f32.mrf.mxu0
      %v6789 = vadd.f32 0.0, %v6788
      %v6790 = vpop.f32.mrf.mxu0
      %v6791 = vadd.f32 0.0, %v6790
      %6792 = vmatmul.bf16.gmra.mxu0 %v6711
      %v6793 = vpop.f32.mrf.mxu0
      %v6794 = vadd.f32 0.0, %v6793
      %v6795 = vpop.f32.mrf.mxu0
      %v6796 = vadd.f32 0.0, %v6795
      %6797 = vmatmul.bf16.gmra.mxu0 %v6714
      %v6798 = vpop.f32.mrf.mxu0
      %v6799 = vadd.f32 0.0, %v6798
      %v6800 = vpop.f32.mrf.mxu0
      %v6801 = vadd.f32 0.0, %v6800
      %6802 = vmatmul.bf16.gmra.mxu0 %v6717
      %v6803 = vpop.f32.mrf.mxu0
      %v6804 = vadd.f32 0.0, %v6803
      %v6805 = vpop.f32.mrf.mxu0
      %v6806 = vadd.f32 0.0, %v6805
      %6807 = vdwg.mxu0
      %v6838 = vunpack.c.l.b16 %v6201
      %v6839 = vunpack.c.l.b16 %v6202
      %v6840 = vunpack.c.l.b16 %v6204
      %v6841 = vunpack.c.l.b16 %v6205
      %v6842 = vunpack.c.l.b16 %v6207
      %v6843 = vunpack.c.l.b16 %v6208
      %v6844 = vunpack.c.l.b16 %v6210
      %v6845 = vunpack.c.l.b16 %v6211
      %v6846 = vunpack.c.l.b16 %v6213
      %v6847 = vunpack.c.l.b16 %v6214
      %v6848 = vunpack.c.l.b16 %v6216
      %v6849 = vunpack.c.l.b16 %v6217
      %v6850 = vunpack.c.l.b16 %v6219
      %v6851 = vunpack.c.l.b16 %v6220
      %v6852 = vunpack.c.l.b16 %v6222
      %v6853 = vunpack.c.l.b16 %v6223
      %v6854 = vunpack.c.l.b16 %v6225
      %v6855 = vunpack.c.l.b16 %v6226
      %v6856 = vunpack.c.l.b16 %v6228
      %v6857 = vunpack.c.l.b16 %v6229
      %v6858 = vunpack.c.l.b16 %v6231
      %v6859 = vunpack.c.l.b16 %v6232
      %v6860 = vunpack.c.l.b16 %v6234
      %v6861 = vunpack.c.l.b16 %v6235
      %v6862 = vunpack.c.l.b16 %v6237
      %v6863 = vunpack.c.l.b16 %v6238
      %v6864 = vunpack.c.l.b16 %v6240
      %v6865 = vunpack.c.l.b16 %v6241
      %v6866 = vunpack.c.l.b16 %v6243
      %v6867 = vunpack.c.l.b16 %v6244
      %v6868 = vpack.c.b16 %v6839, %v6838
      %v6869 = vpack.c.b16 %v6841, %v6840
      %v6870 = vpack.c.b16 %v6843, %v6842
      %v6871 = vpack.c.b16 %v6845, %v6844
      %v6872 = vpack.c.b16 %v6847, %v6846
      %v6873 = vpack.c.b16 %v6849, %v6848
      %v6874 = vpack.c.b16 %v6851, %v6850
      %v6875 = vpack.c.b16 %v6853, %v6852
      %v6876 = vpack.c.b16 %v6855, %v6854
      %v6877 = vpack.c.b16 %v6857, %v6856
      %v6878 = vpack.c.b16 %v6859, %v6858
      %v6879 = vpack.c.b16 %v6861, %v6860
      %v6880 = vpack.c.b16 %v6863, %v6862
      %v6881 = vpack.c.b16 %v6865, %v6864
      %v6882 = vpack.c.b16 %v6867, %v6866
      %v6887 = vunpack.c.l.b16 %v6249
      %v6888 = vunpack.c.l.b16 %v6250
      %v6889 = vunpack.c.l.b16 %v6251
      %v6890 = vunpack.c.l.b16 %v6252
      %v6891 = vpack.c.b16 %v6888, %v6887
      %v6892 = vpack.c.b16 %v6890, %v6889
      %v6896 = vsel %vm1846, %v6868, 0
      %v6899 = vsel %vm1846, %v6869, 0
      %v6902 = vsel %vm1846, %v6870, 0
      %v6905 = vsel %vm1846, %v6871, 0
      %v6908 = vsel %vm1846, %v6872, 0
      %v6911 = vsel %vm1846, %v6873, 0
      %v6914 = vsel %vm1846, %v6874, 0
      %v6917 = vsel %vm1846, %v6875, 0
      %v6920 = vsel %vm1846, %v6876, 0
      %v6923 = vsel %vm1846, %v6877, 0
      %v6926 = vsel %vm1846, %v6878, 0
      %v6929 = vsel %vm1846, %v6879, 0
      %v6932 = vsel %vm1846, %v6880, 0
      %v6935 = vsel %vm1846, %v6881, 0
      %v6938 = vsel %vm1846, %v6882, 0
      %6940 = vmatpush.bf16.msra.mxu0 0
      %6941 = vmatpush.bf16.msra.mxu0 0
      %6942 = vmatpush.bf16.msra.mxu0 0
      %6943 = vmatpush.bf16.msra.mxu0 0
      %6944 = vmatpush.bf16.msra.mxu0 0
      %6945 = vmatpush.bf16.msra.mxu0 0
      %6946 = vmatpush.bf16.msra.mxu0 %v6892
      %6947 = vmatpush.bf16.msra.mxu0 %v6891
      %6948 = vmatmul.bf16.gmra.mxu0 %v4712
      %v6949 = vpop.f32.mrf.mxu0
      %v6950 = vadd.f32 %v6729, %v6949
      %v6951 = vpop.f32.mrf.mxu0
      %v6952 = vadd.f32 %v6731, %v6951
      %6953 = vmatmul.bf16.gmra.mxu0 %v6896
      %v6954 = vpop.f32.mrf.mxu0
      %v6955 = vadd.f32 %v6734, %v6954
      %v6956 = vpop.f32.mrf.mxu0
      %v6957 = vadd.f32 %v6736, %v6956
      %6958 = vmatmul.bf16.gmra.mxu0 %v6899
      %v6959 = vpop.f32.mrf.mxu0
      %v6960 = vadd.f32 %v6739, %v6959
      %v6961 = vpop.f32.mrf.mxu0
      %v6962 = vadd.f32 %v6741, %v6961
      %6963 = vmatmul.bf16.gmra.mxu0 %v6902
      %v6964 = vpop.f32.mrf.mxu0
      %v6965 = vadd.f32 %v6744, %v6964
      %v6966 = vpop.f32.mrf.mxu0
      %v6967 = vadd.f32 %v6746, %v6966
      %6968 = vmatmul.bf16.gmra.mxu0 %v6905
      %v6969 = vpop.f32.mrf.mxu0
      %v6970 = vadd.f32 %v6749, %v6969
      %v6971 = vpop.f32.mrf.mxu0
      %v6972 = vadd.f32 %v6751, %v6971
      %6973 = vmatmul.bf16.gmra.mxu0 %v6908
      %v6974 = vpop.f32.mrf.mxu0
      %v6975 = vadd.f32 %v6754, %v6974
      %v6976 = vpop.f32.mrf.mxu0
      %v6977 = vadd.f32 %v6756, %v6976
      %6978 = vmatmul.bf16.gmra.mxu0 %v6911
      %v6979 = vpop.f32.mrf.mxu0
      %v6980 = vadd.f32 %v6759, %v6979
      %v6981 = vpop.f32.mrf.mxu0
      %v6982 = vadd.f32 %v6761, %v6981
      %6983 = vmatmul.bf16.gmra.mxu0 %v6914
      %v6984 = vpop.f32.mrf.mxu0
      %v6985 = vadd.f32 %v6764, %v6984
      %v6986 = vpop.f32.mrf.mxu0
      %v6987 = vadd.f32 %v6766, %v6986
      %6988 = vmatmul.bf16.gmra.mxu0 %v6917
      %v6989 = vpop.f32.mrf.mxu0
      %v6990 = vadd.f32 %v6769, %v6989
      %v6991 = vpop.f32.mrf.mxu0
      %v6992 = vadd.f32 %v6771, %v6991
      %6993 = vmatmul.bf16.gmra.mxu0 %v6920
      %v6994 = vpop.f32.mrf.mxu0
      %v6995 = vadd.f32 %v6774, %v6994
      %v6996 = vpop.f32.mrf.mxu0
      %v6997 = vadd.f32 %v6776, %v6996
      %6998 = vmatmul.bf16.gmra.mxu0 %v6923
      %v6999 = vpop.f32.mrf.mxu0
      %v7000 = vadd.f32 %v6779, %v6999
      %v7001 = vpop.f32.mrf.mxu0
      %v7002 = vadd.f32 %v6781, %v7001
      %7003 = vmatmul.bf16.gmra.mxu0 %v6926
      %v7004 = vpop.f32.mrf.mxu0
      %v7005 = vadd.f32 %v6784, %v7004
      %v7006 = vpop.f32.mrf.mxu0
      %v7007 = vadd.f32 %v6786, %v7006
      %7008 = vmatmul.bf16.gmra.mxu0 %v6929
      %v7009 = vpop.f32.mrf.mxu0
      %v7010 = vadd.f32 %v6789, %v7009
      %v7011 = vpop.f32.mrf.mxu0
      %v7012 = vadd.f32 %v6791, %v7011
      %7013 = vmatmul.bf16.gmra.mxu0 %v6932
      %v7014 = vpop.f32.mrf.mxu0
      %v7015 = vadd.f32 %v6794, %v7014
      %v7016 = vpop.f32.mrf.mxu0
      %v7017 = vadd.f32 %v6796, %v7016
      %7018 = vmatmul.bf16.gmra.mxu0 %v6935
      %v7019 = vpop.f32.mrf.mxu0
      %v7020 = vadd.f32 %v6799, %v7019
      %v7021 = vpop.f32.mrf.mxu0
      %v7022 = vadd.f32 %v6801, %v7021
      %7023 = vmatmul.bf16.gmra.mxu0 %v6938
      %v7024 = vpop.f32.mrf.mxu0
      %v7025 = vadd.f32 %v6804, %v7024
      %v7026 = vpop.f32.mrf.mxu0
      %v7027 = vadd.f32 %v6806, %v7026
      %7028 = vdwg.mxu0
      %v7044 = vrot.slane %v6201, 5
      %v7045 = vrot.slane %v7044, 4
      %v7046 = vrot.slane %v6202, 5
      %v7047 = vsel %vm2473, %v7045, %v7046
      %v7048 = vrot.slane %v7046, 4
      %v7049 = vrot.slane %v6203, 5
      %v7050 = vsel %vm2473, %v7048, %v7049
      %v7051 = vrot.slane %v6204, 5
      %v7052 = vrot.slane %v7051, 4
      %v7053 = vrot.slane %v6205, 5
      %v7054 = vsel %vm2473, %v7052, %v7053
      %v7055 = vrot.slane %v7053, 4
      %v7056 = vrot.slane %v6206, 5
      %v7057 = vsel %vm2473, %v7055, %v7056
      %v7058 = vrot.slane %v6207, 5
      %v7059 = vrot.slane %v7058, 4
      %v7060 = vrot.slane %v6208, 5
      %v7061 = vsel %vm2473, %v7059, %v7060
      %v7062 = vrot.slane %v7060, 4
      %v7063 = vrot.slane %v6209, 5
      %v7064 = vsel %vm2473, %v7062, %v7063
      %v7065 = vrot.slane %v6210, 5
      %v7066 = vrot.slane %v7065, 4
      %v7067 = vrot.slane %v6211, 5
      %v7068 = vsel %vm2473, %v7066, %v7067
      %v7069 = vrot.slane %v7067, 4
      %v7070 = vrot.slane %v6212, 5
      %v7071 = vsel %vm2473, %v7069, %v7070
      %v7072 = vrot.slane %v6213, 5
      %v7073 = vrot.slane %v7072, 4
      %v7074 = vrot.slane %v6214, 5
      %v7075 = vsel %vm2473, %v7073, %v7074
      %v7076 = vrot.slane %v7074, 4
      %v7077 = vrot.slane %v6215, 5
      %v7078 = vsel %vm2473, %v7076, %v7077
      %v7079 = vrot.slane %v6216, 5
      %v7080 = vrot.slane %v7079, 4
      %v7081 = vrot.slane %v6217, 5
      %v7082 = vsel %vm2473, %v7080, %v7081
      %v7083 = vrot.slane %v7081, 4
      %v7084 = vrot.slane %v6218, 5
      %v7085 = vsel %vm2473, %v7083, %v7084
      %v7086 = vrot.slane %v6219, 5
      %v7087 = vrot.slane %v7086, 4
      %v7088 = vrot.slane %v6220, 5
      %v7089 = vsel %vm2473, %v7087, %v7088
      %v7090 = vrot.slane %v7088, 4
      %v7091 = vrot.slane %v6221, 5
      %v7092 = vsel %vm2473, %v7090, %v7091
      %v7093 = vrot.slane %v6222, 5
      %v7094 = vrot.slane %v7093, 4
      %v7095 = vrot.slane %v6223, 5
      %v7096 = vsel %vm2473, %v7094, %v7095
      %v7097 = vrot.slane %v7095, 4
      %v7098 = vrot.slane %v6224, 5
      %v7099 = vsel %vm2473, %v7097, %v7098
      %v7100 = vrot.slane %v6225, 5
      %v7101 = vrot.slane %v7100, 4
      %v7102 = vrot.slane %v6226, 5
      %v7103 = vsel %vm2473, %v7101, %v7102
      %v7104 = vrot.slane %v7102, 4
      %v7105 = vrot.slane %v6227, 5
      %v7106 = vsel %vm2473, %v7104, %v7105
      %v7107 = vrot.slane %v6228, 5
      %v7108 = vrot.slane %v7107, 4
      %v7109 = vrot.slane %v6229, 5
      %v7110 = vsel %vm2473, %v7108, %v7109
      %v7111 = vrot.slane %v7109, 4
      %v7112 = vrot.slane %v6230, 5
      %v7113 = vsel %vm2473, %v7111, %v7112
      %v7114 = vrot.slane %v6231, 5
      %v7115 = vrot.slane %v7114, 4
      %v7116 = vrot.slane %v6232, 5
      %v7117 = vsel %vm2473, %v7115, %v7116
      %v7118 = vrot.slane %v7116, 4
      %v7119 = vrot.slane %v6233, 5
      %v7120 = vsel %vm2473, %v7118, %v7119
      %v7121 = vrot.slane %v6234, 5
      %v7122 = vrot.slane %v7121, 4
      %v7123 = vrot.slane %v6235, 5
      %v7124 = vsel %vm2473, %v7122, %v7123
      %v7125 = vrot.slane %v7123, 4
      %v7126 = vrot.slane %v6236, 5
      %v7127 = vsel %vm2473, %v7125, %v7126
      %v7128 = vrot.slane %v6237, 5
      %v7129 = vrot.slane %v7128, 4
      %v7130 = vrot.slane %v6238, 5
      %v7131 = vsel %vm2473, %v7129, %v7130
      %v7132 = vrot.slane %v7130, 4
      %v7133 = vrot.slane %v6239, 5
      %v7134 = vsel %vm2473, %v7132, %v7133
      %v7135 = vrot.slane %v6240, 5
      %v7136 = vrot.slane %v7135, 4
      %v7137 = vrot.slane %v6241, 5
      %v7138 = vsel %vm2473, %v7136, %v7137
      %v7139 = vrot.slane %v7137, 4
      %v7140 = vrot.slane %v6242, 5
      %v7141 = vsel %vm2473, %v7139, %v7140
      %v7142 = vrot.slane %v6243, 5
      %v7143 = vrot.slane %v7142, 4
      %v7144 = vrot.slane %v6244, 5
      %v7145 = vsel %vm2473, %v7143, %v7144
      %v7146 = vrot.slane %v7144, 4
      %v7147 = vrot.slane %v6245, 5
      %v7148 = vsel %vm2473, %v7146, %v7147
      %v7149 = vld [vmem:[%s8 + $0x20] sm:$0xf]
      %v7150 = vld [vmem:[%s8 + $0x24] sm:$0xf]
      %v7151 = vld [vmem:[%s8 + $0x28] sm:$0xf]
      %v7152 = vld [vmem:[%s8 + $0x2c] sm:$0xf]
      %v7153 = vunpack.c.l.b16 %v7047
      %v7154 = vunpack.c.l.b16 %v7050
      %v7155 = vunpack.c.l.b16 %v7054
      %v7156 = vunpack.c.l.b16 %v7057
      %v7157 = vunpack.c.l.b16 %v7061
      %v7158 = vunpack.c.l.b16 %v7064
      %v7159 = vunpack.c.l.b16 %v7068
      %v7160 = vunpack.c.l.b16 %v7071
      %v7161 = vunpack.c.l.b16 %v7075
      %v7162 = vunpack.c.l.b16 %v7078
      %v7163 = vunpack.c.l.b16 %v7082
      %v7164 = vunpack.c.l.b16 %v7085
      %v7165 = vunpack.c.l.b16 %v7089
      %v7166 = vunpack.c.l.b16 %v7092
      %v7167 = vunpack.c.l.b16 %v7096
      %v7168 = vunpack.c.l.b16 %v7099
      %v7169 = vunpack.c.l.b16 %v7103
      %v7170 = vunpack.c.l.b16 %v7106
      %v7171 = vunpack.c.l.b16 %v7110
      %v7172 = vunpack.c.l.b16 %v7113
      %v7173 = vunpack.c.l.b16 %v7117
      %v7174 = vunpack.c.l.b16 %v7120
      %v7175 = vunpack.c.l.b16 %v7124
      %v7176 = vunpack.c.l.b16 %v7127
      %v7177 = vunpack.c.l.b16 %v7131
      %v7178 = vunpack.c.l.b16 %v7134
      %v7179 = vunpack.c.l.b16 %v7138
      %v7180 = vunpack.c.l.b16 %v7141
      %v7181 = vunpack.c.l.b16 %v7145
      %v7182 = vunpack.c.l.b16 %v7148
      %v7183 = vpack.c.b16 %v7154, %v7153
      %v7184 = vpack.c.b16 %v7156, %v7155
      %v7185 = vpack.c.b16 %v7158, %v7157
      %v7186 = vpack.c.b16 %v7160, %v7159
      %v7187 = vpack.c.b16 %v7162, %v7161
      %v7188 = vpack.c.b16 %v7164, %v7163
      %v7189 = vpack.c.b16 %v7166, %v7165
      %v7190 = vpack.c.b16 %v7168, %v7167
      %v7191 = vpack.c.b16 %v7170, %v7169
      %v7192 = vpack.c.b16 %v7172, %v7171
      %v7193 = vpack.c.b16 %v7174, %v7173
      %v7194 = vpack.c.b16 %v7176, %v7175
      %v7195 = vpack.c.b16 %v7178, %v7177
      %v7196 = vpack.c.b16 %v7180, %v7179
      %v7197 = vpack.c.b16 %v7182, %v7181
      %v7202 = vunpack.c.l.b16 %v7149
      %v7203 = vunpack.c.l.b16 %v7150
      %v7204 = vunpack.c.l.b16 %v7151
      %v7205 = vunpack.c.l.b16 %v7152
      %v7206 = vpack.c.b16 %v7203, %v7202
      %v7207 = vpack.c.b16 %v7205, %v7204
      %v7211 = vsel %vm1846, %v7183, 0
      %v7214 = vsel %vm1846, %v7184, 0
      %v7217 = vsel %vm1846, %v7185, 0
      %v7220 = vsel %vm1846, %v7186, 0
      %v7223 = vsel %vm1846, %v7187, 0
      %v7226 = vsel %vm1846, %v7188, 0
      %v7229 = vsel %vm1846, %v7189, 0
      %v7232 = vsel %vm1846, %v7190, 0
      %v7235 = vsel %vm1846, %v7191, 0
      %v7238 = vsel %vm1846, %v7192, 0
      %v7241 = vsel %vm1846, %v7193, 0
      %v7244 = vsel %vm1846, %v7194, 0
      %v7247 = vsel %vm1846, %v7195, 0
      %v7250 = vsel %vm1846, %v7196, 0
      %v7253 = vsel %vm1846, %v7197, 0
      %7255 = vmatpush.bf16.msra.mxu0 0
      %7256 = vmatpush.bf16.msra.mxu0 0
      %7257 = vmatpush.bf16.msra.mxu0 0
      %7258 = vmatpush.bf16.msra.mxu0 0
      %7259 = vmatpush.bf16.msra.mxu0 0
      %7260 = vmatpush.bf16.msra.mxu0 0
      %7261 = vmatpush.bf16.msra.mxu0 %v7207
      %7262 = vmatpush.bf16.msra.mxu0 %v7206
      %7263 = vmatmul.bf16.gmra.mxu0 %v5031
      %v7264 = vpop.f32.mrf.mxu0
      %v7265 = vadd.f32 0.0, %v7264
      %v7266 = vpop.f32.mrf.mxu0
      %v7267 = vadd.f32 0.0, %v7266
      %7268 = vmatmul.bf16.gmra.mxu0 %v7211
      %v7269 = vpop.f32.mrf.mxu0
      %v7270 = vadd.f32 0.0, %v7269
      %v7271 = vpop.f32.mrf.mxu0
      %v7272 = vadd.f32 0.0, %v7271
      %7273 = vmatmul.bf16.gmra.mxu0 %v7214
      %v7274 = vpop.f32.mrf.mxu0
      %v7275 = vadd.f32 0.0, %v7274
      %v7276 = vpop.f32.mrf.mxu0
      %v7277 = vadd.f32 0.0, %v7276
      %7278 = vmatmul.bf16.gmra.mxu0 %v7217
      %v7279 = vpop.f32.mrf.mxu0
      %v7280 = vadd.f32 0.0, %v7279
      %v7281 = vpop.f32.mrf.mxu0
      %v7282 = vadd.f32 0.0, %v7281
      %7283 = vmatmul.bf16.gmra.mxu0 %v7220
      %v7284 = vpop.f32.mrf.mxu0
      %v7285 = vadd.f32 0.0, %v7284
      %v7286 = vpop.f32.mrf.mxu0
      %v7287 = vadd.f32 0.0, %v7286
      %7288 = vmatmul.bf16.gmra.mxu0 %v7223
      %v7289 = vpop.f32.mrf.mxu0
      %v7290 = vadd.f32 0.0, %v7289
      %v7291 = vpop.f32.mrf.mxu0
      %v7292 = vadd.f32 0.0, %v7291
      %7293 = vmatmul.bf16.gmra.mxu0 %v7226
      %v7294 = vpop.f32.mrf.mxu0
      %v7295 = vadd.f32 0.0, %v7294
      %v7296 = vpop.f32.mrf.mxu0
      %v7297 = vadd.f32 0.0, %v7296
      %7298 = vmatmul.bf16.gmra.mxu0 %v7229
      %v7299 = vpop.f32.mrf.mxu0
      %v7300 = vadd.f32 0.0, %v7299
      %v7301 = vpop.f32.mrf.mxu0
      %v7302 = vadd.f32 0.0, %v7301
      %7303 = vmatmul.bf16.gmra.mxu0 %v7232
      %v7304 = vpop.f32.mrf.mxu0
      %v7305 = vadd.f32 0.0, %v7304
      %v7306 = vpop.f32.mrf.mxu0
      %v7307 = vadd.f32 0.0, %v7306
      %7308 = vmatmul.bf16.gmra.mxu0 %v7235
      %v7309 = vpop.f32.mrf.mxu0
      %v7310 = vadd.f32 0.0, %v7309
      %v7311 = vpop.f32.mrf.mxu0
      %v7312 = vadd.f32 0.0, %v7311
      %7313 = vmatmul.bf16.gmra.mxu0 %v7238
      %v7314 = vpop.f32.mrf.mxu0
      %v7315 = vadd.f32 0.0, %v7314
      %v7316 = vpop.f32.mrf.mxu0
      %v7317 = vadd.f32 0.0, %v7316
      %7318 = vmatmul.bf16.gmra.mxu0 %v7241
      %v7319 = vpop.f32.mrf.mxu0
      %v7320 = vadd.f32 0.0, %v7319
      %v7321 = vpop.f32.mrf.mxu0
      %v7322 = vadd.f32 0.0, %v7321
      %7323 = vmatmul.bf16.gmra.mxu0 %v7244
      %v7324 = vpop.f32.mrf.mxu0
      %v7325 = vadd.f32 0.0, %v7324
      %v7326 = vpop.f32.mrf.mxu0
      %v7327 = vadd.f32 0.0, %v7326
      %7328 = vmatmul.bf16.gmra.mxu0 %v7247
      %v7329 = vpop.f32.mrf.mxu0
      %v7330 = vadd.f32 0.0, %v7329
      %v7331 = vpop.f32.mrf.mxu0
      %v7332 = vadd.f32 0.0, %v7331
      %7333 = vmatmul.bf16.gmra.mxu0 %v7250
      %v7334 = vpop.f32.mrf.mxu0
      %v7335 = vadd.f32 0.0, %v7334
      %v7336 = vpop.f32.mrf.mxu0
      %v7337 = vadd.f32 0.0, %v7336
      %7338 = vmatmul.bf16.gmra.mxu0 %v7253
      %v7339 = vpop.f32.mrf.mxu0
      %v7340 = vadd.f32 0.0, %v7339
      %v7341 = vpop.f32.mrf.mxu0
      %v7342 = vadd.f32 0.0, %v7341
      %7343 = vdwg.mxu0
      %v7344 = vadd.f32 %v6950, %v7265
      %v7345 = vadd.f32 %v6952, %v7267
      %v7346 = vadd.f32 %v6955, %v7270
      %v7347 = vadd.f32 %v6957, %v7272
      %v7348 = vadd.f32 %v6960, %v7275
      %v7349 = vadd.f32 %v6962, %v7277
      %v7350 = vadd.f32 %v6965, %v7280
      %v7351 = vadd.f32 %v6967, %v7282
      %v7352 = vadd.f32 %v6970, %v7285
      %v7353 = vadd.f32 %v6972, %v7287
      %v7354 = vadd.f32 %v6975, %v7290
      %v7355 = vadd.f32 %v6977, %v7292
      %v7356 = vadd.f32 %v6980, %v7295
      %v7357 = vadd.f32 %v6982, %v7297
      %v7358 = vadd.f32 %v6985, %v7300
      %v7359 = vadd.f32 %v6987, %v7302
      %v7360 = vadd.f32 %v6990, %v7305
      %v7361 = vadd.f32 %v6992, %v7307
      %v7362 = vadd.f32 %v6995, %v7310
      %v7363 = vadd.f32 %v6997, %v7312
      %v7364 = vadd.f32 %v7000, %v7315
      %v7365 = vadd.f32 %v7002, %v7317
      %v7366 = vadd.f32 %v7005, %v7320
      %v7367 = vadd.f32 %v7007, %v7322
      %v7368 = vadd.f32 %v7010, %v7325
      %v7369 = vadd.f32 %v7012, %v7327
      %v7370 = vadd.f32 %v7015, %v7330
      %v7371 = vadd.f32 %v7017, %v7332
      %v7372 = vadd.f32 %v7020, %v7335
      %v7373 = vadd.f32 %v7022, %v7337
      %v7374 = vadd.f32 %v7025, %v7340
      %v7375 = vadd.f32 %v7027, %v7342
      %v7376 = vld [vmem:[%s8 + $0x30] sm:$0xf]
      %v7377 = vld [vmem:[%s8 + $0x34] sm:$0xf]
      %v7378 = vld [vmem:[%s8 + $0x38] sm:$0xf]
      %v7379 = vld [vmem:[%s8 + $0x3c] sm:$0xf]
      %v7382 = vunpack.c.l.b16 %v6246
      %v7383 = vunpack.c.l.b16 %v6247
      %v7384 = vpack.c.b16 %v7383, %v7382
      %v7389 = vunpack.c.l.b16 %v7376
      %v7390 = vunpack.c.l.b16 %v7377
      %v7391 = vunpack.c.l.b16 %v7378
      %v7392 = vunpack.c.l.b16 %v7379
      %v7393 = vpack.c.b16 %v7390, %v7389
      %v7394 = vpack.c.b16 %v7392, %v7391
      %v7398 = vsel %vm1846, %v7384, 0
      %7400 = vmatpush.bf16.msra.mxu0 0
      %7401 = vmatpush.bf16.msra.mxu0 0
      %7402 = vmatpush.bf16.msra.mxu0 0
      %7403 = vmatpush.bf16.msra.mxu0 0
      %7404 = vmatpush.bf16.msra.mxu0 0
      %7405 = vmatpush.bf16.msra.mxu0 0
      %7406 = vmatpush.bf16.msra.mxu0 %v7394
      %7407 = vmatpush.bf16.msra.mxu0 %v7393
      %7408 = vmatmul.bf16.gmra.mxu0 %v6896
      %v7409 = vpop.f32.mrf.mxu0
      %v7410 = vadd.f32 0.0, %v7409
      %v7411 = vpop.f32.mrf.mxu0
      %v7412 = vadd.f32 0.0, %v7411
      %7413 = vmatmul.bf16.gmra.mxu0 %v6899
      %v7414 = vpop.f32.mrf.mxu0
      %v7415 = vadd.f32 0.0, %v7414
      %v7416 = vpop.f32.mrf.mxu0
      %v7417 = vadd.f32 0.0, %v7416
      %7418 = vmatmul.bf16.gmra.mxu0 %v6902
      %v7419 = vpop.f32.mrf.mxu0
      %v7420 = vadd.f32 0.0, %v7419
      %v7421 = vpop.f32.mrf.mxu0
      %v7422 = vadd.f32 0.0, %v7421
      %7423 = vmatmul.bf16.gmra.mxu0 %v6905
      %v7424 = vpop.f32.mrf.mxu0
      %v7425 = vadd.f32 0.0, %v7424
      %v7426 = vpop.f32.mrf.mxu0
      %v7427 = vadd.f32 0.0, %v7426
      %7428 = vmatmul.bf16.gmra.mxu0 %v6908
      %v7429 = vpop.f32.mrf.mxu0
      %v7430 = vadd.f32 0.0, %v7429
      %v7431 = vpop.f32.mrf.mxu0
      %v7432 = vadd.f32 0.0, %v7431
      %7433 = vmatmul.bf16.gmra.mxu0 %v6911
      %v7434 = vpop.f32.mrf.mxu0
      %v7435 = vadd.f32 0.0, %v7434
      %v7436 = vpop.f32.mrf.mxu0
      %v7437 = vadd.f32 0.0, %v7436
      %7438 = vmatmul.bf16.gmra.mxu0 %v6914
      %v7439 = vpop.f32.mrf.mxu0
      %v7440 = vadd.f32 0.0, %v7439
      %v7441 = vpop.f32.mrf.mxu0
      %v7442 = vadd.f32 0.0, %v7441
      %7443 = vmatmul.bf16.gmra.mxu0 %v6917
      %v7444 = vpop.f32.mrf.mxu0
      %v7445 = vadd.f32 0.0, %v7444
      %v7446 = vpop.f32.mrf.mxu0
      %v7447 = vadd.f32 0.0, %v7446
      %7448 = vmatmul.bf16.gmra.mxu0 %v6920
      %v7449 = vpop.f32.mrf.mxu0
      %v7450 = vadd.f32 0.0, %v7449
      %v7451 = vpop.f32.mrf.mxu0
      %v7452 = vadd.f32 0.0, %v7451
      %7453 = vmatmul.bf16.gmra.mxu0 %v6923
      %v7454 = vpop.f32.mrf.mxu0
      %v7455 = vadd.f32 0.0, %v7454
      %v7456 = vpop.f32.mrf.mxu0
      %v7457 = vadd.f32 0.0, %v7456
      %7458 = vmatmul.bf16.gmra.mxu0 %v6926
      %v7459 = vpop.f32.mrf.mxu0
      %v7460 = vadd.f32 0.0, %v7459
      %v7461 = vpop.f32.mrf.mxu0
      %v7462 = vadd.f32 0.0, %v7461
      %7463 = vmatmul.bf16.gmra.mxu0 %v6929
      %v7464 = vpop.f32.mrf.mxu0
      %v7465 = vadd.f32 0.0, %v7464
      %v7466 = vpop.f32.mrf.mxu0
      %v7467 = vadd.f32 0.0, %v7466
      %7468 = vmatmul.bf16.gmra.mxu0 %v6932
      %v7469 = vpop.f32.mrf.mxu0
      %v7470 = vadd.f32 0.0, %v7469
      %v7471 = vpop.f32.mrf.mxu0
      %v7472 = vadd.f32 0.0, %v7471
      %7473 = vmatmul.bf16.gmra.mxu0 %v6935
      %v7474 = vpop.f32.mrf.mxu0
      %v7475 = vadd.f32 0.0, %v7474
      %v7476 = vpop.f32.mrf.mxu0
      %v7477 = vadd.f32 0.0, %v7476
      %7478 = vmatmul.bf16.gmra.mxu0 %v6938
      %v7479 = vpop.f32.mrf.mxu0
      %v7480 = vadd.f32 0.0, %v7479
      %v7481 = vpop.f32.mrf.mxu0
      %v7482 = vadd.f32 0.0, %v7481
      %7483 = vmatmul.bf16.gmra.mxu0 %v7398
      %v7484 = vpop.f32.mrf.mxu0
      %v7485 = vadd.f32 0.0, %v7484
      %v7486 = vpop.f32.mrf.mxu0
      %v7487 = vadd.f32 0.0, %v7486
      %7488 = vdwg.mxu0
      %v7489 = vadd.f32 %v7344, %v7410
      %v7490 = vadd.f32 %v7345, %v7412
      %v7491 = vadd.f32 %v7346, %v7415
      %v7492 = vadd.f32 %v7347, %v7417
      %v7493 = vadd.f32 %v7348, %v7420
      %v7494 = vadd.f32 %v7349, %v7422
      %v7495 = vadd.f32 %v7350, %v7425
      %v7496 = vadd.f32 %v7351, %v7427
      %v7497 = vadd.f32 %v7352, %v7430
      %v7498 = vadd.f32 %v7353, %v7432
      %v7499 = vadd.f32 %v7354, %v7435
      %v7500 = vadd.f32 %v7355, %v7437
      %v7501 = vadd.f32 %v7356, %v7440
      %v7502 = vadd.f32 %v7357, %v7442
      %v7503 = vadd.f32 %v7358, %v7445
      %v7504 = vadd.f32 %v7359, %v7447
      %v7505 = vadd.f32 %v7360, %v7450
      %v7506 = vadd.f32 %v7361, %v7452
      %v7507 = vadd.f32 %v7362, %v7455
      %v7508 = vadd.f32 %v7363, %v7457
      %v7509 = vadd.f32 %v7364, %v7460
      %v7510 = vadd.f32 %v7365, %v7462
      %v7511 = vadd.f32 %v7366, %v7465
      %v7512 = vadd.f32 %v7367, %v7467
      %v7513 = vadd.f32 %v7368, %v7470
      %v7514 = vadd.f32 %v7369, %v7472
      %v7515 = vadd.f32 %v7370, %v7475
      %v7516 = vadd.f32 %v7371, %v7477
      %v7517 = vadd.f32 %v7372, %v7480
      %v7518 = vadd.f32 %v7373, %v7482
      %v7519 = vadd.f32 %v7374, %v7485
      %v7520 = vadd.f32 %v7375, %v7487
      %v7522 = vshrl.u32 %v6246, 16
      %v7524 = vrot.slane %v7522, 4
      %v7525 = vshll.u32 %v6246, 16
      %v7527 = vrot.slane %v7525, 5
      %v7528 = vor.u32 %v7524, %v7527
      %v7529 = vrot.slane %v7528, 4
      %v7531 = vshll.u32 %v6247, 16
      %v7533 = vrot.slane %v7531, 5
      %v7534 = vsel %vm2213, %v7529, %v7533
      %v7535 = vshrl.u32 %v6247, 16
      %v7537 = vrot.slane %v7535, 4
      %v7538 = vor.u32 %v7537, %v7533
      %v7539 = vrot.slane %v7538, 4
      %v7541 = vshll.u32 %v6248, 16
      %v7543 = vrot.slane %v7541, 5
      %v7544 = vsel %vm2213, %v7539, %v7543
      %v7545 = vld [vmem:[%s8 + $0x40] sm:$0xf]
      %v7546 = vld [vmem:[%s8 + $0x44] sm:$0xf]
      %v7547 = vld [vmem:[%s8 + $0x48] sm:$0xf]
      %v7548 = vld [vmem:[%s8 + $0x4c] sm:$0xf]
      %v7549 = vunpack.c.l.b16 %v7534
      %v7550 = vunpack.c.l.b16 %v7544
      %v7551 = vpack.c.b16 %v7550, %v7549
      %v7556 = vunpack.c.l.b16 %v7545
      %v7557 = vunpack.c.l.b16 %v7546
      %v7558 = vunpack.c.l.b16 %v7547
      %v7559 = vunpack.c.l.b16 %v7548
      %v7560 = vpack.c.b16 %v7557, %v7556
      %v7561 = vpack.c.b16 %v7559, %v7558
      %v7565 = vsel %vm1846, %v7551, 0
      %7567 = vmatpush.bf16.msra.mxu0 0
      %7568 = vmatpush.bf16.msra.mxu0 0
      %7569 = vmatpush.bf16.msra.mxu0 0
      %7570 = vmatpush.bf16.msra.mxu0 0
      %7571 = vmatpush.bf16.msra.mxu0 0
      %7572 = vmatpush.bf16.msra.mxu0 0
      %7573 = vmatpush.bf16.msra.mxu0 %v7561
      %7574 = vmatpush.bf16.msra.mxu0 %v7560
      %7575 = vmatmul.bf16.gmra.mxu0 %v6675
      %v7576 = vpop.f32.mrf.mxu0
      %v7577 = vadd.f32 0.0, %v7576
      %v7578 = vpop.f32.mrf.mxu0
      %v7579 = vadd.f32 0.0, %v7578
      %7580 = vmatmul.bf16.gmra.mxu0 %v6678
      %v7581 = vpop.f32.mrf.mxu0
      %v7582 = vadd.f32 0.0, %v7581
      %v7583 = vpop.f32.mrf.mxu0
      %v7584 = vadd.f32 0.0, %v7583
      %7585 = vmatmul.bf16.gmra.mxu0 %v6681
      %v7586 = vpop.f32.mrf.mxu0
      %v7587 = vadd.f32 0.0, %v7586
      %v7588 = vpop.f32.mrf.mxu0
      %v7589 = vadd.f32 0.0, %v7588
      %7590 = vmatmul.bf16.gmra.mxu0 %v6684
      %v7591 = vpop.f32.mrf.mxu0
      %v7592 = vadd.f32 0.0, %v7591
      %v7593 = vpop.f32.mrf.mxu0
      %v7594 = vadd.f32 0.0, %v7593
      %7595 = vmatmul.bf16.gmra.mxu0 %v6687
      %v7596 = vpop.f32.mrf.mxu0
      %v7597 = vadd.f32 0.0, %v7596
      %v7598 = vpop.f32.mrf.mxu0
      %v7599 = vadd.f32 0.0, %v7598
      %7600 = vmatmul.bf16.gmra.mxu0 %v6690
      %v7601 = vpop.f32.mrf.mxu0
      %v7602 = vadd.f32 0.0, %v7601
      %v7603 = vpop.f32.mrf.mxu0
      %v7604 = vadd.f32 0.0, %v7603
      %7605 = vmatmul.bf16.gmra.mxu0 %v6693
      %v7606 = vpop.f32.mrf.mxu0
      %v7607 = vadd.f32 0.0, %v7606
      %v7608 = vpop.f32.mrf.mxu0
      %v7609 = vadd.f32 0.0, %v7608
      %7610 = vmatmul.bf16.gmra.mxu0 %v6696
      %v7611 = vpop.f32.mrf.mxu0
      %v7612 = vadd.f32 0.0, %v7611
      %v7613 = vpop.f32.mrf.mxu0
      %v7614 = vadd.f32 0.0, %v7613
      %7615 = vmatmul.bf16.gmra.mxu0 %v6699
      %v7616 = vpop.f32.mrf.mxu0
      %v7617 = vadd.f32 0.0, %v7616
      %v7618 = vpop.f32.mrf.mxu0
      %v7619 = vadd.f32 0.0, %v7618
      %7620 = vmatmul.bf16.gmra.mxu0 %v6702
      %v7621 = vpop.f32.mrf.mxu0
      %v7622 = vadd.f32 0.0, %v7621
      %v7623 = vpop.f32.mrf.mxu0
      %v7624 = vadd.f32 0.0, %v7623
      %7625 = vmatmul.bf16.gmra.mxu0 %v6705
      %v7626 = vpop.f32.mrf.mxu0
      %v7627 = vadd.f32 0.0, %v7626
      %v7628 = vpop.f32.mrf.mxu0
      %v7629 = vadd.f32 0.0, %v7628
      %7630 = vmatmul.bf16.gmra.mxu0 %v6708
      %v7631 = vpop.f32.mrf.mxu0
      %v7632 = vadd.f32 0.0, %v7631
      %v7633 = vpop.f32.mrf.mxu0
      %v7634 = vadd.f32 0.0, %v7633
      %7635 = vmatmul.bf16.gmra.mxu0 %v6711
      %v7636 = vpop.f32.mrf.mxu0
      %v7637 = vadd.f32 0.0, %v7636
      %v7638 = vpop.f32.mrf.mxu0
      %v7639 = vadd.f32 0.0, %v7638
      %7640 = vmatmul.bf16.gmra.mxu0 %v6714
      %v7641 = vpop.f32.mrf.mxu0
      %v7642 = vadd.f32 0.0, %v7641
      %v7643 = vpop.f32.mrf.mxu0
      %v7644 = vadd.f32 0.0, %v7643
      %7645 = vmatmul.bf16.gmra.mxu0 %v6717
      %v7646 = vpop.f32.mrf.mxu0
      %v7647 = vadd.f32 0.0, %v7646
      %v7648 = vpop.f32.mrf.mxu0
      %v7649 = vadd.f32 0.0, %v7648
      %7650 = vmatmul.bf16.gmra.mxu0 %v7565
      %v7651 = vpop.f32.mrf.mxu0
      %v7652 = vadd.f32 0.0, %v7651
      %v7653 = vpop.f32.mrf.mxu0
      %v7654 = vadd.f32 0.0, %v7653
      %7655 = vdwg.mxu0
      %v7656 = vadd.f32 %v7489, %v7577
      %v7657 = vadd.f32 %v7490, %v7579
      %v7658 = vadd.f32 %v7491, %v7582
      %v7659 = vadd.f32 %v7492, %v7584
      %v7660 = vadd.f32 %v7493, %v7587
      %v7661 = vadd.f32 %v7494, %v7589
      %v7662 = vadd.f32 %v7495, %v7592
      %v7663 = vadd.f32 %v7496, %v7594
      %v7664 = vadd.f32 %v7497, %v7597
      %v7665 = vadd.f32 %v7498, %v7599
      %v7666 = vadd.f32 %v7499, %v7602
      %v7667 = vadd.f32 %v7500, %v7604
      %v7668 = vadd.f32 %v7501, %v7607
      %v7669 = vadd.f32 %v7502, %v7609
      %v7670 = vadd.f32 %v7503, %v7612
      %v7671 = vadd.f32 %v7504, %v7614
      %v7672 = vadd.f32 %v7505, %v7617
      %v7673 = vadd.f32 %v7506, %v7619
      %v7674 = vadd.f32 %v7507, %v7622
      %v7675 = vadd.f32 %v7508, %v7624
      %v7676 = vadd.f32 %v7509, %v7627
      %v7677 = vadd.f32 %v7510, %v7629
      %v7678 = vadd.f32 %v7511, %v7632
      %v7679 = vadd.f32 %v7512, %v7634
      %v7680 = vadd.f32 %v7513, %v7637
      %v7681 = vadd.f32 %v7514, %v7639
      %v7682 = vadd.f32 %v7515, %v7642
      %v7683 = vadd.f32 %v7516, %v7644
      %v7684 = vadd.f32 %v7517, %v7647
      %v7685 = vadd.f32 %v7518, %v7649
      %v7686 = vadd.f32 %v7519, %v7652
      %v7687 = vadd.f32 %v7520, %v7654
      %v7689 = vrot.slane %v6246, 5
      %v7690 = vrot.slane %v7689, 4
      %v7691 = vrot.slane %v6247, 5
      %v7692 = vsel %vm2473, %v7690, %v7691
      %v7693 = vrot.slane %v7691, 4
      %v7694 = vrot.slane %v6248, 5
      %v7695 = vsel %vm2473, %v7693, %v7694
      %v7696 = vld [vmem:[%s8 + $0x50] sm:$0xf]
      %v7697 = vld [vmem:[%s8 + $0x54] sm:$0xf]
      %v7698 = vld [vmem:[%s8 + $0x58] sm:$0xf]
      %v7699 = vld [vmem:[%s8 + $0x5c] sm:$0xf]
      %v7700 = vunpack.c.l.b16 %v7692
      %v7701 = vunpack.c.l.b16 %v7695
      %v7702 = vpack.c.b16 %v7701, %v7700
      %v7707 = vunpack.c.l.b16 %v7696
      %v7708 = vunpack.c.l.b16 %v7697
      %v7709 = vunpack.c.l.b16 %v7698
      %v7710 = vunpack.c.l.b16 %v7699
      %v7711 = vpack.c.b16 %v7708, %v7707
      %v7712 = vpack.c.b16 %v7710, %v7709
      %v7716 = vsel %vm1846, %v7702, 0
      %7718 = vmatpush.bf16.msra.mxu0 0
      %7719 = vmatpush.bf16.msra.mxu0 0
      %7720 = vmatpush.bf16.msra.mxu0 0
      %7721 = vmatpush.bf16.msra.mxu0 0
      %7722 = vmatpush.bf16.msra.mxu0 0
      %7723 = vmatpush.bf16.msra.mxu0 0
      %7724 = vmatpush.bf16.msra.mxu0 %v7712
      %7725 = vmatpush.bf16.msra.mxu0 %v7711
      %7726 = vmatmul.bf16.gmra.mxu0 %v7211
      %v7727 = vpop.f32.mrf.mxu0
      %v7728 = vadd.f32 0.0, %v7727
      %v7729 = vpop.f32.mrf.mxu0
      %v7730 = vadd.f32 0.0, %v7729
      %7731 = vmatmul.bf16.gmra.mxu0 %v7214
      %v7732 = vpop.f32.mrf.mxu0
      %v7733 = vadd.f32 0.0, %v7732
      %v7734 = vpop.f32.mrf.mxu0
      %v7735 = vadd.f32 0.0, %v7734
      %7736 = vmatmul.bf16.gmra.mxu0 %v7217
      %v7737 = vpop.f32.mrf.mxu0
      %v7738 = vadd.f32 0.0, %v7737
      %v7739 = vpop.f32.mrf.mxu0
      %v7740 = vadd.f32 0.0, %v7739
      %7741 = vmatmul.bf16.gmra.mxu0 %v7220
      %v7742 = vpop.f32.mrf.mxu0
      %v7743 = vadd.f32 0.0, %v7742
      %v7744 = vpop.f32.mrf.mxu0
      %v7745 = vadd.f32 0.0, %v7744
      %7746 = vmatmul.bf16.gmra.mxu0 %v7223
      %v7747 = vpop.f32.mrf.mxu0
      %v7748 = vadd.f32 0.0, %v7747
      %v7749 = vpop.f32.mrf.mxu0
      %v7750 = vadd.f32 0.0, %v7749
      %7751 = vmatmul.bf16.gmra.mxu0 %v7226
      %v7752 = vpop.f32.mrf.mxu0
      %v7753 = vadd.f32 0.0, %v7752
      %v7754 = vpop.f32.mrf.mxu0
      %v7755 = vadd.f32 0.0, %v7754
      %7756 = vmatmul.bf16.gmra.mxu0 %v7229
      %v7757 = vpop.f32.mrf.mxu0
      %v7758 = vadd.f32 0.0, %v7757
      %v7759 = vpop.f32.mrf.mxu0
      %v7760 = vadd.f32 0.0, %v7759
      %7761 = vmatmul.bf16.gmra.mxu0 %v7232
      %v7762 = vpop.f32.mrf.mxu0
      %v7763 = vadd.f32 0.0, %v7762
      %v7764 = vpop.f32.mrf.mxu0
      %v7765 = vadd.f32 0.0, %v7764
      %7766 = vmatmul.bf16.gmra.mxu0 %v7235
      %v7767 = vpop.f32.mrf.mxu0
      %v7768 = vadd.f32 0.0, %v7767
      %v7769 = vpop.f32.mrf.mxu0
      %v7770 = vadd.f32 0.0, %v7769
      %7771 = vmatmul.bf16.gmra.mxu0 %v7238
      %v7772 = vpop.f32.mrf.mxu0
      %v7773 = vadd.f32 0.0, %v7772
      %v7774 = vpop.f32.mrf.mxu0
      %v7775 = vadd.f32 0.0, %v7774
      %7776 = vmatmul.bf16.gmra.mxu0 %v7241
      %v7777 = vpop.f32.mrf.mxu0
      %v7778 = vadd.f32 0.0, %v7777
      %v7779 = vpop.f32.mrf.mxu0
      %v7780 = vadd.f32 0.0, %v7779
      %7781 = vmatmul.bf16.gmra.mxu0 %v7244
      %v7782 = vpop.f32.mrf.mxu0
      %v7783 = vadd.f32 0.0, %v7782
      %v7784 = vpop.f32.mrf.mxu0
      %v7785 = vadd.f32 0.0, %v7784
      %7786 = vmatmul.bf16.gmra.mxu0 %v7247
      %v7787 = vpop.f32.mrf.mxu0
      %v7788 = vadd.f32 0.0, %v7787
      %v7789 = vpop.f32.mrf.mxu0
      %v7790 = vadd.f32 0.0, %v7789
      %7791 = vmatmul.bf16.gmra.mxu0 %v7250
      %v7792 = vpop.f32.mrf.mxu0
      %v7793 = vadd.f32 0.0, %v7792
      %v7794 = vpop.f32.mrf.mxu0
      %v7795 = vadd.f32 0.0, %v7794
      %7796 = vmatmul.bf16.gmra.mxu0 %v7253
      %v7797 = vpop.f32.mrf.mxu0
      %v7798 = vadd.f32 0.0, %v7797
      %v7799 = vpop.f32.mrf.mxu0
      %v7800 = vadd.f32 0.0, %v7799
      %7801 = vmatmul.bf16.gmra.mxu0 %v7716
      %v7802 = vpop.f32.mrf.mxu0
      %v7803 = vadd.f32 0.0, %v7802
      %v7804 = vpop.f32.mrf.mxu0
      %v7805 = vadd.f32 0.0, %v7804
      %7806 = vdwg.mxu0
      %v7807 = vadd.f32 %v7656, %v7728
      %v7808 = vadd.f32 %v7657, %v7730
      %v7809 = vadd.f32 %v7658, %v7733
      %v7810 = vadd.f32 %v7659, %v7735
      %v7811 = vadd.f32 %v7660, %v7738
      %v7812 = vadd.f32 %v7661, %v7740
      %v7813 = vadd.f32 %v7662, %v7743
      %v7814 = vadd.f32 %v7663, %v7745
      %v7815 = vadd.f32 %v7664, %v7748
      %v7816 = vadd.f32 %v7665, %v7750
      %v7817 = vadd.f32 %v7666, %v7753
      %v7818 = vadd.f32 %v7667, %v7755
      %v7819 = vadd.f32 %v7668, %v7758
      %v7820 = vadd.f32 %v7669, %v7760
      %v7821 = vadd.f32 %v7670, %v7763
      %v7822 = vadd.f32 %v7671, %v7765
      %v7823 = vadd.f32 %v7672, %v7768
      %v7824 = vadd.f32 %v7673, %v7770
      %v7825 = vadd.f32 %v7674, %v7773
      %v7826 = vadd.f32 %v7675, %v7775
      %v7827 = vadd.f32 %v7676, %v7778
      %v7828 = vadd.f32 %v7677, %v7780
      %v7829 = vadd.f32 %v7678, %v7783
      %v7830 = vadd.f32 %v7679, %v7785
      %v7831 = vadd.f32 %v7680, %v7788
      %v7832 = vadd.f32 %v7681, %v7790
      %v7833 = vadd.f32 %v7682, %v7793
      %v7834 = vadd.f32 %v7683, %v7795
      %v7835 = vadd.f32 %v7684, %v7798
      %v7836 = vadd.f32 %v7685, %v7800
      %v7837 = vadd.f32 %v7686, %v7803
      %v7838 = vadd.f32 %v7687, %v7805
      %v7839 = vld [vmem:[%s8 + $0x60] sm:$0xf]
      %v7840 = vld [vmem:[%s8 + $0x64] sm:$0xf]
      %v7841 = vld [vmem:[%s8 + $0x68] sm:$0xf]
      %v7842 = vld [vmem:[%s8 + $0x6c] sm:$0xf]
      %v7847 = vunpack.c.l.b16 %v7839
      %v7848 = vunpack.c.l.b16 %v7840
      %v7849 = vunpack.c.l.b16 %v7841
      %v7850 = vunpack.c.l.b16 %v7842
      %v7851 = vpack.c.b16 %v7848, %v7847
      %v7852 = vpack.c.b16 %v7850, %v7849
      %7855 = vmatpush.bf16.msra.mxu0 0
      %7856 = vmatpush.bf16.msra.mxu0 0
      %7857 = vmatpush.bf16.msra.mxu0 0
      %7858 = vmatpush.bf16.msra.mxu0 0
      %7859 = vmatpush.bf16.msra.mxu0 0
      %7860 = vmatpush.bf16.msra.mxu0 0
      %7861 = vmatpush.bf16.msra.mxu0 %v7852
      %7862 = vmatpush.bf16.msra.mxu0 %v7851
      %7863 = vmatmul.bf16.gmra.mxu0 %v6899
      %v7864 = vpop.f32.mrf.mxu0
      %v7865 = vadd.f32 0.0, %v7864
      %v7866 = vpop.f32.mrf.mxu0
      %v7867 = vadd.f32 0.0, %v7866
      %7868 = vmatmul.bf16.gmra.mxu0 %v6902
      %v7869 = vpop.f32.mrf.mxu0
      %v7870 = vadd.f32 0.0, %v7869
      %v7871 = vpop.f32.mrf.mxu0
      %v7872 = vadd.f32 0.0, %v7871
      %7873 = vmatmul.bf16.gmra.mxu0 %v6905
      %v7874 = vpop.f32.mrf.mxu0
      %v7875 = vadd.f32 0.0, %v7874
      %v7876 = vpop.f32.mrf.mxu0
      %v7877 = vadd.f32 0.0, %v7876
      %7878 = vmatmul.bf16.gmra.mxu0 %v6908
      %v7879 = vpop.f32.mrf.mxu0
      %v7880 = vadd.f32 0.0, %v7879
      %v7881 = vpop.f32.mrf.mxu0
      %v7882 = vadd.f32 0.0, %v7881
      %7883 = vmatmul.bf16.gmra.mxu0 %v6911
      %v7884 = vpop.f32.mrf.mxu0
      %v7885 = vadd.f32 0.0, %v7884
      %v7886 = vpop.f32.mrf.mxu0
      %v7887 = vadd.f32 0.0, %v7886
      %7888 = vmatmul.bf16.gmra.mxu0 %v6914
      %v7889 = vpop.f32.mrf.mxu0
      %v7890 = vadd.f32 0.0, %v7889
      %v7891 = vpop.f32.mrf.mxu0
      %v7892 = vadd.f32 0.0, %v7891
      %7893 = vmatmul.bf16.gmra.mxu0 %v6917
      %v7894 = vpop.f32.mrf.mxu0
      %v7895 = vadd.f32 0.0, %v7894
      %v7896 = vpop.f32.mrf.mxu0
      %v7897 = vadd.f32 0.0, %v7896
      %7898 = vmatmul.bf16.gmra.mxu0 %v6920
      %v7899 = vpop.f32.mrf.mxu0
      %v7900 = vadd.f32 0.0, %v7899
      %v7901 = vpop.f32.mrf.mxu0
      %v7902 = vadd.f32 0.0, %v7901
      %7903 = vmatmul.bf16.gmra.mxu0 %v6923
      %v7904 = vpop.f32.mrf.mxu0
      %v7905 = vadd.f32 0.0, %v7904
      %v7906 = vpop.f32.mrf.mxu0
      %v7907 = vadd.f32 0.0, %v7906
      %7908 = vmatmul.bf16.gmra.mxu0 %v6926
      %v7909 = vpop.f32.mrf.mxu0
      %v7910 = vadd.f32 0.0, %v7909
      %v7911 = vpop.f32.mrf.mxu0
      %v7912 = vadd.f32 0.0, %v7911
      %7913 = vmatmul.bf16.gmra.mxu0 %v6929
      %v7914 = vpop.f32.mrf.mxu0
      %v7915 = vadd.f32 0.0, %v7914
      %v7916 = vpop.f32.mrf.mxu0
      %v7917 = vadd.f32 0.0, %v7916
      %7918 = vmatmul.bf16.gmra.mxu0 %v6932
      %v7919 = vpop.f32.mrf.mxu0
      %v7920 = vadd.f32 0.0, %v7919
      %v7921 = vpop.f32.mrf.mxu0
      %v7922 = vadd.f32 0.0, %v7921
      %7923 = vmatmul.bf16.gmra.mxu0 %v6935
      %v7924 = vpop.f32.mrf.mxu0
      %v7925 = vadd.f32 0.0, %v7924
      %v7926 = vpop.f32.mrf.mxu0
      %v7927 = vadd.f32 0.0, %v7926
      %7928 = vmatmul.bf16.gmra.mxu0 %v6938
      %v7929 = vpop.f32.mrf.mxu0
      %v7930 = vadd.f32 0.0, %v7929
      %v7931 = vpop.f32.mrf.mxu0
      %v7932 = vadd.f32 0.0, %v7931
      %7933 = vmatmul.bf16.gmra.mxu0 %v7398
      %v7934 = vpop.f32.mrf.mxu0
      %v7935 = vadd.f32 0.0, %v7934
      %v7936 = vpop.f32.mrf.mxu0
      %v7937 = vadd.f32 0.0, %v7936
      %7938 = vmatmul.bf16.gmra.mxu0 %v4712
      %v7939 = vpop.f32.mrf.mxu0
      %v7940 = vadd.f32 0.0, %v7939
      %v7941 = vpop.f32.mrf.mxu0
      %v7942 = vadd.f32 0.0, %v7941
      %7943 = vdwg.mxu0
      %v7944 = vadd.f32 %v7807, %v7865
      %v7945 = vadd.f32 %v7808, %v7867
      %v7946 = vadd.f32 %v7809, %v7870
      %v7947 = vadd.f32 %v7810, %v7872
      %v7948 = vadd.f32 %v7811, %v7875
      %v7949 = vadd.f32 %v7812, %v7877
      %v7950 = vadd.f32 %v7813, %v7880
      %v7951 = vadd.f32 %v7814, %v7882
      %v7952 = vadd.f32 %v7815, %v7885
      %v7953 = vadd.f32 %v7816, %v7887
      %v7954 = vadd.f32 %v7817, %v7890
      %v7955 = vadd.f32 %v7818, %v7892
      %v7956 = vadd.f32 %v7819, %v7895
      %v7957 = vadd.f32 %v7820, %v7897
      %v7958 = vadd.f32 %v7821, %v7900
      %v7959 = vadd.f32 %v7822, %v7902
      %v7960 = vadd.f32 %v7823, %v7905
      %v7961 = vadd.f32 %v7824, %v7907
      %v7962 = vadd.f32 %v7825, %v7910
      %v7963 = vadd.f32 %v7826, %v7912
      %v7964 = vadd.f32 %v7827, %v7915
      %v7965 = vadd.f32 %v7828, %v7917
      %v7966 = vadd.f32 %v7829, %v7920
      %v7967 = vadd.f32 %v7830, %v7922
      %v7968 = vadd.f32 %v7831, %v7925
      %v7969 = vadd.f32 %v7832, %v7927
      %v7970 = vadd.f32 %v7833, %v7930
      %v7971 = vadd.f32 %v7834, %v7932
      %v7972 = vadd.f32 %v7835, %v7935
      %v7973 = vadd.f32 %v7836, %v7937
      %v7974 = vadd.f32 %v7837, %v7940
      %v7975 = vadd.f32 %v7838, %v7942
      %v7976 = vld [vmem:[%s8 + $0x70] sm:$0xf]
      %v7977 = vld [vmem:[%s8 + $0x74] sm:$0xf]
      %v7978 = vld [vmem:[%s8 + $0x78] sm:$0xf]
      %v7979 = vld [vmem:[%s8 + $0x7c] sm:$0xf]
      %v7984 = vunpack.c.l.b16 %v7976
      %v7985 = vunpack.c.l.b16 %v7977
      %v7986 = vunpack.c.l.b16 %v7978
      %v7987 = vunpack.c.l.b16 %v7979
      %v7988 = vpack.c.b16 %v7985, %v7984
      %v7989 = vpack.c.b16 %v7987, %v7986
      %7992 = vmatpush.bf16.msra.mxu0 0
      %7993 = vmatpush.bf16.msra.mxu0 0
      %7994 = vmatpush.bf16.msra.mxu0 0
      %7995 = vmatpush.bf16.msra.mxu0 0
      %7996 = vmatpush.bf16.msra.mxu0 0
      %7997 = vmatpush.bf16.msra.mxu0 0
      %7998 = vmatpush.bf16.msra.mxu0 %v7989
      %7999 = vmatpush.bf16.msra.mxu0 %v7988
      %8000 = vmatmul.bf16.gmra.mxu0 %v6678
      %v8001 = vpop.f32.mrf.mxu0
      %v8002 = vadd.f32 0.0, %v8001
      %v8003 = vpop.f32.mrf.mxu0
      %v8004 = vadd.f32 0.0, %v8003
      %8005 = vmatmul.bf16.gmra.mxu0 %v6681
      %v8006 = vpop.f32.mrf.mxu0
      %v8007 = vadd.f32 0.0, %v8006
      %v8008 = vpop.f32.mrf.mxu0
      %v8009 = vadd.f32 0.0, %v8008
      %8010 = vmatmul.bf16.gmra.mxu0 %v6684
      %v8011 = vpop.f32.mrf.mxu0
      %v8012 = vadd.f32 0.0, %v8011
      %v8013 = vpop.f32.mrf.mxu0
      %v8014 = vadd.f32 0.0, %v8013
      %8015 = vmatmul.bf16.gmra.mxu0 %v6687
      %v8016 = vpop.f32.mrf.mxu0
      %v8017 = vadd.f32 0.0, %v8016
      %v8018 = vpop.f32.mrf.mxu0
      %v8019 = vadd.f32 0.0, %v8018
      %8020 = vmatmul.bf16.gmra.mxu0 %v6690
      %v8021 = vpop.f32.mrf.mxu0
      %v8022 = vadd.f32 0.0, %v8021
      %v8023 = vpop.f32.mrf.mxu0
      %v8024 = vadd.f32 0.0, %v8023
      %8025 = vmatmul.bf16.gmra.mxu0 %v6693
      %v8026 = vpop.f32.mrf.mxu0
      %v8027 = vadd.f32 0.0, %v8026
      %v8028 = vpop.f32.mrf.mxu0
      %v8029 = vadd.f32 0.0, %v8028
      %8030 = vmatmul.bf16.gmra.mxu0 %v6696
      %v8031 = vpop.f32.mrf.mxu0
      %v8032 = vadd.f32 0.0, %v8031
      %v8033 = vpop.f32.mrf.mxu0
      %v8034 = vadd.f32 0.0, %v8033
      %8035 = vmatmul.bf16.gmra.mxu0 %v6699
      %v8036 = vpop.f32.mrf.mxu0
      %v8037 = vadd.f32 0.0, %v8036
      %v8038 = vpop.f32.mrf.mxu0
      %v8039 = vadd.f32 0.0, %v8038
      %8040 = vmatmul.bf16.gmra.mxu0 %v6702
      %v8041 = vpop.f32.mrf.mxu0
      %v8042 = vadd.f32 0.0, %v8041
      %v8043 = vpop.f32.mrf.mxu0
      %v8044 = vadd.f32 0.0, %v8043
      %8045 = vmatmul.bf16.gmra.mxu0 %v6705
      %v8046 = vpop.f32.mrf.mxu0
      %v8047 = vadd.f32 0.0, %v8046
      %v8048 = vpop.f32.mrf.mxu0
      %v8049 = vadd.f32 0.0, %v8048
      %8050 = vmatmul.bf16.gmra.mxu0 %v6708
      %v8051 = vpop.f32.mrf.mxu0
      %v8052 = vadd.f32 0.0, %v8051
      %v8053 = vpop.f32.mrf.mxu0
      %v8054 = vadd.f32 0.0, %v8053
      %8055 = vmatmul.bf16.gmra.mxu0 %v6711
      %v8056 = vpop.f32.mrf.mxu0
      %v8057 = vadd.f32 0.0, %v8056
      %v8058 = vpop.f32.mrf.mxu0
      %v8059 = vadd.f32 0.0, %v8058
      %8060 = vmatmul.bf16.gmra.mxu0 %v6714
      %v8061 = vpop.f32.mrf.mxu0
      %v8062 = vadd.f32 0.0, %v8061
      %v8063 = vpop.f32.mrf.mxu0
      %v8064 = vadd.f32 0.0, %v8063
      %8065 = vmatmul.bf16.gmra.mxu0 %v6717
      %v8066 = vpop.f32.mrf.mxu0
      %v8067 = vadd.f32 0.0, %v8066
      %v8068 = vpop.f32.mrf.mxu0
      %v8069 = vadd.f32 0.0, %v8068
      %8070 = vmatmul.bf16.gmra.mxu0 %v7565
      %v8071 = vpop.f32.mrf.mxu0
      %v8072 = vadd.f32 0.0, %v8071
      %v8073 = vpop.f32.mrf.mxu0
      %v8074 = vadd.f32 0.0, %v8073
      %8075 = vmatmul.bf16.gmra.mxu0 %v4487
      %v8076 = vpop.f32.mrf.mxu0
      %v8077 = vadd.f32 0.0, %v8076
      %v8078 = vpop.f32.mrf.mxu0
      %v8079 = vadd.f32 0.0, %v8078
      %8080 = vdwg.mxu0
      %v8081 = vadd.f32 %v7944, %v8002
      %v8082 = vadd.f32 %v7945, %v8004
      %v8083 = vadd.f32 %v7946, %v8007
      %v8084 = vadd.f32 %v7947, %v8009
      %v8085 = vadd.f32 %v7948, %v8012
      %v8086 = vadd.f32 %v7949, %v8014
      %v8087 = vadd.f32 %v7950, %v8017
      %v8088 = vadd.f32 %v7951, %v8019
      %v8089 = vadd.f32 %v7952, %v8022
      %v8090 = vadd.f32 %v7953, %v8024
      %v8091 = vadd.f32 %v7954, %v8027
      %v8092 = vadd.f32 %v7955, %v8029
      %v8093 = vadd.f32 %v7956, %v8032
      %v8094 = vadd.f32 %v7957, %v8034
      %v8095 = vadd.f32 %v7958, %v8037
      %v8096 = vadd.f32 %v7959, %v8039
      %v8097 = vadd.f32 %v7960, %v8042
      %v8098 = vadd.f32 %v7961, %v8044
      %v8099 = vadd.f32 %v7962, %v8047
      %v8100 = vadd.f32 %v7963, %v8049
      %v8101 = vadd.f32 %v7964, %v8052
      %v8102 = vadd.f32 %v7965, %v8054
      %v8103 = vadd.f32 %v7966, %v8057
      %v8104 = vadd.f32 %v7967, %v8059
      %v8105 = vadd.f32 %v7968, %v8062
      %v8106 = vadd.f32 %v7969, %v8064
      %v8107 = vadd.f32 %v7970, %v8067
      %v8108 = vadd.f32 %v7971, %v8069
      %v8109 = vadd.f32 %v7972, %v8072
      %v8110 = vadd.f32 %v7973, %v8074
      %v8111 = vadd.f32 %v7974, %v8077
      %v8112 = vadd.f32 %v7975, %v8079
      %v8113 = vld [vmem:[%s8 + $0x80] sm:$0xf]
      %v8114 = vld [vmem:[%s8 + $0x84] sm:$0xf]
      %v8115 = vld [vmem:[%s8 + $0x88] sm:$0xf]
      %v8116 = vld [vmem:[%s8 + $0x8c] sm:$0xf]
      %v8121 = vunpack.c.l.b16 %v8113
      %v8122 = vunpack.c.l.b16 %v8114
      %v8123 = vunpack.c.l.b16 %v8115
      %v8124 = vunpack.c.l.b16 %v8116
      %v8125 = vpack.c.b16 %v8122, %v8121
      %v8126 = vpack.c.b16 %v8124, %v8123
      %8129 = vmatpush.bf16.msra.mxu0 0
      %8130 = vmatpush.bf16.msra.mxu0 0
      %8131 = vmatpush.bf16.msra.mxu0 0
      %8132 = vmatpush.bf16.msra.mxu0 0
      %8133 = vmatpush.bf16.msra.mxu0 0
      %8134 = vmatpush.bf16.msra.mxu0 0
      %8135 = vmatpush.bf16.msra.mxu0 %v8126
      %8136 = vmatpush.bf16.msra.mxu0 %v8125
      %8137 = vmatmul.bf16.gmra.mxu0 %v7214
      %v8138 = vpop.f32.mrf.mxu0
      %v8139 = vadd.f32 0.0, %v8138
      %v8140 = vpop.f32.mrf.mxu0
      %v8141 = vadd.f32 0.0, %v8140
      %8142 = vmatmul.bf16.gmra.mxu0 %v7217
      %v8143 = vpop.f32.mrf.mxu0
      %v8144 = vadd.f32 0.0, %v8143
      %v8145 = vpop.f32.mrf.mxu0
      %v8146 = vadd.f32 0.0, %v8145
      %8147 = vmatmul.bf16.gmra.mxu0 %v7220
      %v8148 = vpop.f32.mrf.mxu0
      %v8149 = vadd.f32 0.0, %v8148
      %v8150 = vpop.f32.mrf.mxu0
      %v8151 = vadd.f32 0.0, %v8150
      %8152 = vmatmul.bf16.gmra.mxu0 %v7223
      %v8153 = vpop.f32.mrf.mxu0
      %v8154 = vadd.f32 0.0, %v8153
      %v8155 = vpop.f32.mrf.mxu0
      %v8156 = vadd.f32 0.0, %v8155
      %8157 = vmatmul.bf16.gmra.mxu0 %v7226
      %v8158 = vpop.f32.mrf.mxu0
      %v8159 = vadd.f32 0.0, %v8158
      %v8160 = vpop.f32.mrf.mxu0
      %v8161 = vadd.f32 0.0, %v8160
      %8162 = vmatmul.bf16.gmra.mxu0 %v7229
      %v8163 = vpop.f32.mrf.mxu0
      %v8164 = vadd.f32 0.0, %v8163
      %v8165 = vpop.f32.mrf.mxu0
      %v8166 = vadd.f32 0.0, %v8165
      %8167 = vmatmul.bf16.gmra.mxu0 %v7232
      %v8168 = vpop.f32.mrf.mxu0
      %v8169 = vadd.f32 0.0, %v8168
      %v8170 = vpop.f32.mrf.mxu0
      %v8171 = vadd.f32 0.0, %v8170
      %8172 = vmatmul.bf16.gmra.mxu0 %v7235
      %v8173 = vpop.f32.mrf.mxu0
      %v8174 = vadd.f32 0.0, %v8173
      %v8175 = vpop.f32.mrf.mxu0
      %v8176 = vadd.f32 0.0, %v8175
      %8177 = vmatmul.bf16.gmra.mxu0 %v7238
      %v8178 = vpop.f32.mrf.mxu0
      %v8179 = vadd.f32 0.0, %v8178
      %v8180 = vpop.f32.mrf.mxu0
      %v8181 = vadd.f32 0.0, %v8180
      %8182 = vmatmul.bf16.gmra.mxu0 %v7241
      %v8183 = vpop.f32.mrf.mxu0
      %v8184 = vadd.f32 0.0, %v8183
      %v8185 = vpop.f32.mrf.mxu0
      %v8186 = vadd.f32 0.0, %v8185
      %8187 = vmatmul.bf16.gmra.mxu0 %v7244
      %v8188 = vpop.f32.mrf.mxu0
      %v8189 = vadd.f32 0.0, %v8188
      %v8190 = vpop.f32.mrf.mxu0
      %v8191 = vadd.f32 0.0, %v8190
      %8192 = vmatmul.bf16.gmra.mxu0 %v7247
      %v8193 = vpop.f32.mrf.mxu0
      %v8194 = vadd.f32 0.0, %v8193
      %v8195 = vpop.f32.mrf.mxu0
      %v8196 = vadd.f32 0.0, %v8195
      %8197 = vmatmul.bf16.gmra.mxu0 %v7250
      %v8198 = vpop.f32.mrf.mxu0
      %v8199 = vadd.f32 0.0, %v8198
      %v8200 = vpop.f32.mrf.mxu0
      %v8201 = vadd.f32 0.0, %v8200
      %8202 = vmatmul.bf16.gmra.mxu0 %v7253
      %v8203 = vpop.f32.mrf.mxu0
      %v8204 = vadd.f32 0.0, %v8203
      %v8205 = vpop.f32.mrf.mxu0
      %v8206 = vadd.f32 0.0, %v8205
      %8207 = vmatmul.bf16.gmra.mxu0 %v7716
      %v8208 = vpop.f32.mrf.mxu0
      %v8209 = vadd.f32 0.0, %v8208
      %v8210 = vpop.f32.mrf.mxu0
      %v8211 = vadd.f32 0.0, %v8210
      %8212 = vmatmul.bf16.gmra.mxu0 %v5031
      %v8213 = vpop.f32.mrf.mxu0
      %v8214 = vadd.f32 0.0, %v8213
      %v8215 = vpop.f32.mrf.mxu0
      %v8216 = vadd.f32 0.0, %v8215
      %8217 = vdwg.mxu0
      %v8218 = vadd.f32 %v8081, %v8139
      %v8219 = vadd.f32 %v8082, %v8141
      %v8220 = vadd.f32 %v8083, %v8144
      %v8221 = vadd.f32 %v8084, %v8146
      %v8222 = vadd.f32 %v8085, %v8149
      %v8223 = vadd.f32 %v8086, %v8151
      %v8224 = vadd.f32 %v8087, %v8154
      %v8225 = vadd.f32 %v8088, %v8156
      %v8226 = vadd.f32 %v8089, %v8159
      %v8227 = vadd.f32 %v8090, %v8161
      %v8228 = vadd.f32 %v8091, %v8164
      %v8229 = vadd.f32 %v8092, %v8166
      %v8230 = vadd.f32 %v8093, %v8169
      %v8231 = vadd.f32 %v8094, %v8171
      %v8232 = vadd.f32 %v8095, %v8174
      %v8233 = vadd.f32 %v8096, %v8176
      %v8234 = vadd.f32 %v8097, %v8179
      %v8235 = vadd.f32 %v8098, %v8181
      %v8236 = vadd.f32 %v8099, %v8184
      %v8237 = vadd.f32 %v8100, %v8186
      %v8238 = vadd.f32 %v8101, %v8189
      %v8239 = vadd.f32 %v8102, %v8191
      %v8240 = vadd.f32 %v8103, %v8194
      %v8241 = vadd.f32 %v8104, %v8196
      %v8242 = vadd.f32 %v8105, %v8199
      %v8243 = vadd.f32 %v8106, %v8201
      %v8244 = vadd.f32 %v8107, %v8204
      %v8245 = vadd.f32 %v8108, %v8206
      %v8246 = vadd.f32 %v8109, %v8209
      %v8247 = vadd.f32 %v8110, %v8211
      %v8248 = vadd.f32 %v8111, %v8214
      %v8249 = vadd.f32 %v8112, %v8216
      %v8250 = vadd.f32 %v6041, %v8218
      %v8251 = vadd.f32 %v6042, %v8219
      %v8252 = vadd.f32 %v6043, %v8220
      %v8253 = vadd.f32 %v6044, %v8221
      %v8254 = vadd.f32 %v6045, %v8222
      %v8255 = vadd.f32 %v6046, %v8223
      %v8256 = vadd.f32 %v6047, %v8224
      %v8257 = vadd.f32 %v6048, %v8225
      %v8258 = vadd.f32 %v6049, %v8226
      %v8259 = vadd.f32 %v6050, %v8227
      %v8260 = vadd.f32 %v6051, %v8228
      %v8261 = vadd.f32 %v6052, %v8229
      %v8262 = vadd.f32 %v6053, %v8230
      %v8263 = vadd.f32 %v6054, %v8231
      %v8264 = vadd.f32 %v6055, %v8232
      %v8265 = vadd.f32 %v6056, %v8233
      %v8266 = vadd.f32 %v6057, %v8234
      %v8267 = vadd.f32 %v6058, %v8235
      %v8268 = vadd.f32 %v6059, %v8236
      %v8269 = vadd.f32 %v6060, %v8237
      %v8270 = vadd.f32 %v6061, %v8238
      %v8271 = vadd.f32 %v6062, %v8239
      %v8272 = vadd.f32 %v6063, %v8240
      %v8273 = vadd.f32 %v6064, %v8241
      %v8274 = vadd.f32 %v6065, %v8242
      %v8275 = vadd.f32 %v6066, %v8243
      %v8276 = vadd.f32 %v6067, %v8244
      %v8277 = vadd.f32 %v6068, %v8245
      %v8278 = vadd.f32 %v6069, %v8246
      %v8279 = vadd.f32 %v6070, %v8247
      %v8280 = vadd.f32 %v6071, %v8248
      %v8281 = vadd.f32 %v6072, %v8249
      %v8282 = vld [vmem:[%s9] sm:$0x1]
      %v8284 = vperm.slane %v8282, 0
      %v8286 = vadd.f32 %v8250, %v8284
      %v8287 = vadd.f32 %v8251, %v8284
      %v8288 = vadd.f32 %v8252, %v8284
      %v8289 = vadd.f32 %v8253, %v8284
      %v8290 = vadd.f32 %v8254, %v8284
      %v8291 = vadd.f32 %v8255, %v8284
      %v8292 = vadd.f32 %v8256, %v8284
      %v8293 = vadd.f32 %v8257, %v8284
      %v8294 = vadd.f32 %v8258, %v8284
      %v8295 = vadd.f32 %v8259, %v8284
      %v8296 = vadd.f32 %v8260, %v8284
      %v8297 = vadd.f32 %v8261, %v8284
      %v8298 = vadd.f32 %v8262, %v8284
      %v8299 = vadd.f32 %v8263, %v8284
      %v8300 = vadd.f32 %v8264, %v8284
      %v8301 = vadd.f32 %v8265, %v8284
      %v8302 = vadd.f32 %v8266, %v8284
      %v8303 = vadd.f32 %v8267, %v8284
      %v8304 = vadd.f32 %v8268, %v8284
      %v8305 = vadd.f32 %v8269, %v8284
      %v8306 = vadd.f32 %v8270, %v8284
      %v8307 = vadd.f32 %v8271, %v8284
      %v8308 = vadd.f32 %v8272, %v8284
      %v8309 = vadd.f32 %v8273, %v8284
      %v8310 = vadd.f32 %v8274, %v8284
      %v8311 = vadd.f32 %v8275, %v8284
      %v8312 = vadd.f32 %v8276, %v8284
      %v8313 = vadd.f32 %v8277, %v8284
      %v8314 = vadd.f32 %v8278, %v8284
      %v8315 = vadd.f32 %v8279, %v8284
      %v8316 = vadd.f32 %v8280, %v8284
      %v8317 = vadd.f32 %v8281, %v8284
      %v8318 = vmax.f32 %v8286, 0.0
      %v8319 = vmax.f32 %v8287, 0.0
      %v8320 = vmax.f32 %v8288, 0.0
      %v8321 = vmax.f32 %v8289, 0.0
      %v8322 = vmax.f32 %v8290, 0.0
      %v8323 = vmax.f32 %v8291, 0.0
      %v8324 = vmax.f32 %v8292, 0.0
      %v8325 = vmax.f32 %v8293, 0.0
      %v8326 = vmax.f32 %v8294, 0.0
      %v8327 = vmax.f32 %v8295, 0.0
      %v8328 = vmax.f32 %v8296, 0.0
      %v8329 = vmax.f32 %v8297, 0.0
      %v8330 = vmax.f32 %v8298, 0.0
      %v8331 = vmax.f32 %v8299, 0.0
      %v8332 = vmax.f32 %v8300, 0.0
      %v8333 = vmax.f32 %v8301, 0.0
      %v8334 = vmax.f32 %v8302, 0.0
      %v8335 = vmax.f32 %v8303, 0.0
      %v8336 = vmax.f32 %v8304, 0.0
      %v8337 = vmax.f32 %v8305, 0.0
      %v8338 = vmax.f32 %v8306, 0.0
      %v8339 = vmax.f32 %v8307, 0.0
      %v8340 = vmax.f32 %v8308, 0.0
      %v8341 = vmax.f32 %v8309, 0.0
      %v8342 = vmax.f32 %v8310, 0.0
      %v8343 = vmax.f32 %v8311, 0.0
      %v8344 = vmax.f32 %v8312, 0.0
      %v8345 = vmax.f32 %v8313, 0.0
      %v8346 = vmax.f32 %v8314, 0.0
      %v8347 = vmax.f32 %v8315, 0.0
      %v8348 = vmax.f32 %v8316, 0.0
      %v8349 = vmax.f32 %v8317, 0.0
      %v8350 = vpack.c.bf16 %v8319, %v8318
      %v8351 = vpack.c.bf16 %v8321, %v8320
      %v8352 = vpack.c.bf16 %v8323, %v8322
      %v8353 = vpack.c.bf16 %v8325, %v8324
      %v8354 = vpack.c.bf16 %v8327, %v8326
      %v8355 = vpack.c.bf16 %v8329, %v8328
      %v8356 = vpack.c.bf16 %v8331, %v8330
      %v8357 = vpack.c.bf16 %v8333, %v8332
      %v8358 = vpack.c.bf16 %v8335, %v8334
      %v8359 = vpack.c.bf16 %v8337, %v8336
      %v8360 = vpack.c.bf16 %v8339, %v8338
      %v8361 = vpack.c.bf16 %v8341, %v8340
      %v8362 = vpack.c.bf16 %v8343, %v8342
      %v8363 = vpack.c.bf16 %v8345, %v8344
      %v8364 = vpack.c.bf16 %v8347, %v8346
      %v8365 = vpack.c.bf16 %v8349, %v8348
      %v8366 = vld [vmem:[%s10] sm:$0xf]
      %v8367 = vld [vmem:[%s10 + $0x4] sm:$0xf]
      %v8368 = vld [vmem:[%s10 + $0x8] sm:$0xf]
      %v8369 = vld [vmem:[%s10 + $0xc] sm:$0xf]
      %v8370 = vld [vmem:[%s11] sm:$0x1]
      %v8372 = vperm.slane %v8370, 0
      %v8378 = vunpack.c.l.b16 %v8366
      %v8379 = vunpack.c.l.b16 %v8367
      %v8380 = vunpack.c.l.b16 %v8368
      %v8381 = vunpack.c.l.b16 %v8369
      %v8382 = vpack.c.b16 %v8379, %v8378
      %v8383 = vpack.c.b16 %v8381, %v8380
      %v8387 = vsel %vm1846, %v8350, 0
      %v8390 = vsel %vm1846, %v8351, 0
      %v8393 = vsel %vm1846, %v8352, 0
      %v8396 = vsel %vm1846, %v8353, 0
      %v8399 = vsel %vm1846, %v8354, 0
      %v8402 = vsel %vm1846, %v8355, 0
      %v8405 = vsel %vm1846, %v8356, 0
      %v8408 = vsel %vm1846, %v8357, 0
      %v8411 = vsel %vm1846, %v8358, 0
      %v8414 = vsel %vm1846, %v8359, 0
      %v8417 = vsel %vm1846, %v8360, 0
      %v8420 = vsel %vm1846, %v8361, 0
      %v8423 = vsel %vm1846, %v8362, 0
      %v8426 = vsel %vm1846, %v8363, 0
      %v8429 = vsel %vm1846, %v8364, 0
      %v8432 = vsel %vm1846, %v8365, 0
      %8434 = vmatpush.bf16.msra.mxu0 0
      %8435 = vmatpush.bf16.msra.mxu0 0
      %8436 = vmatpush.bf16.msra.mxu0 0
      %8437 = vmatpush.bf16.msra.mxu0 0
      %8438 = vmatpush.bf16.msra.mxu0 0
      %8439 = vmatpush.bf16.msra.mxu0 0
      %8440 = vmatpush.bf16.msra.mxu0 %v8383
      %8441 = vmatpush.bf16.msra.mxu0 %v8382
      %8442 = vmatmul.bf16.gmra.mxu0 %v8387
      %v8443 = vpop.f32.mrf.mxu0
      %v8444 = vadd.f32 %v8372, %v8443
      %v8445 = vpop.f32.mrf.mxu0
      %v8446 = vadd.f32 %v8372, %v8445
      %8447 = vmatmul.bf16.gmra.mxu0 %v8390
      %v8448 = vpop.f32.mrf.mxu0
      %v8449 = vadd.f32 %v8372, %v8448
      %v8450 = vpop.f32.mrf.mxu0
      %v8451 = vadd.f32 %v8372, %v8450
      %8452 = vmatmul.bf16.gmra.mxu0 %v8393
      %v8453 = vpop.f32.mrf.mxu0
      %v8454 = vadd.f32 %v8372, %v8453
      %v8455 = vpop.f32.mrf.mxu0
      %v8456 = vadd.f32 %v8372, %v8455
      %8457 = vmatmul.bf16.gmra.mxu0 %v8396
      %v8458 = vpop.f32.mrf.mxu0
      %v8459 = vadd.f32 %v8372, %v8458
      %v8460 = vpop.f32.mrf.mxu0
      %v8461 = vadd.f32 %v8372, %v8460
      %8462 = vmatmul.bf16.gmra.mxu0 %v8399
      %v8463 = vpop.f32.mrf.mxu0
      %v8464 = vadd.f32 %v8372, %v8463
      %v8465 = vpop.f32.mrf.mxu0
      %v8466 = vadd.f32 %v8372, %v8465
      %8467 = vmatmul.bf16.gmra.mxu0 %v8402
      %v8468 = vpop.f32.mrf.mxu0
      %v8469 = vadd.f32 %v8372, %v8468
      %v8470 = vpop.f32.mrf.mxu0
      %v8471 = vadd.f32 %v8372, %v8470
      %8472 = vmatmul.bf16.gmra.mxu0 %v8405
      %v8473 = vpop.f32.mrf.mxu0
      %v8474 = vadd.f32 %v8372, %v8473
      %v8475 = vpop.f32.mrf.mxu0
      %v8476 = vadd.f32 %v8372, %v8475
      %8477 = vmatmul.bf16.gmra.mxu0 %v8408
      %v8478 = vpop.f32.mrf.mxu0
      %v8479 = vadd.f32 %v8372, %v8478
      %v8480 = vpop.f32.mrf.mxu0
      %v8481 = vadd.f32 %v8372, %v8480
      %8482 = vmatmul.bf16.gmra.mxu0 %v8411
      %v8483 = vpop.f32.mrf.mxu0
      %v8484 = vadd.f32 %v8372, %v8483
      %v8485 = vpop.f32.mrf.mxu0
      %v8486 = vadd.f32 %v8372, %v8485
      %8487 = vmatmul.bf16.gmra.mxu0 %v8414
      %v8488 = vpop.f32.mrf.mxu0
      %v8489 = vadd.f32 %v8372, %v8488
      %v8490 = vpop.f32.mrf.mxu0
      %v8491 = vadd.f32 %v8372, %v8490
      %8492 = vmatmul.bf16.gmra.mxu0 %v8417
      %v8493 = vpop.f32.mrf.mxu0
      %v8494 = vadd.f32 %v8372, %v8493
      %v8495 = vpop.f32.mrf.mxu0
      %v8496 = vadd.f32 %v8372, %v8495
      %8497 = vmatmul.bf16.gmra.mxu0 %v8420
      %v8498 = vpop.f32.mrf.mxu0
      %v8499 = vadd.f32 %v8372, %v8498
      %v8500 = vpop.f32.mrf.mxu0
      %v8501 = vadd.f32 %v8372, %v8500
      %8502 = vmatmul.bf16.gmra.mxu0 %v8423
      %v8503 = vpop.f32.mrf.mxu0
      %v8504 = vadd.f32 %v8372, %v8503
      %v8505 = vpop.f32.mrf.mxu0
      %v8506 = vadd.f32 %v8372, %v8505
      %8507 = vmatmul.bf16.gmra.mxu0 %v8426
      %v8508 = vpop.f32.mrf.mxu0
      %v8509 = vadd.f32 %v8372, %v8508
      %v8510 = vpop.f32.mrf.mxu0
      %v8511 = vadd.f32 %v8372, %v8510
      %8512 = vmatmul.bf16.gmra.mxu0 %v8429
      %v8513 = vpop.f32.mrf.mxu0
      %v8514 = vadd.f32 %v8372, %v8513
      %v8515 = vpop.f32.mrf.mxu0
      %v8516 = vadd.f32 %v8372, %v8515
      %8517 = vmatmul.bf16.gmra.mxu0 %v8432
      %v8518 = vpop.f32.mrf.mxu0
      %v8519 = vadd.f32 %v8372, %v8518
      %v8520 = vpop.f32.mrf.mxu0
      %v8521 = vadd.f32 %v8372, %v8520
      %8522 = vdwg.mxu0
      %vm8523 = vcmask 23552
      %8524 = vst.msk [vmem:[%s413] sm:$0xff] %vm8523, %v8444
      %8525 = vst.msk [vmem:[%s413 + $0x8] sm:$0xff] %vm8523, %v8446
      %8526 = vst.msk [vmem:[%s413 + $0x10] sm:$0xff] %vm8523, %v8449
      %8527 = vst.msk [vmem:[%s413 + $0x18] sm:$0xff] %vm8523, %v8451
      %8528 = vst.msk [vmem:[%s413 + $0x20] sm:$0xff] %vm8523, %v8454
      %8529 = vst.msk [vmem:[%s413 + $0x28] sm:$0xff] %vm8523, %v8456
      %8530 = vst.msk [vmem:[%s413 + $0x30] sm:$0xff] %vm8523, %v8459
      %8531 = vst.msk [vmem:[%s413 + $0x38] sm:$0xff] %vm8523, %v8461
      %8532 = vst.msk [vmem:[%s413 + $0x40] sm:$0xff] %vm8523, %v8464
      %8533 = vst.msk [vmem:[%s413 + $0x48] sm:$0xff] %vm8523, %v8466
      %8534 = vst.msk [vmem:[%s413 + $0x50] sm:$0xff] %vm8523, %v8469
      %8535 = vst.msk [vmem:[%s413 + $0x58] sm:$0xff] %vm8523, %v8471
      %8536 = vst.msk [vmem:[%s413 + $0x60] sm:$0xff] %vm8523, %v8474
      %8537 = vst.msk [vmem:[%s413 + $0x68] sm:$0xff] %vm8523, %v8476
      %8538 = vst.msk [vmem:[%s413 + $0x70] sm:$0xff] %vm8523, %v8479
      %8539 = vst.msk [vmem:[%s413 + $0x78] sm:$0xff] %vm8523, %v8481
      %8540 = vst.msk [vmem:[%s413 + $0x80] sm:$0xff] %vm8523, %v8484
      %8541 = vst.msk [vmem:[%s413 + $0x88] sm:$0xff] %vm8523, %v8486
      %8542 = vst.msk [vmem:[%s413 + $0x90] sm:$0xff] %vm8523, %v8489
      %8543 = vst.msk [vmem:[%s413 + $0x98] sm:$0xff] %vm8523, %v8491
      %8544 = vst.msk [vmem:[%s413 + $0xa0] sm:$0xff] %vm8523, %v8494
      %8545 = vst.msk [vmem:[%s413 + $0xa8] sm:$0xff] %vm8523, %v8496
      %8546 = vst.msk [vmem:[%s413 + $0xb0] sm:$0xff] %vm8523, %v8499
      %8547 = vst.msk [vmem:[%s413 + $0xb8] sm:$0xff] %vm8523, %v8501
      %8548 = vst.msk [vmem:[%s413 + $0xc0] sm:$0xff] %vm8523, %v8504
      %8549 = vst.msk [vmem:[%s413 + $0xc8] sm:$0xff] %vm8523, %v8506
      %8550 = vst.msk [vmem:[%s413 + $0xd0] sm:$0xff] %vm8523, %v8509
      %8551 = vst.msk [vmem:[%s413 + $0xd8] sm:$0xff] %vm8523, %v8511
      %8552 = vst.msk [vmem:[%s413 + $0xe0] sm:$0xff] %vm8523, %v8514
      %8553 = vst.msk [vmem:[%s413 + $0xe8] sm:$0xff] %vm8523, %v8516
      %8554 = vst.msk [vmem:[%s413 + $0xf0] sm:$0xff] %vm8523, %v8519
      %8555 = vst.msk [vmem:[%s413 + $0xf8] sm:$0xff] %vm8523, %v8521
      %p8556 = scmp.lt.s32.totalorder %s23, 1
      %s8557 = scalar_select %p8556, %s23, 1
      %s8558 = smul.addr %s8557, 32
      %s8559 = smul.addr %s8558, 8
      %s8560 = scalar_lea.vmem %s12, %s8559
      // Predicated region
      $region69: #{light_unet_forward.1} parent=67 // pred_check
        %p8561 = pneg %p298
      $region70: #{light_unet_forward.1} parent=67 // pred_check_branch
        %8563 = sbr.rel (%p8561) target = $region72
      $region71: #{light_unet_forward.1} parent=67 // pred_region
        _
      $region72: #{light_unet_forward.1} parent=67 // pred_fallthru
        _
    $region68: #{light_unet_forward.1} parent=5 // pred_fallthru
      _
    %p8564 = scmp.le.s32.totalorder 2, %s18
    // Predicated region
    $region73: #{light_unet_forward.1} parent=5 // pred_check
      %p8565 = pneg %p8564
    $region74: #{light_unet_forward.1} parent=5 // pred_check_branch
      %8567 = sbr.rel (%p8565) target = $region76
    $region75: #{light_unet_forward.1} parent=5 // pred_region
      %s8568 = ssub.s32 %s18, 2
      // Predicated region
      $region77: #{light_unet_forward.1} parent=75 // pred_check
        %p8569 = pneg %p304
      $region78: #{light_unet_forward.1} parent=75 // pred_check_branch
        %8571 = sbr.rel (%p8569) target = $region80
      $region79: #{light_unet_forward.1} parent=75 // pred_region
        %p8572 = scmp.lt.s32.totalorder %s24, 1
        %s8573 = scalar_select %p8572, %s24, 1
        %s8574 = smul.addr %s8573, 32
        %s8575 = smul.addr %s8574, 8
        %s8576 = scalar_lea.vmem %s12, %s8575
      $region80: #{light_unet_forward.1} parent=75 // pred_fallthru
        _
    $region76: #{light_unet_forward.1} parent=5 // pred_fallthru
      _
  $region6: #{light_unet_forward.1} parent=0 // loop_footer
    %s22 = sadd.s32 1, %s18
  $region7: #{light_unet_forward.1} parent=0 // loop_footer_branch
    %17 = sbr.rel target = $region3
  $region8: #{light_unet_forward.1} parent=0 // loop_exit
    _

</llo_original>
